<compile_context>
chip_gen: v7x
topology: tpu7x:2x2x1
jax: 0.10.0
libtpu: 0.0.40
codegen_flags: <defaults>
</compile_context>

<pallas_src>
import functools
import numpy as np

import jax
import jax.numpy as jnp
from jax.experimental import pallas as pl
from jax.experimental.pallas import tpu as pltpu


# ----------------------------------------------------------------------------
# Pallas kernel: fused GEMM + bias + ReLU (the single compute path per layer)
# ----------------------------------------------------------------------------
def _gemm_bias_relu_kernel(a_ref, b_ref, bias_ref, o_ref):
    acc = jnp.dot(a_ref[...], b_ref[...], preferred_element_type=jnp.float32)
    o_ref[...] = jnp.maximum(acc + bias_ref[...], 0.0).astype(o_ref.dtype)


def _round_down_128(x):
    return (x // 128) * 128


def _round_up_128(x):
    return -(-x // 128) * 128


@functools.lru_cache(maxsize=None)
def _lane_budget_bytes():
    """Per-block byte budget, gated on chip generation (smaller on v7x: 64 MiB
    physical VMEM shared differently / 2 TensorCores).  Conservative fallback."""
    try:
        info_fn = getattr(pltpu, "get_tpu_info", None)
        if info_fn is not None:
            cap = getattr(info_fn(), "vmem_capacity_bytes", None)
            if cap is not None and cap <= 64 * 1024 * 1024:
                return 2 * 1024 * 1024          # v7x-class
    except Exception:
        pass
    return 4 * 1024 * 1024                      # v5e / v6e


def _pick_tiles(R, K, C):
    # Row tile: only the Linear layers have large R (= batch); convs run in the
    # transposed orientation with R = Cout <= 64 and stay untiled.
    rm = R if R <= 256 else 256

    # Lane tile: adaptive to K (and R) so each grid step moves ~budget bytes of
    # B-operand + output instead of a fixed tiny tile for small-K layers.
    if C <= 512:
        tn = C
    else:
        per_lane = 2 * K + 2 * rm + 4           # bf16 B col + bf16 out col + f32 bias
        tn = _round_down_128(_lane_budget_bytes() // per_lane)
        tn = max(tn, 512)
        if C > 1024:
            # keep at least 2 lane blocks so v7x's second TensorCore gets work
            tn = min(tn, _round_up_128(pl.cdiv(C, 2)))
        tn = min(tn, C)
    return rm, tn


def gemm_bias_relu(a, b, bias2d, out_dtype=jnp.bfloat16):
    """relu(a @ b + bias2d).

    a      : (R, K)  bf16 (cast if needed)
    b      : (K, C)  bf16 (cast if needed)
    bias2d : (R, 1) or (1, C), applied in f32 inside the kernel
    returns: (R, C) in out_dtype (bf16 on the hot path)
    """
    R, K = a.shape
    K2, C = b.shape
    assert K == K2
    if a.dtype != jnp.bfloat16:
        a = a.astype(jnp.bfloat16)
    if b.dtype != jnp.bfloat16:
        b = b.astype(jnp.bfloat16)
    bias2d = bias2d.astype(jnp.float32)

    rm, tn = _pick_tiles(R, K, C)
    grid = (pl.cdiv(R, rm), pl.cdiv(C, tn))

    br, bc = bias2d.shape
    if bc == 1:                                   # (R,1)/(1,1): broadcast over lanes
        bias_block = (rm, 1) if br == R else (1, 1)
        bias_map = (lambda i, j: (i, 0)) if br == R else (lambda i, j: (0, 0))
    else:                                         # (1,C): broadcast over rows
        bias_block = (1, tn)
        bias_map = lambda i, j: (0, j)

    out_bytes = jnp.dtype(out_dtype).itemsize
    cost = pl.CostEstimate(
        flops=2 * R * K * C,
        transcendentals=0,
        bytes_accessed=2 * (R * K + K * C) + 4 * br * bc + out_bytes * R * C,
    )

    return pl.pallas_call(
        _gemm_bias_relu_kernel,
        out_shape=jax.ShapeDtypeStruct((R, C), out_dtype),
        grid=grid,
        in_specs=[
            pl.BlockSpec((rm, K), lambda i, j: (i, 0)),
            pl.BlockSpec((K, tn), lambda i, j: (0, j)),
            pl.BlockSpec(bias_block, bias_map),
        ],
        out_specs=pl.BlockSpec((rm, tn), lambda i, j: (i, j)),
        compiler_params=pltpu.CompilerParams(
            dimension_semantics=("parallel", "parallel")),
        cost_estimate=cost,
    )(a, b, bias2d)


# ----------------------------------------------------------------------------
# Conv / ConvTranspose via bf16 im2col (glue) + Pallas GEMM, (C,B,H,W) layout
# ----------------------------------------------------------------------------
def _im2col_cnhw(x, kh, kw, stride, padding):
    """x: (C, B, H, W) -> patches (kh*kw*C, B*Ho*Wo); rows tap-major, channel-minor."""
    C, B, H, W = x.shape
    if padding:
        x = jnp.pad(x, ((0, 0), (0, 0), (padding, padding), (padding, padding)))
    Hp, Wp = H + 2 * padding, W + 2 * padding
    Ho = (Hp - kh) // stride + 1
    Wo = (Wp - kw) // stride + 1
    taps = []
    for i in range(kh):
        for j in range(kw):
            taps.append(x[:, :, i:i + stride * Ho:stride, j:j + stride * Wo:stride])
    pat = jnp.stack(taps, axis=0).reshape(kh * kw * C, B * Ho * Wo)
    return pat, (B, Ho, Wo)


def conv2d_relu(x_cnhw, w_gemm, bias_col, kh, kw, stride, padding):
    """Conv2d + ReLU.  w_gemm: (Cout, kh*kw*Cin) bf16; bias_col: (Cout, 1) f32."""
    pat, (B, Ho, Wo) = _im2col_cnhw(x_cnhw, kh, kw, stride, padding)
    Cout = w_gemm.shape[0]
    out = gemm_bias_relu(w_gemm, pat, bias_col)        # (Cout, B*Ho*Wo) bf16, lane-dense
    return out.reshape(Cout, B, Ho, Wo)


def conv_transpose2d_relu(x_cnhw, w_gemm, bias_col, kh, kw, stride, padding,
                          output_padding):
    """ConvTranspose2d + ReLU: single lax.pad (edge + interior dilation), then conv."""
    pad_h = (kh - 1 - padding, kh - 1 - padding + output_padding, stride - 1)
    pad_w = (kw - 1 - padding, kw - 1 - padding + output_padding, stride - 1)
    xd = jax.lax.pad(x_cnhw, jnp.zeros((), x_cnhw.dtype),
                     ((0, 0, 0), (0, 0, 0), pad_h, pad_w))
    return conv2d_relu(xd, w_gemm, bias_col, kh, kw, stride=1, padding=0)


# ----------------------------------------------------------------------------
# Parameter initialization: PyTorch-shaped init, stored directly in GEMM layout
# (bf16 weights / f32 2-D biases) -> zero per-call weight transposes/flips.
# ----------------------------------------------------------------------------
def _conv_w_to_gemm(w_conv):
    # (Cout, Cin, KH, KW) -> (Cout, KH*KW*Cin), tap-major / channel-minor columns
    Cout, Cin, KH, KW = w_conv.shape
    return jnp.transpose(w_conv, (0, 2, 3, 1)).reshape(Cout, KH * KW * Cin)


def _convT_w_to_gemm(w_t):
    # torch ConvTranspose2d weight (Cin, Cout, KH, KW) -> forward-conv GEMM weight
    w_conv = jnp.transpose(w_t, (1, 0, 2, 3))[:, :, ::-1, ::-1]
    return _conv_w_to_gemm(w_conv)


def init_params(key):
    def uniform(k, shape, fan_in):
        bound = 1.0 / np.sqrt(fan_in)
        return jax.random.uniform(k, shape, jnp.float32, -bound, bound)

    keys = jax.random.split(key, 16)
    p = {}
    # encoder convs: torch layout (Cout, Cin, KH, KW)
    p["enc1_w"] = _conv_w_to_gemm(uniform(keys[0], (16, 1, 3, 3), 9)).astype(jnp.bfloat16)
    p["enc1_b"] = uniform(keys[1], (16, 1), 9)
    p["enc2_w"] = _conv_w_to_gemm(uniform(keys[2], (32, 16, 3, 3), 144)).astype(jnp.bfloat16)
    p["enc2_b"] = uniform(keys[3], (32, 1), 144)
    p["enc3_w"] = _conv_w_to_gemm(uniform(keys[4], (64, 32, 5, 5), 800)).astype(jnp.bfloat16)
    p["enc3_b"] = uniform(keys[5], (64, 1), 800)
    # linears: torch Linear weight is (out, in); store transposed (in, out)
    p["enc4_w"] = uniform(keys[6], (256, 576), 576).T.astype(jnp.bfloat16)
    p["enc4_b"] = uniform(keys[7], (1, 256), 576)
    p["dec1_w"] = uniform(keys[8], (576, 256), 256).T.astype(jnp.bfloat16)
    p["dec1_b"] = uniform(keys[9], (1, 576), 256)
    # decoder transposed convs: torch layout (Cin, Cout, KH, KW)
    p["dec2_w"] = _convT_w_to_gemm(uniform(keys[10], (64, 32, 5, 5), 1600)).astype(jnp.bfloat16)
    p["dec2_b"] = uniform(keys[11], (32, 1), 1600)
    p["dec3_w"] = _convT_w_to_gemm(uniform(keys[12], (32, 16, 3, 3), 288)).astype(jnp.bfloat16)
    p["dec3_b"] = uniform(keys[13], (16, 1), 288)
    p["dec4_w"] = _convT_w_to_gemm(uniform(keys[14], (16, 1, 3, 3), 144)).astype(jnp.bfloat16)
    p["dec4_b"] = uniform(keys[15], (1, 1), 144)
    return p


# ----------------------------------------------------------------------------
# Forward pass (mirrors K_SparseAutoencoder.forward)
# ----------------------------------------------------------------------------
@functools.partial(jax.jit, static_argnames=("k",))
def k_sparse_autoencoder_forward(params, x_nchw, k):
    ret_val = []
    B = x_nchw.shape[0]

    # Hot path is bf16 and uses (C, B, H, W) layout so each conv GEMM produces
    # a lane-dense (Cout, B*Ho*Wo) output; f32 NCHW copies are only made for
    # the ret_val list (parity with the PyTorch module), off the hot path.
    x = jnp.transpose(x_nchw.astype(jnp.bfloat16), (1, 0, 2, 3))             # (1,B,28,28)
    x = conv2d_relu(x, params["enc1_w"], params["enc1_b"], 3, 3, 2, 1)       # (16,B,14,14)
    ret_val.append(jnp.transpose(x, (1, 0, 2, 3)).astype(jnp.float32))
    x = conv2d_relu(x, params["enc2_w"], params["enc2_b"], 3, 3, 2, 1)       # (32,B,7,7)
    ret_val.append(jnp.transpose(x, (1, 0, 2, 3)).astype(jnp.float32))
    x = conv2d_relu(x, params["enc3_w"], params["enc3_b"], 5, 5, 2, 1)       # (64,B,3,3)
    x_nchw3 = jnp.transpose(x, (1, 0, 2, 3))                                 # (B,64,3,3)
    ret_val.append(x_nchw3.astype(jnp.float32))

    # x.view(-1, 64*3*3) in NCHW (C, H, W) flatten order
    x = x_nchw3.reshape(B, 64 * 3 * 3)

    # enc4: Linear(576, 256) + ReLU
    x = gemm_bias_relu(x, params["enc4_w"], params["enc4_b"])                # (B,256) bf16

    # k-sparse bottleneck: keep top-k activations per row, zero the rest.
    # TODO(synk): data-dependent per-row top-k + scatter stays in plain JAX
    # (jax.lax.top_k); no clean Pallas TPU primitive for it.
    topv, topi = jax.lax.top_k(x.astype(jnp.float32), k)
    x = jnp.zeros_like(x).at[jnp.arange(B)[:, None], topi].set(
        topv.astype(x.dtype))
    ret_val.append(x.astype(jnp.float32))

    # dec1: Linear(256, 576) + ReLU
    x = gemm_bias_relu(x, params["dec1_w"], params["dec1_b"])                # (B,576) bf16
    ret_val.append(x.astype(jnp.float32))

    # x.view(-1, 64, 3, 3) then back to (C,B,H,W)
    x = jnp.transpose(x.reshape(B, 64, 3, 3), (1, 0, 2, 3))                  # (64,B,3,3)

    x = conv_transpose2d_relu(x, params["dec2_w"], params["dec2_b"], 5, 5, 2, 1, 0)  # (32,B,7,7)
    ret_val.append(jnp.transpose(x, (1, 0, 2, 3)).astype(jnp.float32))
    x = conv_transpose2d_relu(x, params["dec3_w"], params["dec3_b"], 3, 3, 2, 1, 1)  # (16,B,14,14)
    ret_val.append(jnp.transpose(x, (1, 0, 2, 3)).astype(jnp.float32))
    x = conv_transpose2d_relu(x, params["dec4_w"], params["dec4_b"], 3, 3, 2, 1, 1)  # (1,B,28,28)
    out = jnp.transpose(x, (1, 0, 2, 3)).astype(jnp.float32)                 # NCHW f32
    ret_val.append(out)

    return out, ret_val


if __name__ == "__main__":
    key = jax.random.PRNGKey(0)
    pkey, xkey = jax.random.split(key)
    params = init_params(pkey)

    # MNIST-like input: the module hard-codes 576 = 64*3*3 -> 28x28, 1 channel
    x = jax.random.normal(xkey, (2, 1, 28, 28), dtype=jnp.float32)
    k = 10

    out, activations = k_sparse_autoencoder_forward(params, x, k)
    jax.block_until_ready(out)

    assert out.shape == (2, 1, 28, 28), out.shape
    assert activations[0].shape == (2, 16, 14, 14)
    assert activations[1].shape == (2, 32, 7, 7)
    assert activations[2].shape == (2, 64, 3, 3)
    assert activations[3].shape == (2, 256)        # sparse bottleneck
    assert activations[4].shape == (2, 576)
    assert activations[5].shape == (2, 32, 7, 7)
    assert activations[6].shape == (2, 16, 14, 14)
    assert len(activations) == 8
    # bottleneck sparsity check: at most k nonzeros per row (ties at 0 allowed)
    nnz = jnp.sum(activations[3] != 0.0, axis=1)
    assert bool(jnp.all(nnz <= k))
    assert bool(jnp.all(jnp.isfinite(out)))

    print("KERNEL_OK")
</pallas_src>

<mosaic_0001>
module attributes {stable_mosaic.version = 11 : i64} {
  func.func @_gemm_bias_relu_kernel(%arg0: i32, %arg1: i32, %arg2: memref<16x9xbf16, #tpu.memory_space<vmem>>, %arg3: memref<9x392xbf16, #tpu.memory_space<vmem>>, %arg4: memref<16x1xf32, #tpu.memory_space<vmem>>, %arg5: memref<16x392xbf16, #tpu.memory_space<vmem>>) attributes {dimension_semantics = [#tpu.dimension_semantics<parallel>, #tpu.dimension_semantics<parallel>], iteration_bounds = array<i64: 1, 1>, scalar_prefetch = 0 : i64, scratch_operands = 0 : i64, tpu.core_type = #tpu.core_type<tc>, window_params = [{transform_indices = @transform_0, window_bounds = array<i64: 16, 9>}, {transform_indices = @transform_1, window_bounds = array<i64: 9, 392>}, {transform_indices = @transform_2, window_bounds = array<i64: 16, 1>}, {transform_indices = @transform_3, window_bounds = array<i64: 16, 392>}]} {
    %c0 = arith.constant 0 : index
    %c0_0 = arith.constant 0 : index
    %0 = vector.load %arg2[%c0, %c0_0] : memref<16x9xbf16, #tpu.memory_space<vmem>>, vector<16x9xbf16>
    %c0_1 = arith.constant 0 : index
    %c0_2 = arith.constant 0 : index
    %1 = vector.load %arg3[%c0_1, %c0_2] : memref<9x392xbf16, #tpu.memory_space<vmem>>, vector<9x392xbf16>
    %cst = arith.constant dense<0.000000e+00> : vector<16x392xf32>
    %2 = tpu.matmul %0, %1, %cst {dimension_numbers = #tpu.dot_dimension_numbers<[1], [0], [0], [1], [0, 0, 1, 1], [], []>} : vector<16x9xbf16>, vector<9x392xbf16>, vector<16x392xf32> -> vector<16x392xf32>
    %c0_3 = arith.constant 0 : index
    %c0_4 = arith.constant 0 : index
    %3 = vector.load %arg4[%c0_3, %c0_4] : memref<16x1xf32, #tpu.memory_space<vmem>>, vector<16x1xf32>
    %4 = vector.broadcast %3 : vector<16x1xf32> to vector<16x392xf32>
    %5 = arith.addf %2, %4 : vector<16x392xf32>
    %cst_5 = arith.constant 0.000000e+00 : f32
    %6 = vector.broadcast %cst_5 : f32 to vector<16x392xf32>
    %7 = arith.maximumf %5, %6 : vector<16x392xf32>
    %8 = arith.truncf %7 : vector<16x392xf32> to vector<16x392xbf16>
    %c0_6 = arith.constant 0 : index
    %c0_7 = arith.constant 0 : index
    %9 = vector.load %arg5[%c0_6, %c0_7] : memref<16x392xbf16, #tpu.memory_space<vmem>>, vector<16x392xbf16>
    tpu.vector_store %arg5[%c0_6, %c0_7], %8 {strides = array<i32>} : memref<16x392xbf16, #tpu.memory_space<vmem>>, vector<16x392xbf16>,
    return
  }
  func.func @transform_0(%arg0: i32, %arg1: i32) -> (i32, i32) {
    %c0_i32 = arith.constant 0 : i32
    %c0_i32_0 = arith.constant 0 : i32
    return %arg0, %c0_i32 : i32, i32
  }
  func.func @transform_1(%arg0: i32, %arg1: i32) -> (i32, i32) {
    %c0_i32 = arith.constant 0 : i32
    %c0_i32_0 = arith.constant 0 : i32
    return %c0_i32, %arg1 : i32, i32
  }
  func.func @transform_2(%arg0: i32, %arg1: i32) -> (i32, i32) {
    %c0_i32 = arith.constant 0 : i32
    %c0_i32_0 = arith.constant 0 : i32
    return %arg0, %c0_i32 : i32, i32
  }
  func.func @transform_3(%arg0: i32, %arg1: i32) -> (i32, i32) {
    %c0_i32 = arith.constant 0 : i32
    return %arg0, %arg1 : i32, i32
  }
}

module attributes {stable_mosaic.version = 11 : i64} {
  func.func @_gemm_bias_relu_kernel(%arg0: i32, %arg1: i32, %arg2: memref<32x144xbf16, #tpu.memory_space<vmem>>, %arg3: memref<144x98xbf16, #tpu.memory_space<vmem>>, %arg4: memref<32x1xf32, #tpu.memory_space<vmem>>, %arg5: memref<32x98xbf16, #tpu.memory_space<vmem>>) attributes {dimension_semantics = [#tpu.dimension_semantics<parallel>, #tpu.dimension_semantics<parallel>], iteration_bounds = array<i64: 1, 1>, scalar_prefetch = 0 : i64, scratch_operands = 0 : i64, tpu.core_type = #tpu.core_type<tc>, window_params = [{transform_indices = @transform_0, window_bounds = array<i64: 32, 144>}, {transform_indices = @transform_1, window_bounds = array<i64: 144, 98>}, {transform_indices = @transform_2, window_bounds = array<i64: 32, 1>}, {transform_indices = @transform_3, window_bounds = array<i64: 32, 98>}]} {
    %c0 = arith.constant 0 : index
    %c0_0 = arith.constant 0 : index
    %0 = vector.load %arg2[%c0, %c0_0] : memref<32x144xbf16, #tpu.memory_space<vmem>>, vector<32x144xbf16>
    %c0_1 = arith.constant 0 : index
    %c0_2 = arith.constant 0 : index
    %1 = vector.load %arg3[%c0_1, %c0_2] : memref<144x98xbf16, #tpu.memory_space<vmem>>, vector<144x98xbf16>
    %cst = arith.constant dense<0.000000e+00> : vector<32x98xf32>
    %2 = tpu.matmul %0, %1, %cst {dimension_numbers = #tpu.dot_dimension_numbers<[1], [0], [0], [1], [0, 0, 1, 1], [], []>} : vector<32x144xbf16>, vector<144x98xbf16>, vector<32x98xf32> -> vector<32x98xf32>
    %c0_3 = arith.constant 0 : index
    %c0_4 = arith.constant 0 : index
    %3 = vector.load %arg4[%c0_3, %c0_4] : memref<32x1xf32, #tpu.memory_space<vmem>>, vector<32x1xf32>
    %4 = vector.broadcast %3 : vector<32x1xf32> to vector<32x98xf32>
    %5 = arith.addf %2, %4 : vector<32x98xf32>
    %cst_5 = arith.constant 0.000000e+00 : f32
    %6 = vector.broadcast %cst_5 : f32 to vector<32x98xf32>
    %7 = arith.maximumf %5, %6 : vector<32x98xf32>
    %8 = arith.truncf %7 : vector<32x98xf32> to vector<32x98xbf16>
    %c0_6 = arith.constant 0 : index
    %c0_7 = arith.constant 0 : index
    %9 = vector.load %arg5[%c0_6, %c0_7] : memref<32x98xbf16, #tpu.memory_space<vmem>>, vector<32x98xbf16>
    tpu.vector_store %arg5[%c0_6, %c0_7], %8 {strides = array<i32>} : memref<32x98xbf16, #tpu.memory_space<vmem>>, vector<32x98xbf16>,
    return
  }
  func.func @transform_0(%arg0: i32, %arg1: i32) -> (i32, i32) {
    %c0_i32 = arith.constant 0 : i32
    %c0_i32_0 = arith.constant 0 : i32
    return %arg0, %c0_i32 : i32, i32
  }
  func.func @transform_1(%arg0: i32, %arg1: i32) -> (i32, i32) {
    %c0_i32 = arith.constant 0 : i32
    %c0_i32_0 = arith.constant 0 : i32
    return %c0_i32, %arg1 : i32, i32
  }
  func.func @transform_2(%arg0: i32, %arg1: i32) -> (i32, i32) {
    %c0_i32 = arith.constant 0 : i32
    %c0_i32_0 = arith.constant 0 : i32
    return %arg0, %c0_i32 : i32, i32
  }
  func.func @transform_3(%arg0: i32, %arg1: i32) -> (i32, i32) {
    %c0_i32 = arith.constant 0 : i32
    return %arg0, %arg1 : i32, i32
  }
}

module attributes {stable_mosaic.version = 11 : i64} {
  func.func @_gemm_bias_relu_kernel(%arg0: i32, %arg1: i32, %arg2: memref<64x800xbf16, #tpu.memory_space<vmem>>, %arg3: memref<800x18xbf16, #tpu.memory_space<vmem>>, %arg4: memref<64x1xf32, #tpu.memory_space<vmem>>, %arg5: memref<64x18xbf16, #tpu.memory_space<vmem>>) attributes {dimension_semantics = [#tpu.dimension_semantics<parallel>, #tpu.dimension_semantics<parallel>], iteration_bounds = array<i64: 1, 1>, scalar_prefetch = 0 : i64, scratch_operands = 0 : i64, tpu.core_type = #tpu.core_type<tc>, window_params = [{transform_indices = @transform_0, window_bounds = array<i64: 64, 800>}, {transform_indices = @transform_1, window_bounds = array<i64: 800, 18>}, {transform_indices = @transform_2, window_bounds = array<i64: 64, 1>}, {transform_indices = @transform_3, window_bounds = array<i64: 64, 18>}]} {
    %c0 = arith.constant 0 : index
    %c0_0 = arith.constant 0 : index
    %0 = vector.load %arg2[%c0, %c0_0] : memref<64x800xbf16, #tpu.memory_space<vmem>>, vector<64x800xbf16>
    %c0_1 = arith.constant 0 : index
    %c0_2 = arith.constant 0 : index
    %1 = vector.load %arg3[%c0_1, %c0_2] : memref<800x18xbf16, #tpu.memory_space<vmem>>, vector<800x18xbf16>
    %cst = arith.constant dense<0.000000e+00> : vector<64x18xf32>
    %2 = tpu.matmul %0, %1, %cst {dimension_numbers = #tpu.dot_dimension_numbers<[1], [0], [0], [1], [0, 0, 1, 1], [], []>} : vector<64x800xbf16>, vector<800x18xbf16>, vector<64x18xf32> -> vector<64x18xf32>
    %c0_3 = arith.constant 0 : index
    %c0_4 = arith.constant 0 : index
    %3 = vector.load %arg4[%c0_3, %c0_4] : memref<64x1xf32, #tpu.memory_space<vmem>>, vector<64x1xf32>
    %4 = vector.broadcast %3 : vector<64x1xf32> to vector<64x18xf32>
    %5 = arith.addf %2, %4 : vector<64x18xf32>
    %cst_5 = arith.constant 0.000000e+00 : f32
    %6 = vector.broadcast %cst_5 : f32 to vector<64x18xf32>
    %7 = arith.maximumf %5, %6 : vector<64x18xf32>
    %8 = arith.truncf %7 : vector<64x18xf32> to vector<64x18xbf16>
    %c0_6 = arith.constant 0 : index
    %c0_7 = arith.constant 0 : index
    %9 = vector.load %arg5[%c0_6, %c0_7] : memref<64x18xbf16, #tpu.memory_space<vmem>>, vector<64x18xbf16>
    tpu.vector_store %arg5[%c0_6, %c0_7], %8 {strides = array<i32>} : memref<64x18xbf16, #tpu.memory_space<vmem>>, vector<64x18xbf16>,
    return
  }
  func.func @transform_0(%arg0: i32, %arg1: i32) -> (i32, i32) {
    %c0_i32 = arith.constant 0 : i32
    %c0_i32_0 = arith.constant 0 : i32
    return %arg0, %c0_i32 : i32, i32
  }
  func.func @transform_1(%arg0: i32, %arg1: i32) -> (i32, i32) {
    %c0_i32 = arith.constant 0 : i32
    %c0_i32_0 = arith.constant 0 : i32
    return %c0_i32, %arg1 : i32, i32
  }
  func.func @transform_2(%arg0: i32, %arg1: i32) -> (i32, i32) {
    %c0_i32 = arith.constant 0 : i32
    %c0_i32_0 = arith.constant 0 : i32
    return %arg0, %c0_i32 : i32, i32
  }
  func.func @transform_3(%arg0: i32, %arg1: i32) -> (i32, i32) {
    %c0_i32 = arith.constant 0 : i32
    return %arg0, %arg1 : i32, i32
  }
}

module attributes {stable_mosaic.version = 11 : i64} {
  func.func @_gemm_bias_relu_kernel(%arg0: i32, %arg1: i32, %arg2: memref<2x576xbf16, #tpu.memory_space<vmem>>, %arg3: memref<576x256xbf16, #tpu.memory_space<vmem>>, %arg4: memref<1x256xf32, #tpu.memory_space<vmem>>, %arg5: memref<2x256xbf16, #tpu.memory_space<vmem>>) attributes {dimension_semantics = [#tpu.dimension_semantics<parallel>, #tpu.dimension_semantics<parallel>], iteration_bounds = array<i64: 1, 1>, scalar_prefetch = 0 : i64, scratch_operands = 0 : i64, tpu.core_type = #tpu.core_type<tc>, window_params = [{transform_indices = @transform_0, window_bounds = array<i64: 2, 576>}, {transform_indices = @transform_1, window_bounds = array<i64: 576, 256>}, {transform_indices = @transform_2, window_bounds = array<i64: 1, 256>}, {transform_indices = @transform_3, window_bounds = array<i64: 2, 256>}]} {
    %c0 = arith.constant 0 : index
    %c0_0 = arith.constant 0 : index
    %0 = vector.load %arg2[%c0, %c0_0] : memref<2x576xbf16, #tpu.memory_space<vmem>>, vector<2x576xbf16>
    %c0_1 = arith.constant 0 : index
    %c0_2 = arith.constant 0 : index
    %1 = vector.load %arg3[%c0_1, %c0_2] : memref<576x256xbf16, #tpu.memory_space<vmem>>, vector<576x256xbf16>
    %cst = arith.constant dense<0.000000e+00> : vector<2x256xf32>
    %2 = tpu.matmul %0, %1, %cst {dimension_numbers = #tpu.dot_dimension_numbers<[1], [0], [0], [1], [0, 0, 1, 1], [], []>} : vector<2x576xbf16>, vector<576x256xbf16>, vector<2x256xf32> -> vector<2x256xf32>
    %c0_3 = arith.constant 0 : index
    %c0_4 = arith.constant 0 : index
    %3 = vector.load %arg4[%c0_3, %c0_4] : memref<1x256xf32, #tpu.memory_space<vmem>>, vector<1x256xf32>
    %4 = vector.broadcast %3 : vector<1x256xf32> to vector<2x256xf32>
    %5 = arith.addf %2, %4 : vector<2x256xf32>
    %cst_5 = arith.constant 0.000000e+00 : f32
    %6 = vector.broadcast %cst_5 : f32 to vector<2x256xf32>
    %7 = arith.maximumf %5, %6 : vector<2x256xf32>
    %8 = arith.truncf %7 : vector<2x256xf32> to vector<2x256xbf16>
    %c0_6 = arith.constant 0 : index
    %c0_7 = arith.constant 0 : index
    %9 = vector.load %arg5[%c0_6, %c0_7] : memref<2x256xbf16, #tpu.memory_space<vmem>>, vector<2x256xbf16>
    tpu.vector_store %arg5[%c0_6, %c0_7], %8 {strides = array<i32>} : memref<2x256xbf16, #tpu.memory_space<vmem>>, vector<2x256xbf16>,
    return
  }
  func.func @transform_0(%arg0: i32, %arg1: i32) -> (i32, i32) {
    %c0_i32 = arith.constant 0 : i32
    %c0_i32_0 = arith.constant 0 : i32
    return %arg0, %c0_i32 : i32, i32
  }
  func.func @transform_1(%arg0: i32, %arg1: i32) -> (i32, i32) {
    %c0_i32 = arith.constant 0 : i32
    %c0_i32_0 = arith.constant 0 : i32
    return %c0_i32, %arg1 : i32, i32
  }
  func.func @transform_2(%arg0: i32, %arg1: i32) -> (i32, i32) {
    %c0_i32 = arith.constant 0 : i32
    %c0_i32_0 = arith.constant 0 : i32
    return %c0_i32, %arg1 : i32, i32
  }
  func.func @transform_3(%arg0: i32, %arg1: i32) -> (i32, i32) {
    %c0_i32 = arith.constant 0 : i32
    return %arg0, %arg1 : i32, i32
  }
}

module attributes {stable_mosaic.version = 11 : i64} {
  func.func @_gemm_bias_relu_kernel(%arg0: i32, %arg1: i32, %arg2: memref<2x256xbf16, #tpu.memory_space<vmem>>, %arg3: memref<256x576xbf16, #tpu.memory_space<vmem>>, %arg4: memref<1x576xf32, #tpu.memory_space<vmem>>, %arg5: memref<2x576xbf16, #tpu.memory_space<vmem>>) attributes {dimension_semantics = [#tpu.dimension_semantics<parallel>, #tpu.dimension_semantics<parallel>], iteration_bounds = array<i64: 1, 1>, scalar_prefetch = 0 : i64, scratch_operands = 0 : i64, tpu.core_type = #tpu.core_type<tc>, window_params = [{transform_indices = @transform_0, window_bounds = array<i64: 2, 256>}, {transform_indices = @transform_1, window_bounds = array<i64: 256, 576>}, {transform_indices = @transform_2, window_bounds = array<i64: 1, 576>}, {transform_indices = @transform_3, window_bounds = array<i64: 2, 576>}]} {
    %c0 = arith.constant 0 : index
    %c0_0 = arith.constant 0 : index
    %0 = vector.load %arg2[%c0, %c0_0] : memref<2x256xbf16, #tpu.memory_space<vmem>>, vector<2x256xbf16>
    %c0_1 = arith.constant 0 : index
    %c0_2 = arith.constant 0 : index
    %1 = vector.load %arg3[%c0_1, %c0_2] : memref<256x576xbf16, #tpu.memory_space<vmem>>, vector<256x576xbf16>
    %cst = arith.constant dense<0.000000e+00> : vector<2x576xf32>
    %2 = tpu.matmul %0, %1, %cst {dimension_numbers = #tpu.dot_dimension_numbers<[1], [0], [0], [1], [0, 0, 1, 1], [], []>} : vector<2x256xbf16>, vector<256x576xbf16>, vector<2x576xf32> -> vector<2x576xf32>
    %c0_3 = arith.constant 0 : index
    %c0_4 = arith.constant 0 : index
    %3 = vector.load %arg4[%c0_3, %c0_4] : memref<1x576xf32, #tpu.memory_space<vmem>>, vector<1x576xf32>
    %4 = vector.broadcast %3 : vector<1x576xf32> to vector<2x576xf32>
    %5 = arith.addf %2, %4 : vector<2x576xf32>
    %cst_5 = arith.constant 0.000000e+00 : f32
    %6 = vector.broadcast %cst_5 : f32 to vector<2x576xf32>
    %7 = arith.maximumf %5, %6 : vector<2x576xf32>
    %8 = arith.truncf %7 : vector<2x576xf32> to vector<2x576xbf16>
    %c0_6 = arith.constant 0 : index
    %c0_7 = arith.constant 0 : index
    %9 = vector.load %arg5[%c0_6, %c0_7] : memref<2x576xbf16, #tpu.memory_space<vmem>>, vector<2x576xbf16>
    tpu.vector_store %arg5[%c0_6, %c0_7], %8 {strides = array<i32>} : memref<2x576xbf16, #tpu.memory_space<vmem>>, vector<2x576xbf16>,
    return
  }
  func.func @transform_0(%arg0: i32, %arg1: i32) -> (i32, i32) {
    %c0_i32 = arith.constant 0 : i32
    %c0_i32_0 = arith.constant 0 : i32
    return %arg0, %c0_i32 : i32, i32
  }
  func.func @transform_1(%arg0: i32, %arg1: i32) -> (i32, i32) {
    %c0_i32 = arith.constant 0 : i32
    %c0_i32_0 = arith.constant 0 : i32
    return %c0_i32, %arg1 : i32, i32
  }
  func.func @transform_2(%arg0: i32, %arg1: i32) -> (i32, i32) {
    %c0_i32 = arith.constant 0 : i32
    %c0_i32_0 = arith.constant 0 : i32
    return %c0_i32, %arg1 : i32, i32
  }
  func.func @transform_3(%arg0: i32, %arg1: i32) -> (i32, i32) {
    %c0_i32 = arith.constant 0 : i32
    return %arg0, %arg1 : i32, i32
  }
}

module attributes {stable_mosaic.version = 11 : i64} {
  func.func @_gemm_bias_relu_kernel(%arg0: i32, %arg1: i32, %arg2: memref<32x1600xbf16, #tpu.memory_space<vmem>>, %arg3: memref<1600x98xbf16, #tpu.memory_space<vmem>>, %arg4: memref<32x1xf32, #tpu.memory_space<vmem>>, %arg5: memref<32x98xbf16, #tpu.memory_space<vmem>>) attributes {dimension_semantics = [#tpu.dimension_semantics<parallel>, #tpu.dimension_semantics<parallel>], iteration_bounds = array<i64: 1, 1>, scalar_prefetch = 0 : i64, scratch_operands = 0 : i64, tpu.core_type = #tpu.core_type<tc>, window_params = [{transform_indices = @transform_0, window_bounds = array<i64: 32, 1600>}, {transform_indices = @transform_1, window_bounds = array<i64: 1600, 98>}, {transform_indices = @transform_2, window_bounds = array<i64: 32, 1>}, {transform_indices = @transform_3, window_bounds = array<i64: 32, 98>}]} {
    %c0 = arith.constant 0 : index
    %c0_0 = arith.constant 0 : index
    %0 = vector.load %arg2[%c0, %c0_0] : memref<32x1600xbf16, #tpu.memory_space<vmem>>, vector<32x1600xbf16>
    %c0_1 = arith.constant 0 : index
    %c0_2 = arith.constant 0 : index
    %1 = vector.load %arg3[%c0_1, %c0_2] : memref<1600x98xbf16, #tpu.memory_space<vmem>>, vector<1600x98xbf16>
    %cst = arith.constant dense<0.000000e+00> : vector<32x98xf32>
    %2 = tpu.matmul %0, %1, %cst {dimension_numbers = #tpu.dot_dimension_numbers<[1], [0], [0], [1], [0, 0, 1, 1], [], []>} : vector<32x1600xbf16>, vector<1600x98xbf16>, vector<32x98xf32> -> vector<32x98xf32>
    %c0_3 = arith.constant 0 : index
    %c0_4 = arith.constant 0 : index
    %3 = vector.load %arg4[%c0_3, %c0_4] : memref<32x1xf32, #tpu.memory_space<vmem>>, vector<32x1xf32>
    %4 = vector.broadcast %3 : vector<32x1xf32> to vector<32x98xf32>
    %5 = arith.addf %2, %4 : vector<32x98xf32>
    %cst_5 = arith.constant 0.000000e+00 : f32
    %6 = vector.broadcast %cst_5 : f32 to vector<32x98xf32>
    %7 = arith.maximumf %5, %6 : vector<32x98xf32>
    %8 = arith.truncf %7 : vector<32x98xf32> to vector<32x98xbf16>
    %c0_6 = arith.constant 0 : index
    %c0_7 = arith.constant 0 : index
    %9 = vector.load %arg5[%c0_6, %c0_7] : memref<32x98xbf16, #tpu.memory_space<vmem>>, vector<32x98xbf16>
    tpu.vector_store %arg5[%c0_6, %c0_7], %8 {strides = array<i32>} : memref<32x98xbf16, #tpu.memory_space<vmem>>, vector<32x98xbf16>,
    return
  }
  func.func @transform_0(%arg0: i32, %arg1: i32) -> (i32, i32) {
    %c0_i32 = arith.constant 0 : i32
    %c0_i32_0 = arith.constant 0 : i32
    return %arg0, %c0_i32 : i32, i32
  }
  func.func @transform_1(%arg0: i32, %arg1: i32) -> (i32, i32) {
    %c0_i32 = arith.constant 0 : i32
    %c0_i32_0 = arith.constant 0 : i32
    return %c0_i32, %arg1 : i32, i32
  }
  func.func @transform_2(%arg0: i32, %arg1: i32) -> (i32, i32) {
    %c0_i32 = arith.constant 0 : i32
    %c0_i32_0 = arith.constant 0 : i32
    return %arg0, %c0_i32 : i32, i32
  }
  func.func @transform_3(%arg0: i32, %arg1: i32) -> (i32, i32) {
    %c0_i32 = arith.constant 0 : i32
    return %arg0, %arg1 : i32, i32
  }
}

module attributes {stable_mosaic.version = 11 : i64} {
  func.func @_gemm_bias_relu_kernel(%arg0: i32, %arg1: i32, %arg2: memref<16x288xbf16, #tpu.memory_space<vmem>>, %arg3: memref<288x392xbf16, #tpu.memory_space<vmem>>, %arg4: memref<16x1xf32, #tpu.memory_space<vmem>>, %arg5: memref<16x392xbf16, #tpu.memory_space<vmem>>) attributes {dimension_semantics = [#tpu.dimension_semantics<parallel>, #tpu.dimension_semantics<parallel>], iteration_bounds = array<i64: 1, 1>, scalar_prefetch = 0 : i64, scratch_operands = 0 : i64, tpu.core_type = #tpu.core_type<tc>, window_params = [{transform_indices = @transform_0, window_bounds = array<i64: 16, 288>}, {transform_indices = @transform_1, window_bounds = array<i64: 288, 392>}, {transform_indices = @transform_2, window_bounds = array<i64: 16, 1>}, {transform_indices = @transform_3, window_bounds = array<i64: 16, 392>}]} {
    %c0 = arith.constant 0 : index
    %c0_0 = arith.constant 0 : index
    %0 = vector.load %arg2[%c0, %c0_0] : memref<16x288xbf16, #tpu.memory_space<vmem>>, vector<16x288xbf16>
    %c0_1 = arith.constant 0 : index
    %c0_2 = arith.constant 0 : index
    %1 = vector.load %arg3[%c0_1, %c0_2] : memref<288x392xbf16, #tpu.memory_space<vmem>>, vector<288x392xbf16>
    %cst = arith.constant dense<0.000000e+00> : vector<16x392xf32>
    %2 = tpu.matmul %0, %1, %cst {dimension_numbers = #tpu.dot_dimension_numbers<[1], [0], [0], [1], [0, 0, 1, 1], [], []>} : vector<16x288xbf16>, vector<288x392xbf16>, vector<16x392xf32> -> vector<16x392xf32>
    %c0_3 = arith.constant 0 : index
    %c0_4 = arith.constant 0 : index
    %3 = vector.load %arg4[%c0_3, %c0_4] : memref<16x1xf32, #tpu.memory_space<vmem>>, vector<16x1xf32>
    %4 = vector.broadcast %3 : vector<16x1xf32> to vector<16x392xf32>
    %5 = arith.addf %2, %4 : vector<16x392xf32>
    %cst_5 = arith.constant 0.000000e+00 : f32
    %6 = vector.broadcast %cst_5 : f32 to vector<16x392xf32>
    %7 = arith.maximumf %5, %6 : vector<16x392xf32>
    %8 = arith.truncf %7 : vector<16x392xf32> to vector<16x392xbf16>
    %c0_6 = arith.constant 0 : index
    %c0_7 = arith.constant 0 : index
    %9 = vector.load %arg5[%c0_6, %c0_7] : memref<16x392xbf16, #tpu.memory_space<vmem>>, vector<16x392xbf16>
    tpu.vector_store %arg5[%c0_6, %c0_7], %8 {strides = array<i32>} : memref<16x392xbf16, #tpu.memory_space<vmem>>, vector<16x392xbf16>,
    return
  }
  func.func @transform_0(%arg0: i32, %arg1: i32) -> (i32, i32) {
    %c0_i32 = arith.constant 0 : i32
    %c0_i32_0 = arith.constant 0 : i32
    return %arg0, %c0_i32 : i32, i32
  }
  func.func @transform_1(%arg0: i32, %arg1: i32) -> (i32, i32) {
    %c0_i32 = arith.constant 0 : i32
    %c0_i32_0 = arith.constant 0 : i32
    return %c0_i32, %arg1 : i32, i32
  }
  func.func @transform_2(%arg0: i32, %arg1: i32) -> (i32, i32) {
    %c0_i32 = arith.constant 0 : i32
    %c0_i32_0 = arith.constant 0 : i32
    return %arg0, %c0_i32 : i32, i32
  }
  func.func @transform_3(%arg0: i32, %arg1: i32) -> (i32, i32) {
    %c0_i32 = arith.constant 0 : i32
    return %arg0, %arg1 : i32, i32
  }
}

module attributes {stable_mosaic.version = 11 : i64} {
  func.func @_gemm_bias_relu_kernel(%arg0: i32, %arg1: i32, %arg2: memref<1x144xbf16, #tpu.memory_space<vmem>>, %arg3: memref<144x896xbf16, #tpu.memory_space<vmem>>, %arg4: memref<1x1xf32, #tpu.memory_space<vmem>>, %arg5: memref<1x896xbf16, #tpu.memory_space<vmem>>) attributes {dimension_semantics = [#tpu.dimension_semantics<parallel>, #tpu.dimension_semantics<parallel>], iteration_bounds = array<i64: 1, 2>, scalar_prefetch = 0 : i64, scratch_operands = 0 : i64, tpu.core_type = #tpu.core_type<tc>, window_params = [{transform_indices = @transform_0, window_bounds = array<i64: 1, 144>}, {transform_indices = @transform_1, window_bounds = array<i64: 144, 896>}, {transform_indices = @transform_2, window_bounds = array<i64: 1, 1>}, {transform_indices = @transform_3, window_bounds = array<i64: 1, 896>}]} {
    %c0 = arith.constant 0 : index
    %c0_0 = arith.constant 0 : index
    %0 = vector.load %arg2[%c0, %c0_0] : memref<1x144xbf16, #tpu.memory_space<vmem>>, vector<1x144xbf16>
    %c0_1 = arith.constant 0 : index
    %c0_2 = arith.constant 0 : index
    %1 = vector.load %arg3[%c0_1, %c0_2] : memref<144x896xbf16, #tpu.memory_space<vmem>>, vector<144x896xbf16>
    %cst = arith.constant dense<0.000000e+00> : vector<1x896xf32>
    %2 = tpu.matmul %0, %1, %cst {dimension_numbers = #tpu.dot_dimension_numbers<[1], [0], [0], [1], [0, 0, 1, 1], [], []>} : vector<1x144xbf16>, vector<144x896xbf16>, vector<1x896xf32> -> vector<1x896xf32>
    %c0_3 = arith.constant 0 : index
    %c0_4 = arith.constant 0 : index
    %3 = vector.load %arg4[%c0_3, %c0_4] : memref<1x1xf32, #tpu.memory_space<vmem>>, vector<1x1xf32>
    %4 = vector.broadcast %3 : vector<1x1xf32> to vector<1x896xf32>
    %5 = arith.addf %2, %4 : vector<1x896xf32>
    %cst_5 = arith.constant 0.000000e+00 : f32
    %6 = vector.broadcast %cst_5 : f32 to vector<1x896xf32>
    %7 = arith.maximumf %5, %6 : vector<1x896xf32>
    %8 = arith.truncf %7 : vector<1x896xf32> to vector<1x896xbf16>
    %c0_6 = arith.constant 0 : index
    %c0_7 = arith.constant 0 : index
    %9 = vector.load %arg5[%c0_6, %c0_7] : memref<1x896xbf16, #tpu.memory_space<vmem>>, vector<1x896xbf16>
    tpu.vector_store %arg5[%c0_6, %c0_7], %8 {strides = array<i32>} : memref<1x896xbf16, #tpu.memory_space<vmem>>, vector<1x896xbf16>,
    return
  }
  func.func @transform_0(%arg0: i32, %arg1: i32) -> (i32, i32) {
    %c0_i32 = arith.constant 0 : i32
    %c0_i32_0 = arith.constant 0 : i32
    return %arg0, %c0_i32 : i32, i32
  }
  func.func @transform_1(%arg0: i32, %arg1: i32) -> (i32, i32) {
    %c0_i32 = arith.constant 0 : i32
    %c0_i32_0 = arith.constant 0 : i32
    return %c0_i32, %arg1 : i32, i32
  }
  func.func @transform_2(%arg0: i32, %arg1: i32) -> (i32, i32) {
    %c0_i32 = arith.constant 0 : i32
    %c0_i32_0 = arith.constant 0 : i32
    return %arg0, %c0_i32 : i32, i32
  }
  func.func @transform_3(%arg0: i32, %arg1: i32) -> (i32, i32) {
    %c0_i32 = arith.constant 0 : i32
    return %arg0, %arg1 : i32, i32
  }
}

</mosaic_0001>

<llo_original>
// kernel: k_sparse_autoencoder_forward.8
$region0: #{k_sparse_autoencoder_forward.8}
  #allocation0 [shape = 'u32[]', space=smem, size = 0x4, offset = 0x4, fixed_abs, tag = 'smem constant byte address 0x4 - core index']
  #allocation1 [shape = 'u32[144,128]{1,0:T(1,128)}', space=vmem, size = 0x12000, scoped, tag = 'internal scratch']
  %s0 = inlined_call_operand.hbm [shape: bf16[16,9], index: 0, kind: input, shape index: {}]
  %s1 = inlined_call_operand.vmem [shape: bf16[9,392], index: 1, kind: input, shape index: {}]
  %s2 = inlined_call_operand.vmem [shape: f32[16,1], index: 2, kind: input, shape index: {}]
  %s3 = inlined_call_operand.vmem [shape: bf16[16,392], index: 3, kind: output, shape index: {}]
  %s4 = sld [smem:[#allocation0]]
  $region26: #{k_sparse_autoencoder_forward.8} parent=0
    _
  %s6 = ssub.s32 1, %s4
  %s7 = scalar_select 0, %s6, %s4
  $region1: #{k_sparse_autoencoder_forward.8} parent=0
    #allocation2 [shape = 'u8[4096]{0}', space=vmem, size = 0x1000, scoped, tag = 'input window, operand 0, single buffered']
    #allocation3 [shape = 's32[1]{0}', space=sflag, size = 0x4, scoped, tag = 'scoped memory for k_sparse_autoencoder_forward.8']
    %8 = vsyncpa [#allocation3], 0
    // Predicated region
    $region2: #{k_sparse_autoencoder_forward.8} parent=1 // pred_check
      _
    $region3: #{k_sparse_autoencoder_forward.8} parent=1 // pred_check_branch
      %10 = sbr.rel (0) target = $region5
    $region4: #{k_sparse_autoencoder_forward.8} parent=1 // pred_region
      %s12 = ssub.s32 128, 128
      %13 = vsyncadd [#allocation3], %s12
      %s14 = sshll.u32 [#allocation2], 4
      %s15 = int_to_ptr.vmem [resolvable:$true] %s14
      %20 = dma.hbm_to_vmem [thread:$0]  %s0, 128, %s15, [#allocation3], 64, 64, 4
    $region5: #{k_sparse_autoencoder_forward.8} parent=1 // pred_fallthru
      _
    // Predicated region
    $region6: #{k_sparse_autoencoder_forward.8} parent=1 // pred_check
      _
    $region7: #{k_sparse_autoencoder_forward.8} parent=1 // pred_check_branch
      %22 = sbr.rel (0) target = $region9
    $region8: #{k_sparse_autoencoder_forward.8} parent=1 // pred_region
      _
    $region9: #{k_sparse_autoencoder_forward.8} parent=1 // pred_fallthru
      _
    // Predicated region
    $region10: #{k_sparse_autoencoder_forward.8} parent=1 // pred_check
      _
    $region11: #{k_sparse_autoencoder_forward.8} parent=1 // pred_check_branch
      %24 = sbr.rel (0) target = $region13
    $region12: #{k_sparse_autoencoder_forward.8} parent=1 // pred_region
      _
    $region13: #{k_sparse_autoencoder_forward.8} parent=1 // pred_fallthru
      _
    // Predicated region
    $region14: #{k_sparse_autoencoder_forward.8} parent=1 // pred_check
      _
    $region15: #{k_sparse_autoencoder_forward.8} parent=1 // pred_check_branch
      %26 = sbr.rel (0) target = $region17
    $region16: #{k_sparse_autoencoder_forward.8} parent=1 // pred_region
      %27 = dma.done [#allocation3], 128
    $region17: #{k_sparse_autoencoder_forward.8} parent=1 // pred_fallthru
      _
    %v29 = vld [vmem:[#allocation2] sm:$0xf]
    %v30 = vld [vmem:[#allocation2 + $0x4] sm:$0xf]
    %v31 = vld [vmem:[%s1] sm:$0xff]
    %v32 = vld [vmem:[%s1 + $0x8] sm:$0xff]
    %v33 = vld [vmem:[%s1 + $0x10] sm:$0x11]
    %v34 = vld [vmem:[%s1 + $0x18] sm:$0x11]
    %v35 = vld [vmem:[%s2] sm:$0xff]
    %v36 = vld [vmem:[%s2 + $0x8] sm:$0xff]
    %38 = vset.pattern.permute.xlu0 0
    %39 = vperm.xlu0 %38, %v35
    %v40 = vpop.permute.xlu0 %39
    %43 = vset.pattern.permute.xlu0 0
    %44 = vperm.xlu0 %43, %v36
    %v45 = vpop.permute.xlu0 %44
    %v49 = vunpack.c.l.b16 %v29
    %v50 = vunpack.c.l.b16 %v30
    %v51 = vpack.c.b16 %v50, %v49
    %v56 = vunpack.c.l.b16 %v31
    %v57 = vunpack.c.h.b16 %v31
    %v58 = vunpack.c.l.b16 %v32
    %v59 = vunpack.c.h.b16 %v32
    %v60 = vunpack.c.l.b16 %v33
    %v61 = vunpack.c.h.b16 %v33
    %v62 = vunpack.c.l.b16 %v34
    %v63 = vunpack.c.h.b16 %v34
    %v64 = vpack.c.b16 %v60, %v56
    %v65 = vpack.c.b16 %v61, %v57
    %v66 = vpack.c.b16 %v62, %v58
    %v67 = vpack.c.b16 %v63, %v59
    %vm68 = vcmask 72704
    %v70 = vsel %vm68, %v51, 0
    %vm72 = vcmask 1043456
    %vm73 = vcmask 1044480
    %v74 = vsel %vm72, 4294967295, 65535
    %v75 = vsel %vm73, %v74, 0
    %v77 = vand.u32 %v64, %v75
    %v80 = vand.u32 %v65, %v75
    %v83 = vand.u32 %v66, %v75
    %v86 = vand.u32 %v67, %v75
    %88 = vmatprep.subr.bf16.mxu0 %v80
    %89 = vmatpush1.bf16.msra.mxu0 %v77
    %90 = vmatprep.subr.bf16.mxu0 0
    %91 = vmatpush1.bf16.msra.mxu0 0
    %92 = vmatprep.subr.bf16.mxu0 0
    %93 = vmatpush1.bf16.msra.mxu0 0
    %94 = vmatprep.subr.bf16.mxu0 0
    %95 = vmatpush1.bf16.msra.mxu0 0
    %96 = vmatprep.subr.bf16.mxu0 0
    %97 = vmatpush1.bf16.msra.mxu0 0
    %98 = vmatprep.subr.bf16.mxu0 0
    %99 = vmatpush1.bf16.msra.mxu0 0
    %100 = vmatprep.subr.bf16.mxu0 0
    %101 = vmatpush1.bf16.msra.mxu0 0
    %102 = vmatprep.subr.bf16.mxu0 0
    %103 = vmatpush1.bf16.msra.mxu0 0
    %104 = vmatprep.subr.bf16.mxu0 0
    %105 = vmatpush1.bf16.msra.mxu0 0
    %106 = vmatprep.subr.bf16.mxu0 0
    %107 = vmatpush1.bf16.msra.mxu0 0
    %108 = vmatprep.subr.bf16.mxu0 0
    %109 = vmatpush1.bf16.msra.mxu0 0
    %110 = vmatprep.subr.bf16.mxu0 0
    %111 = vmatpush1.bf16.msra.mxu0 0
    %112 = vmatprep.subr.bf16.mxu0 0
    %113 = vmatpush1.bf16.msra.mxu0 0
    %114 = vmatprep.subr.bf16.mxu0 0
    %115 = vmatpush1.bf16.msra.mxu0 0
    %116 = vmatprep.subr.bf16.mxu0 0
    %117 = vmatpush1.bf16.msra.mxu0 0
    %118 = vmatprep.subr.bf16.mxu0 0
    %119 = vmatpush1.bf16.msra.mxu0 0
    %120 = vmatprep.mubr.bf16.mxu0 0
    %121 = vmatmul.mubr.bf16.gmra.mrb[0].mxu0 %v70
    %v122 = vpop.f32.mrb[0].mxu0
    %v123 = vadd.f32 %v40, %v122
    %v124 = vpop.f32.mrb[0].mxu0
    %v125 = vadd.f32 %v40, %v124
    %v126 = vpop.f32.mrb[0].mxu0
    %v127 = vadd.f32 %v45, %v126
    %v128 = vpop.f32.mrb[0].mxu0
    %v129 = vadd.f32 %v45, %v128
    %130 = vdwg.mxu0
    %131 = vmatprep.subr.bf16.mxu0 %v86
    %132 = vmatpush1.bf16.msra.mxu0 %v83
    %133 = vmatprep.subr.bf16.mxu0 0
    %134 = vmatpush1.bf16.msra.mxu0 0
    %135 = vmatprep.subr.bf16.mxu0 0
    %136 = vmatpush1.bf16.msra.mxu0 0
    %137 = vmatprep.subr.bf16.mxu0 0
    %138 = vmatpush1.bf16.msra.mxu0 0
    %139 = vmatprep.subr.bf16.mxu0 0
    %140 = vmatpush1.bf16.msra.mxu0 0
    %141 = vmatprep.subr.bf16.mxu0 0
    %142 = vmatpush1.bf16.msra.mxu0 0
    %143 = vmatprep.subr.bf16.mxu0 0
    %144 = vmatpush1.bf16.msra.mxu0 0
    %145 = vmatprep.subr.bf16.mxu0 0
    %146 = vmatpush1.bf16.msra.mxu0 0
    %147 = vmatprep.subr.bf16.mxu0 0
    %148 = vmatpush1.bf16.msra.mxu0 0
    %149 = vmatprep.subr.bf16.mxu0 0
    %150 = vmatpush1.bf16.msra.mxu0 0
    %151 = vmatprep.subr.bf16.mxu0 0
    %152 = vmatpush1.bf16.msra.mxu0 0
    %153 = vmatprep.subr.bf16.mxu0 0
    %154 = vmatpush1.bf16.msra.mxu0 0
    %155 = vmatprep.subr.bf16.mxu0 0
    %156 = vmatpush1.bf16.msra.mxu0 0
    %157 = vmatprep.subr.bf16.mxu0 0
    %158 = vmatpush1.bf16.msra.mxu0 0
    %159 = vmatprep.subr.bf16.mxu0 0
    %160 = vmatpush1.bf16.msra.mxu0 0
    %161 = vmatprep.subr.bf16.mxu0 0
    %162 = vmatpush1.bf16.msra.mxu0 0
    %163 = vmatprep.mubr.bf16.mxu0 0
    %164 = vmatmul.mubr.bf16.gmra.mrb[0].mxu0 %v70
    %v165 = vpop.f32.mrb[0].mxu0
    %v166 = vadd.f32 %v40, %v165
    %v167 = vpop.f32.mrb[0].mxu0
    %v168 = vadd.f32 %v40, %v167
    %v169 = vpop.f32.mrb[0].mxu0
    %v170 = vadd.f32 %v45, %v169
    %v171 = vpop.f32.mrb[0].mxu0
    %v172 = vadd.f32 %v45, %v171
    %173 = vdwg.mxu0
    %v174 = vmax.f32 %v123, 0.0
    %v175 = vmax.f32 %v125, 0.0
    %v176 = vmax.f32 %v166, 0.0
    %v177 = vmax.f32 %v168, 0.0
    %v178 = vmax.f32 %v127, 0.0
    %v179 = vmax.f32 %v129, 0.0
    %v180 = vmax.f32 %v170, 0.0
    %v181 = vmax.f32 %v172, 0.0
    %v182 = vpack.c.bf16 %v178, %v174
    %v183 = vpack.c.bf16 %v179, %v175
    %v184 = vpack.c.bf16 %v180, %v176
    %v185 = vpack.c.bf16 %v181, %v177
    %v190 = vunpack.c.l.b16 %v182
    %v191 = vunpack.c.l.b16 %v183
    %v192 = vunpack.c.l.b16 %v184
    %v193 = vunpack.c.l.b16 %v185
    %v194 = vunpack.c.h.b16 %v182
    %v195 = vunpack.c.h.b16 %v183
    %v196 = vunpack.c.h.b16 %v184
    %v197 = vunpack.c.h.b16 %v185
    %v198 = vpack.c.b16 %v191, %v190
    %v199 = vpack.c.b16 %v193, %v192
    %v200 = vpack.c.b16 %v195, %v194
    %v201 = vpack.c.b16 %v197, %v196
    %206 = vst [vmem:[%s3] sm:$0xff] %v198
    %vm207 = vcmask 64516
    %vm208 = vmor %vm207, %vm72
    %209 = vst.msk [vmem:[%s3 + $0x8] sm:$0xff] %vm208, %v199
    %210 = vst [vmem:[%s3 + $0x10] sm:$0xff] %v200
    %211 = vst.msk [vmem:[%s3 + $0x18] sm:$0xff] %vm208, %v201
    // Predicated region
    $region18: #{k_sparse_autoencoder_forward.8} parent=1 // pred_check
      _
    $region19: #{k_sparse_autoencoder_forward.8} parent=1 // pred_check_branch
      %213 = sbr.rel (0) target = $region21
    $region20: #{k_sparse_autoencoder_forward.8} parent=1 // pred_region
      _
    $region21: #{k_sparse_autoencoder_forward.8} parent=1 // pred_fallthru
      _
    // Predicated region
    $region22: #{k_sparse_autoencoder_forward.8} parent=1 // pred_check
      _
    $region23: #{k_sparse_autoencoder_forward.8} parent=1 // pred_check_branch
      %215 = sbr.rel (0) target = $region25
    $region24: #{k_sparse_autoencoder_forward.8} parent=1 // pred_region
      _
    $region25: #{k_sparse_autoencoder_forward.8} parent=1 // pred_fallthru
      _
    %216 = vsyncpa [#allocation3], 1

// kernel: k_sparse_autoencoder_forward.9
$region0: #{k_sparse_autoencoder_forward.9}
  #allocation0 [shape = 'u32[]', space=smem, size = 0x4, offset = 0x4, fixed_abs, tag = 'smem constant byte address 0x4 - core index']
  #allocation1 [shape = 'u32[144,128]{1,0:T(1,128)}', space=vmem, size = 0x12000, scoped, tag = 'internal scratch']
  %s0 = inlined_call_operand.hbm [shape: bf16[32,144], index: 0, kind: input, shape index: {}]
  %s1 = inlined_call_operand.vmem [shape: bf16[144,98], index: 1, kind: input, shape index: {}]
  %s2 = inlined_call_operand.vmem [shape: f32[32,1], index: 2, kind: input, shape index: {}]
  %s3 = inlined_call_operand.vmem [shape: bf16[32,98], index: 3, kind: output, shape index: {}]
  %s4 = sld [smem:[#allocation0]]
  $region26: #{k_sparse_autoencoder_forward.9} parent=0
    _
  %s6 = ssub.s32 1, %s4
  %s7 = scalar_select 0, %s6, %s4
  $region1: #{k_sparse_autoencoder_forward.9} parent=0
    #allocation2 [shape = 'u8[16384]{0}', space=vmem, size = 0x4000, scoped, tag = 'input window, operand 0, single buffered']
    #allocation3 [shape = 's32[1]{0}', space=sflag, size = 0x4, scoped, tag = 'scoped memory for k_sparse_autoencoder_forward.9']
    %8 = vsyncpa [#allocation3], 0
    // Predicated region
    $region2: #{k_sparse_autoencoder_forward.9} parent=1 // pred_check
      _
    $region3: #{k_sparse_autoencoder_forward.9} parent=1 // pred_check_branch
      %10 = sbr.rel (0) target = $region5
    $region4: #{k_sparse_autoencoder_forward.9} parent=1 // pred_region
      %s12 = ssub.s32 512, 512
      %13 = vsyncadd [#allocation3], %s12
      %s14 = sshll.u32 [#allocation2], 4
      %s15 = int_to_ptr.vmem [resolvable:$true] %s14
      %20 = dma.hbm_to_vmem [thread:$0]  %s0, 512, %s15, [#allocation3], 128, 128, 8
    $region5: #{k_sparse_autoencoder_forward.9} parent=1 // pred_fallthru
      _
    // Predicated region
    $region6: #{k_sparse_autoencoder_forward.9} parent=1 // pred_check
      _
    $region7: #{k_sparse_autoencoder_forward.9} parent=1 // pred_check_branch
      %22 = sbr.rel (0) target = $region9
    $region8: #{k_sparse_autoencoder_forward.9} parent=1 // pred_region
      _
    $region9: #{k_sparse_autoencoder_forward.9} parent=1 // pred_fallthru
      _
    // Predicated region
    $region10: #{k_sparse_autoencoder_forward.9} parent=1 // pred_check
      _
    $region11: #{k_sparse_autoencoder_forward.9} parent=1 // pred_check_branch
      %24 = sbr.rel (0) target = $region13
    $region12: #{k_sparse_autoencoder_forward.9} parent=1 // pred_region
      _
    $region13: #{k_sparse_autoencoder_forward.9} parent=1 // pred_fallthru
      _
    // Predicated region
    $region14: #{k_sparse_autoencoder_forward.9} parent=1 // pred_check
      _
    $region15: #{k_sparse_autoencoder_forward.9} parent=1 // pred_check_branch
      %26 = sbr.rel (0) target = $region17
    $region16: #{k_sparse_autoencoder_forward.9} parent=1 // pred_region
      %27 = dma.done [#allocation3], 512
    $region17: #{k_sparse_autoencoder_forward.9} parent=1 // pred_fallthru
      _
    %v29 = vld [vmem:[#allocation2] sm:$0xff]
    %v30 = vld [vmem:[#allocation2 + $0x8] sm:$0xff]
    %v31 = vld [vmem:[#allocation2 + $0x10] sm:$0xff]
    %v32 = vld [vmem:[#allocation2 + $0x18] sm:$0xff]
    %v33 = vld [vmem:[%s1] sm:$0xf]
    %v34 = vld [vmem:[%s1 + $0x4] sm:$0xf]
    %v35 = vld [vmem:[%s1 + $0x8] sm:$0xf]
    %v36 = vld [vmem:[%s1 + $0xc] sm:$0xf]
    %v37 = vld [vmem:[%s1 + $0x10] sm:$0xf]
    %v38 = vld [vmem:[%s1 + $0x14] sm:$0xf]
    %v39 = vld [vmem:[%s1 + $0x18] sm:$0xf]
    %v40 = vld [vmem:[%s1 + $0x1c] sm:$0xf]
    %v41 = vld [vmem:[%s1 + $0x20] sm:$0xf]
    %v42 = vld [vmem:[%s1 + $0x24] sm:$0xf]
    %v43 = vld [vmem:[%s1 + $0x28] sm:$0xf]
    %v44 = vld [vmem:[%s1 + $0x2c] sm:$0xf]
    %v45 = vld [vmem:[%s1 + $0x30] sm:$0xf]
    %v46 = vld [vmem:[%s1 + $0x34] sm:$0xf]
    %v47 = vld [vmem:[%s1 + $0x38] sm:$0xf]
    %v48 = vld [vmem:[%s1 + $0x3c] sm:$0xf]
    %v49 = vld [vmem:[%s1 + $0x40] sm:$0xf]
    %v50 = vld [vmem:[%s1 + $0x44] sm:$0xf]
    %v51 = vld [vmem:[%s2] sm:$0xff]
    %v52 = vld [vmem:[%s2 + $0x8] sm:$0xff]
    %v53 = vld [vmem:[%s2 + $0x10] sm:$0xff]
    %v54 = vld [vmem:[%s2 + $0x18] sm:$0xff]
    %56 = vset.pattern.permute.xlu0 0
    %57 = vperm.xlu0 %56, %v51
    %v58 = vpop.permute.xlu0 %57
    %61 = vset.pattern.permute.xlu0 0
    %62 = vperm.xlu0 %61, %v52
    %v63 = vpop.permute.xlu0 %62
    %66 = vset.pattern.permute.xlu0 0
    %67 = vperm.xlu0 %66, %v53
    %v68 = vpop.permute.xlu0 %67
    %71 = vset.pattern.permute.xlu0 0
    %72 = vperm.xlu0 %71, %v54
    %v73 = vpop.permute.xlu0 %72
    %v79 = vunpack.c.l.b16 %v29
    %v80 = vunpack.c.h.b16 %v29
    %v81 = vunpack.c.l.b16 %v30
    %v82 = vunpack.c.h.b16 %v30
    %v83 = vunpack.c.l.b16 %v31
    %v84 = vunpack.c.h.b16 %v31
    %v85 = vunpack.c.l.b16 %v32
    %v86 = vunpack.c.h.b16 %v32
    %v87 = vpack.c.b16 %v81, %v79
    %v88 = vpack.c.b16 %v82, %v80
    %v89 = vpack.c.b16 %v85, %v83
    %v90 = vpack.c.b16 %v86, %v84
    %v111 = vunpack.c.l.b16 %v33
    %v112 = vunpack.c.l.b16 %v34
    %v113 = vunpack.c.l.b16 %v35
    %v114 = vunpack.c.l.b16 %v36
    %v115 = vunpack.c.l.b16 %v37
    %v116 = vunpack.c.l.b16 %v38
    %v117 = vunpack.c.l.b16 %v39
    %v118 = vunpack.c.l.b16 %v40
    %v119 = vunpack.c.l.b16 %v41
    %v120 = vunpack.c.l.b16 %v42
    %v121 = vunpack.c.l.b16 %v43
    %v122 = vunpack.c.l.b16 %v44
    %v123 = vunpack.c.l.b16 %v45
    %v124 = vunpack.c.l.b16 %v46
    %v125 = vunpack.c.l.b16 %v47
    %v126 = vunpack.c.l.b16 %v48
    %v127 = vunpack.c.l.b16 %v49
    %v128 = vunpack.c.l.b16 %v50
    %v129 = vpack.c.b16 %v112, %v111
    %v130 = vpack.c.b16 %v114, %v113
    %v131 = vpack.c.b16 %v116, %v115
    %v132 = vpack.c.b16 %v118, %v117
    %v133 = vpack.c.b16 %v120, %v119
    %v134 = vpack.c.b16 %v122, %v121
    %v135 = vpack.c.b16 %v124, %v123
    %v136 = vpack.c.b16 %v126, %v125
    %v137 = vpack.c.b16 %v128, %v127
    %vm147 = vcmask 130048
    %v149 = vsel %vm147, %v88, 0
    %v152 = vsel %vm147, %v90, 0
    %154 = vmatprep.subr.bf16.mxu0 0
    %155 = vmatpush1.bf16.msra.mxu0 %v129
    %156 = vmatprep.subr.bf16.mxu0 0
    %157 = vmatpush1.bf16.msra.mxu0 %v130
    %158 = vmatprep.subr.bf16.mxu0 0
    %159 = vmatpush1.bf16.msra.mxu0 %v131
    %160 = vmatprep.subr.bf16.mxu0 0
    %161 = vmatpush1.bf16.msra.mxu0 %v132
    %162 = vmatprep.subr.bf16.mxu0 0
    %163 = vmatpush1.bf16.msra.mxu0 %v133
    %164 = vmatprep.subr.bf16.mxu0 0
    %165 = vmatpush1.bf16.msra.mxu0 %v134
    %166 = vmatprep.subr.bf16.mxu0 0
    %167 = vmatpush1.bf16.msra.mxu0 %v135
    %168 = vmatprep.subr.bf16.mxu0 0
    %169 = vmatpush1.bf16.msra.mxu0 %v136
    %170 = vmatprep.subr.bf16.mxu0 0
    %171 = vmatpush1.bf16.msra.mxu0 %v137
    %172 = vmatprep.subr.bf16.mxu0 0
    %173 = vmatpush1.bf16.msra.mxu0 0
    %174 = vmatprep.subr.bf16.mxu0 0
    %175 = vmatpush1.bf16.msra.mxu0 0
    %176 = vmatprep.subr.bf16.mxu0 0
    %177 = vmatpush1.bf16.msra.mxu0 0
    %178 = vmatprep.subr.bf16.mxu0 0
    %179 = vmatpush1.bf16.msra.mxu0 0
    %180 = vmatprep.subr.bf16.mxu0 0
    %181 = vmatpush1.bf16.msra.mxu0 0
    %182 = vmatprep.subr.bf16.mxu0 0
    %183 = vmatpush1.bf16.msra.mxu0 0
    %184 = vmatprep.subr.bf16.mxu0 0
    %185 = vmatpush1.bf16.msra.mxu0 0
    %186 = vmatprep.mubr.bf16.mxu0 %v149
    %187 = vmatmul.mubr.bf16.gmra.mrb[0].mxu0 %v87
    %v188 = vpop.f32.mrb[0].mxu0
    %v189 = vadd.f32 %v58, %v188
    %v190 = vpop.f32.mrb[0].mxu0
    %v191 = vpop.f32.mrb[0].mxu0
    %v192 = vadd.f32 %v63, %v191
    %v193 = vpop.f32.mrb[0].mxu0
    %194 = vmatprep.mubr.bf16.mxu0 %v152
    %195 = vmatmul.mubr.bf16.gmra.mrb[0].mxu0 %v89
    %v196 = vpop.f32.mrb[0].mxu0
    %v197 = vadd.f32 %v68, %v196
    %v198 = vpop.f32.mrb[0].mxu0
    %v199 = vpop.f32.mrb[0].mxu0
    %v200 = vadd.f32 %v73, %v199
    %v201 = vpop.f32.mrb[0].mxu0
    %202 = vdwg.mxu0
    %v203 = vmax.f32 %v189, 0.0
    %v204 = vmax.f32 %v192, 0.0
    %v205 = vmax.f32 %v197, 0.0
    %v206 = vmax.f32 %v200, 0.0
    %v207 = vpack.c.bf16 %v204, %v203
    %v208 = vpack.c.bf16 %v206, %v205
    %v211 = vunpack.c.l.b16 %v207
    %v212 = vunpack.c.h.b16 %v207
    %v213 = vunpack.c.l.b16 %v208
    %v214 = vunpack.c.h.b16 %v208
    %v215 = vpack.c.b16 %v211, %v211
    %v216 = vpack.c.b16 %v212, %v212
    %v217 = vpack.c.b16 %v213, %v213
    %v218 = vpack.c.b16 %v214, %v214
    %vm223 = vcmask 797696
    %224 = vst.msk [vmem:[%s3] sm:$0xf] %vm223, %v215
    %225 = vst.msk [vmem:[%s3 + $0x4] sm:$0xf] %vm223, %v216
    %226 = vst.msk [vmem:[%s3 + $0x8] sm:$0xf] %vm223, %v217
    %227 = vst.msk [vmem:[%s3 + $0xc] sm:$0xf] %vm223, %v218
    // Predicated region
    $region18: #{k_sparse_autoencoder_forward.9} parent=1 // pred_check
      _
    $region19: #{k_sparse_autoencoder_forward.9} parent=1 // pred_check_branch
      %229 = sbr.rel (0) target = $region21
    $region20: #{k_sparse_autoencoder_forward.9} parent=1 // pred_region
      _
    $region21: #{k_sparse_autoencoder_forward.9} parent=1 // pred_fallthru
      _
    // Predicated region
    $region22: #{k_sparse_autoencoder_forward.9} parent=1 // pred_check
      _
    $region23: #{k_sparse_autoencoder_forward.9} parent=1 // pred_check_branch
      %231 = sbr.rel (0) target = $region25
    $region24: #{k_sparse_autoencoder_forward.9} parent=1 // pred_region
      _
    $region25: #{k_sparse_autoencoder_forward.9} parent=1 // pred_fallthru
      _
    %232 = vsyncpa [#allocation3], 1

// kernel: k_sparse_autoencoder_forward.10
$region0: #{k_sparse_autoencoder_forward.10}
  #allocation0 [shape = 'u32[]', space=smem, size = 0x4, offset = 0x4, fixed_abs, tag = 'smem constant byte address 0x4 - core index']
  #allocation1 [shape = 'u32[144,128]{1,0:T(1,128)}', space=vmem, size = 0x12000, scoped, tag = 'internal scratch']
  %s0 = inlined_call_operand.hbm [shape: bf16[64,800], index: 0, kind: input, shape index: {}]
  %s1 = inlined_call_operand.vmem [shape: bf16[800,18], index: 1, kind: input, shape index: {}]
  %s2 = inlined_call_operand.vmem [shape: f32[64,1], index: 2, kind: input, shape index: {}]
  %s3 = inlined_call_operand.vmem [shape: bf16[64,18], index: 3, kind: output, shape index: {}]
  %s4 = sld [smem:[#allocation0]]
  $region26: #{k_sparse_autoencoder_forward.10} parent=0
    _
  %s6 = ssub.s32 1, %s4
  %s7 = scalar_select 0, %s6, %s4
  $region1: #{k_sparse_autoencoder_forward.10} parent=0
    #allocation2 [shape = 'u8[114688]{0}', space=vmem, size = 0x1c000, scoped, tag = 'input window, operand 0, single buffered']
    #allocation3 [shape = 's32[1]{0}', space=sflag, size = 0x4, scoped, tag = 'scoped memory for k_sparse_autoencoder_forward.10']
    %8 = vsyncpa [#allocation3], 0
    // Predicated region
    $region2: #{k_sparse_autoencoder_forward.10} parent=1 // pred_check
      _
    $region3: #{k_sparse_autoencoder_forward.10} parent=1 // pred_check_branch
      %10 = sbr.rel (0) target = $region5
    $region4: #{k_sparse_autoencoder_forward.10} parent=1 // pred_region
      %s12 = ssub.s32 3584, 3584
      %13 = vsyncadd [#allocation3], %s12
      %s14 = sshll.u32 [#allocation2], 4
      %s15 = int_to_ptr.vmem [resolvable:$true] %s14
      %20 = dma.hbm_to_vmem [thread:$0]  %s0, 3584, %s15, [#allocation3], 448, 448, 28
    $region5: #{k_sparse_autoencoder_forward.10} parent=1 // pred_fallthru
      _
    // Predicated region
    $region6: #{k_sparse_autoencoder_forward.10} parent=1 // pred_check
      _
    $region7: #{k_sparse_autoencoder_forward.10} parent=1 // pred_check_branch
      %22 = sbr.rel (0) target = $region9
    $region8: #{k_sparse_autoencoder_forward.10} parent=1 // pred_region
      _
    $region9: #{k_sparse_autoencoder_forward.10} parent=1 // pred_fallthru
      _
    // Predicated region
    $region10: #{k_sparse_autoencoder_forward.10} parent=1 // pred_check
      _
    $region11: #{k_sparse_autoencoder_forward.10} parent=1 // pred_check_branch
      %24 = sbr.rel (0) target = $region13
    $region12: #{k_sparse_autoencoder_forward.10} parent=1 // pred_region
      _
    $region13: #{k_sparse_autoencoder_forward.10} parent=1 // pred_fallthru
      _
    // Predicated region
    $region14: #{k_sparse_autoencoder_forward.10} parent=1 // pred_check
      _
    $region15: #{k_sparse_autoencoder_forward.10} parent=1 // pred_check_branch
      %26 = sbr.rel (0) target = $region17
    $region16: #{k_sparse_autoencoder_forward.10} parent=1 // pred_region
      %27 = dma.done [#allocation3], 3584
    $region17: #{k_sparse_autoencoder_forward.10} parent=1 // pred_fallthru
      _
    %v29 = vld [vmem:[#allocation2] sm:$0xff]
    %v30 = vld [vmem:[#allocation2 + $0x8] sm:$0xff]
    %v31 = vld [vmem:[#allocation2 + $0x10] sm:$0xff]
    %v32 = vld [vmem:[#allocation2 + $0x18] sm:$0xf]
    %v33 = vld [vmem:[#allocation2 + $0x1c] sm:$0xff]
    %v34 = vld [vmem:[#allocation2 + $0x24] sm:$0xff]
    %v35 = vld [vmem:[#allocation2 + $0x2c] sm:$0xff]
    %v36 = vld [vmem:[#allocation2 + $0x34] sm:$0xf]
    %v37 = vld [vmem:[#allocation2 + $0x38] sm:$0xff]
    %v38 = vld [vmem:[#allocation2 + $0x40] sm:$0xff]
    %v39 = vld [vmem:[#allocation2 + $0x48] sm:$0xff]
    %v40 = vld [vmem:[#allocation2 + $0x50] sm:$0xf]
    %v41 = vld [vmem:[#allocation2 + $0x54] sm:$0xff]
    %v42 = vld [vmem:[#allocation2 + $0x5c] sm:$0xff]
    %v43 = vld [vmem:[#allocation2 + $0x64] sm:$0xff]
    %v44 = vld [vmem:[#allocation2 + $0x6c] sm:$0xf]
    %v45 = vld [vmem:[#allocation2 + $0x70] sm:$0xff]
    %v46 = vld [vmem:[#allocation2 + $0x78] sm:$0xff]
    %v47 = vld [vmem:[#allocation2 + $0x80] sm:$0xff]
    %v48 = vld [vmem:[#allocation2 + $0x88] sm:$0xf]
    %v49 = vld [vmem:[#allocation2 + $0x8c] sm:$0xff]
    %v50 = vld [vmem:[#allocation2 + $0x94] sm:$0xff]
    %v51 = vld [vmem:[#allocation2 + $0x9c] sm:$0xff]
    %v52 = vld [vmem:[#allocation2 + $0xa4] sm:$0xf]
    %v53 = vld [vmem:[#allocation2 + $0xa8] sm:$0xff]
    %v54 = vld [vmem:[#allocation2 + $0xb0] sm:$0xff]
    %v55 = vld [vmem:[#allocation2 + $0xb8] sm:$0xff]
    %v56 = vld [vmem:[#allocation2 + $0xc0] sm:$0xf]
    %v57 = vld [vmem:[#allocation2 + $0xc4] sm:$0xff]
    %v58 = vld [vmem:[#allocation2 + $0xcc] sm:$0xff]
    %v59 = vld [vmem:[#allocation2 + $0xd4] sm:$0xff]
    %v60 = vld [vmem:[#allocation2 + $0xdc] sm:$0xf]
    %v61 = vld [vmem:[%s1] sm:$0xf]
    %v62 = vld [vmem:[%s1 + $0x4] sm:$0xf]
    %v63 = vld [vmem:[%s1 + $0x8] sm:$0xf]
    %v64 = vld [vmem:[%s1 + $0xc] sm:$0xf]
    %v65 = vld [vmem:[%s1 + $0x10] sm:$0xf]
    %v66 = vld [vmem:[%s1 + $0x14] sm:$0xf]
    %v67 = vld [vmem:[%s1 + $0x18] sm:$0xf]
    %v68 = vld [vmem:[%s1 + $0x1c] sm:$0xf]
    %v69 = vld [vmem:[%s1 + $0x20] sm:$0xf]
    %v70 = vld [vmem:[%s1 + $0x24] sm:$0xf]
    %v71 = vld [vmem:[%s1 + $0x28] sm:$0xf]
    %v72 = vld [vmem:[%s1 + $0x2c] sm:$0xf]
    %v73 = vld [vmem:[%s1 + $0x30] sm:$0xf]
    %v74 = vld [vmem:[%s1 + $0x34] sm:$0xf]
    %v75 = vld [vmem:[%s1 + $0x38] sm:$0xf]
    %v76 = vld [vmem:[%s1 + $0x3c] sm:$0xf]
    %v77 = vld [vmem:[%s1 + $0x40] sm:$0xf]
    %v78 = vld [vmem:[%s1 + $0x44] sm:$0xf]
    %v79 = vld [vmem:[%s1 + $0x48] sm:$0xf]
    %v80 = vld [vmem:[%s1 + $0x4c] sm:$0xf]
    %v81 = vld [vmem:[%s1 + $0x50] sm:$0xf]
    %v82 = vld [vmem:[%s1 + $0x54] sm:$0xf]
    %v83 = vld [vmem:[%s1 + $0x58] sm:$0xf]
    %v84 = vld [vmem:[%s1 + $0x5c] sm:$0xf]
    %v85 = vld [vmem:[%s1 + $0x60] sm:$0xf]
    %v86 = vld [vmem:[%s1 + $0x64] sm:$0xf]
    %v87 = vld [vmem:[%s1 + $0x68] sm:$0xf]
    %v88 = vld [vmem:[%s1 + $0x6c] sm:$0xf]
    %v89 = vld [vmem:[%s1 + $0x70] sm:$0xf]
    %v90 = vld [vmem:[%s1 + $0x74] sm:$0xf]
    %v91 = vld [vmem:[%s1 + $0x78] sm:$0xf]
    %v92 = vld [vmem:[%s1 + $0x7c] sm:$0xf]
    %v93 = vld [vmem:[%s1 + $0x80] sm:$0xf]
    %v94 = vld [vmem:[%s1 + $0x84] sm:$0xf]
    %v95 = vld [vmem:[%s1 + $0x88] sm:$0xf]
    %v96 = vld [vmem:[%s1 + $0x8c] sm:$0xf]
    %v97 = vld [vmem:[%s1 + $0x90] sm:$0xf]
    %v98 = vld [vmem:[%s1 + $0x94] sm:$0xf]
    %v99 = vld [vmem:[%s1 + $0x98] sm:$0xf]
    %v100 = vld [vmem:[%s1 + $0x9c] sm:$0xf]
    %v101 = vld [vmem:[%s1 + $0xa0] sm:$0xf]
    %v102 = vld [vmem:[%s1 + $0xa4] sm:$0xf]
    %v103 = vld [vmem:[%s1 + $0xa8] sm:$0xf]
    %v104 = vld [vmem:[%s1 + $0xac] sm:$0xf]
    %v105 = vld [vmem:[%s1 + $0xb0] sm:$0xf]
    %v106 = vld [vmem:[%s1 + $0xb4] sm:$0xf]
    %v107 = vld [vmem:[%s1 + $0xb8] sm:$0xf]
    %v108 = vld [vmem:[%s1 + $0xbc] sm:$0xf]
    %v109 = vld [vmem:[%s1 + $0xc0] sm:$0xf]
    %v110 = vld [vmem:[%s1 + $0xc4] sm:$0xf]
    %v111 = vld [vmem:[%s1 + $0xc8] sm:$0xf]
    %v112 = vld [vmem:[%s1 + $0xcc] sm:$0xf]
    %v113 = vld [vmem:[%s1 + $0xd0] sm:$0xf]
    %v114 = vld [vmem:[%s1 + $0xd4] sm:$0xf]
    %v115 = vld [vmem:[%s1 + $0xd8] sm:$0xf]
    %v116 = vld [vmem:[%s1 + $0xdc] sm:$0xf]
    %v117 = vld [vmem:[%s1 + $0xe0] sm:$0xf]
    %v118 = vld [vmem:[%s1 + $0xe4] sm:$0xf]
    %v119 = vld [vmem:[%s1 + $0xe8] sm:$0xf]
    %v120 = vld [vmem:[%s1 + $0xec] sm:$0xf]
    %v121 = vld [vmem:[%s1 + $0xf0] sm:$0xf]
    %v122 = vld [vmem:[%s1 + $0xf4] sm:$0xf]
    %v123 = vld [vmem:[%s1 + $0xf8] sm:$0xf]
    %v124 = vld [vmem:[%s1 + $0xfc] sm:$0xf]
    %v125 = vld [vmem:[%s1 + $0x100] sm:$0xf]
    %v126 = vld [vmem:[%s1 + $0x104] sm:$0xf]
    %v127 = vld [vmem:[%s1 + $0x108] sm:$0xf]
    %v128 = vld [vmem:[%s1 + $0x10c] sm:$0xf]
    %v129 = vld [vmem:[%s1 + $0x110] sm:$0xf]
    %v130 = vld [vmem:[%s1 + $0x114] sm:$0xf]
    %v131 = vld [vmem:[%s1 + $0x118] sm:$0xf]
    %v132 = vld [vmem:[%s1 + $0x11c] sm:$0xf]
    %v133 = vld [vmem:[%s1 + $0x120] sm:$0xf]
    %v134 = vld [vmem:[%s1 + $0x124] sm:$0xf]
    %v135 = vld [vmem:[%s1 + $0x128] sm:$0xf]
    %v136 = vld [vmem:[%s1 + $0x12c] sm:$0xf]
    %v137 = vld [vmem:[%s1 + $0x130] sm:$0xf]
    %v138 = vld [vmem:[%s1 + $0x134] sm:$0xf]
    %v139 = vld [vmem:[%s1 + $0x138] sm:$0xf]
    %v140 = vld [vmem:[%s1 + $0x13c] sm:$0xf]
    %v141 = vld [vmem:[%s1 + $0x140] sm:$0xf]
    %v142 = vld [vmem:[%s1 + $0x144] sm:$0xf]
    %v143 = vld [vmem:[%s1 + $0x148] sm:$0xf]
    %v144 = vld [vmem:[%s1 + $0x14c] sm:$0xf]
    %v145 = vld [vmem:[%s1 + $0x150] sm:$0xf]
    %v146 = vld [vmem:[%s1 + $0x154] sm:$0xf]
    %v147 = vld [vmem:[%s1 + $0x158] sm:$0xf]
    %v148 = vld [vmem:[%s1 + $0x15c] sm:$0xf]
    %v149 = vld [vmem:[%s1 + $0x160] sm:$0xf]
    %v150 = vld [vmem:[%s1 + $0x164] sm:$0xf]
    %v151 = vld [vmem:[%s1 + $0x168] sm:$0xf]
    %v152 = vld [vmem:[%s1 + $0x16c] sm:$0xf]
    %v153 = vld [vmem:[%s1 + $0x170] sm:$0xf]
    %v154 = vld [vmem:[%s1 + $0x174] sm:$0xf]
    %v155 = vld [vmem:[%s1 + $0x178] sm:$0xf]
    %v156 = vld [vmem:[%s1 + $0x17c] sm:$0xf]
    %v157 = vld [vmem:[%s1 + $0x180] sm:$0xf]
    %v158 = vld [vmem:[%s1 + $0x184] sm:$0xf]
    %v159 = vld [vmem:[%s1 + $0x188] sm:$0xf]
    %v160 = vld [vmem:[%s1 + $0x18c] sm:$0xf]
    %v161 = vld [vmem:[%s2] sm:$0xff]
    %v162 = vld [vmem:[%s2 + $0x8] sm:$0xff]
    %v163 = vld [vmem:[%s2 + $0x10] sm:$0xff]
    %v164 = vld [vmem:[%s2 + $0x18] sm:$0xff]
    %v165 = vld [vmem:[%s2 + $0x20] sm:$0xff]
    %v166 = vld [vmem:[%s2 + $0x28] sm:$0xff]
    %v167 = vld [vmem:[%s2 + $0x30] sm:$0xff]
    %v168 = vld [vmem:[%s2 + $0x38] sm:$0xff]
    %170 = vset.pattern.permute.xlu0 0
    %171 = vperm.xlu0 %170, %v161
    %v172 = vpop.permute.xlu0 %171
    %175 = vset.pattern.permute.xlu0 0
    %176 = vperm.xlu0 %175, %v162
    %v177 = vpop.permute.xlu0 %176
    %180 = vset.pattern.permute.xlu0 0
    %181 = vperm.xlu0 %180, %v163
    %v182 = vpop.permute.xlu0 %181
    %185 = vset.pattern.permute.xlu0 0
    %186 = vperm.xlu0 %185, %v164
    %v187 = vpop.permute.xlu0 %186
    %190 = vset.pattern.permute.xlu0 0
    %191 = vperm.xlu0 %190, %v165
    %v192 = vpop.permute.xlu0 %191
    %195 = vset.pattern.permute.xlu0 0
    %196 = vperm.xlu0 %195, %v166
    %v197 = vpop.permute.xlu0 %196
    %200 = vset.pattern.permute.xlu0 0
    %201 = vperm.xlu0 %200, %v167
    %v202 = vpop.permute.xlu0 %201
    %205 = vset.pattern.permute.xlu0 0
    %206 = vperm.xlu0 %205, %v168
    %v207 = vpop.permute.xlu0 %206
    %v241 = vunpack.c.l.b16 %v29
    %v242 = vunpack.c.h.b16 %v29
    %v243 = vunpack.c.l.b16 %v30
    %v244 = vunpack.c.h.b16 %v30
    %v245 = vunpack.c.l.b16 %v31
    %v246 = vunpack.c.h.b16 %v31
    %v247 = vunpack.c.l.b16 %v32
    %v248 = vunpack.c.l.b16 %v33
    %v249 = vunpack.c.h.b16 %v33
    %v250 = vunpack.c.l.b16 %v34
    %v251 = vunpack.c.h.b16 %v34
    %v252 = vunpack.c.l.b16 %v35
    %v253 = vunpack.c.h.b16 %v35
    %v254 = vunpack.c.l.b16 %v36
    %v255 = vunpack.c.l.b16 %v37
    %v256 = vunpack.c.h.b16 %v37
    %v257 = vunpack.c.l.b16 %v38
    %v258 = vunpack.c.h.b16 %v38
    %v259 = vunpack.c.l.b16 %v39
    %v260 = vunpack.c.h.b16 %v39
    %v261 = vunpack.c.l.b16 %v40
    %v262 = vunpack.c.l.b16 %v41
    %v263 = vunpack.c.h.b16 %v41
    %v264 = vunpack.c.l.b16 %v42
    %v265 = vunpack.c.h.b16 %v42
    %v266 = vunpack.c.l.b16 %v43
    %v267 = vunpack.c.h.b16 %v43
    %v268 = vunpack.c.l.b16 %v44
    %v269 = vunpack.c.l.b16 %v45
    %v270 = vunpack.c.h.b16 %v45
    %v271 = vunpack.c.l.b16 %v46
    %v272 = vunpack.c.h.b16 %v46
    %v273 = vunpack.c.l.b16 %v47
    %v274 = vunpack.c.h.b16 %v47
    %v275 = vunpack.c.l.b16 %v48
    %v276 = vunpack.c.l.b16 %v49
    %v277 = vunpack.c.h.b16 %v49
    %v278 = vunpack.c.l.b16 %v50
    %v279 = vunpack.c.h.b16 %v50
    %v280 = vunpack.c.l.b16 %v51
    %v281 = vunpack.c.h.b16 %v51
    %v282 = vunpack.c.l.b16 %v52
    %v283 = vunpack.c.l.b16 %v53
    %v284 = vunpack.c.h.b16 %v53
    %v285 = vunpack.c.l.b16 %v54
    %v286 = vunpack.c.h.b16 %v54
    %v287 = vunpack.c.l.b16 %v55
    %v288 = vunpack.c.h.b16 %v55
    %v289 = vunpack.c.l.b16 %v56
    %v290 = vunpack.c.l.b16 %v57
    %v291 = vunpack.c.h.b16 %v57
    %v292 = vunpack.c.l.b16 %v58
    %v293 = vunpack.c.h.b16 %v58
    %v294 = vunpack.c.l.b16 %v59
    %v295 = vunpack.c.h.b16 %v59
    %v296 = vunpack.c.l.b16 %v60
    %v297 = vpack.c.b16 %v248, %v241
    %v298 = vpack.c.b16 %v249, %v242
    %v299 = vpack.c.b16 %v250, %v243
    %v300 = vpack.c.b16 %v251, %v244
    %v301 = vpack.c.b16 %v252, %v245
    %v302 = vpack.c.b16 %v253, %v246
    %v303 = vpack.c.b16 %v254, %v247
    %v304 = vpack.c.b16 %v262, %v255
    %v305 = vpack.c.b16 %v263, %v256
    %v306 = vpack.c.b16 %v264, %v257
    %v307 = vpack.c.b16 %v265, %v258
    %v308 = vpack.c.b16 %v266, %v259
    %v309 = vpack.c.b16 %v267, %v260
    %v310 = vpack.c.b16 %v268, %v261
    %v311 = vpack.c.b16 %v276, %v269
    %v312 = vpack.c.b16 %v277, %v270
    %v313 = vpack.c.b16 %v278, %v271
    %v314 = vpack.c.b16 %v279, %v272
    %v315 = vpack.c.b16 %v280, %v273
    %v316 = vpack.c.b16 %v281, %v274
    %v317 = vpack.c.b16 %v282, %v275
    %v318 = vpack.c.b16 %v290, %v283
    %v319 = vpack.c.b16 %v291, %v284
    %v320 = vpack.c.b16 %v292, %v285
    %v321 = vpack.c.b16 %v293, %v286
    %v322 = vpack.c.b16 %v294, %v287
    %v323 = vpack.c.b16 %v295, %v288
    %v324 = vpack.c.b16 %v296, %v289
    %v449 = vunpack.c.l.b16 %v61
    %v450 = vunpack.c.l.b16 %v62
    %v451 = vunpack.c.l.b16 %v63
    %v452 = vunpack.c.l.b16 %v64
    %v453 = vunpack.c.l.b16 %v65
    %v454 = vunpack.c.l.b16 %v66
    %v455 = vunpack.c.l.b16 %v67
    %v456 = vunpack.c.l.b16 %v68
    %v457 = vunpack.c.l.b16 %v69
    %v458 = vunpack.c.l.b16 %v70
    %v459 = vunpack.c.l.b16 %v71
    %v460 = vunpack.c.l.b16 %v72
    %v461 = vunpack.c.l.b16 %v73
    %v462 = vunpack.c.l.b16 %v74
    %v463 = vunpack.c.l.b16 %v75
    %v464 = vunpack.c.l.b16 %v76
    %v465 = vunpack.c.l.b16 %v77
    %v466 = vunpack.c.l.b16 %v78
    %v467 = vunpack.c.l.b16 %v79
    %v468 = vunpack.c.l.b16 %v80
    %v469 = vunpack.c.l.b16 %v81
    %v470 = vunpack.c.l.b16 %v82
    %v471 = vunpack.c.l.b16 %v83
    %v472 = vunpack.c.l.b16 %v84
    %v473 = vunpack.c.l.b16 %v85
    %v474 = vunpack.c.l.b16 %v86
    %v475 = vunpack.c.l.b16 %v87
    %v476 = vunpack.c.l.b16 %v88
    %v477 = vunpack.c.l.b16 %v89
    %v478 = vunpack.c.l.b16 %v90
    %v479 = vunpack.c.l.b16 %v91
    %v480 = vunpack.c.l.b16 %v92
    %v481 = vunpack.c.l.b16 %v93
    %v482 = vunpack.c.l.b16 %v94
    %v483 = vunpack.c.l.b16 %v95
    %v484 = vunpack.c.l.b16 %v96
    %v485 = vunpack.c.l.b16 %v97
    %v486 = vunpack.c.l.b16 %v98
    %v487 = vunpack.c.l.b16 %v99
    %v488 = vunpack.c.l.b16 %v100
    %v489 = vunpack.c.l.b16 %v101
    %v490 = vunpack.c.l.b16 %v102
    %v491 = vunpack.c.l.b16 %v103
    %v492 = vunpack.c.l.b16 %v104
    %v493 = vunpack.c.l.b16 %v105
    %v494 = vunpack.c.l.b16 %v106
    %v495 = vunpack.c.l.b16 %v107
    %v496 = vunpack.c.l.b16 %v108
    %v497 = vunpack.c.l.b16 %v109
    %v498 = vunpack.c.l.b16 %v110
    %v499 = vunpack.c.l.b16 %v111
    %v500 = vunpack.c.l.b16 %v112
    %v501 = vunpack.c.l.b16 %v113
    %v502 = vunpack.c.l.b16 %v114
    %v503 = vunpack.c.l.b16 %v115
    %v504 = vunpack.c.l.b16 %v116
    %v505 = vunpack.c.l.b16 %v117
    %v506 = vunpack.c.l.b16 %v118
    %v507 = vunpack.c.l.b16 %v119
    %v508 = vunpack.c.l.b16 %v120
    %v509 = vunpack.c.l.b16 %v121
    %v510 = vunpack.c.l.b16 %v122
    %v511 = vunpack.c.l.b16 %v123
    %v512 = vunpack.c.l.b16 %v124
    %v513 = vunpack.c.l.b16 %v125
    %v514 = vunpack.c.l.b16 %v126
    %v515 = vunpack.c.l.b16 %v127
    %v516 = vunpack.c.l.b16 %v128
    %v517 = vunpack.c.l.b16 %v129
    %v518 = vunpack.c.l.b16 %v130
    %v519 = vunpack.c.l.b16 %v131
    %v520 = vunpack.c.l.b16 %v132
    %v521 = vunpack.c.l.b16 %v133
    %v522 = vunpack.c.l.b16 %v134
    %v523 = vunpack.c.l.b16 %v135
    %v524 = vunpack.c.l.b16 %v136
    %v525 = vunpack.c.l.b16 %v137
    %v526 = vunpack.c.l.b16 %v138
    %v527 = vunpack.c.l.b16 %v139
    %v528 = vunpack.c.l.b16 %v140
    %v529 = vunpack.c.l.b16 %v141
    %v530 = vunpack.c.l.b16 %v142
    %v531 = vunpack.c.l.b16 %v143
    %v532 = vunpack.c.l.b16 %v144
    %v533 = vunpack.c.l.b16 %v145
    %v534 = vunpack.c.l.b16 %v146
    %v535 = vunpack.c.l.b16 %v147
    %v536 = vunpack.c.l.b16 %v148
    %v537 = vunpack.c.l.b16 %v149
    %v538 = vunpack.c.l.b16 %v150
    %v539 = vunpack.c.l.b16 %v151
    %v540 = vunpack.c.l.b16 %v152
    %v541 = vunpack.c.l.b16 %v153
    %v542 = vunpack.c.l.b16 %v154
    %v543 = vunpack.c.l.b16 %v155
    %v544 = vunpack.c.l.b16 %v156
    %v545 = vunpack.c.l.b16 %v157
    %v546 = vunpack.c.l.b16 %v158
    %v547 = vunpack.c.l.b16 %v159
    %v548 = vunpack.c.l.b16 %v160
    %v549 = vpack.c.b16 %v450, %v449
    %v550 = vpack.c.b16 %v452, %v451
    %v551 = vpack.c.b16 %v454, %v453
    %v552 = vpack.c.b16 %v456, %v455
    %v553 = vpack.c.b16 %v458, %v457
    %v554 = vpack.c.b16 %v460, %v459
    %v555 = vpack.c.b16 %v462, %v461
    %v556 = vpack.c.b16 %v464, %v463
    %v557 = vpack.c.b16 %v466, %v465
    %v558 = vpack.c.b16 %v468, %v467
    %v559 = vpack.c.b16 %v470, %v469
    %v560 = vpack.c.b16 %v472, %v471
    %v561 = vpack.c.b16 %v474, %v473
    %v562 = vpack.c.b16 %v476, %v475
    %v563 = vpack.c.b16 %v478, %v477
    %v564 = vpack.c.b16 %v480, %v479
    %v565 = vpack.c.b16 %v482, %v481
    %v566 = vpack.c.b16 %v484, %v483
    %v567 = vpack.c.b16 %v486, %v485
    %v568 = vpack.c.b16 %v488, %v487
    %v569 = vpack.c.b16 %v490, %v489
    %v570 = vpack.c.b16 %v492, %v491
    %v571 = vpack.c.b16 %v494, %v493
    %v572 = vpack.c.b16 %v496, %v495
    %v573 = vpack.c.b16 %v498, %v497
    %v574 = vpack.c.b16 %v500, %v499
    %v575 = vpack.c.b16 %v502, %v501
    %v576 = vpack.c.b16 %v504, %v503
    %v577 = vpack.c.b16 %v506, %v505
    %v578 = vpack.c.b16 %v508, %v507
    %v579 = vpack.c.b16 %v510, %v509
    %v580 = vpack.c.b16 %v512, %v511
    %v581 = vpack.c.b16 %v514, %v513
    %v582 = vpack.c.b16 %v516, %v515
    %v583 = vpack.c.b16 %v518, %v517
    %v584 = vpack.c.b16 %v520, %v519
    %v585 = vpack.c.b16 %v522, %v521
    %v586 = vpack.c.b16 %v524, %v523
    %v587 = vpack.c.b16 %v526, %v525
    %v588 = vpack.c.b16 %v528, %v527
    %v589 = vpack.c.b16 %v530, %v529
    %v590 = vpack.c.b16 %v532, %v531
    %v591 = vpack.c.b16 %v534, %v533
    %v592 = vpack.c.b16 %v536, %v535
    %v593 = vpack.c.b16 %v538, %v537
    %v594 = vpack.c.b16 %v540, %v539
    %v595 = vpack.c.b16 %v542, %v541
    %v596 = vpack.c.b16 %v544, %v543
    %v597 = vpack.c.b16 %v546, %v545
    %v598 = vpack.c.b16 %v548, %v547
    %vm649 = vcmask 261120
    %v651 = vsel %vm649, %v303, 0
    %v654 = vsel %vm649, %v310, 0
    %v657 = vsel %vm649, %v317, 0
    %v660 = vsel %vm649, %v324, 0
    %662 = vmatprep.subr.bf16.mxu0 0
    %663 = vmatpush1.bf16.msra.mxu0 %v549
    %664 = vmatprep.subr.bf16.mxu0 0
    %665 = vmatpush1.bf16.msra.mxu0 %v550
    %666 = vmatprep.subr.bf16.mxu0 0
    %667 = vmatpush1.bf16.msra.mxu0 %v551
    %668 = vmatprep.subr.bf16.mxu0 0
    %669 = vmatpush1.bf16.msra.mxu0 %v552
    %670 = vmatprep.subr.bf16.mxu0 0
    %671 = vmatpush1.bf16.msra.mxu0 %v553
    %672 = vmatprep.subr.bf16.mxu0 0
    %673 = vmatpush1.bf16.msra.mxu0 %v554
    %674 = vmatprep.subr.bf16.mxu0 0
    %675 = vmatpush1.bf16.msra.mxu0 %v555
    %676 = vmatprep.subr.bf16.mxu0 0
    %677 = vmatpush1.bf16.msra.mxu0 %v556
    %678 = vmatprep.subr.bf16.mxu0 0
    %679 = vmatpush1.bf16.msra.mxu0 %v557
    %680 = vmatprep.subr.bf16.mxu0 0
    %681 = vmatpush1.bf16.msra.mxu0 %v558
    %682 = vmatprep.subr.bf16.mxu0 0
    %683 = vmatpush1.bf16.msra.mxu0 %v559
    %684 = vmatprep.subr.bf16.mxu0 0
    %685 = vmatpush1.bf16.msra.mxu0 %v560
    %686 = vmatprep.subr.bf16.mxu0 0
    %687 = vmatpush1.bf16.msra.mxu0 %v561
    %688 = vmatprep.subr.bf16.mxu0 0
    %689 = vmatpush1.bf16.msra.mxu0 %v562
    %690 = vmatprep.subr.bf16.mxu0 0
    %691 = vmatpush1.bf16.msra.mxu0 %v563
    %692 = vmatprep.subr.bf16.mxu0 0
    %693 = vmatpush1.bf16.msra.mxu0 %v564
    %694 = vmatprep.mubr.bf16.mxu0 %v298
    %695 = vmatmul.mubr.bf16.gmra.mrb[0].mxu0 %v297
    %v696 = vpop.f32.mrb[0].mxu0
    %v697 = vadd.f32 %v172, %v696
    %v698 = vpop.f32.mrb[0].mxu0
    %v699 = vpop.f32.mrb[0].mxu0
    %v700 = vadd.f32 %v177, %v699
    %v701 = vpop.f32.mrb[0].mxu0
    %702 = vmatprep.mubr.bf16.mxu0 %v305
    %703 = vmatmul.mubr.bf16.gmra.mrb[0].mxu0 %v304
    %v704 = vpop.f32.mrb[0].mxu0
    %v705 = vadd.f32 %v182, %v704
    %v706 = vpop.f32.mrb[0].mxu0
    %v707 = vpop.f32.mrb[0].mxu0
    %v708 = vadd.f32 %v187, %v707
    %v709 = vpop.f32.mrb[0].mxu0
    %710 = vmatprep.mubr.bf16.mxu0 %v312
    %711 = vmatmul.mubr.bf16.gmra.mrb[0].mxu0 %v311
    %v712 = vpop.f32.mrb[0].mxu0
    %v713 = vadd.f32 %v192, %v712
    %v714 = vpop.f32.mrb[0].mxu0
    %v715 = vpop.f32.mrb[0].mxu0
    %v716 = vadd.f32 %v197, %v715
    %v717 = vpop.f32.mrb[0].mxu0
    %718 = vmatprep.mubr.bf16.mxu0 %v319
    %719 = vmatmul.mubr.bf16.gmra.mrb[0].mxu0 %v318
    %v720 = vpop.f32.mrb[0].mxu0
    %v721 = vadd.f32 %v202, %v720
    %v722 = vpop.f32.mrb[0].mxu0
    %v723 = vpop.f32.mrb[0].mxu0
    %v724 = vadd.f32 %v207, %v723
    %v725 = vpop.f32.mrb[0].mxu0
    %726 = vdwg.mxu0
    %727 = vmatprep.subr.bf16.mxu0 0
    %728 = vmatpush1.bf16.msra.mxu0 %v565
    %729 = vmatprep.subr.bf16.mxu0 0
    %730 = vmatpush1.bf16.msra.mxu0 %v566
    %731 = vmatprep.subr.bf16.mxu0 0
    %732 = vmatpush1.bf16.msra.mxu0 %v567
    %733 = vmatprep.subr.bf16.mxu0 0
    %734 = vmatpush1.bf16.msra.mxu0 %v568
    %735 = vmatprep.subr.bf16.mxu0 0
    %736 = vmatpush1.bf16.msra.mxu0 %v569
    %737 = vmatprep.subr.bf16.mxu0 0
    %738 = vmatpush1.bf16.msra.mxu0 %v570
    %739 = vmatprep.subr.bf16.mxu0 0
    %740 = vmatpush1.bf16.msra.mxu0 %v571
    %741 = vmatprep.subr.bf16.mxu0 0
    %742 = vmatpush1.bf16.msra.mxu0 %v572
    %743 = vmatprep.subr.bf16.mxu0 0
    %744 = vmatpush1.bf16.msra.mxu0 %v573
    %745 = vmatprep.subr.bf16.mxu0 0
    %746 = vmatpush1.bf16.msra.mxu0 %v574
    %747 = vmatprep.subr.bf16.mxu0 0
    %748 = vmatpush1.bf16.msra.mxu0 %v575
    %749 = vmatprep.subr.bf16.mxu0 0
    %750 = vmatpush1.bf16.msra.mxu0 %v576
    %751 = vmatprep.subr.bf16.mxu0 0
    %752 = vmatpush1.bf16.msra.mxu0 %v577
    %753 = vmatprep.subr.bf16.mxu0 0
    %754 = vmatpush1.bf16.msra.mxu0 %v578
    %755 = vmatprep.subr.bf16.mxu0 0
    %756 = vmatpush1.bf16.msra.mxu0 %v579
    %757 = vmatprep.subr.bf16.mxu0 0
    %758 = vmatpush1.bf16.msra.mxu0 %v580
    %759 = vmatprep.mubr.bf16.mxu0 %v300
    %760 = vmatmul.mubr.bf16.gmra.mrb[0].mxu0 %v299
    %v761 = vpop.f32.mrb[0].mxu0
    %v762 = vadd.f32 %v697, %v761
    %v763 = vpop.f32.mrb[0].mxu0
    %v764 = vpop.f32.mrb[0].mxu0
    %v765 = vadd.f32 %v700, %v764
    %v766 = vpop.f32.mrb[0].mxu0
    %767 = vmatprep.mubr.bf16.mxu0 %v307
    %768 = vmatmul.mubr.bf16.gmra.mrb[0].mxu0 %v306
    %v769 = vpop.f32.mrb[0].mxu0
    %v770 = vadd.f32 %v705, %v769
    %v771 = vpop.f32.mrb[0].mxu0
    %v772 = vpop.f32.mrb[0].mxu0
    %v773 = vadd.f32 %v708, %v772
    %v774 = vpop.f32.mrb[0].mxu0
    %775 = vmatprep.mubr.bf16.mxu0 %v314
    %776 = vmatmul.mubr.bf16.gmra.mrb[0].mxu0 %v313
    %v777 = vpop.f32.mrb[0].mxu0
    %v778 = vadd.f32 %v713, %v777
    %v779 = vpop.f32.mrb[0].mxu0
    %v780 = vpop.f32.mrb[0].mxu0
    %v781 = vadd.f32 %v716, %v780
    %v782 = vpop.f32.mrb[0].mxu0
    %783 = vmatprep.mubr.bf16.mxu0 %v321
    %784 = vmatmul.mubr.bf16.gmra.mrb[0].mxu0 %v320
    %v785 = vpop.f32.mrb[0].mxu0
    %v786 = vadd.f32 %v721, %v785
    %v787 = vpop.f32.mrb[0].mxu0
    %v788 = vpop.f32.mrb[0].mxu0
    %v789 = vadd.f32 %v724, %v788
    %v790 = vpop.f32.mrb[0].mxu0
    %791 = vdwg.mxu0
    %792 = vmatprep.subr.bf16.mxu0 0
    %793 = vmatpush1.bf16.msra.mxu0 %v581
    %794 = vmatprep.subr.bf16.mxu0 0
    %795 = vmatpush1.bf16.msra.mxu0 %v582
    %796 = vmatprep.subr.bf16.mxu0 0
    %797 = vmatpush1.bf16.msra.mxu0 %v583
    %798 = vmatprep.subr.bf16.mxu0 0
    %799 = vmatpush1.bf16.msra.mxu0 %v584
    %800 = vmatprep.subr.bf16.mxu0 0
    %801 = vmatpush1.bf16.msra.mxu0 %v585
    %802 = vmatprep.subr.bf16.mxu0 0
    %803 = vmatpush1.bf16.msra.mxu0 %v586
    %804 = vmatprep.subr.bf16.mxu0 0
    %805 = vmatpush1.bf16.msra.mxu0 %v587
    %806 = vmatprep.subr.bf16.mxu0 0
    %807 = vmatpush1.bf16.msra.mxu0 %v588
    %808 = vmatprep.subr.bf16.mxu0 0
    %809 = vmatpush1.bf16.msra.mxu0 %v589
    %810 = vmatprep.subr.bf16.mxu0 0
    %811 = vmatpush1.bf16.msra.mxu0 %v590
    %812 = vmatprep.subr.bf16.mxu0 0
    %813 = vmatpush1.bf16.msra.mxu0 %v591
    %814 = vmatprep.subr.bf16.mxu0 0
    %815 = vmatpush1.bf16.msra.mxu0 %v592
    %816 = vmatprep.subr.bf16.mxu0 0
    %817 = vmatpush1.bf16.msra.mxu0 %v593
    %818 = vmatprep.subr.bf16.mxu0 0
    %819 = vmatpush1.bf16.msra.mxu0 %v594
    %820 = vmatprep.subr.bf16.mxu0 0
    %821 = vmatpush1.bf16.msra.mxu0 %v595
    %822 = vmatprep.subr.bf16.mxu0 0
    %823 = vmatpush1.bf16.msra.mxu0 %v596
    %824 = vmatprep.mubr.bf16.mxu0 %v302
    %825 = vmatmul.mubr.bf16.gmra.mrb[0].mxu0 %v301
    %v826 = vpop.f32.mrb[0].mxu0
    %v827 = vadd.f32 %v762, %v826
    %v828 = vpop.f32.mrb[0].mxu0
    %v829 = vpop.f32.mrb[0].mxu0
    %v830 = vadd.f32 %v765, %v829
    %v831 = vpop.f32.mrb[0].mxu0
    %832 = vmatprep.mubr.bf16.mxu0 %v309
    %833 = vmatmul.mubr.bf16.gmra.mrb[0].mxu0 %v308
    %v834 = vpop.f32.mrb[0].mxu0
    %v835 = vadd.f32 %v770, %v834
    %v836 = vpop.f32.mrb[0].mxu0
    %v837 = vpop.f32.mrb[0].mxu0
    %v838 = vadd.f32 %v773, %v837
    %v839 = vpop.f32.mrb[0].mxu0
    %840 = vmatprep.mubr.bf16.mxu0 %v316
    %841 = vmatmul.mubr.bf16.gmra.mrb[0].mxu0 %v315
    %v842 = vpop.f32.mrb[0].mxu0
    %v843 = vadd.f32 %v778, %v842
    %v844 = vpop.f32.mrb[0].mxu0
    %v845 = vpop.f32.mrb[0].mxu0
    %v846 = vadd.f32 %v781, %v845
    %v847 = vpop.f32.mrb[0].mxu0
    %848 = vmatprep.mubr.bf16.mxu0 %v323
    %849 = vmatmul.mubr.bf16.gmra.mrb[0].mxu0 %v322
    %v850 = vpop.f32.mrb[0].mxu0
    %v851 = vadd.f32 %v786, %v850
    %v852 = vpop.f32.mrb[0].mxu0
    %v853 = vpop.f32.mrb[0].mxu0
    %v854 = vadd.f32 %v789, %v853
    %v855 = vpop.f32.mrb[0].mxu0
    %856 = vdwg.mxu0
    %857 = vmatprep.subr.bf16.mxu0 0
    %858 = vmatpush1.bf16.msra.mxu0 %v597
    %859 = vmatprep.subr.bf16.mxu0 0
    %860 = vmatpush1.bf16.msra.mxu0 %v598
    %861 = vmatprep.subr.bf16.mxu0 0
    %862 = vmatpush1.bf16.msra.mxu0 0
    %863 = vmatprep.subr.bf16.mxu0 0
    %864 = vmatpush1.bf16.msra.mxu0 0
    %865 = vmatprep.subr.bf16.mxu0 0
    %866 = vmatpush1.bf16.msra.mxu0 0
    %867 = vmatprep.subr.bf16.mxu0 0
    %868 = vmatpush1.bf16.msra.mxu0 0
    %869 = vmatprep.subr.bf16.mxu0 0
    %870 = vmatpush1.bf16.msra.mxu0 0
    %871 = vmatprep.subr.bf16.mxu0 0
    %872 = vmatpush1.bf16.msra.mxu0 0
    %873 = vmatprep.subr.bf16.mxu0 0
    %874 = vmatpush1.bf16.msra.mxu0 0
    %875 = vmatprep.subr.bf16.mxu0 0
    %876 = vmatpush1.bf16.msra.mxu0 0
    %877 = vmatprep.subr.bf16.mxu0 0
    %878 = vmatpush1.bf16.msra.mxu0 0
    %879 = vmatprep.subr.bf16.mxu0 0
    %880 = vmatpush1.bf16.msra.mxu0 0
    %881 = vmatprep.subr.bf16.mxu0 0
    %882 = vmatpush1.bf16.msra.mxu0 0
    %883 = vmatprep.subr.bf16.mxu0 0
    %884 = vmatpush1.bf16.msra.mxu0 0
    %885 = vmatprep.subr.bf16.mxu0 0
    %886 = vmatpush1.bf16.msra.mxu0 0
    %887 = vmatprep.subr.bf16.mxu0 0
    %888 = vmatpush1.bf16.msra.mxu0 0
    %889 = vmatprep.mubr.bf16.mxu0 0
    %890 = vmatmul.mubr.bf16.gmra.mrb[0].mxu0 %v651
    %v891 = vpop.f32.mrb[0].mxu0
    %v892 = vadd.f32 %v827, %v891
    %v893 = vpop.f32.mrb[0].mxu0
    %v894 = vpop.f32.mrb[0].mxu0
    %v895 = vadd.f32 %v830, %v894
    %v896 = vpop.f32.mrb[0].mxu0
    %897 = vmatprep.mubr.bf16.mxu0 0
    %898 = vmatmul.mubr.bf16.gmra.mrb[0].mxu0 %v654
    %v899 = vpop.f32.mrb[0].mxu0
    %v900 = vadd.f32 %v835, %v899
    %v901 = vpop.f32.mrb[0].mxu0
    %v902 = vpop.f32.mrb[0].mxu0
    %v903 = vadd.f32 %v838, %v902
    %v904 = vpop.f32.mrb[0].mxu0
    %905 = vmatprep.mubr.bf16.mxu0 0
    %906 = vmatmul.mubr.bf16.gmra.mrb[0].mxu0 %v657
    %v907 = vpop.f32.mrb[0].mxu0
    %v908 = vadd.f32 %v843, %v907
    %v909 = vpop.f32.mrb[0].mxu0
    %v910 = vpop.f32.mrb[0].mxu0
    %v911 = vadd.f32 %v846, %v910
    %v912 = vpop.f32.mrb[0].mxu0
    %913 = vmatprep.mubr.bf16.mxu0 0
    %914 = vmatmul.mubr.bf16.gmra.mrb[0].mxu0 %v660
    %v915 = vpop.f32.mrb[0].mxu0
    %v916 = vadd.f32 %v851, %v915
    %v917 = vpop.f32.mrb[0].mxu0
    %v918 = vpop.f32.mrb[0].mxu0
    %v919 = vadd.f32 %v854, %v918
    %v920 = vpop.f32.mrb[0].mxu0
    %921 = vdwg.mxu0
    %v922 = vmax.f32 %v892, 0.0
    %v923 = vmax.f32 %v895, 0.0
    %v924 = vmax.f32 %v900, 0.0
    %v925 = vmax.f32 %v903, 0.0
    %v926 = vmax.f32 %v908, 0.0
    %v927 = vmax.f32 %v911, 0.0
    %v928 = vmax.f32 %v916, 0.0
    %v929 = vmax.f32 %v919, 0.0
    %v930 = vpack.c.bf16 %v923, %v922
    %v931 = vpack.c.bf16 %v925, %v924
    %v932 = vpack.c.bf16 %v927, %v926
    %v933 = vpack.c.bf16 %v929, %v928
    %v938 = vunpack.c.l.b16 %v930
    %v939 = vunpack.c.h.b16 %v930
    %v940 = vunpack.c.l.b16 %v931
    %v941 = vunpack.c.h.b16 %v931
    %v942 = vunpack.c.l.b16 %v932
    %v943 = vunpack.c.h.b16 %v932
    %v944 = vunpack.c.l.b16 %v933
    %v945 = vunpack.c.h.b16 %v933
    %v946 = vpack.c.b16 %v938, %v938
    %v947 = vpack.c.b16 %v939, %v939
    %v948 = vpack.c.b16 %v940, %v940
    %v949 = vpack.c.b16 %v941, %v941
    %v950 = vpack.c.b16 %v942, %v942
    %v951 = vpack.c.b16 %v943, %v943
    %v952 = vpack.c.b16 %v944, %v944
    %v953 = vpack.c.b16 %v945, %v945
    %vm962 = vcmask 142336
    %963 = vst.msk [vmem:[%s3] sm:$0xf] %vm962, %v946
    %964 = vst.msk [vmem:[%s3 + $0x4] sm:$0xf] %vm962, %v947
    %965 = vst.msk [vmem:[%s3 + $0x8] sm:$0xf] %vm962, %v948
    %966 = vst.msk [vmem:[%s3 + $0xc] sm:$0xf] %vm962, %v949
    %967 = vst.msk [vmem:[%s3 + $0x10] sm:$0xf] %vm962, %v950
    %968 = vst.msk [vmem:[%s3 + $0x14] sm:$0xf] %vm962, %v951
    %969 = vst.msk [vmem:[%s3 + $0x18] sm:$0xf] %vm962, %v952
    %970 = vst.msk [vmem:[%s3 + $0x1c] sm:$0xf] %vm962, %v953
    // Predicated region
    $region18: #{k_sparse_autoencoder_forward.10} parent=1 // pred_check
      _
    $region19: #{k_sparse_autoencoder_forward.10} parent=1 // pred_check_branch
      %972 = sbr.rel (0) target = $region21
    $region20: #{k_sparse_autoencoder_forward.10} parent=1 // pred_region
      _
    $region21: #{k_sparse_autoencoder_forward.10} parent=1 // pred_fallthru
      _
    // Predicated region
    $region22: #{k_sparse_autoencoder_forward.10} parent=1 // pred_check
      _
    $region23: #{k_sparse_autoencoder_forward.10} parent=1 // pred_check_branch
      %974 = sbr.rel (0) target = $region25
    $region24: #{k_sparse_autoencoder_forward.10} parent=1 // pred_region
      _
    $region25: #{k_sparse_autoencoder_forward.10} parent=1 // pred_fallthru
      _
    %975 = vsyncpa [#allocation3], 1

// kernel: k_sparse_autoencoder_forward.11
$region0: #{k_sparse_autoencoder_forward.11}
  #allocation0 [shape = 'u32[]', space=smem, size = 0x4, offset = 0x4, fixed_abs, tag = 'smem constant byte address 0x4 - core index']
  #allocation1 [shape = 'u32[144,128]{1,0:T(1,128)}', space=vmem, size = 0x12000, scoped, tag = 'internal scratch']
  %s0 = inlined_call_operand.vmem [shape: bf16[2,576], index: 0, kind: input, shape index: {}]
  %s1 = inlined_call_operand.hbm [shape: bf16[576,256], index: 1, kind: input, shape index: {}]
  %s2 = inlined_call_operand.hbm [shape: f32[1,256], index: 2, kind: input, shape index: {}]
  %s3 = inlined_call_operand.vmem [shape: bf16[2,256], index: 3, kind: output, shape index: {}]
  %s4 = sld [smem:[#allocation0]]
  $region30: #{k_sparse_autoencoder_forward.11} parent=0
    _
  %s6 = ssub.s32 1, %s4
  %s7 = scalar_select 0, %s6, %s4
  $region1: #{k_sparse_autoencoder_forward.11} parent=0
    #allocation2 [shape = 'u8[294912]{0}', space=vmem, size = 0x48000, scoped, tag = 'input window, operand 1, single buffered']
    #allocation3 [shape = 's32[1]{0}', space=sflag, size = 0x4, scoped, tag = 'scoped memory for k_sparse_autoencoder_forward.11']
    #allocation4 [shape = 'u8[1024]{0}', space=vmem, size = 0x400, scoped, tag = 'input window, operand 2, single buffered']
    #allocation5 [shape = 's32[1]{0}', space=sflag, size = 0x4, scoped, tag = 'scoped memory for k_sparse_autoencoder_forward.11']
    %8 = vsyncpa [#allocation3], 0
    %9 = vsyncpa [#allocation5], 0
    // Predicated region
    $region2: #{k_sparse_autoencoder_forward.11} parent=1 // pred_check
      _
    $region3: #{k_sparse_autoencoder_forward.11} parent=1 // pred_check_branch
      %11 = sbr.rel (0) target = $region5
    $region4: #{k_sparse_autoencoder_forward.11} parent=1 // pred_region
      _
    $region5: #{k_sparse_autoencoder_forward.11} parent=1 // pred_fallthru
      _
    // Predicated region
    $region6: #{k_sparse_autoencoder_forward.11} parent=1 // pred_check
      _
    $region7: #{k_sparse_autoencoder_forward.11} parent=1 // pred_check_branch
      %13 = sbr.rel (0) target = $region9
    $region8: #{k_sparse_autoencoder_forward.11} parent=1 // pred_region
      %s15 = ssub.s32 9216, 9216
      %16 = vsyncadd [#allocation3], %s15
      %s17 = sshll.u32 [#allocation2], 4
      %s18 = int_to_ptr.vmem [resolvable:$true] %s17
      %23 = dma.hbm_to_vmem [thread:$0]  %s1, 9216, %s18, [#allocation3], 128, 128, 8
    $region9: #{k_sparse_autoencoder_forward.11} parent=1 // pred_fallthru
      _
    // Predicated region
    $region10: #{k_sparse_autoencoder_forward.11} parent=1 // pred_check
      _
    $region11: #{k_sparse_autoencoder_forward.11} parent=1 // pred_check_branch
      %25 = sbr.rel (0) target = $region13
    $region12: #{k_sparse_autoencoder_forward.11} parent=1 // pred_region
      %s27 = ssub.s32 32, 32
      %28 = vsyncadd [#allocation5], %s27
      %s30 = sshll.u32 [#allocation4], 4
      %s31 = int_to_ptr.vmem [resolvable:$true] %s30
      %33 = dma.hbm_to_vmem [thread:$0]  %s2, 32, %s31, [#allocation5]
    $region13: #{k_sparse_autoencoder_forward.11} parent=1 // pred_fallthru
      _
    // Predicated region
    $region14: #{k_sparse_autoencoder_forward.11} parent=1 // pred_check
      _
    $region15: #{k_sparse_autoencoder_forward.11} parent=1 // pred_check_branch
      %35 = sbr.rel (0) target = $region17
    $region16: #{k_sparse_autoencoder_forward.11} parent=1 // pred_region
      %36 = dma.done [#allocation3], 9216
    $region17: #{k_sparse_autoencoder_forward.11} parent=1 // pred_fallthru
      _
    // Predicated region
    $region18: #{k_sparse_autoencoder_forward.11} parent=1 // pred_check
      _
    $region19: #{k_sparse_autoencoder_forward.11} parent=1 // pred_check_branch
      %38 = sbr.rel (0) target = $region21
    $region20: #{k_sparse_autoencoder_forward.11} parent=1 // pred_region
      %39 = dma.done [#allocation5], 32
    $region21: #{k_sparse_autoencoder_forward.11} parent=1 // pred_fallthru
      _
    %v41 = vld [vmem:[%s0] sm:$0x1f]
    %v42 = vld [vmem:[#allocation2] sm:$0xff]
    %v43 = vld [vmem:[#allocation2 + $0x8] sm:$0xff]
    %v44 = vld [vmem:[#allocation2 + $0x10] sm:$0xff]
    %v45 = vld [vmem:[#allocation2 + $0x18] sm:$0xff]
    %v46 = vld [vmem:[#allocation2 + $0x20] sm:$0xff]
    %v47 = vld [vmem:[#allocation2 + $0x28] sm:$0xff]
    %v48 = vld [vmem:[#allocation2 + $0x30] sm:$0xff]
    %v49 = vld [vmem:[#allocation2 + $0x38] sm:$0xff]
    %v50 = vld [vmem:[#allocation2 + $0x40] sm:$0xff]
    %v51 = vld [vmem:[#allocation2 + $0x48] sm:$0xff]
    %v52 = vld [vmem:[#allocation2 + $0x50] sm:$0xff]
    %v53 = vld [vmem:[#allocation2 + $0x58] sm:$0xff]
    %v54 = vld [vmem:[#allocation2 + $0x60] sm:$0xff]
    %v55 = vld [vmem:[#allocation2 + $0x68] sm:$0xff]
    %v56 = vld [vmem:[#allocation2 + $0x70] sm:$0xff]
    %v57 = vld [vmem:[#allocation2 + $0x78] sm:$0xff]
    %v58 = vld [vmem:[#allocation2 + $0x80] sm:$0xff]
    %v59 = vld [vmem:[#allocation2 + $0x88] sm:$0xff]
    %v60 = vld [vmem:[#allocation2 + $0x90] sm:$0xff]
    %v61 = vld [vmem:[#allocation2 + $0x98] sm:$0xff]
    %v62 = vld [vmem:[#allocation2 + $0xa0] sm:$0xff]
    %v63 = vld [vmem:[#allocation2 + $0xa8] sm:$0xff]
    %v64 = vld [vmem:[#allocation2 + $0xb0] sm:$0xff]
    %v65 = vld [vmem:[#allocation2 + $0xb8] sm:$0xff]
    %v66 = vld [vmem:[#allocation2 + $0xc0] sm:$0xff]
    %v67 = vld [vmem:[#allocation2 + $0xc8] sm:$0xff]
    %v68 = vld [vmem:[#allocation2 + $0xd0] sm:$0xff]
    %v69 = vld [vmem:[#allocation2 + $0xd8] sm:$0xff]
    %v70 = vld [vmem:[#allocation2 + $0xe0] sm:$0xff]
    %v71 = vld [vmem:[#allocation2 + $0xe8] sm:$0xff]
    %v72 = vld [vmem:[#allocation2 + $0xf0] sm:$0xff]
    %v73 = vld [vmem:[#allocation2 + $0xf8] sm:$0xff]
    %v74 = vld [vmem:[#allocation2 + $0x100] sm:$0xff]
    %v75 = vld [vmem:[#allocation2 + $0x108] sm:$0xff]
    %v76 = vld [vmem:[#allocation2 + $0x110] sm:$0xff]
    %v77 = vld [vmem:[#allocation2 + $0x118] sm:$0xff]
    %v78 = vld [vmem:[#allocation2 + $0x120] sm:$0xff]
    %v79 = vld [vmem:[#allocation2 + $0x128] sm:$0xff]
    %v80 = vld [vmem:[#allocation2 + $0x130] sm:$0xff]
    %v81 = vld [vmem:[#allocation2 + $0x138] sm:$0xff]
    %v82 = vld [vmem:[#allocation2 + $0x140] sm:$0xff]
    %v83 = vld [vmem:[#allocation2 + $0x148] sm:$0xff]
    %v84 = vld [vmem:[#allocation2 + $0x150] sm:$0xff]
    %v85 = vld [vmem:[#allocation2 + $0x158] sm:$0xff]
    %v86 = vld [vmem:[#allocation2 + $0x160] sm:$0xff]
    %v87 = vld [vmem:[#allocation2 + $0x168] sm:$0xff]
    %v88 = vld [vmem:[#allocation2 + $0x170] sm:$0xff]
    %v89 = vld [vmem:[#allocation2 + $0x178] sm:$0xff]
    %v90 = vld [vmem:[#allocation2 + $0x180] sm:$0xff]
    %v91 = vld [vmem:[#allocation2 + $0x188] sm:$0xff]
    %v92 = vld [vmem:[#allocation2 + $0x190] sm:$0xff]
    %v93 = vld [vmem:[#allocation2 + $0x198] sm:$0xff]
    %v94 = vld [vmem:[#allocation2 + $0x1a0] sm:$0xff]
    %v95 = vld [vmem:[#allocation2 + $0x1a8] sm:$0xff]
    %v96 = vld [vmem:[#allocation2 + $0x1b0] sm:$0xff]
    %v97 = vld [vmem:[#allocation2 + $0x1b8] sm:$0xff]
    %v98 = vld [vmem:[#allocation2 + $0x1c0] sm:$0xff]
    %v99 = vld [vmem:[#allocation2 + $0x1c8] sm:$0xff]
    %v100 = vld [vmem:[#allocation2 + $0x1d0] sm:$0xff]
    %v101 = vld [vmem:[#allocation2 + $0x1d8] sm:$0xff]
    %v102 = vld [vmem:[#allocation2 + $0x1e0] sm:$0xff]
    %v103 = vld [vmem:[#allocation2 + $0x1e8] sm:$0xff]
    %v104 = vld [vmem:[#allocation2 + $0x1f0] sm:$0xff]
    %v105 = vld [vmem:[#allocation2 + $0x1f8] sm:$0xff]
    %v106 = vld [vmem:[#allocation2 + $0x200] sm:$0xff]
    %v107 = vld [vmem:[#allocation2 + $0x208] sm:$0xff]
    %v108 = vld [vmem:[#allocation2 + $0x210] sm:$0xff]
    %v109 = vld [vmem:[#allocation2 + $0x218] sm:$0xff]
    %v110 = vld [vmem:[#allocation2 + $0x220] sm:$0xff]
    %v111 = vld [vmem:[#allocation2 + $0x228] sm:$0xff]
    %v112 = vld [vmem:[#allocation2 + $0x230] sm:$0xff]
    %v113 = vld [vmem:[#allocation2 + $0x238] sm:$0xff]
    %v114 = vld [vmem:[#allocation4] sm:$0x3]
    %v116 = vlaneseq
    %v117 = vshrl.u32 %v116, 7
    %v118 = vsub.s32 0, %v117
    %v119 = vrot.slane %v114, %v118
    %v120 = vlaneseq
    %v121 = vshrl.u32 %v120, 7
    %v122 = vsub.s32 1, %v121
    %v123 = vrot.slane %v114, %v122
    %v127 = vcombine.high %v41, %v41
    %v129 = vunpack.c.l.s4 1966171168
    %v130 = vunpack.c.0.s8 %v129
    %v131 = vlaneseq
    %v132 = vshrl.u32 %v131, 7
    %v133 = vsub.s32 %v130, %v132
    %v134 = vrot.slane %v41, %v133
    %v136 = vunpack.c.l.s4 1966171168
    %v137 = vunpack.c.0.s8 %v136
    %v138 = vlaneseq
    %v139 = vshrl.u32 %v138, 7
    %v140 = vsub.s32 %v137, %v139
    %v141 = vrot.slane %v127, %v140
    %v142 = vcombine.high %v134, %v134
    %v144 = vunpack.c.l.s4 1966171168
    %v145 = vunpack.c.0.s8 %v144
    %v146 = vlaneseq
    %v147 = vshrl.u32 %v146, 7
    %v148 = vsub.s32 %v145, %v147
    %v149 = vrot.slane %v134, %v148
    %v151 = vunpack.c.l.s4 1966171168
    %v152 = vunpack.c.0.s8 %v151
    %v153 = vlaneseq
    %v154 = vshrl.u32 %v153, 7
    %v155 = vsub.s32 %v152, %v154
    %v156 = vrot.slane %v141, %v155
    %v158 = vunpack.c.l.s4 1966171168
    %v159 = vunpack.c.0.s8 %v158
    %v160 = vlaneseq
    %v161 = vshrl.u32 %v160, 7
    %v162 = vsub.s32 %v159, %v161
    %v163 = vrot.slane %v142, %v162
    %v164 = vcombine.high %v149, %v149
    %v165 = vcombine.high %v163, %v163
    %v242 = vunpack.c.l.b16 %v42
    %v243 = vunpack.c.h.b16 %v42
    %v244 = vunpack.c.l.b16 %v43
    %v245 = vunpack.c.h.b16 %v43
    %v246 = vunpack.c.l.b16 %v44
    %v247 = vunpack.c.h.b16 %v44
    %v248 = vunpack.c.l.b16 %v45
    %v249 = vunpack.c.h.b16 %v45
    %v250 = vunpack.c.l.b16 %v46
    %v251 = vunpack.c.h.b16 %v46
    %v252 = vunpack.c.l.b16 %v47
    %v253 = vunpack.c.h.b16 %v47
    %v254 = vunpack.c.l.b16 %v48
    %v255 = vunpack.c.h.b16 %v48
    %v256 = vunpack.c.l.b16 %v49
    %v257 = vunpack.c.h.b16 %v49
    %v258 = vunpack.c.l.b16 %v50
    %v259 = vunpack.c.h.b16 %v50
    %v260 = vunpack.c.l.b16 %v51
    %v261 = vunpack.c.h.b16 %v51
    %v262 = vunpack.c.l.b16 %v52
    %v263 = vunpack.c.h.b16 %v52
    %v264 = vunpack.c.l.b16 %v53
    %v265 = vunpack.c.h.b16 %v53
    %v266 = vunpack.c.l.b16 %v54
    %v267 = vunpack.c.h.b16 %v54
    %v268 = vunpack.c.l.b16 %v55
    %v269 = vunpack.c.h.b16 %v55
    %v270 = vunpack.c.l.b16 %v56
    %v271 = vunpack.c.h.b16 %v56
    %v272 = vunpack.c.l.b16 %v57
    %v273 = vunpack.c.h.b16 %v57
    %v274 = vunpack.c.l.b16 %v58
    %v275 = vunpack.c.h.b16 %v58
    %v276 = vunpack.c.l.b16 %v59
    %v277 = vunpack.c.h.b16 %v59
    %v278 = vunpack.c.l.b16 %v60
    %v279 = vunpack.c.h.b16 %v60
    %v280 = vunpack.c.l.b16 %v61
    %v281 = vunpack.c.h.b16 %v61
    %v282 = vunpack.c.l.b16 %v62
    %v283 = vunpack.c.h.b16 %v62
    %v284 = vunpack.c.l.b16 %v63
    %v285 = vunpack.c.h.b16 %v63
    %v286 = vunpack.c.l.b16 %v64
    %v287 = vunpack.c.h.b16 %v64
    %v288 = vunpack.c.l.b16 %v65
    %v289 = vunpack.c.h.b16 %v65
    %v290 = vunpack.c.l.b16 %v66
    %v291 = vunpack.c.h.b16 %v66
    %v292 = vunpack.c.l.b16 %v67
    %v293 = vunpack.c.h.b16 %v67
    %v294 = vunpack.c.l.b16 %v68
    %v295 = vunpack.c.h.b16 %v68
    %v296 = vunpack.c.l.b16 %v69
    %v297 = vunpack.c.h.b16 %v69
    %v298 = vunpack.c.l.b16 %v70
    %v299 = vunpack.c.h.b16 %v70
    %v300 = vunpack.c.l.b16 %v71
    %v301 = vunpack.c.h.b16 %v71
    %v302 = vunpack.c.l.b16 %v72
    %v303 = vunpack.c.h.b16 %v72
    %v304 = vunpack.c.l.b16 %v73
    %v305 = vunpack.c.h.b16 %v73
    %v306 = vunpack.c.l.b16 %v74
    %v307 = vunpack.c.h.b16 %v74
    %v308 = vunpack.c.l.b16 %v75
    %v309 = vunpack.c.h.b16 %v75
    %v310 = vunpack.c.l.b16 %v76
    %v311 = vunpack.c.h.b16 %v76
    %v312 = vunpack.c.l.b16 %v77
    %v313 = vunpack.c.h.b16 %v77
    %v314 = vunpack.c.l.b16 %v78
    %v315 = vunpack.c.h.b16 %v78
    %v316 = vunpack.c.l.b16 %v79
    %v317 = vunpack.c.h.b16 %v79
    %v318 = vunpack.c.l.b16 %v80
    %v319 = vunpack.c.h.b16 %v80
    %v320 = vunpack.c.l.b16 %v81
    %v321 = vunpack.c.h.b16 %v81
    %v322 = vunpack.c.l.b16 %v82
    %v323 = vunpack.c.h.b16 %v82
    %v324 = vunpack.c.l.b16 %v83
    %v325 = vunpack.c.h.b16 %v83
    %v326 = vunpack.c.l.b16 %v84
    %v327 = vunpack.c.h.b16 %v84
    %v328 = vunpack.c.l.b16 %v85
    %v329 = vunpack.c.h.b16 %v85
    %v330 = vunpack.c.l.b16 %v86
    %v331 = vunpack.c.h.b16 %v86
    %v332 = vunpack.c.l.b16 %v87
    %v333 = vunpack.c.h.b16 %v87
    %v334 = vunpack.c.l.b16 %v88
    %v335 = vunpack.c.h.b16 %v88
    %v336 = vunpack.c.l.b16 %v89
    %v337 = vunpack.c.h.b16 %v89
    %v338 = vunpack.c.l.b16 %v90
    %v339 = vunpack.c.h.b16 %v90
    %v340 = vunpack.c.l.b16 %v91
    %v341 = vunpack.c.h.b16 %v91
    %v342 = vunpack.c.l.b16 %v92
    %v343 = vunpack.c.h.b16 %v92
    %v344 = vunpack.c.l.b16 %v93
    %v345 = vunpack.c.h.b16 %v93
    %v346 = vunpack.c.l.b16 %v94
    %v347 = vunpack.c.h.b16 %v94
    %v348 = vunpack.c.l.b16 %v95
    %v349 = vunpack.c.h.b16 %v95
    %v350 = vunpack.c.l.b16 %v96
    %v351 = vunpack.c.h.b16 %v96
    %v352 = vunpack.c.l.b16 %v97
    %v353 = vunpack.c.h.b16 %v97
    %v354 = vunpack.c.l.b16 %v98
    %v355 = vunpack.c.h.b16 %v98
    %v356 = vunpack.c.l.b16 %v99
    %v357 = vunpack.c.h.b16 %v99
    %v358 = vunpack.c.l.b16 %v100
    %v359 = vunpack.c.h.b16 %v100
    %v360 = vunpack.c.l.b16 %v101
    %v361 = vunpack.c.h.b16 %v101
    %v362 = vunpack.c.l.b16 %v102
    %v363 = vunpack.c.h.b16 %v102
    %v364 = vunpack.c.l.b16 %v103
    %v365 = vunpack.c.h.b16 %v103
    %v366 = vunpack.c.l.b16 %v104
    %v367 = vunpack.c.h.b16 %v104
    %v368 = vunpack.c.l.b16 %v105
    %v369 = vunpack.c.h.b16 %v105
    %v370 = vunpack.c.l.b16 %v106
    %v371 = vunpack.c.h.b16 %v106
    %v372 = vunpack.c.l.b16 %v107
    %v373 = vunpack.c.h.b16 %v107
    %v374 = vunpack.c.l.b16 %v108
    %v375 = vunpack.c.h.b16 %v108
    %v376 = vunpack.c.l.b16 %v109
    %v377 = vunpack.c.h.b16 %v109
    %v378 = vunpack.c.l.b16 %v110
    %v379 = vunpack.c.h.b16 %v110
    %v380 = vunpack.c.l.b16 %v111
    %v381 = vunpack.c.h.b16 %v111
    %v382 = vunpack.c.l.b16 %v112
    %v383 = vunpack.c.h.b16 %v112
    %v384 = vunpack.c.l.b16 %v113
    %v385 = vunpack.c.h.b16 %v113
    %v386 = vpack.c.b16 %v244, %v242
    %v387 = vpack.c.b16 %v245, %v243
    %v388 = vpack.c.b16 %v248, %v246
    %v389 = vpack.c.b16 %v249, %v247
    %v390 = vpack.c.b16 %v252, %v250
    %v391 = vpack.c.b16 %v253, %v251
    %v392 = vpack.c.b16 %v256, %v254
    %v393 = vpack.c.b16 %v257, %v255
    %v394 = vpack.c.b16 %v260, %v258
    %v395 = vpack.c.b16 %v261, %v259
    %v396 = vpack.c.b16 %v264, %v262
    %v397 = vpack.c.b16 %v265, %v263
    %v398 = vpack.c.b16 %v268, %v266
    %v399 = vpack.c.b16 %v269, %v267
    %v400 = vpack.c.b16 %v272, %v270
    %v401 = vpack.c.b16 %v273, %v271
    %v402 = vpack.c.b16 %v276, %v274
    %v403 = vpack.c.b16 %v277, %v275
    %v404 = vpack.c.b16 %v280, %v278
    %v405 = vpack.c.b16 %v281, %v279
    %v406 = vpack.c.b16 %v284, %v282
    %v407 = vpack.c.b16 %v285, %v283
    %v408 = vpack.c.b16 %v288, %v286
    %v409 = vpack.c.b16 %v289, %v287
    %v410 = vpack.c.b16 %v292, %v290
    %v411 = vpack.c.b16 %v293, %v291
    %v412 = vpack.c.b16 %v296, %v294
    %v413 = vpack.c.b16 %v297, %v295
    %v414 = vpack.c.b16 %v300, %v298
    %v415 = vpack.c.b16 %v301, %v299
    %v416 = vpack.c.b16 %v304, %v302
    %v417 = vpack.c.b16 %v305, %v303
    %v418 = vpack.c.b16 %v308, %v306
    %v419 = vpack.c.b16 %v309, %v307
    %v420 = vpack.c.b16 %v312, %v310
    %v421 = vpack.c.b16 %v313, %v311
    %v422 = vpack.c.b16 %v316, %v314
    %v423 = vpack.c.b16 %v317, %v315
    %v424 = vpack.c.b16 %v320, %v318
    %v425 = vpack.c.b16 %v321, %v319
    %v426 = vpack.c.b16 %v324, %v322
    %v427 = vpack.c.b16 %v325, %v323
    %v428 = vpack.c.b16 %v328, %v326
    %v429 = vpack.c.b16 %v329, %v327
    %v430 = vpack.c.b16 %v332, %v330
    %v431 = vpack.c.b16 %v333, %v331
    %v432 = vpack.c.b16 %v336, %v334
    %v433 = vpack.c.b16 %v337, %v335
    %v434 = vpack.c.b16 %v340, %v338
    %v435 = vpack.c.b16 %v341, %v339
    %v436 = vpack.c.b16 %v344, %v342
    %v437 = vpack.c.b16 %v345, %v343
    %v438 = vpack.c.b16 %v348, %v346
    %v439 = vpack.c.b16 %v349, %v347
    %v440 = vpack.c.b16 %v352, %v350
    %v441 = vpack.c.b16 %v353, %v351
    %v442 = vpack.c.b16 %v356, %v354
    %v443 = vpack.c.b16 %v357, %v355
    %v444 = vpack.c.b16 %v360, %v358
    %v445 = vpack.c.b16 %v361, %v359
    %v446 = vpack.c.b16 %v364, %v362
    %v447 = vpack.c.b16 %v365, %v363
    %v448 = vpack.c.b16 %v368, %v366
    %v449 = vpack.c.b16 %v369, %v367
    %v450 = vpack.c.b16 %v372, %v370
    %v451 = vpack.c.b16 %v373, %v371
    %v452 = vpack.c.b16 %v376, %v374
    %v453 = vpack.c.b16 %v377, %v375
    %v454 = vpack.c.b16 %v380, %v378
    %v455 = vpack.c.b16 %v381, %v379
    %v456 = vpack.c.b16 %v384, %v382
    %v457 = vpack.c.b16 %v385, %v383
    %vm530 = vcmask 523264
    %v532 = vsel %vm530, %v156, 0
    %534 = vmatprep.subr.bf16.mxu0 %v387
    %535 = vmatpush1.bf16.msra.mxu0 %v386
    %536 = vmatprep.subr.bf16.mxu0 %v389
    %537 = vmatpush1.bf16.msra.mxu0 %v388
    %538 = vmatprep.subr.bf16.mxu0 %v391
    %539 = vmatpush1.bf16.msra.mxu0 %v390
    %540 = vmatprep.subr.bf16.mxu0 %v393
    %541 = vmatpush1.bf16.msra.mxu0 %v392
    %542 = vmatprep.subr.bf16.mxu0 %v395
    %543 = vmatpush1.bf16.msra.mxu0 %v394
    %544 = vmatprep.subr.bf16.mxu0 %v397
    %545 = vmatpush1.bf16.msra.mxu0 %v396
    %546 = vmatprep.subr.bf16.mxu0 %v399
    %547 = vmatpush1.bf16.msra.mxu0 %v398
    %548 = vmatprep.subr.bf16.mxu0 %v401
    %549 = vmatpush1.bf16.msra.mxu0 %v400
    %550 = vmatprep.subr.bf16.mxu0 %v403
    %551 = vmatpush1.bf16.msra.mxu0 %v402
    %552 = vmatprep.subr.bf16.mxu0 %v405
    %553 = vmatpush1.bf16.msra.mxu0 %v404
    %554 = vmatprep.subr.bf16.mxu0 %v407
    %555 = vmatpush1.bf16.msra.mxu0 %v406
    %556 = vmatprep.subr.bf16.mxu0 %v409
    %557 = vmatpush1.bf16.msra.mxu0 %v408
    %558 = vmatprep.subr.bf16.mxu0 %v411
    %559 = vmatpush1.bf16.msra.mxu0 %v410
    %560 = vmatprep.subr.bf16.mxu0 %v413
    %561 = vmatpush1.bf16.msra.mxu0 %v412
    %562 = vmatprep.subr.bf16.mxu0 %v415
    %563 = vmatpush1.bf16.msra.mxu0 %v414
    %564 = vmatprep.subr.bf16.mxu0 %v417
    %565 = vmatpush1.bf16.msra.mxu0 %v416
    %566 = vmatprep.mubr.bf16.mxu0 %v163
    %567 = vmatmul.mubr.bf16.gmra.mrb[0].mxu0 %v149
    %v568 = vpop.f32.mrb[0].mxu0
    %v569 = vadd.f32 %v119, %v568
    %v570 = vpop.f32.mrb[0].mxu0
    %v571 = vadd.f32 %v123, %v570
    %v572 = vpop.f32.mrb[0].mxu0
    %v573 = vpop.f32.mrb[0].mxu0
    %574 = vdwg.mxu0
    %575 = vmatprep.subr.bf16.mxu0 %v419
    %576 = vmatpush1.bf16.msra.mxu0 %v418
    %577 = vmatprep.subr.bf16.mxu0 %v421
    %578 = vmatpush1.bf16.msra.mxu0 %v420
    %579 = vmatprep.subr.bf16.mxu0 %v423
    %580 = vmatpush1.bf16.msra.mxu0 %v422
    %581 = vmatprep.subr.bf16.mxu0 %v425
    %582 = vmatpush1.bf16.msra.mxu0 %v424
    %583 = vmatprep.subr.bf16.mxu0 %v427
    %584 = vmatpush1.bf16.msra.mxu0 %v426
    %585 = vmatprep.subr.bf16.mxu0 %v429
    %586 = vmatpush1.bf16.msra.mxu0 %v428
    %587 = vmatprep.subr.bf16.mxu0 %v431
    %588 = vmatpush1.bf16.msra.mxu0 %v430
    %589 = vmatprep.subr.bf16.mxu0 %v433
    %590 = vmatpush1.bf16.msra.mxu0 %v432
    %591 = vmatprep.subr.bf16.mxu0 %v435
    %592 = vmatpush1.bf16.msra.mxu0 %v434
    %593 = vmatprep.subr.bf16.mxu0 %v437
    %594 = vmatpush1.bf16.msra.mxu0 %v436
    %595 = vmatprep.subr.bf16.mxu0 %v439
    %596 = vmatpush1.bf16.msra.mxu0 %v438
    %597 = vmatprep.subr.bf16.mxu0 %v441
    %598 = vmatpush1.bf16.msra.mxu0 %v440
    %599 = vmatprep.subr.bf16.mxu0 %v443
    %600 = vmatpush1.bf16.msra.mxu0 %v442
    %601 = vmatprep.subr.bf16.mxu0 %v445
    %602 = vmatpush1.bf16.msra.mxu0 %v444
    %603 = vmatprep.subr.bf16.mxu0 %v447
    %604 = vmatpush1.bf16.msra.mxu0 %v446
    %605 = vmatprep.subr.bf16.mxu0 %v449
    %606 = vmatpush1.bf16.msra.mxu0 %v448
    %607 = vmatprep.mubr.bf16.mxu0 %v165
    %608 = vmatmul.mubr.bf16.gmra.mrb[0].mxu0 %v164
    %v609 = vpop.f32.mrb[0].mxu0
    %v610 = vadd.f32 %v569, %v609
    %v611 = vpop.f32.mrb[0].mxu0
    %v612 = vadd.f32 %v571, %v611
    %v613 = vpop.f32.mrb[0].mxu0
    %v614 = vpop.f32.mrb[0].mxu0
    %615 = vdwg.mxu0
    %616 = vmatprep.subr.bf16.mxu0 %v451
    %617 = vmatpush1.bf16.msra.mxu0 %v450
    %618 = vmatprep.subr.bf16.mxu0 %v453
    %619 = vmatpush1.bf16.msra.mxu0 %v452
    %620 = vmatprep.subr.bf16.mxu0 %v455
    %621 = vmatpush1.bf16.msra.mxu0 %v454
    %622 = vmatprep.subr.bf16.mxu0 %v457
    %623 = vmatpush1.bf16.msra.mxu0 %v456
    %624 = vmatprep.subr.bf16.mxu0 0
    %625 = vmatpush1.bf16.msra.mxu0 0
    %626 = vmatprep.subr.bf16.mxu0 0
    %627 = vmatpush1.bf16.msra.mxu0 0
    %628 = vmatprep.subr.bf16.mxu0 0
    %629 = vmatpush1.bf16.msra.mxu0 0
    %630 = vmatprep.subr.bf16.mxu0 0
    %631 = vmatpush1.bf16.msra.mxu0 0
    %632 = vmatprep.subr.bf16.mxu0 0
    %633 = vmatpush1.bf16.msra.mxu0 0
    %634 = vmatprep.subr.bf16.mxu0 0
    %635 = vmatpush1.bf16.msra.mxu0 0
    %636 = vmatprep.subr.bf16.mxu0 0
    %637 = vmatpush1.bf16.msra.mxu0 0
    %638 = vmatprep.subr.bf16.mxu0 0
    %639 = vmatpush1.bf16.msra.mxu0 0
    %640 = vmatprep.subr.bf16.mxu0 0
    %641 = vmatpush1.bf16.msra.mxu0 0
    %642 = vmatprep.subr.bf16.mxu0 0
    %643 = vmatpush1.bf16.msra.mxu0 0
    %644 = vmatprep.subr.bf16.mxu0 0
    %645 = vmatpush1.bf16.msra.mxu0 0
    %646 = vmatprep.subr.bf16.mxu0 0
    %647 = vmatpush1.bf16.msra.mxu0 0
    %648 = vmatprep.mubr.bf16.mxu0 0
    %649 = vmatmul.mubr.bf16.gmra.mrb[0].mxu0 %v532
    %v650 = vpop.f32.mrb[0].mxu0
    %v651 = vadd.f32 %v610, %v650
    %v652 = vpop.f32.mrb[0].mxu0
    %v653 = vadd.f32 %v612, %v652
    %v654 = vpop.f32.mrb[0].mxu0
    %v655 = vpop.f32.mrb[0].mxu0
    %656 = vdwg.mxu0
    %v657 = vmax.f32 %v651, 0.0
    %v658 = vmax.f32 %v653, 0.0
    %v659 = vpack.c.bf16 %v657, %v657
    %v660 = vpack.c.bf16 %v658, %v658
    %v663 = vcombine.low %v659, %v660
    %v665 = vunpack.c.l.s4 1966171168
    %v666 = vunpack.c.0.s8 %v665
    %v667 = vlaneseq
    %v668 = vshrl.u32 %v667, 7
    %v669 = vsub.s32 %v666, %v668
    %v670 = vrot.slane %v663, %v669
    %v672 = vunpack.c.l.s4 1966171168
    %v673 = vunpack.c.0.s8 %v672
    %v674 = vlaneseq
    %v675 = vshrl.u32 %v674, 7
    %v676 = vsub.s32 %v673, %v675
    %v677 = vrot.slane %v670, %v676
    %679 = vst [vmem:[%s3] sm:$0x3] %v677
    // Predicated region
    $region22: #{k_sparse_autoencoder_forward.11} parent=1 // pred_check
      _
    $region23: #{k_sparse_autoencoder_forward.11} parent=1 // pred_check_branch
      %681 = sbr.rel (0) target = $region25
    $region24: #{k_sparse_autoencoder_forward.11} parent=1 // pred_region
      _
    $region25: #{k_sparse_autoencoder_forward.11} parent=1 // pred_fallthru
      _
    // Predicated region
    $region26: #{k_sparse_autoencoder_forward.11} parent=1 // pred_check
      _
    $region27: #{k_sparse_autoencoder_forward.11} parent=1 // pred_check_branch
      %683 = sbr.rel (0) target = $region29
    $region28: #{k_sparse_autoencoder_forward.11} parent=1 // pred_region
      _
    $region29: #{k_sparse_autoencoder_forward.11} parent=1 // pred_fallthru
      _
    %684 = vsyncpa [#allocation3], 1
    %685 = vsyncpa [#allocation5], 1

// kernel: k_sparse_autoencoder_forward.12
$region0: #{k_sparse_autoencoder_forward.12}
  #allocation0 [shape = 'u32[]', space=smem, size = 0x4, offset = 0x4, fixed_abs, tag = 'smem constant byte address 0x4 - core index']
  #allocation1 [shape = 'u32[144,128]{1,0:T(1,128)}', space=vmem, size = 0x12000, scoped, tag = 'internal scratch']
  %s0 = inlined_call_operand.vmem [shape: bf16[2,256], index: 0, kind: input, shape index: {}]
  %s1 = inlined_call_operand.vmem [shape: bf16[256,576], index: 1, kind: input, shape index: {}]
  %s2 = inlined_call_operand.vmem [shape: f32[1,576], index: 2, kind: input, shape index: {}]
  %s3 = inlined_call_operand.vmem [shape: bf16[2,576], index: 3, kind: output, shape index: {}]
  %s4 = sld [smem:[#allocation0]]
  $region22: #{k_sparse_autoencoder_forward.12} parent=0
    _
  %s6 = ssub.s32 1, %s4
  %s7 = scalar_select 0, %s6, %s4
  // Predicated region
  $region2: #{k_sparse_autoencoder_forward.12} parent=0 // pred_check
    _
  $region3: #{k_sparse_autoencoder_forward.12} parent=0 // pred_check_branch
    %9 = sbr.rel (0) target = $region5
  $region4: #{k_sparse_autoencoder_forward.12} parent=0 // pred_region
    _
  $region5: #{k_sparse_autoencoder_forward.12} parent=0 // pred_fallthru
    _
  // Predicated region
  $region6: #{k_sparse_autoencoder_forward.12} parent=0 // pred_check
    _
  $region7: #{k_sparse_autoencoder_forward.12} parent=0 // pred_check_branch
    %11 = sbr.rel (0) target = $region9
  $region8: #{k_sparse_autoencoder_forward.12} parent=0 // pred_region
    _
  $region9: #{k_sparse_autoencoder_forward.12} parent=0 // pred_fallthru
    _
  // Predicated region
  $region10: #{k_sparse_autoencoder_forward.12} parent=0 // pred_check
    _
  $region11: #{k_sparse_autoencoder_forward.12} parent=0 // pred_check_branch
    %13 = sbr.rel (0) target = $region13
  $region12: #{k_sparse_autoencoder_forward.12} parent=0 // pred_region
    _
  $region13: #{k_sparse_autoencoder_forward.12} parent=0 // pred_fallthru
    _
  %v15 = vld [vmem:[%s0] sm:$0x3]
  %v16 = vld [vmem:[%s1] sm:$0xff]
  %v17 = vld [vmem:[%s1 + $0x8] sm:$0xff]
  %v18 = vld [vmem:[%s1 + $0x10] sm:$0xf]
  %v19 = vld [vmem:[%s1 + $0x14] sm:$0xff]
  %v20 = vld [vmem:[%s1 + $0x1c] sm:$0xff]
  %v21 = vld [vmem:[%s1 + $0x24] sm:$0xf]
  %v22 = vld [vmem:[%s1 + $0x28] sm:$0xff]
  %v23 = vld [vmem:[%s1 + $0x30] sm:$0xff]
  %v24 = vld [vmem:[%s1 + $0x38] sm:$0xf]
  %v25 = vld [vmem:[%s1 + $0x3c] sm:$0xff]
  %v26 = vld [vmem:[%s1 + $0x44] sm:$0xff]
  %v27 = vld [vmem:[%s1 + $0x4c] sm:$0xf]
  %v28 = vld [vmem:[%s1 + $0x50] sm:$0xff]
  %v29 = vld [vmem:[%s1 + $0x58] sm:$0xff]
  %v30 = vld [vmem:[%s1 + $0x60] sm:$0xf]
  %v31 = vld [vmem:[%s1 + $0x64] sm:$0xff]
  %v32 = vld [vmem:[%s1 + $0x6c] sm:$0xff]
  %v33 = vld [vmem:[%s1 + $0x74] sm:$0xf]
  %v34 = vld [vmem:[%s1 + $0x78] sm:$0xff]
  %v35 = vld [vmem:[%s1 + $0x80] sm:$0xff]
  %v36 = vld [vmem:[%s1 + $0x88] sm:$0xf]
  %v37 = vld [vmem:[%s1 + $0x8c] sm:$0xff]
  %v38 = vld [vmem:[%s1 + $0x94] sm:$0xff]
  %v39 = vld [vmem:[%s1 + $0x9c] sm:$0xf]
  %v40 = vld [vmem:[%s1 + $0xa0] sm:$0xff]
  %v41 = vld [vmem:[%s1 + $0xa8] sm:$0xff]
  %v42 = vld [vmem:[%s1 + $0xb0] sm:$0xf]
  %v43 = vld [vmem:[%s1 + $0xb4] sm:$0xff]
  %v44 = vld [vmem:[%s1 + $0xbc] sm:$0xff]
  %v45 = vld [vmem:[%s1 + $0xc4] sm:$0xf]
  %v46 = vld [vmem:[%s1 + $0xc8] sm:$0xff]
  %v47 = vld [vmem:[%s1 + $0xd0] sm:$0xff]
  %v48 = vld [vmem:[%s1 + $0xd8] sm:$0xf]
  %v49 = vld [vmem:[%s1 + $0xdc] sm:$0xff]
  %v50 = vld [vmem:[%s1 + $0xe4] sm:$0xff]
  %v51 = vld [vmem:[%s1 + $0xec] sm:$0xf]
  %v52 = vld [vmem:[%s1 + $0xf0] sm:$0xff]
  %v53 = vld [vmem:[%s1 + $0xf8] sm:$0xff]
  %v54 = vld [vmem:[%s1 + $0x100] sm:$0xf]
  %v55 = vld [vmem:[%s1 + $0x104] sm:$0xff]
  %v56 = vld [vmem:[%s1 + $0x10c] sm:$0xff]
  %v57 = vld [vmem:[%s1 + $0x114] sm:$0xf]
  %v58 = vld [vmem:[%s1 + $0x118] sm:$0xff]
  %v59 = vld [vmem:[%s1 + $0x120] sm:$0xff]
  %v60 = vld [vmem:[%s1 + $0x128] sm:$0xf]
  %v61 = vld [vmem:[%s1 + $0x12c] sm:$0xff]
  %v62 = vld [vmem:[%s1 + $0x134] sm:$0xff]
  %v63 = vld [vmem:[%s1 + $0x13c] sm:$0xf]
  %v64 = vld [vmem:[%s1 + $0x140] sm:$0xff]
  %v65 = vld [vmem:[%s1 + $0x148] sm:$0xff]
  %v66 = vld [vmem:[%s1 + $0x150] sm:$0xf]
  %v67 = vld [vmem:[%s1 + $0x154] sm:$0xff]
  %v68 = vld [vmem:[%s1 + $0x15c] sm:$0xff]
  %v69 = vld [vmem:[%s1 + $0x164] sm:$0xf]
  %v70 = vld [vmem:[%s1 + $0x168] sm:$0xff]
  %v71 = vld [vmem:[%s1 + $0x170] sm:$0xff]
  %v72 = vld [vmem:[%s1 + $0x178] sm:$0xf]
  %v73 = vld [vmem:[%s1 + $0x17c] sm:$0xff]
  %v74 = vld [vmem:[%s1 + $0x184] sm:$0xff]
  %v75 = vld [vmem:[%s1 + $0x18c] sm:$0xf]
  %v76 = vld [vmem:[%s1 + $0x190] sm:$0xff]
  %v77 = vld [vmem:[%s1 + $0x198] sm:$0xff]
  %v78 = vld [vmem:[%s1 + $0x1a0] sm:$0xf]
  %v79 = vld [vmem:[%s1 + $0x1a4] sm:$0xff]
  %v80 = vld [vmem:[%s1 + $0x1ac] sm:$0xff]
  %v81 = vld [vmem:[%s1 + $0x1b4] sm:$0xf]
  %v82 = vld [vmem:[%s1 + $0x1b8] sm:$0xff]
  %v83 = vld [vmem:[%s1 + $0x1c0] sm:$0xff]
  %v84 = vld [vmem:[%s1 + $0x1c8] sm:$0xf]
  %v85 = vld [vmem:[%s1 + $0x1cc] sm:$0xff]
  %v86 = vld [vmem:[%s1 + $0x1d4] sm:$0xff]
  %v87 = vld [vmem:[%s1 + $0x1dc] sm:$0xf]
  %v88 = vld [vmem:[%s1 + $0x1e0] sm:$0xff]
  %v89 = vld [vmem:[%s1 + $0x1e8] sm:$0xff]
  %v90 = vld [vmem:[%s1 + $0x1f0] sm:$0xf]
  %v91 = vld [vmem:[%s1 + $0x1f4] sm:$0xff]
  %v92 = vld [vmem:[%s1 + $0x1fc] sm:$0xff]
  %v93 = vld [vmem:[%s1 + $0x204] sm:$0xf]
  %v94 = vld [vmem:[%s1 + $0x208] sm:$0xff]
  %v95 = vld [vmem:[%s1 + $0x210] sm:$0xff]
  %v96 = vld [vmem:[%s1 + $0x218] sm:$0xf]
  %v97 = vld [vmem:[%s1 + $0x21c] sm:$0xff]
  %v98 = vld [vmem:[%s1 + $0x224] sm:$0xff]
  %v99 = vld [vmem:[%s1 + $0x22c] sm:$0xf]
  %v100 = vld [vmem:[%s1 + $0x230] sm:$0xff]
  %v101 = vld [vmem:[%s1 + $0x238] sm:$0xff]
  %v102 = vld [vmem:[%s1 + $0x240] sm:$0xf]
  %v103 = vld [vmem:[%s1 + $0x244] sm:$0xff]
  %v104 = vld [vmem:[%s1 + $0x24c] sm:$0xff]
  %v105 = vld [vmem:[%s1 + $0x254] sm:$0xf]
  %v106 = vld [vmem:[%s1 + $0x258] sm:$0xff]
  %v107 = vld [vmem:[%s1 + $0x260] sm:$0xff]
  %v108 = vld [vmem:[%s1 + $0x268] sm:$0xf]
  %v109 = vld [vmem:[%s1 + $0x26c] sm:$0xff]
  %v110 = vld [vmem:[%s1 + $0x274] sm:$0xff]
  %v111 = vld [vmem:[%s1 + $0x27c] sm:$0xf]
  %v112 = vld [vmem:[%s2] sm:$0x1f]
  %v114 = vlaneseq
  %v115 = vshrl.u32 %v114, 7
  %v116 = vsub.s32 0, %v115
  %v117 = vrot.slane %v112, %v116
  %v118 = vlaneseq
  %v119 = vshrl.u32 %v118, 7
  %v120 = vsub.s32 1, %v119
  %v121 = vrot.slane %v112, %v120
  %v122 = vlaneseq
  %v123 = vshrl.u32 %v122, 7
  %v124 = vsub.s32 2, %v123
  %v125 = vrot.slane %v112, %v124
  %v126 = vlaneseq
  %v127 = vshrl.u32 %v126, 7
  %v128 = vsub.s32 3, %v127
  %v129 = vrot.slane %v112, %v128
  %v130 = vlaneseq
  %v131 = vshrl.u32 %v130, 7
  %v132 = vsub.s32 4, %v131
  %v133 = vrot.slane %v112, %v132
  %v141 = vunpack.c.l.s4 1966171168
  %v142 = vunpack.c.0.s8 %v141
  %v143 = vlaneseq
  %v144 = vshrl.u32 %v143, 7
  %v145 = vsub.s32 %v142, %v144
  %v146 = vrot.slane %v15, %v145
  %v147 = vcombine.high %v146, %v146
  %v149 = vunpack.c.l.s4 1966171168
  %v150 = vunpack.c.0.s8 %v149
  %v151 = vlaneseq
  %v152 = vshrl.u32 %v151, 7
  %v153 = vsub.s32 %v150, %v152
  %v154 = vrot.slane %v146, %v153
  %v156 = vunpack.c.l.s4 1966171168
  %v157 = vunpack.c.0.s8 %v156
  %v158 = vlaneseq
  %v159 = vshrl.u32 %v158, 7
  %v160 = vsub.s32 %v157, %v159
  %v161 = vrot.slane %v147, %v160
  %v260 = vunpack.c.l.b16 %v16
  %v261 = vunpack.c.h.b16 %v16
  %v262 = vunpack.c.l.b16 %v17
  %v263 = vunpack.c.h.b16 %v17
  %v264 = vunpack.c.l.b16 %v18
  %v265 = vunpack.c.l.b16 %v19
  %v266 = vunpack.c.h.b16 %v19
  %v267 = vunpack.c.l.b16 %v20
  %v268 = vunpack.c.h.b16 %v20
  %v269 = vunpack.c.l.b16 %v21
  %v270 = vunpack.c.l.b16 %v22
  %v271 = vunpack.c.h.b16 %v22
  %v272 = vunpack.c.l.b16 %v23
  %v273 = vunpack.c.h.b16 %v23
  %v274 = vunpack.c.l.b16 %v24
  %v275 = vunpack.c.l.b16 %v25
  %v276 = vunpack.c.h.b16 %v25
  %v277 = vunpack.c.l.b16 %v26
  %v278 = vunpack.c.h.b16 %v26
  %v279 = vunpack.c.l.b16 %v27
  %v280 = vunpack.c.l.b16 %v28
  %v281 = vunpack.c.h.b16 %v28
  %v282 = vunpack.c.l.b16 %v29
  %v283 = vunpack.c.h.b16 %v29
  %v284 = vunpack.c.l.b16 %v30
  %v285 = vunpack.c.l.b16 %v31
  %v286 = vunpack.c.h.b16 %v31
  %v287 = vunpack.c.l.b16 %v32
  %v288 = vunpack.c.h.b16 %v32
  %v289 = vunpack.c.l.b16 %v33
  %v290 = vunpack.c.l.b16 %v34
  %v291 = vunpack.c.h.b16 %v34
  %v292 = vunpack.c.l.b16 %v35
  %v293 = vunpack.c.h.b16 %v35
  %v294 = vunpack.c.l.b16 %v36
  %v295 = vunpack.c.l.b16 %v37
  %v296 = vunpack.c.h.b16 %v37
  %v297 = vunpack.c.l.b16 %v38
  %v298 = vunpack.c.h.b16 %v38
  %v299 = vunpack.c.l.b16 %v39
  %v300 = vunpack.c.l.b16 %v40
  %v301 = vunpack.c.h.b16 %v40
  %v302 = vunpack.c.l.b16 %v41
  %v303 = vunpack.c.h.b16 %v41
  %v304 = vunpack.c.l.b16 %v42
  %v305 = vunpack.c.l.b16 %v43
  %v306 = vunpack.c.h.b16 %v43
  %v307 = vunpack.c.l.b16 %v44
  %v308 = vunpack.c.h.b16 %v44
  %v309 = vunpack.c.l.b16 %v45
  %v310 = vunpack.c.l.b16 %v46
  %v311 = vunpack.c.h.b16 %v46
  %v312 = vunpack.c.l.b16 %v47
  %v313 = vunpack.c.h.b16 %v47
  %v314 = vunpack.c.l.b16 %v48
  %v315 = vunpack.c.l.b16 %v49
  %v316 = vunpack.c.h.b16 %v49
  %v317 = vunpack.c.l.b16 %v50
  %v318 = vunpack.c.h.b16 %v50
  %v319 = vunpack.c.l.b16 %v51
  %v320 = vunpack.c.l.b16 %v52
  %v321 = vunpack.c.h.b16 %v52
  %v322 = vunpack.c.l.b16 %v53
  %v323 = vunpack.c.h.b16 %v53
  %v324 = vunpack.c.l.b16 %v54
  %v325 = vunpack.c.l.b16 %v55
  %v326 = vunpack.c.h.b16 %v55
  %v327 = vunpack.c.l.b16 %v56
  %v328 = vunpack.c.h.b16 %v56
  %v329 = vunpack.c.l.b16 %v57
  %v330 = vunpack.c.l.b16 %v58
  %v331 = vunpack.c.h.b16 %v58
  %v332 = vunpack.c.l.b16 %v59
  %v333 = vunpack.c.h.b16 %v59
  %v334 = vunpack.c.l.b16 %v60
  %v335 = vunpack.c.l.b16 %v61
  %v336 = vunpack.c.h.b16 %v61
  %v337 = vunpack.c.l.b16 %v62
  %v338 = vunpack.c.h.b16 %v62
  %v339 = vunpack.c.l.b16 %v63
  %v340 = vunpack.c.l.b16 %v64
  %v341 = vunpack.c.h.b16 %v64
  %v342 = vunpack.c.l.b16 %v65
  %v343 = vunpack.c.h.b16 %v65
  %v344 = vunpack.c.l.b16 %v66
  %v345 = vunpack.c.l.b16 %v67
  %v346 = vunpack.c.h.b16 %v67
  %v347 = vunpack.c.l.b16 %v68
  %v348 = vunpack.c.h.b16 %v68
  %v349 = vunpack.c.l.b16 %v69
  %v350 = vunpack.c.l.b16 %v70
  %v351 = vunpack.c.h.b16 %v70
  %v352 = vunpack.c.l.b16 %v71
  %v353 = vunpack.c.h.b16 %v71
  %v354 = vunpack.c.l.b16 %v72
  %v355 = vunpack.c.l.b16 %v73
  %v356 = vunpack.c.h.b16 %v73
  %v357 = vunpack.c.l.b16 %v74
  %v358 = vunpack.c.h.b16 %v74
  %v359 = vunpack.c.l.b16 %v75
  %v360 = vunpack.c.l.b16 %v76
  %v361 = vunpack.c.h.b16 %v76
  %v362 = vunpack.c.l.b16 %v77
  %v363 = vunpack.c.h.b16 %v77
  %v364 = vunpack.c.l.b16 %v78
  %v365 = vunpack.c.l.b16 %v79
  %v366 = vunpack.c.h.b16 %v79
  %v367 = vunpack.c.l.b16 %v80
  %v368 = vunpack.c.h.b16 %v80
  %v369 = vunpack.c.l.b16 %v81
  %v370 = vunpack.c.l.b16 %v82
  %v371 = vunpack.c.h.b16 %v82
  %v372 = vunpack.c.l.b16 %v83
  %v373 = vunpack.c.h.b16 %v83
  %v374 = vunpack.c.l.b16 %v84
  %v375 = vunpack.c.l.b16 %v85
  %v376 = vunpack.c.h.b16 %v85
  %v377 = vunpack.c.l.b16 %v86
  %v378 = vunpack.c.h.b16 %v86
  %v379 = vunpack.c.l.b16 %v87
  %v380 = vunpack.c.l.b16 %v88
  %v381 = vunpack.c.h.b16 %v88
  %v382 = vunpack.c.l.b16 %v89
  %v383 = vunpack.c.h.b16 %v89
  %v384 = vunpack.c.l.b16 %v90
  %v385 = vunpack.c.l.b16 %v91
  %v386 = vunpack.c.h.b16 %v91
  %v387 = vunpack.c.l.b16 %v92
  %v388 = vunpack.c.h.b16 %v92
  %v389 = vunpack.c.l.b16 %v93
  %v390 = vunpack.c.l.b16 %v94
  %v391 = vunpack.c.h.b16 %v94
  %v392 = vunpack.c.l.b16 %v95
  %v393 = vunpack.c.h.b16 %v95
  %v394 = vunpack.c.l.b16 %v96
  %v395 = vunpack.c.l.b16 %v97
  %v396 = vunpack.c.h.b16 %v97
  %v397 = vunpack.c.l.b16 %v98
  %v398 = vunpack.c.h.b16 %v98
  %v399 = vunpack.c.l.b16 %v99
  %v400 = vunpack.c.l.b16 %v100
  %v401 = vunpack.c.h.b16 %v100
  %v402 = vunpack.c.l.b16 %v101
  %v403 = vunpack.c.h.b16 %v101
  %v404 = vunpack.c.l.b16 %v102
  %v405 = vunpack.c.l.b16 %v103
  %v406 = vunpack.c.h.b16 %v103
  %v407 = vunpack.c.l.b16 %v104
  %v408 = vunpack.c.h.b16 %v104
  %v409 = vunpack.c.l.b16 %v105
  %v410 = vunpack.c.l.b16 %v106
  %v411 = vunpack.c.h.b16 %v106
  %v412 = vunpack.c.l.b16 %v107
  %v413 = vunpack.c.h.b16 %v107
  %v414 = vunpack.c.l.b16 %v108
  %v415 = vunpack.c.l.b16 %v109
  %v416 = vunpack.c.h.b16 %v109
  %v417 = vunpack.c.l.b16 %v110
  %v418 = vunpack.c.h.b16 %v110
  %v419 = vunpack.c.l.b16 %v111
  %v420 = vpack.c.b16 %v265, %v260
  %v421 = vpack.c.b16 %v266, %v261
  %v422 = vpack.c.b16 %v267, %v262
  %v423 = vpack.c.b16 %v268, %v263
  %v424 = vpack.c.b16 %v269, %v264
  %v425 = vpack.c.b16 %v275, %v270
  %v426 = vpack.c.b16 %v276, %v271
  %v427 = vpack.c.b16 %v277, %v272
  %v428 = vpack.c.b16 %v278, %v273
  %v429 = vpack.c.b16 %v279, %v274
  %v430 = vpack.c.b16 %v285, %v280
  %v431 = vpack.c.b16 %v286, %v281
  %v432 = vpack.c.b16 %v287, %v282
  %v433 = vpack.c.b16 %v288, %v283
  %v434 = vpack.c.b16 %v289, %v284
  %v435 = vpack.c.b16 %v295, %v290
  %v436 = vpack.c.b16 %v296, %v291
  %v437 = vpack.c.b16 %v297, %v292
  %v438 = vpack.c.b16 %v298, %v293
  %v439 = vpack.c.b16 %v299, %v294
  %v440 = vpack.c.b16 %v305, %v300
  %v441 = vpack.c.b16 %v306, %v301
  %v442 = vpack.c.b16 %v307, %v302
  %v443 = vpack.c.b16 %v308, %v303
  %v444 = vpack.c.b16 %v309, %v304
  %v445 = vpack.c.b16 %v315, %v310
  %v446 = vpack.c.b16 %v316, %v311
  %v447 = vpack.c.b16 %v317, %v312
  %v448 = vpack.c.b16 %v318, %v313
  %v449 = vpack.c.b16 %v319, %v314
  %v450 = vpack.c.b16 %v325, %v320
  %v451 = vpack.c.b16 %v326, %v321
  %v452 = vpack.c.b16 %v327, %v322
  %v453 = vpack.c.b16 %v328, %v323
  %v454 = vpack.c.b16 %v329, %v324
  %v455 = vpack.c.b16 %v335, %v330
  %v456 = vpack.c.b16 %v336, %v331
  %v457 = vpack.c.b16 %v337, %v332
  %v458 = vpack.c.b16 %v338, %v333
  %v459 = vpack.c.b16 %v339, %v334
  %v460 = vpack.c.b16 %v345, %v340
  %v461 = vpack.c.b16 %v346, %v341
  %v462 = vpack.c.b16 %v347, %v342
  %v463 = vpack.c.b16 %v348, %v343
  %v464 = vpack.c.b16 %v349, %v344
  %v465 = vpack.c.b16 %v355, %v350
  %v466 = vpack.c.b16 %v356, %v351
  %v467 = vpack.c.b16 %v357, %v352
  %v468 = vpack.c.b16 %v358, %v353
  %v469 = vpack.c.b16 %v359, %v354
  %v470 = vpack.c.b16 %v365, %v360
  %v471 = vpack.c.b16 %v366, %v361
  %v472 = vpack.c.b16 %v367, %v362
  %v473 = vpack.c.b16 %v368, %v363
  %v474 = vpack.c.b16 %v369, %v364
  %v475 = vpack.c.b16 %v375, %v370
  %v476 = vpack.c.b16 %v376, %v371
  %v477 = vpack.c.b16 %v377, %v372
  %v478 = vpack.c.b16 %v378, %v373
  %v479 = vpack.c.b16 %v379, %v374
  %v480 = vpack.c.b16 %v385, %v380
  %v481 = vpack.c.b16 %v386, %v381
  %v482 = vpack.c.b16 %v387, %v382
  %v483 = vpack.c.b16 %v388, %v383
  %v484 = vpack.c.b16 %v389, %v384
  %v485 = vpack.c.b16 %v395, %v390
  %v486 = vpack.c.b16 %v396, %v391
  %v487 = vpack.c.b16 %v397, %v392
  %v488 = vpack.c.b16 %v398, %v393
  %v489 = vpack.c.b16 %v399, %v394
  %v490 = vpack.c.b16 %v405, %v400
  %v491 = vpack.c.b16 %v406, %v401
  %v492 = vpack.c.b16 %v407, %v402
  %v493 = vpack.c.b16 %v408, %v403
  %v494 = vpack.c.b16 %v409, %v404
  %v495 = vpack.c.b16 %v415, %v410
  %v496 = vpack.c.b16 %v416, %v411
  %v497 = vpack.c.b16 %v417, %v412
  %v498 = vpack.c.b16 %v418, %v413
  %v499 = vpack.c.b16 %v419, %v414
  %580 = vmatprep.subr.bf16.mxu0 %v421
  %581 = vmatpush1.bf16.msra.mxu0 %v420
  %582 = vmatprep.subr.bf16.mxu0 %v426
  %583 = vmatpush1.bf16.msra.mxu0 %v425
  %584 = vmatprep.subr.bf16.mxu0 %v431
  %585 = vmatpush1.bf16.msra.mxu0 %v430
  %586 = vmatprep.subr.bf16.mxu0 %v436
  %587 = vmatpush1.bf16.msra.mxu0 %v435
  %588 = vmatprep.subr.bf16.mxu0 %v441
  %589 = vmatpush1.bf16.msra.mxu0 %v440
  %590 = vmatprep.subr.bf16.mxu0 %v446
  %591 = vmatpush1.bf16.msra.mxu0 %v445
  %592 = vmatprep.subr.bf16.mxu0 %v451
  %593 = vmatpush1.bf16.msra.mxu0 %v450
  %594 = vmatprep.subr.bf16.mxu0 %v456
  %595 = vmatpush1.bf16.msra.mxu0 %v455
  %596 = vmatprep.subr.bf16.mxu0 %v461
  %597 = vmatpush1.bf16.msra.mxu0 %v460
  %598 = vmatprep.subr.bf16.mxu0 %v466
  %599 = vmatpush1.bf16.msra.mxu0 %v465
  %600 = vmatprep.subr.bf16.mxu0 %v471
  %601 = vmatpush1.bf16.msra.mxu0 %v470
  %602 = vmatprep.subr.bf16.mxu0 %v476
  %603 = vmatpush1.bf16.msra.mxu0 %v475
  %604 = vmatprep.subr.bf16.mxu0 %v481
  %605 = vmatpush1.bf16.msra.mxu0 %v480
  %606 = vmatprep.subr.bf16.mxu0 %v486
  %607 = vmatpush1.bf16.msra.mxu0 %v485
  %608 = vmatprep.subr.bf16.mxu0 %v491
  %609 = vmatpush1.bf16.msra.mxu0 %v490
  %610 = vmatprep.subr.bf16.mxu0 %v496
  %611 = vmatpush1.bf16.msra.mxu0 %v495
  %612 = vmatprep.mubr.bf16.mxu0 %v161
  %613 = vmatmul.mubr.bf16.gmra.mrb[0].mxu0 %v154
  %v614 = vpop.f32.mrb[0].mxu0
  %v615 = vadd.f32 %v117, %v614
  %v616 = vpop.f32.mrb[0].mxu0
  %v617 = vadd.f32 %v121, %v616
  %v618 = vpop.f32.mrb[0].mxu0
  %v619 = vpop.f32.mrb[0].mxu0
  %620 = vdwg.mxu0
  %621 = vmatprep.subr.bf16.mxu0 %v423
  %622 = vmatpush1.bf16.msra.mxu0 %v422
  %623 = vmatprep.subr.bf16.mxu0 %v428
  %624 = vmatpush1.bf16.msra.mxu0 %v427
  %625 = vmatprep.subr.bf16.mxu0 %v433
  %626 = vmatpush1.bf16.msra.mxu0 %v432
  %627 = vmatprep.subr.bf16.mxu0 %v438
  %628 = vmatpush1.bf16.msra.mxu0 %v437
  %629 = vmatprep.subr.bf16.mxu0 %v443
  %630 = vmatpush1.bf16.msra.mxu0 %v442
  %631 = vmatprep.subr.bf16.mxu0 %v448
  %632 = vmatpush1.bf16.msra.mxu0 %v447
  %633 = vmatprep.subr.bf16.mxu0 %v453
  %634 = vmatpush1.bf16.msra.mxu0 %v452
  %635 = vmatprep.subr.bf16.mxu0 %v458
  %636 = vmatpush1.bf16.msra.mxu0 %v457
  %637 = vmatprep.subr.bf16.mxu0 %v463
  %638 = vmatpush1.bf16.msra.mxu0 %v462
  %639 = vmatprep.subr.bf16.mxu0 %v468
  %640 = vmatpush1.bf16.msra.mxu0 %v467
  %641 = vmatprep.subr.bf16.mxu0 %v473
  %642 = vmatpush1.bf16.msra.mxu0 %v472
  %643 = vmatprep.subr.bf16.mxu0 %v478
  %644 = vmatpush1.bf16.msra.mxu0 %v477
  %645 = vmatprep.subr.bf16.mxu0 %v483
  %646 = vmatpush1.bf16.msra.mxu0 %v482
  %647 = vmatprep.subr.bf16.mxu0 %v488
  %648 = vmatpush1.bf16.msra.mxu0 %v487
  %649 = vmatprep.subr.bf16.mxu0 %v493
  %650 = vmatpush1.bf16.msra.mxu0 %v492
  %651 = vmatprep.subr.bf16.mxu0 %v498
  %652 = vmatpush1.bf16.msra.mxu0 %v497
  %653 = vmatprep.mubr.bf16.mxu0 %v161
  %654 = vmatmul.mubr.bf16.gmra.mrb[0].mxu0 %v154
  %v655 = vpop.f32.mrb[0].mxu0
  %v656 = vadd.f32 %v125, %v655
  %v657 = vpop.f32.mrb[0].mxu0
  %v658 = vadd.f32 %v129, %v657
  %v659 = vpop.f32.mrb[0].mxu0
  %v660 = vpop.f32.mrb[0].mxu0
  %661 = vdwg.mxu0
  %662 = vmatprep.subr.bf16.mxu0 0
  %663 = vmatpush1.bf16.msra.mxu0 %v424
  %664 = vmatprep.subr.bf16.mxu0 0
  %665 = vmatpush1.bf16.msra.mxu0 %v429
  %666 = vmatprep.subr.bf16.mxu0 0
  %667 = vmatpush1.bf16.msra.mxu0 %v434
  %668 = vmatprep.subr.bf16.mxu0 0
  %669 = vmatpush1.bf16.msra.mxu0 %v439
  %670 = vmatprep.subr.bf16.mxu0 0
  %671 = vmatpush1.bf16.msra.mxu0 %v444
  %672 = vmatprep.subr.bf16.mxu0 0
  %673 = vmatpush1.bf16.msra.mxu0 %v449
  %674 = vmatprep.subr.bf16.mxu0 0
  %675 = vmatpush1.bf16.msra.mxu0 %v454
  %676 = vmatprep.subr.bf16.mxu0 0
  %677 = vmatpush1.bf16.msra.mxu0 %v459
  %678 = vmatprep.subr.bf16.mxu0 0
  %679 = vmatpush1.bf16.msra.mxu0 %v464
  %680 = vmatprep.subr.bf16.mxu0 0
  %681 = vmatpush1.bf16.msra.mxu0 %v469
  %682 = vmatprep.subr.bf16.mxu0 0
  %683 = vmatpush1.bf16.msra.mxu0 %v474
  %684 = vmatprep.subr.bf16.mxu0 0
  %685 = vmatpush1.bf16.msra.mxu0 %v479
  %686 = vmatprep.subr.bf16.mxu0 0
  %687 = vmatpush1.bf16.msra.mxu0 %v484
  %688 = vmatprep.subr.bf16.mxu0 0
  %689 = vmatpush1.bf16.msra.mxu0 %v489
  %690 = vmatprep.subr.bf16.mxu0 0
  %691 = vmatpush1.bf16.msra.mxu0 %v494
  %692 = vmatprep.subr.bf16.mxu0 0
  %693 = vmatpush1.bf16.msra.mxu0 %v499
  %694 = vmatprep.mubr.bf16.mxu0 %v161
  %695 = vmatmul.mubr.bf16.gmra.mrb[0].mxu0 %v154
  %v696 = vpop.f32.mrb[0].mxu0
  %v697 = vadd.f32 %v133, %v696
  %v698 = vpop.f32.mrb[0].mxu0
  %v699 = vpop.f32.mrb[0].mxu0
  %v700 = vpop.f32.mrb[0].mxu0
  %701 = vdwg.mxu0
  %v702 = vmax.f32 %v615, 0.0
  %v703 = vmax.f32 %v617, 0.0
  %v704 = vmax.f32 %v656, 0.0
  %v705 = vmax.f32 %v658, 0.0
  %v706 = vmax.f32 %v697, 0.0
  %v707 = vpack.c.bf16 %v702, %v702
  %v708 = vpack.c.bf16 %v703, %v703
  %v709 = vpack.c.bf16 %v704, %v704
  %v710 = vpack.c.bf16 %v705, %v705
  %v711 = vpack.c.bf16 %v706, %v706
  %v717 = vcombine.low %v707, %v708
  %v718 = vcombine.low %v709, %v710
  %v720 = vunpack.c.l.s4 1966171168
  %v721 = vunpack.c.0.s8 %v720
  %v722 = vlaneseq
  %v723 = vshrl.u32 %v722, 7
  %v724 = vsub.s32 %v721, %v723
  %v725 = vrot.slane %v717, %v724
  %v727 = vunpack.c.l.s4 1966171168
  %v728 = vunpack.c.0.s8 %v727
  %v729 = vlaneseq
  %v730 = vshrl.u32 %v729, 7
  %v731 = vsub.s32 %v728, %v730
  %v732 = vrot.slane %v718, %v731
  %v734 = vunpack.c.l.s4 1966171168
  %v735 = vunpack.c.0.s8 %v734
  %v736 = vlaneseq
  %v737 = vshrl.u32 %v736, 7
  %v738 = vsub.s32 %v735, %v737
  %v739 = vrot.slane %v711, %v738
  %v740 = vcombine.low %v725, %v732
  %v742 = vunpack.c.l.s4 1966171168
  %v743 = vunpack.c.0.s8 %v742
  %v744 = vlaneseq
  %v745 = vshrl.u32 %v744, 7
  %v746 = vsub.s32 %v743, %v745
  %v747 = vrot.slane %v740, %v746
  %v749 = vunpack.c.l.s4 1966171168
  %v750 = vunpack.c.0.s8 %v749
  %v751 = vlaneseq
  %v752 = vshrl.u32 %v751, 7
  %v753 = vsub.s32 %v750, %v752
  %v754 = vrot.slane %v739, %v753
  %v755 = vcombine.low %v747, %v754
  %vm757 = vcmask 1040384
  %vm758 = vcmask 1041409
  %vm759 = vmor %vm758, %vm757
  %vm760 = vcmask 1042434
  %vm761 = vmor %vm760, %vm759
  %vm762 = vcmask 1043459
  %vm763 = vmor %vm762, %vm761
  %vm764 = vcmask 520196
  %vm765 = vmor %vm764, %vm763
  %766 = vst.msk [vmem:[%s3] sm:$0x1f] %vm765, %v755
  // Predicated region
  $region14: #{k_sparse_autoencoder_forward.12} parent=0 // pred_check
    _
  $region15: #{k_sparse_autoencoder_forward.12} parent=0 // pred_check_branch
    %768 = sbr.rel (0) target = $region17
  $region16: #{k_sparse_autoencoder_forward.12} parent=0 // pred_region
    _
  $region17: #{k_sparse_autoencoder_forward.12} parent=0 // pred_fallthru
    _
  // Predicated region
  $region18: #{k_sparse_autoencoder_forward.12} parent=0 // pred_check
    _
  $region19: #{k_sparse_autoencoder_forward.12} parent=0 // pred_check_branch
    %770 = sbr.rel (0) target = $region21
  $region20: #{k_sparse_autoencoder_forward.12} parent=0 // pred_region
    _
  $region21: #{k_sparse_autoencoder_forward.12} parent=0 // pred_fallthru
    _

// kernel: k_sparse_autoencoder_forward.13
$region0: #{k_sparse_autoencoder_forward.13}
  #allocation0 [shape = 'u32[]', space=smem, size = 0x4, offset = 0x4, fixed_abs, tag = 'smem constant byte address 0x4 - core index']
  #allocation1 [shape = 'u32[144,128]{1,0:T(1,128)}', space=vmem, size = 0x12000, scoped, tag = 'internal scratch']
  %s0 = inlined_call_operand.vmem [shape: bf16[32,1600], index: 0, kind: input, shape index: {}]
  %s1 = inlined_call_operand.vmem [shape: bf16[1600,98], index: 1, kind: input, shape index: {}]
  %s2 = inlined_call_operand.vmem [shape: f32[32,1], index: 2, kind: input, shape index: {}]
  %s3 = inlined_call_operand.vmem [shape: bf16[32,98], index: 3, kind: output, shape index: {}]
  %s4 = sld [smem:[#allocation0]]
  $region22: #{k_sparse_autoencoder_forward.13} parent=0
    _
  %s6 = ssub.s32 1, %s4
  %s7 = scalar_select 0, %s6, %s4
  // Predicated region
  $region2: #{k_sparse_autoencoder_forward.13} parent=0 // pred_check
    _
  $region3: #{k_sparse_autoencoder_forward.13} parent=0 // pred_check_branch
    %9 = sbr.rel (0) target = $region5
  $region4: #{k_sparse_autoencoder_forward.13} parent=0 // pred_region
    _
  $region5: #{k_sparse_autoencoder_forward.13} parent=0 // pred_fallthru
    _
  // Predicated region
  $region6: #{k_sparse_autoencoder_forward.13} parent=0 // pred_check
    _
  $region7: #{k_sparse_autoencoder_forward.13} parent=0 // pred_check_branch
    %11 = sbr.rel (0) target = $region9
  $region8: #{k_sparse_autoencoder_forward.13} parent=0 // pred_region
    _
  $region9: #{k_sparse_autoencoder_forward.13} parent=0 // pred_fallthru
    _
  // Predicated region
  $region10: #{k_sparse_autoencoder_forward.13} parent=0 // pred_check
    _
  $region11: #{k_sparse_autoencoder_forward.13} parent=0 // pred_check_branch
    %13 = sbr.rel (0) target = $region13
  $region12: #{k_sparse_autoencoder_forward.13} parent=0 // pred_region
    _
  $region13: #{k_sparse_autoencoder_forward.13} parent=0 // pred_fallthru
    _
  %v15 = vld [vmem:[%s0] sm:$0xff]
  %v16 = vld [vmem:[%s0 + $0x8] sm:$0xff]
  %v17 = vld [vmem:[%s0 + $0x10] sm:$0xff]
  %v18 = vld [vmem:[%s0 + $0x18] sm:$0xff]
  %v19 = vld [vmem:[%s0 + $0x20] sm:$0xff]
  %v20 = vld [vmem:[%s0 + $0x28] sm:$0xff]
  %v21 = vld [vmem:[%s0 + $0x30] sm:$0xf]
  %v22 = vld [vmem:[%s0 + $0x34] sm:$0xff]
  %v23 = vld [vmem:[%s0 + $0x3c] sm:$0xff]
  %v24 = vld [vmem:[%s0 + $0x44] sm:$0xff]
  %v25 = vld [vmem:[%s0 + $0x4c] sm:$0xff]
  %v26 = vld [vmem:[%s0 + $0x54] sm:$0xff]
  %v27 = vld [vmem:[%s0 + $0x5c] sm:$0xff]
  %v28 = vld [vmem:[%s0 + $0x64] sm:$0xf]
  %v29 = vld [vmem:[%s0 + $0x68] sm:$0xff]
  %v30 = vld [vmem:[%s0 + $0x70] sm:$0xff]
  %v31 = vld [vmem:[%s0 + $0x78] sm:$0xff]
  %v32 = vld [vmem:[%s0 + $0x80] sm:$0xff]
  %v33 = vld [vmem:[%s0 + $0x88] sm:$0xff]
  %v34 = vld [vmem:[%s0 + $0x90] sm:$0xff]
  %v35 = vld [vmem:[%s0 + $0x98] sm:$0xf]
  %v36 = vld [vmem:[%s0 + $0x9c] sm:$0xff]
  %v37 = vld [vmem:[%s0 + $0xa4] sm:$0xff]
  %v38 = vld [vmem:[%s0 + $0xac] sm:$0xff]
  %v39 = vld [vmem:[%s0 + $0xb4] sm:$0xff]
  %v40 = vld [vmem:[%s0 + $0xbc] sm:$0xff]
  %v41 = vld [vmem:[%s0 + $0xc4] sm:$0xff]
  %v42 = vld [vmem:[%s0 + $0xcc] sm:$0xf]
  %v43 = vld [vmem:[%s1] sm:$0xf]
  %v44 = vld [vmem:[%s1 + $0x4] sm:$0xf]
  %v45 = vld [vmem:[%s1 + $0x8] sm:$0xf]
  %v46 = vld [vmem:[%s1 + $0xc] sm:$0xf]
  %v47 = vld [vmem:[%s1 + $0x10] sm:$0xf]
  %v48 = vld [vmem:[%s1 + $0x14] sm:$0xf]
  %v49 = vld [vmem:[%s1 + $0x18] sm:$0xf]
  %v50 = vld [vmem:[%s1 + $0x1c] sm:$0xf]
  %v51 = vld [vmem:[%s1 + $0x20] sm:$0xf]
  %v52 = vld [vmem:[%s1 + $0x24] sm:$0xf]
  %v53 = vld [vmem:[%s1 + $0x28] sm:$0xf]
  %v54 = vld [vmem:[%s1 + $0x2c] sm:$0xf]
  %v55 = vld [vmem:[%s1 + $0x30] sm:$0xf]
  %v56 = vld [vmem:[%s1 + $0x34] sm:$0xf]
  %v57 = vld [vmem:[%s1 + $0x38] sm:$0xf]
  %v58 = vld [vmem:[%s1 + $0x3c] sm:$0xf]
  %v59 = vld [vmem:[%s1 + $0x40] sm:$0xf]
  %v60 = vld [vmem:[%s1 + $0x44] sm:$0xf]
  %v61 = vld [vmem:[%s1 + $0x48] sm:$0xf]
  %v62 = vld [vmem:[%s1 + $0x4c] sm:$0xf]
  %v63 = vld [vmem:[%s1 + $0x50] sm:$0xf]
  %v64 = vld [vmem:[%s1 + $0x54] sm:$0xf]
  %v65 = vld [vmem:[%s1 + $0x58] sm:$0xf]
  %v66 = vld [vmem:[%s1 + $0x5c] sm:$0xf]
  %v67 = vld [vmem:[%s1 + $0x60] sm:$0xf]
  %v68 = vld [vmem:[%s1 + $0x64] sm:$0xf]
  %v69 = vld [vmem:[%s1 + $0x68] sm:$0xf]
  %v70 = vld [vmem:[%s1 + $0x6c] sm:$0xf]
  %v71 = vld [vmem:[%s1 + $0x70] sm:$0xf]
  %v72 = vld [vmem:[%s1 + $0x74] sm:$0xf]
  %v73 = vld [vmem:[%s1 + $0x78] sm:$0xf]
  %v74 = vld [vmem:[%s1 + $0x7c] sm:$0xf]
  %v75 = vld [vmem:[%s1 + $0x80] sm:$0xf]
  %v76 = vld [vmem:[%s1 + $0x84] sm:$0xf]
  %v77 = vld [vmem:[%s1 + $0x88] sm:$0xf]
  %v78 = vld [vmem:[%s1 + $0x8c] sm:$0xf]
  %v79 = vld [vmem:[%s1 + $0x90] sm:$0xf]
  %v80 = vld [vmem:[%s1 + $0x94] sm:$0xf]
  %v81 = vld [vmem:[%s1 + $0x98] sm:$0xf]
  %v82 = vld [vmem:[%s1 + $0x9c] sm:$0xf]
  %v83 = vld [vmem:[%s1 + $0xa0] sm:$0xf]
  %v84 = vld [vmem:[%s1 + $0xa4] sm:$0xf]
  %v85 = vld [vmem:[%s1 + $0xa8] sm:$0xf]
  %v86 = vld [vmem:[%s1 + $0xac] sm:$0xf]
  %v87 = vld [vmem:[%s1 + $0xb0] sm:$0xf]
  %v88 = vld [vmem:[%s1 + $0xb4] sm:$0xf]
  %v89 = vld [vmem:[%s1 + $0xb8] sm:$0xf]
  %v90 = vld [vmem:[%s1 + $0xbc] sm:$0xf]
  %v91 = vld [vmem:[%s1 + $0xc0] sm:$0xf]
  %v92 = vld [vmem:[%s1 + $0xc4] sm:$0xf]
  %v93 = vld [vmem:[%s1 + $0xc8] sm:$0xf]
  %v94 = vld [vmem:[%s1 + $0xcc] sm:$0xf]
  %v95 = vld [vmem:[%s1 + $0xd0] sm:$0xf]
  %v96 = vld [vmem:[%s1 + $0xd4] sm:$0xf]
  %v97 = vld [vmem:[%s1 + $0xd8] sm:$0xf]
  %v98 = vld [vmem:[%s1 + $0xdc] sm:$0xf]
  %v99 = vld [vmem:[%s1 + $0xe0] sm:$0xf]
  %v100 = vld [vmem:[%s1 + $0xe4] sm:$0xf]
  %v101 = vld [vmem:[%s1 + $0xe8] sm:$0xf]
  %v102 = vld [vmem:[%s1 + $0xec] sm:$0xf]
  %v103 = vld [vmem:[%s1 + $0xf0] sm:$0xf]
  %v104 = vld [vmem:[%s1 + $0xf4] sm:$0xf]
  %v105 = vld [vmem:[%s1 + $0xf8] sm:$0xf]
  %v106 = vld [vmem:[%s1 + $0xfc] sm:$0xf]
  %v107 = vld [vmem:[%s1 + $0x100] sm:$0xf]
  %v108 = vld [vmem:[%s1 + $0x104] sm:$0xf]
  %v109 = vld [vmem:[%s1 + $0x108] sm:$0xf]
  %v110 = vld [vmem:[%s1 + $0x10c] sm:$0xf]
  %v111 = vld [vmem:[%s1 + $0x110] sm:$0xf]
  %v112 = vld [vmem:[%s1 + $0x114] sm:$0xf]
  %v113 = vld [vmem:[%s1 + $0x118] sm:$0xf]
  %v114 = vld [vmem:[%s1 + $0x11c] sm:$0xf]
  %v115 = vld [vmem:[%s1 + $0x120] sm:$0xf]
  %v116 = vld [vmem:[%s1 + $0x124] sm:$0xf]
  %v117 = vld [vmem:[%s1 + $0x128] sm:$0xf]
  %v118 = vld [vmem:[%s1 + $0x12c] sm:$0xf]
  %v119 = vld [vmem:[%s1 + $0x130] sm:$0xf]
  %v120 = vld [vmem:[%s1 + $0x134] sm:$0xf]
  %v121 = vld [vmem:[%s1 + $0x138] sm:$0xf]
  %v122 = vld [vmem:[%s1 + $0x13c] sm:$0xf]
  %v123 = vld [vmem:[%s1 + $0x140] sm:$0xf]
  %v124 = vld [vmem:[%s1 + $0x144] sm:$0xf]
  %v125 = vld [vmem:[%s1 + $0x148] sm:$0xf]
  %v126 = vld [vmem:[%s1 + $0x14c] sm:$0xf]
  %v127 = vld [vmem:[%s1 + $0x150] sm:$0xf]
  %v128 = vld [vmem:[%s1 + $0x154] sm:$0xf]
  %v129 = vld [vmem:[%s1 + $0x158] sm:$0xf]
  %v130 = vld [vmem:[%s1 + $0x15c] sm:$0xf]
  %v131 = vld [vmem:[%s1 + $0x160] sm:$0xf]
  %v132 = vld [vmem:[%s1 + $0x164] sm:$0xf]
  %v133 = vld [vmem:[%s1 + $0x168] sm:$0xf]
  %v134 = vld [vmem:[%s1 + $0x16c] sm:$0xf]
  %v135 = vld [vmem:[%s1 + $0x170] sm:$0xf]
  %v136 = vld [vmem:[%s1 + $0x174] sm:$0xf]
  %v137 = vld [vmem:[%s1 + $0x178] sm:$0xf]
  %v138 = vld [vmem:[%s1 + $0x17c] sm:$0xf]
  %v139 = vld [vmem:[%s1 + $0x180] sm:$0xf]
  %v140 = vld [vmem:[%s1 + $0x184] sm:$0xf]
  %v141 = vld [vmem:[%s1 + $0x188] sm:$0xf]
  %v142 = vld [vmem:[%s1 + $0x18c] sm:$0xf]
  %v143 = vld [vmem:[%s1 + $0x190] sm:$0xf]
  %v144 = vld [vmem:[%s1 + $0x194] sm:$0xf]
  %v145 = vld [vmem:[%s1 + $0x198] sm:$0xf]
  %v146 = vld [vmem:[%s1 + $0x19c] sm:$0xf]
  %v147 = vld [vmem:[%s1 + $0x1a0] sm:$0xf]
  %v148 = vld [vmem:[%s1 + $0x1a4] sm:$0xf]
  %v149 = vld [vmem:[%s1 + $0x1a8] sm:$0xf]
  %v150 = vld [vmem:[%s1 + $0x1ac] sm:$0xf]
  %v151 = vld [vmem:[%s1 + $0x1b0] sm:$0xf]
  %v152 = vld [vmem:[%s1 + $0x1b4] sm:$0xf]
  %v153 = vld [vmem:[%s1 + $0x1b8] sm:$0xf]
  %v154 = vld [vmem:[%s1 + $0x1bc] sm:$0xf]
  %v155 = vld [vmem:[%s1 + $0x1c0] sm:$0xf]
  %v156 = vld [vmem:[%s1 + $0x1c4] sm:$0xf]
  %v157 = vld [vmem:[%s1 + $0x1c8] sm:$0xf]
  %v158 = vld [vmem:[%s1 + $0x1cc] sm:$0xf]
  %v159 = vld [vmem:[%s1 + $0x1d0] sm:$0xf]
  %v160 = vld [vmem:[%s1 + $0x1d4] sm:$0xf]
  %v161 = vld [vmem:[%s1 + $0x1d8] sm:$0xf]
  %v162 = vld [vmem:[%s1 + $0x1dc] sm:$0xf]
  %v163 = vld [vmem:[%s1 + $0x1e0] sm:$0xf]
  %v164 = vld [vmem:[%s1 + $0x1e4] sm:$0xf]
  %v165 = vld [vmem:[%s1 + $0x1e8] sm:$0xf]
  %v166 = vld [vmem:[%s1 + $0x1ec] sm:$0xf]
  %v167 = vld [vmem:[%s1 + $0x1f0] sm:$0xf]
  %v168 = vld [vmem:[%s1 + $0x1f4] sm:$0xf]
  %v169 = vld [vmem:[%s1 + $0x1f8] sm:$0xf]
  %v170 = vld [vmem:[%s1 + $0x1fc] sm:$0xf]
  %v171 = vld [vmem:[%s1 + $0x200] sm:$0xf]
  %v172 = vld [vmem:[%s1 + $0x204] sm:$0xf]
  %v173 = vld [vmem:[%s1 + $0x208] sm:$0xf]
  %v174 = vld [vmem:[%s1 + $0x20c] sm:$0xf]
  %v175 = vld [vmem:[%s1 + $0x210] sm:$0xf]
  %v176 = vld [vmem:[%s1 + $0x214] sm:$0xf]
  %v177 = vld [vmem:[%s1 + $0x218] sm:$0xf]
  %v178 = vld [vmem:[%s1 + $0x21c] sm:$0xf]
  %v179 = vld [vmem:[%s1 + $0x220] sm:$0xf]
  %v180 = vld [vmem:[%s1 + $0x224] sm:$0xf]
  %v181 = vld [vmem:[%s1 + $0x228] sm:$0xf]
  %v182 = vld [vmem:[%s1 + $0x22c] sm:$0xf]
  %v183 = vld [vmem:[%s1 + $0x230] sm:$0xf]
  %v184 = vld [vmem:[%s1 + $0x234] sm:$0xf]
  %v185 = vld [vmem:[%s1 + $0x238] sm:$0xf]
  %v186 = vld [vmem:[%s1 + $0x23c] sm:$0xf]
  %v187 = vld [vmem:[%s1 + $0x240] sm:$0xf]
  %v188 = vld [vmem:[%s1 + $0x244] sm:$0xf]
  %v189 = vld [vmem:[%s1 + $0x248] sm:$0xf]
  %v190 = vld [vmem:[%s1 + $0x24c] sm:$0xf]
  %v191 = vld [vmem:[%s1 + $0x250] sm:$0xf]
  %v192 = vld [vmem:[%s1 + $0x254] sm:$0xf]
  %v193 = vld [vmem:[%s1 + $0x258] sm:$0xf]
  %v194 = vld [vmem:[%s1 + $0x25c] sm:$0xf]
  %v195 = vld [vmem:[%s1 + $0x260] sm:$0xf]
  %v196 = vld [vmem:[%s1 + $0x264] sm:$0xf]
  %v197 = vld [vmem:[%s1 + $0x268] sm:$0xf]
  %v198 = vld [vmem:[%s1 + $0x26c] sm:$0xf]
  %v199 = vld [vmem:[%s1 + $0x270] sm:$0xf]
  %v200 = vld [vmem:[%s1 + $0x274] sm:$0xf]
  %v201 = vld [vmem:[%s1 + $0x278] sm:$0xf]
  %v202 = vld [vmem:[%s1 + $0x27c] sm:$0xf]
  %v203 = vld [vmem:[%s1 + $0x280] sm:$0xf]
  %v204 = vld [vmem:[%s1 + $0x284] sm:$0xf]
  %v205 = vld [vmem:[%s1 + $0x288] sm:$0xf]
  %v206 = vld [vmem:[%s1 + $0x28c] sm:$0xf]
  %v207 = vld [vmem:[%s1 + $0x290] sm:$0xf]
  %v208 = vld [vmem:[%s1 + $0x294] sm:$0xf]
  %v209 = vld [vmem:[%s1 + $0x298] sm:$0xf]
  %v210 = vld [vmem:[%s1 + $0x29c] sm:$0xf]
  %v211 = vld [vmem:[%s1 + $0x2a0] sm:$0xf]
  %v212 = vld [vmem:[%s1 + $0x2a4] sm:$0xf]
  %v213 = vld [vmem:[%s1 + $0x2a8] sm:$0xf]
  %v214 = vld [vmem:[%s1 + $0x2ac] sm:$0xf]
  %v215 = vld [vmem:[%s1 + $0x2b0] sm:$0xf]
  %v216 = vld [vmem:[%s1 + $0x2b4] sm:$0xf]
  %v217 = vld [vmem:[%s1 + $0x2b8] sm:$0xf]
  %v218 = vld [vmem:[%s1 + $0x2bc] sm:$0xf]
  %v219 = vld [vmem:[%s1 + $0x2c0] sm:$0xf]
  %v220 = vld [vmem:[%s1 + $0x2c4] sm:$0xf]
  %v221 = vld [vmem:[%s1 + $0x2c8] sm:$0xf]
  %v222 = vld [vmem:[%s1 + $0x2cc] sm:$0xf]
  %v223 = vld [vmem:[%s1 + $0x2d0] sm:$0xf]
  %v224 = vld [vmem:[%s1 + $0x2d4] sm:$0xf]
  %v225 = vld [vmem:[%s1 + $0x2d8] sm:$0xf]
  %v226 = vld [vmem:[%s1 + $0x2dc] sm:$0xf]
  %v227 = vld [vmem:[%s1 + $0x2e0] sm:$0xf]
  %v228 = vld [vmem:[%s1 + $0x2e4] sm:$0xf]
  %v229 = vld [vmem:[%s1 + $0x2e8] sm:$0xf]
  %v230 = vld [vmem:[%s1 + $0x2ec] sm:$0xf]
  %v231 = vld [vmem:[%s1 + $0x2f0] sm:$0xf]
  %v232 = vld [vmem:[%s1 + $0x2f4] sm:$0xf]
  %v233 = vld [vmem:[%s1 + $0x2f8] sm:$0xf]
  %v234 = vld [vmem:[%s1 + $0x2fc] sm:$0xf]
  %v235 = vld [vmem:[%s1 + $0x300] sm:$0xf]
  %v236 = vld [vmem:[%s1 + $0x304] sm:$0xf]
  %v237 = vld [vmem:[%s1 + $0x308] sm:$0xf]
  %v238 = vld [vmem:[%s1 + $0x30c] sm:$0xf]
  %v239 = vld [vmem:[%s1 + $0x310] sm:$0xf]
  %v240 = vld [vmem:[%s1 + $0x314] sm:$0xf]
  %v241 = vld [vmem:[%s1 + $0x318] sm:$0xf]
  %v242 = vld [vmem:[%s1 + $0x31c] sm:$0xf]
  %v243 = vld [vmem:[%s2] sm:$0xff]
  %v244 = vld [vmem:[%s2 + $0x8] sm:$0xff]
  %v245 = vld [vmem:[%s2 + $0x10] sm:$0xff]
  %v246 = vld [vmem:[%s2 + $0x18] sm:$0xff]
  %248 = vset.pattern.permute.xlu0 0
  %249 = vperm.xlu0 %248, %v243
  %v250 = vpop.permute.xlu0 %249
  %253 = vset.pattern.permute.xlu0 0
  %254 = vperm.xlu0 %253, %v244
  %v255 = vpop.permute.xlu0 %254
  %258 = vset.pattern.permute.xlu0 0
  %259 = vperm.xlu0 %258, %v245
  %v260 = vpop.permute.xlu0 %259
  %263 = vset.pattern.permute.xlu0 0
  %264 = vperm.xlu0 %263, %v246
  %v265 = vpop.permute.xlu0 %264
  %v295 = vunpack.c.l.b16 %v15
  %v296 = vunpack.c.h.b16 %v15
  %v297 = vunpack.c.l.b16 %v16
  %v298 = vunpack.c.h.b16 %v16
  %v299 = vunpack.c.l.b16 %v17
  %v300 = vunpack.c.h.b16 %v17
  %v301 = vunpack.c.l.b16 %v18
  %v302 = vunpack.c.h.b16 %v18
  %v303 = vunpack.c.l.b16 %v19
  %v304 = vunpack.c.h.b16 %v19
  %v305 = vunpack.c.l.b16 %v20
  %v306 = vunpack.c.h.b16 %v20
  %v307 = vunpack.c.l.b16 %v21
  %v308 = vunpack.c.l.b16 %v22
  %v309 = vunpack.c.h.b16 %v22
  %v310 = vunpack.c.l.b16 %v23
  %v311 = vunpack.c.h.b16 %v23
  %v312 = vunpack.c.l.b16 %v24
  %v313 = vunpack.c.h.b16 %v24
  %v314 = vunpack.c.l.b16 %v25
  %v315 = vunpack.c.h.b16 %v25
  %v316 = vunpack.c.l.b16 %v26
  %v317 = vunpack.c.h.b16 %v26
  %v318 = vunpack.c.l.b16 %v27
  %v319 = vunpack.c.h.b16 %v27
  %v320 = vunpack.c.l.b16 %v28
  %v321 = vunpack.c.l.b16 %v29
  %v322 = vunpack.c.h.b16 %v29
  %v323 = vunpack.c.l.b16 %v30
  %v324 = vunpack.c.h.b16 %v30
  %v325 = vunpack.c.l.b16 %v31
  %v326 = vunpack.c.h.b16 %v31
  %v327 = vunpack.c.l.b16 %v32
  %v328 = vunpack.c.h.b16 %v32
  %v329 = vunpack.c.l.b16 %v33
  %v330 = vunpack.c.h.b16 %v33
  %v331 = vunpack.c.l.b16 %v34
  %v332 = vunpack.c.h.b16 %v34
  %v333 = vunpack.c.l.b16 %v35
  %v334 = vunpack.c.l.b16 %v36
  %v335 = vunpack.c.h.b16 %v36
  %v336 = vunpack.c.l.b16 %v37
  %v337 = vunpack.c.h.b16 %v37
  %v338 = vunpack.c.l.b16 %v38
  %v339 = vunpack.c.h.b16 %v38
  %v340 = vunpack.c.l.b16 %v39
  %v341 = vunpack.c.h.b16 %v39
  %v342 = vunpack.c.l.b16 %v40
  %v343 = vunpack.c.h.b16 %v40
  %v344 = vunpack.c.l.b16 %v41
  %v345 = vunpack.c.h.b16 %v41
  %v346 = vunpack.c.l.b16 %v42
  %v347 = vpack.c.b16 %v308, %v295
  %v348 = vpack.c.b16 %v309, %v296
  %v349 = vpack.c.b16 %v310, %v297
  %v350 = vpack.c.b16 %v311, %v298
  %v351 = vpack.c.b16 %v312, %v299
  %v352 = vpack.c.b16 %v313, %v300
  %v353 = vpack.c.b16 %v314, %v301
  %v354 = vpack.c.b16 %v315, %v302
  %v355 = vpack.c.b16 %v316, %v303
  %v356 = vpack.c.b16 %v317, %v304
  %v357 = vpack.c.b16 %v318, %v305
  %v358 = vpack.c.b16 %v319, %v306
  %v359 = vpack.c.b16 %v320, %v307
  %v360 = vpack.c.b16 %v334, %v321
  %v361 = vpack.c.b16 %v335, %v322
  %v362 = vpack.c.b16 %v336, %v323
  %v363 = vpack.c.b16 %v337, %v324
  %v364 = vpack.c.b16 %v338, %v325
  %v365 = vpack.c.b16 %v339, %v326
  %v366 = vpack.c.b16 %v340, %v327
  %v367 = vpack.c.b16 %v341, %v328
  %v368 = vpack.c.b16 %v342, %v329
  %v369 = vpack.c.b16 %v343, %v330
  %v370 = vpack.c.b16 %v344, %v331
  %v371 = vpack.c.b16 %v345, %v332
  %v372 = vpack.c.b16 %v346, %v333
  %v597 = vunpack.c.l.b16 %v43
  %v598 = vunpack.c.l.b16 %v44
  %v599 = vunpack.c.l.b16 %v45
  %v600 = vunpack.c.l.b16 %v46
  %v601 = vunpack.c.l.b16 %v47
  %v602 = vunpack.c.l.b16 %v48
  %v603 = vunpack.c.l.b16 %v49
  %v604 = vunpack.c.l.b16 %v50
  %v605 = vunpack.c.l.b16 %v51
  %v606 = vunpack.c.l.b16 %v52
  %v607 = vunpack.c.l.b16 %v53
  %v608 = vunpack.c.l.b16 %v54
  %v609 = vunpack.c.l.b16 %v55
  %v610 = vunpack.c.l.b16 %v56
  %v611 = vunpack.c.l.b16 %v57
  %v612 = vunpack.c.l.b16 %v58
  %v613 = vunpack.c.l.b16 %v59
  %v614 = vunpack.c.l.b16 %v60
  %v615 = vunpack.c.l.b16 %v61
  %v616 = vunpack.c.l.b16 %v62
  %v617 = vunpack.c.l.b16 %v63
  %v618 = vunpack.c.l.b16 %v64
  %v619 = vunpack.c.l.b16 %v65
  %v620 = vunpack.c.l.b16 %v66
  %v621 = vunpack.c.l.b16 %v67
  %v622 = vunpack.c.l.b16 %v68
  %v623 = vunpack.c.l.b16 %v69
  %v624 = vunpack.c.l.b16 %v70
  %v625 = vunpack.c.l.b16 %v71
  %v626 = vunpack.c.l.b16 %v72
  %v627 = vunpack.c.l.b16 %v73
  %v628 = vunpack.c.l.b16 %v74
  %v629 = vunpack.c.l.b16 %v75
  %v630 = vunpack.c.l.b16 %v76
  %v631 = vunpack.c.l.b16 %v77
  %v632 = vunpack.c.l.b16 %v78
  %v633 = vunpack.c.l.b16 %v79
  %v634 = vunpack.c.l.b16 %v80
  %v635 = vunpack.c.l.b16 %v81
  %v636 = vunpack.c.l.b16 %v82
  %v637 = vunpack.c.l.b16 %v83
  %v638 = vunpack.c.l.b16 %v84
  %v639 = vunpack.c.l.b16 %v85
  %v640 = vunpack.c.l.b16 %v86
  %v641 = vunpack.c.l.b16 %v87
  %v642 = vunpack.c.l.b16 %v88
  %v643 = vunpack.c.l.b16 %v89
  %v644 = vunpack.c.l.b16 %v90
  %v645 = vunpack.c.l.b16 %v91
  %v646 = vunpack.c.l.b16 %v92
  %v647 = vunpack.c.l.b16 %v93
  %v648 = vunpack.c.l.b16 %v94
  %v649 = vunpack.c.l.b16 %v95
  %v650 = vunpack.c.l.b16 %v96
  %v651 = vunpack.c.l.b16 %v97
  %v652 = vunpack.c.l.b16 %v98
  %v653 = vunpack.c.l.b16 %v99
  %v654 = vunpack.c.l.b16 %v100
  %v655 = vunpack.c.l.b16 %v101
  %v656 = vunpack.c.l.b16 %v102
  %v657 = vunpack.c.l.b16 %v103
  %v658 = vunpack.c.l.b16 %v104
  %v659 = vunpack.c.l.b16 %v105
  %v660 = vunpack.c.l.b16 %v106
  %v661 = vunpack.c.l.b16 %v107
  %v662 = vunpack.c.l.b16 %v108
  %v663 = vunpack.c.l.b16 %v109
  %v664 = vunpack.c.l.b16 %v110
  %v665 = vunpack.c.l.b16 %v111
  %v666 = vunpack.c.l.b16 %v112
  %v667 = vunpack.c.l.b16 %v113
  %v668 = vunpack.c.l.b16 %v114
  %v669 = vunpack.c.l.b16 %v115
  %v670 = vunpack.c.l.b16 %v116
  %v671 = vunpack.c.l.b16 %v117
  %v672 = vunpack.c.l.b16 %v118
  %v673 = vunpack.c.l.b16 %v119
  %v674 = vunpack.c.l.b16 %v120
  %v675 = vunpack.c.l.b16 %v121
  %v676 = vunpack.c.l.b16 %v122
  %v677 = vunpack.c.l.b16 %v123
  %v678 = vunpack.c.l.b16 %v124
  %v679 = vunpack.c.l.b16 %v125
  %v680 = vunpack.c.l.b16 %v126
  %v681 = vunpack.c.l.b16 %v127
  %v682 = vunpack.c.l.b16 %v128
  %v683 = vunpack.c.l.b16 %v129
  %v684 = vunpack.c.l.b16 %v130
  %v685 = vunpack.c.l.b16 %v131
  %v686 = vunpack.c.l.b16 %v132
  %v687 = vunpack.c.l.b16 %v133
  %v688 = vunpack.c.l.b16 %v134
  %v689 = vunpack.c.l.b16 %v135
  %v690 = vunpack.c.l.b16 %v136
  %v691 = vunpack.c.l.b16 %v137
  %v692 = vunpack.c.l.b16 %v138
  %v693 = vunpack.c.l.b16 %v139
  %v694 = vunpack.c.l.b16 %v140
  %v695 = vunpack.c.l.b16 %v141
  %v696 = vunpack.c.l.b16 %v142
  %v697 = vunpack.c.l.b16 %v143
  %v698 = vunpack.c.l.b16 %v144
  %v699 = vunpack.c.l.b16 %v145
  %v700 = vunpack.c.l.b16 %v146
  %v701 = vunpack.c.l.b16 %v147
  %v702 = vunpack.c.l.b16 %v148
  %v703 = vunpack.c.l.b16 %v149
  %v704 = vunpack.c.l.b16 %v150
  %v705 = vunpack.c.l.b16 %v151
  %v706 = vunpack.c.l.b16 %v152
  %v707 = vunpack.c.l.b16 %v153
  %v708 = vunpack.c.l.b16 %v154
  %v709 = vunpack.c.l.b16 %v155
  %v710 = vunpack.c.l.b16 %v156
  %v711 = vunpack.c.l.b16 %v157
  %v712 = vunpack.c.l.b16 %v158
  %v713 = vunpack.c.l.b16 %v159
  %v714 = vunpack.c.l.b16 %v160
  %v715 = vunpack.c.l.b16 %v161
  %v716 = vunpack.c.l.b16 %v162
  %v717 = vunpack.c.l.b16 %v163
  %v718 = vunpack.c.l.b16 %v164
  %v719 = vunpack.c.l.b16 %v165
  %v720 = vunpack.c.l.b16 %v166
  %v721 = vunpack.c.l.b16 %v167
  %v722 = vunpack.c.l.b16 %v168
  %v723 = vunpack.c.l.b16 %v169
  %v724 = vunpack.c.l.b16 %v170
  %v725 = vunpack.c.l.b16 %v171
  %v726 = vunpack.c.l.b16 %v172
  %v727 = vunpack.c.l.b16 %v173
  %v728 = vunpack.c.l.b16 %v174
  %v729 = vunpack.c.l.b16 %v175
  %v730 = vunpack.c.l.b16 %v176
  %v731 = vunpack.c.l.b16 %v177
  %v732 = vunpack.c.l.b16 %v178
  %v733 = vunpack.c.l.b16 %v179
  %v734 = vunpack.c.l.b16 %v180
  %v735 = vunpack.c.l.b16 %v181
  %v736 = vunpack.c.l.b16 %v182
  %v737 = vunpack.c.l.b16 %v183
  %v738 = vunpack.c.l.b16 %v184
  %v739 = vunpack.c.l.b16 %v185
  %v740 = vunpack.c.l.b16 %v186
  %v741 = vunpack.c.l.b16 %v187
  %v742 = vunpack.c.l.b16 %v188
  %v743 = vunpack.c.l.b16 %v189
  %v744 = vunpack.c.l.b16 %v190
  %v745 = vunpack.c.l.b16 %v191
  %v746 = vunpack.c.l.b16 %v192
  %v747 = vunpack.c.l.b16 %v193
  %v748 = vunpack.c.l.b16 %v194
  %v749 = vunpack.c.l.b16 %v195
  %v750 = vunpack.c.l.b16 %v196
  %v751 = vunpack.c.l.b16 %v197
  %v752 = vunpack.c.l.b16 %v198
  %v753 = vunpack.c.l.b16 %v199
  %v754 = vunpack.c.l.b16 %v200
  %v755 = vunpack.c.l.b16 %v201
  %v756 = vunpack.c.l.b16 %v202
  %v757 = vunpack.c.l.b16 %v203
  %v758 = vunpack.c.l.b16 %v204
  %v759 = vunpack.c.l.b16 %v205
  %v760 = vunpack.c.l.b16 %v206
  %v761 = vunpack.c.l.b16 %v207
  %v762 = vunpack.c.l.b16 %v208
  %v763 = vunpack.c.l.b16 %v209
  %v764 = vunpack.c.l.b16 %v210
  %v765 = vunpack.c.l.b16 %v211
  %v766 = vunpack.c.l.b16 %v212
  %v767 = vunpack.c.l.b16 %v213
  %v768 = vunpack.c.l.b16 %v214
  %v769 = vunpack.c.l.b16 %v215
  %v770 = vunpack.c.l.b16 %v216
  %v771 = vunpack.c.l.b16 %v217
  %v772 = vunpack.c.l.b16 %v218
  %v773 = vunpack.c.l.b16 %v219
  %v774 = vunpack.c.l.b16 %v220
  %v775 = vunpack.c.l.b16 %v221
  %v776 = vunpack.c.l.b16 %v222
  %v777 = vunpack.c.l.b16 %v223
  %v778 = vunpack.c.l.b16 %v224
  %v779 = vunpack.c.l.b16 %v225
  %v780 = vunpack.c.l.b16 %v226
  %v781 = vunpack.c.l.b16 %v227
  %v782 = vunpack.c.l.b16 %v228
  %v783 = vunpack.c.l.b16 %v229
  %v784 = vunpack.c.l.b16 %v230
  %v785 = vunpack.c.l.b16 %v231
  %v786 = vunpack.c.l.b16 %v232
  %v787 = vunpack.c.l.b16 %v233
  %v788 = vunpack.c.l.b16 %v234
  %v789 = vunpack.c.l.b16 %v235
  %v790 = vunpack.c.l.b16 %v236
  %v791 = vunpack.c.l.b16 %v237
  %v792 = vunpack.c.l.b16 %v238
  %v793 = vunpack.c.l.b16 %v239
  %v794 = vunpack.c.l.b16 %v240
  %v795 = vunpack.c.l.b16 %v241
  %v796 = vunpack.c.l.b16 %v242
  %v797 = vpack.c.b16 %v598, %v597
  %v798 = vpack.c.b16 %v600, %v599
  %v799 = vpack.c.b16 %v602, %v601
  %v800 = vpack.c.b16 %v604, %v603
  %v801 = vpack.c.b16 %v606, %v605
  %v802 = vpack.c.b16 %v608, %v607
  %v803 = vpack.c.b16 %v610, %v609
  %v804 = vpack.c.b16 %v612, %v611
  %v805 = vpack.c.b16 %v614, %v613
  %v806 = vpack.c.b16 %v616, %v615
  %v807 = vpack.c.b16 %v618, %v617
  %v808 = vpack.c.b16 %v620, %v619
  %v809 = vpack.c.b16 %v622, %v621
  %v810 = vpack.c.b16 %v624, %v623
  %v811 = vpack.c.b16 %v626, %v625
  %v812 = vpack.c.b16 %v628, %v627
  %v813 = vpack.c.b16 %v630, %v629
  %v814 = vpack.c.b16 %v632, %v631
  %v815 = vpack.c.b16 %v634, %v633
  %v816 = vpack.c.b16 %v636, %v635
  %v817 = vpack.c.b16 %v638, %v637
  %v818 = vpack.c.b16 %v640, %v639
  %v819 = vpack.c.b16 %v642, %v641
  %v820 = vpack.c.b16 %v644, %v643
  %v821 = vpack.c.b16 %v646, %v645
  %v822 = vpack.c.b16 %v648, %v647
  %v823 = vpack.c.b16 %v650, %v649
  %v824 = vpack.c.b16 %v652, %v651
  %v825 = vpack.c.b16 %v654, %v653
  %v826 = vpack.c.b16 %v656, %v655
  %v827 = vpack.c.b16 %v658, %v657
  %v828 = vpack.c.b16 %v660, %v659
  %v829 = vpack.c.b16 %v662, %v661
  %v830 = vpack.c.b16 %v664, %v663
  %v831 = vpack.c.b16 %v666, %v665
  %v832 = vpack.c.b16 %v668, %v667
  %v833 = vpack.c.b16 %v670, %v669
  %v834 = vpack.c.b16 %v672, %v671
  %v835 = vpack.c.b16 %v674, %v673
  %v836 = vpack.c.b16 %v676, %v675
  %v837 = vpack.c.b16 %v678, %v677
  %v838 = vpack.c.b16 %v680, %v679
  %v839 = vpack.c.b16 %v682, %v681
  %v840 = vpack.c.b16 %v684, %v683
  %v841 = vpack.c.b16 %v686, %v685
  %v842 = vpack.c.b16 %v688, %v687
  %v843 = vpack.c.b16 %v690, %v689
  %v844 = vpack.c.b16 %v692, %v691
  %v845 = vpack.c.b16 %v694, %v693
  %v846 = vpack.c.b16 %v696, %v695
  %v847 = vpack.c.b16 %v698, %v697
  %v848 = vpack.c.b16 %v700, %v699
  %v849 = vpack.c.b16 %v702, %v701
  %v850 = vpack.c.b16 %v704, %v703
  %v851 = vpack.c.b16 %v706, %v705
  %v852 = vpack.c.b16 %v708, %v707
  %v853 = vpack.c.b16 %v710, %v709
  %v854 = vpack.c.b16 %v712, %v711
  %v855 = vpack.c.b16 %v714, %v713
  %v856 = vpack.c.b16 %v716, %v715
  %v857 = vpack.c.b16 %v718, %v717
  %v858 = vpack.c.b16 %v720, %v719
  %v859 = vpack.c.b16 %v722, %v721
  %v860 = vpack.c.b16 %v724, %v723
  %v861 = vpack.c.b16 %v726, %v725
  %v862 = vpack.c.b16 %v728, %v727
  %v863 = vpack.c.b16 %v730, %v729
  %v864 = vpack.c.b16 %v732, %v731
  %v865 = vpack.c.b16 %v734, %v733
  %v866 = vpack.c.b16 %v736, %v735
  %v867 = vpack.c.b16 %v738, %v737
  %v868 = vpack.c.b16 %v740, %v739
  %v869 = vpack.c.b16 %v742, %v741
  %v870 = vpack.c.b16 %v744, %v743
  %v871 = vpack.c.b16 %v746, %v745
  %v872 = vpack.c.b16 %v748, %v747
  %v873 = vpack.c.b16 %v750, %v749
  %v874 = vpack.c.b16 %v752, %v751
  %v875 = vpack.c.b16 %v754, %v753
  %v876 = vpack.c.b16 %v756, %v755
  %v877 = vpack.c.b16 %v758, %v757
  %v878 = vpack.c.b16 %v760, %v759
  %v879 = vpack.c.b16 %v762, %v761
  %v880 = vpack.c.b16 %v764, %v763
  %v881 = vpack.c.b16 %v766, %v765
  %v882 = vpack.c.b16 %v768, %v767
  %v883 = vpack.c.b16 %v770, %v769
  %v884 = vpack.c.b16 %v772, %v771
  %v885 = vpack.c.b16 %v774, %v773
  %v886 = vpack.c.b16 %v776, %v775
  %v887 = vpack.c.b16 %v778, %v777
  %v888 = vpack.c.b16 %v780, %v779
  %v889 = vpack.c.b16 %v782, %v781
  %v890 = vpack.c.b16 %v784, %v783
  %v891 = vpack.c.b16 %v786, %v785
  %v892 = vpack.c.b16 %v788, %v787
  %v893 = vpack.c.b16 %v790, %v789
  %v894 = vpack.c.b16 %v792, %v791
  %v895 = vpack.c.b16 %v794, %v793
  %v896 = vpack.c.b16 %v796, %v795
  %vm997 = vcmask 523264
  %v999 = vsel %vm997, %v359, 0
  %v1002 = vsel %vm997, %v372, 0
  %1004 = vmatprep.subr.bf16.mxu0 0
  %1005 = vmatpush1.bf16.msra.mxu0 %v797
  %1006 = vmatprep.subr.bf16.mxu0 0
  %1007 = vmatpush1.bf16.msra.mxu0 %v798
  %1008 = vmatprep.subr.bf16.mxu0 0
  %1009 = vmatpush1.bf16.msra.mxu0 %v799
  %1010 = vmatprep.subr.bf16.mxu0 0
  %1011 = vmatpush1.bf16.msra.mxu0 %v800
  %1012 = vmatprep.subr.bf16.mxu0 0
  %1013 = vmatpush1.bf16.msra.mxu0 %v801
  %1014 = vmatprep.subr.bf16.mxu0 0
  %1015 = vmatpush1.bf16.msra.mxu0 %v802
  %1016 = vmatprep.subr.bf16.mxu0 0
  %1017 = vmatpush1.bf16.msra.mxu0 %v803
  %1018 = vmatprep.subr.bf16.mxu0 0
  %1019 = vmatpush1.bf16.msra.mxu0 %v804
  %1020 = vmatprep.subr.bf16.mxu0 0
  %1021 = vmatpush1.bf16.msra.mxu0 %v805
  %1022 = vmatprep.subr.bf16.mxu0 0
  %1023 = vmatpush1.bf16.msra.mxu0 %v806
  %1024 = vmatprep.subr.bf16.mxu0 0
  %1025 = vmatpush1.bf16.msra.mxu0 %v807
  %1026 = vmatprep.subr.bf16.mxu0 0
  %1027 = vmatpush1.bf16.msra.mxu0 %v808
  %1028 = vmatprep.subr.bf16.mxu0 0
  %1029 = vmatpush1.bf16.msra.mxu0 %v809
  %1030 = vmatprep.subr.bf16.mxu0 0
  %1031 = vmatpush1.bf16.msra.mxu0 %v810
  %1032 = vmatprep.subr.bf16.mxu0 0
  %1033 = vmatpush1.bf16.msra.mxu0 %v811
  %1034 = vmatprep.subr.bf16.mxu0 0
  %1035 = vmatpush1.bf16.msra.mxu0 %v812
  %1036 = vmatprep.mubr.bf16.mxu0 %v348
  %1037 = vmatmul.mubr.bf16.gmra.mrb[0].mxu0 %v347
  %v1038 = vpop.f32.mrb[0].mxu0
  %v1039 = vadd.f32 %v250, %v1038
  %v1040 = vpop.f32.mrb[0].mxu0
  %v1041 = vpop.f32.mrb[0].mxu0
  %v1042 = vadd.f32 %v255, %v1041
  %v1043 = vpop.f32.mrb[0].mxu0
  %1044 = vmatprep.mubr.bf16.mxu0 %v361
  %1045 = vmatmul.mubr.bf16.gmra.mrb[0].mxu0 %v360
  %v1046 = vpop.f32.mrb[0].mxu0
  %v1047 = vadd.f32 %v260, %v1046
  %v1048 = vpop.f32.mrb[0].mxu0
  %v1049 = vpop.f32.mrb[0].mxu0
  %v1050 = vadd.f32 %v265, %v1049
  %v1051 = vpop.f32.mrb[0].mxu0
  %1052 = vdwg.mxu0
  %1053 = vmatprep.subr.bf16.mxu0 0
  %1054 = vmatpush1.bf16.msra.mxu0 %v813
  %1055 = vmatprep.subr.bf16.mxu0 0
  %1056 = vmatpush1.bf16.msra.mxu0 %v814
  %1057 = vmatprep.subr.bf16.mxu0 0
  %1058 = vmatpush1.bf16.msra.mxu0 %v815
  %1059 = vmatprep.subr.bf16.mxu0 0
  %1060 = vmatpush1.bf16.msra.mxu0 %v816
  %1061 = vmatprep.subr.bf16.mxu0 0
  %1062 = vmatpush1.bf16.msra.mxu0 %v817
  %1063 = vmatprep.subr.bf16.mxu0 0
  %1064 = vmatpush1.bf16.msra.mxu0 %v818
  %1065 = vmatprep.subr.bf16.mxu0 0
  %1066 = vmatpush1.bf16.msra.mxu0 %v819
  %1067 = vmatprep.subr.bf16.mxu0 0
  %1068 = vmatpush1.bf16.msra.mxu0 %v820
  %1069 = vmatprep.subr.bf16.mxu0 0
  %1070 = vmatpush1.bf16.msra.mxu0 %v821
  %1071 = vmatprep.subr.bf16.mxu0 0
  %1072 = vmatpush1.bf16.msra.mxu0 %v822
  %1073 = vmatprep.subr.bf16.mxu0 0
  %1074 = vmatpush1.bf16.msra.mxu0 %v823
  %1075 = vmatprep.subr.bf16.mxu0 0
  %1076 = vmatpush1.bf16.msra.mxu0 %v824
  %1077 = vmatprep.subr.bf16.mxu0 0
  %1078 = vmatpush1.bf16.msra.mxu0 %v825
  %1079 = vmatprep.subr.bf16.mxu0 0
  %1080 = vmatpush1.bf16.msra.mxu0 %v826
  %1081 = vmatprep.subr.bf16.mxu0 0
  %1082 = vmatpush1.bf16.msra.mxu0 %v827
  %1083 = vmatprep.subr.bf16.mxu0 0
  %1084 = vmatpush1.bf16.msra.mxu0 %v828
  %1085 = vmatprep.mubr.bf16.mxu0 %v350
  %1086 = vmatmul.mubr.bf16.gmra.mrb[0].mxu0 %v349
  %v1087 = vpop.f32.mrb[0].mxu0
  %v1088 = vadd.f32 %v1039, %v1087
  %v1089 = vpop.f32.mrb[0].mxu0
  %v1090 = vpop.f32.mrb[0].mxu0
  %v1091 = vadd.f32 %v1042, %v1090
  %v1092 = vpop.f32.mrb[0].mxu0
  %1093 = vmatprep.mubr.bf16.mxu0 %v363
  %1094 = vmatmul.mubr.bf16.gmra.mrb[0].mxu0 %v362
  %v1095 = vpop.f32.mrb[0].mxu0
  %v1096 = vadd.f32 %v1047, %v1095
  %v1097 = vpop.f32.mrb[0].mxu0
  %v1098 = vpop.f32.mrb[0].mxu0
  %v1099 = vadd.f32 %v1050, %v1098
  %v1100 = vpop.f32.mrb[0].mxu0
  %1101 = vdwg.mxu0
  %1102 = vmatprep.subr.bf16.mxu0 0
  %1103 = vmatpush1.bf16.msra.mxu0 %v829
  %1104 = vmatprep.subr.bf16.mxu0 0
  %1105 = vmatpush1.bf16.msra.mxu0 %v830
  %1106 = vmatprep.subr.bf16.mxu0 0
  %1107 = vmatpush1.bf16.msra.mxu0 %v831
  %1108 = vmatprep.subr.bf16.mxu0 0
  %1109 = vmatpush1.bf16.msra.mxu0 %v832
  %1110 = vmatprep.subr.bf16.mxu0 0
  %1111 = vmatpush1.bf16.msra.mxu0 %v833
  %1112 = vmatprep.subr.bf16.mxu0 0
  %1113 = vmatpush1.bf16.msra.mxu0 %v834
  %1114 = vmatprep.subr.bf16.mxu0 0
  %1115 = vmatpush1.bf16.msra.mxu0 %v835
  %1116 = vmatprep.subr.bf16.mxu0 0
  %1117 = vmatpush1.bf16.msra.mxu0 %v836
  %1118 = vmatprep.subr.bf16.mxu0 0
  %1119 = vmatpush1.bf16.msra.mxu0 %v837
  %1120 = vmatprep.subr.bf16.mxu0 0
  %1121 = vmatpush1.bf16.msra.mxu0 %v838
  %1122 = vmatprep.subr.bf16.mxu0 0
  %1123 = vmatpush1.bf16.msra.mxu0 %v839
  %1124 = vmatprep.subr.bf16.mxu0 0
  %1125 = vmatpush1.bf16.msra.mxu0 %v840
  %1126 = vmatprep.subr.bf16.mxu0 0
  %1127 = vmatpush1.bf16.msra.mxu0 %v841
  %1128 = vmatprep.subr.bf16.mxu0 0
  %1129 = vmatpush1.bf16.msra.mxu0 %v842
  %1130 = vmatprep.subr.bf16.mxu0 0
  %1131 = vmatpush1.bf16.msra.mxu0 %v843
  %1132 = vmatprep.subr.bf16.mxu0 0
  %1133 = vmatpush1.bf16.msra.mxu0 %v844
  %1134 = vmatprep.mubr.bf16.mxu0 %v352
  %1135 = vmatmul.mubr.bf16.gmra.mrb[0].mxu0 %v351
  %v1136 = vpop.f32.mrb[0].mxu0
  %v1137 = vadd.f32 %v1088, %v1136
  %v1138 = vpop.f32.mrb[0].mxu0
  %v1139 = vpop.f32.mrb[0].mxu0
  %v1140 = vadd.f32 %v1091, %v1139
  %v1141 = vpop.f32.mrb[0].mxu0
  %1142 = vmatprep.mubr.bf16.mxu0 %v365
  %1143 = vmatmul.mubr.bf16.gmra.mrb[0].mxu0 %v364
  %v1144 = vpop.f32.mrb[0].mxu0
  %v1145 = vadd.f32 %v1096, %v1144
  %v1146 = vpop.f32.mrb[0].mxu0
  %v1147 = vpop.f32.mrb[0].mxu0
  %v1148 = vadd.f32 %v1099, %v1147
  %v1149 = vpop.f32.mrb[0].mxu0
  %1150 = vdwg.mxu0
  %1151 = vmatprep.subr.bf16.mxu0 0
  %1152 = vmatpush1.bf16.msra.mxu0 %v845
  %1153 = vmatprep.subr.bf16.mxu0 0
  %1154 = vmatpush1.bf16.msra.mxu0 %v846
  %1155 = vmatprep.subr.bf16.mxu0 0
  %1156 = vmatpush1.bf16.msra.mxu0 %v847
  %1157 = vmatprep.subr.bf16.mxu0 0
  %1158 = vmatpush1.bf16.msra.mxu0 %v848
  %1159 = vmatprep.subr.bf16.mxu0 0
  %1160 = vmatpush1.bf16.msra.mxu0 %v849
  %1161 = vmatprep.subr.bf16.mxu0 0
  %1162 = vmatpush1.bf16.msra.mxu0 %v850
  %1163 = vmatprep.subr.bf16.mxu0 0
  %1164 = vmatpush1.bf16.msra.mxu0 %v851
  %1165 = vmatprep.subr.bf16.mxu0 0
  %1166 = vmatpush1.bf16.msra.mxu0 %v852
  %1167 = vmatprep.subr.bf16.mxu0 0
  %1168 = vmatpush1.bf16.msra.mxu0 %v853
  %1169 = vmatprep.subr.bf16.mxu0 0
  %1170 = vmatpush1.bf16.msra.mxu0 %v854
  %1171 = vmatprep.subr.bf16.mxu0 0
  %1172 = vmatpush1.bf16.msra.mxu0 %v855
  %1173 = vmatprep.subr.bf16.mxu0 0
  %1174 = vmatpush1.bf16.msra.mxu0 %v856
  %1175 = vmatprep.subr.bf16.mxu0 0
  %1176 = vmatpush1.bf16.msra.mxu0 %v857
  %1177 = vmatprep.subr.bf16.mxu0 0
  %1178 = vmatpush1.bf16.msra.mxu0 %v858
  %1179 = vmatprep.subr.bf16.mxu0 0
  %1180 = vmatpush1.bf16.msra.mxu0 %v859
  %1181 = vmatprep.subr.bf16.mxu0 0
  %1182 = vmatpush1.bf16.msra.mxu0 %v860
  %1183 = vmatprep.mubr.bf16.mxu0 %v354
  %1184 = vmatmul.mubr.bf16.gmra.mrb[0].mxu0 %v353
  %v1185 = vpop.f32.mrb[0].mxu0
  %v1186 = vadd.f32 %v1137, %v1185
  %v1187 = vpop.f32.mrb[0].mxu0
  %v1188 = vpop.f32.mrb[0].mxu0
  %v1189 = vadd.f32 %v1140, %v1188
  %v1190 = vpop.f32.mrb[0].mxu0
  %1191 = vmatprep.mubr.bf16.mxu0 %v367
  %1192 = vmatmul.mubr.bf16.gmra.mrb[0].mxu0 %v366
  %v1193 = vpop.f32.mrb[0].mxu0
  %v1194 = vadd.f32 %v1145, %v1193
  %v1195 = vpop.f32.mrb[0].mxu0
  %v1196 = vpop.f32.mrb[0].mxu0
  %v1197 = vadd.f32 %v1148, %v1196
  %v1198 = vpop.f32.mrb[0].mxu0
  %1199 = vdwg.mxu0
  %1200 = vmatprep.subr.bf16.mxu0 0
  %1201 = vmatpush1.bf16.msra.mxu0 %v861
  %1202 = vmatprep.subr.bf16.mxu0 0
  %1203 = vmatpush1.bf16.msra.mxu0 %v862
  %1204 = vmatprep.subr.bf16.mxu0 0
  %1205 = vmatpush1.bf16.msra.mxu0 %v863
  %1206 = vmatprep.subr.bf16.mxu0 0
  %1207 = vmatpush1.bf16.msra.mxu0 %v864
  %1208 = vmatprep.subr.bf16.mxu0 0
  %1209 = vmatpush1.bf16.msra.mxu0 %v865
  %1210 = vmatprep.subr.bf16.mxu0 0
  %1211 = vmatpush1.bf16.msra.mxu0 %v866
  %1212 = vmatprep.subr.bf16.mxu0 0
  %1213 = vmatpush1.bf16.msra.mxu0 %v867
  %1214 = vmatprep.subr.bf16.mxu0 0
  %1215 = vmatpush1.bf16.msra.mxu0 %v868
  %1216 = vmatprep.subr.bf16.mxu0 0
  %1217 = vmatpush1.bf16.msra.mxu0 %v869
  %1218 = vmatprep.subr.bf16.mxu0 0
  %1219 = vmatpush1.bf16.msra.mxu0 %v870
  %1220 = vmatprep.subr.bf16.mxu0 0
  %1221 = vmatpush1.bf16.msra.mxu0 %v871
  %1222 = vmatprep.subr.bf16.mxu0 0
  %1223 = vmatpush1.bf16.msra.mxu0 %v872
  %1224 = vmatprep.subr.bf16.mxu0 0
  %1225 = vmatpush1.bf16.msra.mxu0 %v873
  %1226 = vmatprep.subr.bf16.mxu0 0
  %1227 = vmatpush1.bf16.msra.mxu0 %v874
  %1228 = vmatprep.subr.bf16.mxu0 0
  %1229 = vmatpush1.bf16.msra.mxu0 %v875
  %1230 = vmatprep.subr.bf16.mxu0 0
  %1231 = vmatpush1.bf16.msra.mxu0 %v876
  %1232 = vmatprep.mubr.bf16.mxu0 %v356
  %1233 = vmatmul.mubr.bf16.gmra.mrb[0].mxu0 %v355
  %v1234 = vpop.f32.mrb[0].mxu0
  %v1235 = vadd.f32 %v1186, %v1234
  %v1236 = vpop.f32.mrb[0].mxu0
  %v1237 = vpop.f32.mrb[0].mxu0
  %v1238 = vadd.f32 %v1189, %v1237
  %v1239 = vpop.f32.mrb[0].mxu0
  %1240 = vmatprep.mubr.bf16.mxu0 %v369
  %1241 = vmatmul.mubr.bf16.gmra.mrb[0].mxu0 %v368
  %v1242 = vpop.f32.mrb[0].mxu0
  %v1243 = vadd.f32 %v1194, %v1242
  %v1244 = vpop.f32.mrb[0].mxu0
  %v1245 = vpop.f32.mrb[0].mxu0
  %v1246 = vadd.f32 %v1197, %v1245
  %v1247 = vpop.f32.mrb[0].mxu0
  %1248 = vdwg.mxu0
  %1249 = vmatprep.subr.bf16.mxu0 0
  %1250 = vmatpush1.bf16.msra.mxu0 %v877
  %1251 = vmatprep.subr.bf16.mxu0 0
  %1252 = vmatpush1.bf16.msra.mxu0 %v878
  %1253 = vmatprep.subr.bf16.mxu0 0
  %1254 = vmatpush1.bf16.msra.mxu0 %v879
  %1255 = vmatprep.subr.bf16.mxu0 0
  %1256 = vmatpush1.bf16.msra.mxu0 %v880
  %1257 = vmatprep.subr.bf16.mxu0 0
  %1258 = vmatpush1.bf16.msra.mxu0 %v881
  %1259 = vmatprep.subr.bf16.mxu0 0
  %1260 = vmatpush1.bf16.msra.mxu0 %v882
  %1261 = vmatprep.subr.bf16.mxu0 0
  %1262 = vmatpush1.bf16.msra.mxu0 %v883
  %1263 = vmatprep.subr.bf16.mxu0 0
  %1264 = vmatpush1.bf16.msra.mxu0 %v884
  %1265 = vmatprep.subr.bf16.mxu0 0
  %1266 = vmatpush1.bf16.msra.mxu0 %v885
  %1267 = vmatprep.subr.bf16.mxu0 0
  %1268 = vmatpush1.bf16.msra.mxu0 %v886
  %1269 = vmatprep.subr.bf16.mxu0 0
  %1270 = vmatpush1.bf16.msra.mxu0 %v887
  %1271 = vmatprep.subr.bf16.mxu0 0
  %1272 = vmatpush1.bf16.msra.mxu0 %v888
  %1273 = vmatprep.subr.bf16.mxu0 0
  %1274 = vmatpush1.bf16.msra.mxu0 %v889
  %1275 = vmatprep.subr.bf16.mxu0 0
  %1276 = vmatpush1.bf16.msra.mxu0 %v890
  %1277 = vmatprep.subr.bf16.mxu0 0
  %1278 = vmatpush1.bf16.msra.mxu0 %v891
  %1279 = vmatprep.subr.bf16.mxu0 0
  %1280 = vmatpush1.bf16.msra.mxu0 %v892
  %1281 = vmatprep.mubr.bf16.mxu0 %v358
  %1282 = vmatmul.mubr.bf16.gmra.mrb[0].mxu0 %v357
  %v1283 = vpop.f32.mrb[0].mxu0
  %v1284 = vadd.f32 %v1235, %v1283
  %v1285 = vpop.f32.mrb[0].mxu0
  %v1286 = vpop.f32.mrb[0].mxu0
  %v1287 = vadd.f32 %v1238, %v1286
  %v1288 = vpop.f32.mrb[0].mxu0
  %1289 = vmatprep.mubr.bf16.mxu0 %v371
  %1290 = vmatmul.mubr.bf16.gmra.mrb[0].mxu0 %v370
  %v1291 = vpop.f32.mrb[0].mxu0
  %v1292 = vadd.f32 %v1243, %v1291
  %v1293 = vpop.f32.mrb[0].mxu0
  %v1294 = vpop.f32.mrb[0].mxu0
  %v1295 = vadd.f32 %v1246, %v1294
  %v1296 = vpop.f32.mrb[0].mxu0
  %1297 = vdwg.mxu0
  %1298 = vmatprep.subr.bf16.mxu0 0
  %1299 = vmatpush1.bf16.msra.mxu0 %v893
  %1300 = vmatprep.subr.bf16.mxu0 0
  %1301 = vmatpush1.bf16.msra.mxu0 %v894
  %1302 = vmatprep.subr.bf16.mxu0 0
  %1303 = vmatpush1.bf16.msra.mxu0 %v895
  %1304 = vmatprep.subr.bf16.mxu0 0
  %1305 = vmatpush1.bf16.msra.mxu0 %v896
  %1306 = vmatprep.subr.bf16.mxu0 0
  %1307 = vmatpush1.bf16.msra.mxu0 0
  %1308 = vmatprep.subr.bf16.mxu0 0
  %1309 = vmatpush1.bf16.msra.mxu0 0
  %1310 = vmatprep.subr.bf16.mxu0 0
  %1311 = vmatpush1.bf16.msra.mxu0 0
  %1312 = vmatprep.subr.bf16.mxu0 0
  %1313 = vmatpush1.bf16.msra.mxu0 0
  %1314 = vmatprep.subr.bf16.mxu0 0
  %1315 = vmatpush1.bf16.msra.mxu0 0
  %1316 = vmatprep.subr.bf16.mxu0 0
  %1317 = vmatpush1.bf16.msra.mxu0 0
  %1318 = vmatprep.subr.bf16.mxu0 0
  %1319 = vmatpush1.bf16.msra.mxu0 0
  %1320 = vmatprep.subr.bf16.mxu0 0
  %1321 = vmatpush1.bf16.msra.mxu0 0
  %1322 = vmatprep.subr.bf16.mxu0 0
  %1323 = vmatpush1.bf16.msra.mxu0 0
  %1324 = vmatprep.subr.bf16.mxu0 0
  %1325 = vmatpush1.bf16.msra.mxu0 0
  %1326 = vmatprep.subr.bf16.mxu0 0
  %1327 = vmatpush1.bf16.msra.mxu0 0
  %1328 = vmatprep.subr.bf16.mxu0 0
  %1329 = vmatpush1.bf16.msra.mxu0 0
  %1330 = vmatprep.mubr.bf16.mxu0 0
  %1331 = vmatmul.mubr.bf16.gmra.mrb[0].mxu0 %v999
  %v1332 = vpop.f32.mrb[0].mxu0
  %v1333 = vadd.f32 %v1284, %v1332
  %v1334 = vpop.f32.mrb[0].mxu0
  %v1335 = vpop.f32.mrb[0].mxu0
  %v1336 = vadd.f32 %v1287, %v1335
  %v1337 = vpop.f32.mrb[0].mxu0
  %1338 = vmatprep.mubr.bf16.mxu0 0
  %1339 = vmatmul.mubr.bf16.gmra.mrb[0].mxu0 %v1002
  %v1340 = vpop.f32.mrb[0].mxu0
  %v1341 = vadd.f32 %v1292, %v1340
  %v1342 = vpop.f32.mrb[0].mxu0
  %v1343 = vpop.f32.mrb[0].mxu0
  %v1344 = vadd.f32 %v1295, %v1343
  %v1345 = vpop.f32.mrb[0].mxu0
  %1346 = vdwg.mxu0
  %v1347 = vmax.f32 %v1333, 0.0
  %v1348 = vmax.f32 %v1336, 0.0
  %v1349 = vmax.f32 %v1341, 0.0
  %v1350 = vmax.f32 %v1344, 0.0
  %v1351 = vpack.c.bf16 %v1348, %v1347
  %v1352 = vpack.c.bf16 %v1350, %v1349
  %v1355 = vunpack.c.l.b16 %v1351
  %v1356 = vunpack.c.h.b16 %v1351
  %v1357 = vunpack.c.l.b16 %v1352
  %v1358 = vunpack.c.h.b16 %v1352
  %v1359 = vpack.c.b16 %v1355, %v1355
  %v1360 = vpack.c.b16 %v1356, %v1356
  %v1361 = vpack.c.b16 %v1357, %v1357
  %v1362 = vpack.c.b16 %v1358, %v1358
  %vm1367 = vcmask 797696
  %1368 = vst.msk [vmem:[%s3] sm:$0xf] %vm1367, %v1359
  %1369 = vst.msk [vmem:[%s3 + $0x4] sm:$0xf] %vm1367, %v1360
  %1370 = vst.msk [vmem:[%s3 + $0x8] sm:$0xf] %vm1367, %v1361
  %1371 = vst.msk [vmem:[%s3 + $0xc] sm:$0xf] %vm1367, %v1362
  // Predicated region
  $region14: #{k_sparse_autoencoder_forward.13} parent=0 // pred_check
    _
  $region15: #{k_sparse_autoencoder_forward.13} parent=0 // pred_check_branch
    %1373 = sbr.rel (0) target = $region17
  $region16: #{k_sparse_autoencoder_forward.13} parent=0 // pred_region
    _
  $region17: #{k_sparse_autoencoder_forward.13} parent=0 // pred_fallthru
    _
  // Predicated region
  $region18: #{k_sparse_autoencoder_forward.13} parent=0 // pred_check
    _
  $region19: #{k_sparse_autoencoder_forward.13} parent=0 // pred_check_branch
    %1375 = sbr.rel (0) target = $region21
  $region20: #{k_sparse_autoencoder_forward.13} parent=0 // pred_region
    _
  $region21: #{k_sparse_autoencoder_forward.13} parent=0 // pred_fallthru
    _

// kernel: k_sparse_autoencoder_forward.14
$region0: #{k_sparse_autoencoder_forward.14}
  #allocation0 [shape = 'u32[]', space=smem, size = 0x4, offset = 0x4, fixed_abs, tag = 'smem constant byte address 0x4 - core index']
  #allocation1 [shape = 'u32[144,128]{1,0:T(1,128)}', space=vmem, size = 0x12000, scoped, tag = 'internal scratch']
  %s0 = inlined_call_operand.vmem [shape: bf16[16,288], index: 0, kind: input, shape index: {}]
  %s1 = inlined_call_operand.vmem [shape: bf16[288,392], index: 1, kind: input, shape index: {}]
  %s2 = inlined_call_operand.vmem [shape: f32[16,1], index: 2, kind: input, shape index: {}]
  %s3 = inlined_call_operand.vmem [shape: bf16[16,392], index: 3, kind: output, shape index: {}]
  %s4 = sld [smem:[#allocation0]]
  $region22: #{k_sparse_autoencoder_forward.14} parent=0
    _
  %s6 = ssub.s32 1, %s4
  %s7 = scalar_select 0, %s6, %s4
  // Predicated region
  $region2: #{k_sparse_autoencoder_forward.14} parent=0 // pred_check
    _
  $region3: #{k_sparse_autoencoder_forward.14} parent=0 // pred_check_branch
    %9 = sbr.rel (0) target = $region5
  $region4: #{k_sparse_autoencoder_forward.14} parent=0 // pred_region
    _
  $region5: #{k_sparse_autoencoder_forward.14} parent=0 // pred_fallthru
    _
  // Predicated region
  $region6: #{k_sparse_autoencoder_forward.14} parent=0 // pred_check
    _
  $region7: #{k_sparse_autoencoder_forward.14} parent=0 // pred_check_branch
    %11 = sbr.rel (0) target = $region9
  $region8: #{k_sparse_autoencoder_forward.14} parent=0 // pred_region
    _
  $region9: #{k_sparse_autoencoder_forward.14} parent=0 // pred_fallthru
    _
  // Predicated region
  $region10: #{k_sparse_autoencoder_forward.14} parent=0 // pred_check
    _
  $region11: #{k_sparse_autoencoder_forward.14} parent=0 // pred_check_branch
    %13 = sbr.rel (0) target = $region13
  $region12: #{k_sparse_autoencoder_forward.14} parent=0 // pred_region
    _
  $region13: #{k_sparse_autoencoder_forward.14} parent=0 // pred_fallthru
    _
  %v15 = vld [vmem:[%s0] sm:$0xff]
  %v16 = vld [vmem:[%s0 + $0x8] sm:$0xf]
  %v17 = vld [vmem:[%s0 + $0xc] sm:$0xff]
  %v18 = vld [vmem:[%s0 + $0x14] sm:$0xf]
  %v19 = vld [vmem:[%s1] sm:$0xff]
  %v20 = vld [vmem:[%s1 + $0x8] sm:$0xff]
  %v21 = vld [vmem:[%s1 + $0x10] sm:$0xff]
  %v22 = vld [vmem:[%s1 + $0x18] sm:$0xff]
  %v23 = vld [vmem:[%s1 + $0x20] sm:$0xff]
  %v24 = vld [vmem:[%s1 + $0x28] sm:$0xff]
  %v25 = vld [vmem:[%s1 + $0x30] sm:$0xff]
  %v26 = vld [vmem:[%s1 + $0x38] sm:$0xff]
  %v27 = vld [vmem:[%s1 + $0x40] sm:$0xff]
  %v28 = vld [vmem:[%s1 + $0x48] sm:$0xff]
  %v29 = vld [vmem:[%s1 + $0x50] sm:$0xff]
  %v30 = vld [vmem:[%s1 + $0x58] sm:$0xff]
  %v31 = vld [vmem:[%s1 + $0x60] sm:$0xff]
  %v32 = vld [vmem:[%s1 + $0x68] sm:$0xff]
  %v33 = vld [vmem:[%s1 + $0x70] sm:$0xff]
  %v34 = vld [vmem:[%s1 + $0x78] sm:$0xff]
  %v35 = vld [vmem:[%s1 + $0x80] sm:$0xff]
  %v36 = vld [vmem:[%s1 + $0x88] sm:$0xff]
  %v37 = vld [vmem:[%s1 + $0x90] sm:$0xff]
  %v38 = vld [vmem:[%s1 + $0x98] sm:$0xff]
  %v39 = vld [vmem:[%s1 + $0xa0] sm:$0xff]
  %v40 = vld [vmem:[%s1 + $0xa8] sm:$0xff]
  %v41 = vld [vmem:[%s1 + $0xb0] sm:$0xff]
  %v42 = vld [vmem:[%s1 + $0xb8] sm:$0xff]
  %v43 = vld [vmem:[%s1 + $0xc0] sm:$0xff]
  %v44 = vld [vmem:[%s1 + $0xc8] sm:$0xff]
  %v45 = vld [vmem:[%s1 + $0xd0] sm:$0xff]
  %v46 = vld [vmem:[%s1 + $0xd8] sm:$0xff]
  %v47 = vld [vmem:[%s1 + $0xe0] sm:$0xff]
  %v48 = vld [vmem:[%s1 + $0xe8] sm:$0xff]
  %v49 = vld [vmem:[%s1 + $0xf0] sm:$0xff]
  %v50 = vld [vmem:[%s1 + $0xf8] sm:$0xff]
  %v51 = vld [vmem:[%s1 + $0x100] sm:$0xff]
  %v52 = vld [vmem:[%s1 + $0x108] sm:$0xff]
  %v53 = vld [vmem:[%s1 + $0x110] sm:$0xff]
  %v54 = vld [vmem:[%s1 + $0x118] sm:$0xff]
  %v55 = vld [vmem:[%s1 + $0x120] sm:$0xff]
  %v56 = vld [vmem:[%s1 + $0x128] sm:$0xff]
  %v57 = vld [vmem:[%s1 + $0x130] sm:$0xff]
  %v58 = vld [vmem:[%s1 + $0x138] sm:$0xff]
  %v59 = vld [vmem:[%s1 + $0x140] sm:$0xff]
  %v60 = vld [vmem:[%s1 + $0x148] sm:$0xff]
  %v61 = vld [vmem:[%s1 + $0x150] sm:$0xff]
  %v62 = vld [vmem:[%s1 + $0x158] sm:$0xff]
  %v63 = vld [vmem:[%s1 + $0x160] sm:$0xff]
  %v64 = vld [vmem:[%s1 + $0x168] sm:$0xff]
  %v65 = vld [vmem:[%s1 + $0x170] sm:$0xff]
  %v66 = vld [vmem:[%s1 + $0x178] sm:$0xff]
  %v67 = vld [vmem:[%s1 + $0x180] sm:$0xff]
  %v68 = vld [vmem:[%s1 + $0x188] sm:$0xff]
  %v69 = vld [vmem:[%s1 + $0x190] sm:$0xff]
  %v70 = vld [vmem:[%s1 + $0x198] sm:$0xff]
  %v71 = vld [vmem:[%s1 + $0x1a0] sm:$0xff]
  %v72 = vld [vmem:[%s1 + $0x1a8] sm:$0xff]
  %v73 = vld [vmem:[%s1 + $0x1b0] sm:$0xff]
  %v74 = vld [vmem:[%s1 + $0x1b8] sm:$0xff]
  %v75 = vld [vmem:[%s1 + $0x1c0] sm:$0xff]
  %v76 = vld [vmem:[%s1 + $0x1c8] sm:$0xff]
  %v77 = vld [vmem:[%s1 + $0x1d0] sm:$0xff]
  %v78 = vld [vmem:[%s1 + $0x1d8] sm:$0xff]
  %v79 = vld [vmem:[%s1 + $0x1e0] sm:$0xff]
  %v80 = vld [vmem:[%s1 + $0x1e8] sm:$0xff]
  %v81 = vld [vmem:[%s1 + $0x1f0] sm:$0xff]
  %v82 = vld [vmem:[%s1 + $0x1f8] sm:$0xff]
  %v83 = vld [vmem:[%s1 + $0x200] sm:$0xff]
  %v84 = vld [vmem:[%s1 + $0x208] sm:$0xff]
  %v85 = vld [vmem:[%s1 + $0x210] sm:$0xff]
  %v86 = vld [vmem:[%s1 + $0x218] sm:$0xff]
  %v87 = vld [vmem:[%s1 + $0x220] sm:$0xff]
  %v88 = vld [vmem:[%s1 + $0x228] sm:$0xff]
  %v89 = vld [vmem:[%s1 + $0x230] sm:$0xff]
  %v90 = vld [vmem:[%s1 + $0x238] sm:$0xff]
  %v91 = vld [vmem:[%s2] sm:$0xff]
  %v92 = vld [vmem:[%s2 + $0x8] sm:$0xff]
  %94 = vset.pattern.permute.xlu0 0
  %95 = vperm.xlu0 %94, %v91
  %v96 = vpop.permute.xlu0 %95
  %99 = vset.pattern.permute.xlu0 0
  %100 = vperm.xlu0 %99, %v92
  %v101 = vpop.permute.xlu0 %100
  %v107 = vunpack.c.l.b16 %v15
  %v108 = vunpack.c.h.b16 %v15
  %v109 = vunpack.c.l.b16 %v16
  %v110 = vunpack.c.l.b16 %v17
  %v111 = vunpack.c.h.b16 %v17
  %v112 = vunpack.c.l.b16 %v18
  %v113 = vpack.c.b16 %v110, %v107
  %v114 = vpack.c.b16 %v111, %v108
  %v115 = vpack.c.b16 %v112, %v109
  %v190 = vunpack.c.l.b16 %v19
  %v191 = vunpack.c.h.b16 %v19
  %v192 = vunpack.c.l.b16 %v20
  %v193 = vunpack.c.h.b16 %v20
  %v194 = vunpack.c.l.b16 %v21
  %v195 = vunpack.c.h.b16 %v21
  %v196 = vunpack.c.l.b16 %v22
  %v197 = vunpack.c.h.b16 %v22
  %v198 = vunpack.c.l.b16 %v23
  %v199 = vunpack.c.h.b16 %v23
  %v200 = vunpack.c.l.b16 %v24
  %v201 = vunpack.c.h.b16 %v24
  %v202 = vunpack.c.l.b16 %v25
  %v203 = vunpack.c.h.b16 %v25
  %v204 = vunpack.c.l.b16 %v26
  %v205 = vunpack.c.h.b16 %v26
  %v206 = vunpack.c.l.b16 %v27
  %v207 = vunpack.c.h.b16 %v27
  %v208 = vunpack.c.l.b16 %v28
  %v209 = vunpack.c.h.b16 %v28
  %v210 = vunpack.c.l.b16 %v29
  %v211 = vunpack.c.h.b16 %v29
  %v212 = vunpack.c.l.b16 %v30
  %v213 = vunpack.c.h.b16 %v30
  %v214 = vunpack.c.l.b16 %v31
  %v215 = vunpack.c.h.b16 %v31
  %v216 = vunpack.c.l.b16 %v32
  %v217 = vunpack.c.h.b16 %v32
  %v218 = vunpack.c.l.b16 %v33
  %v219 = vunpack.c.h.b16 %v33
  %v220 = vunpack.c.l.b16 %v34
  %v221 = vunpack.c.h.b16 %v34
  %v222 = vunpack.c.l.b16 %v35
  %v223 = vunpack.c.h.b16 %v35
  %v224 = vunpack.c.l.b16 %v36
  %v225 = vunpack.c.h.b16 %v36
  %v226 = vunpack.c.l.b16 %v37
  %v227 = vunpack.c.h.b16 %v37
  %v228 = vunpack.c.l.b16 %v38
  %v229 = vunpack.c.h.b16 %v38
  %v230 = vunpack.c.l.b16 %v39
  %v231 = vunpack.c.h.b16 %v39
  %v232 = vunpack.c.l.b16 %v40
  %v233 = vunpack.c.h.b16 %v40
  %v234 = vunpack.c.l.b16 %v41
  %v235 = vunpack.c.h.b16 %v41
  %v236 = vunpack.c.l.b16 %v42
  %v237 = vunpack.c.h.b16 %v42
  %v238 = vunpack.c.l.b16 %v43
  %v239 = vunpack.c.h.b16 %v43
  %v240 = vunpack.c.l.b16 %v44
  %v241 = vunpack.c.h.b16 %v44
  %v242 = vunpack.c.l.b16 %v45
  %v243 = vunpack.c.h.b16 %v45
  %v244 = vunpack.c.l.b16 %v46
  %v245 = vunpack.c.h.b16 %v46
  %v246 = vunpack.c.l.b16 %v47
  %v247 = vunpack.c.h.b16 %v47
  %v248 = vunpack.c.l.b16 %v48
  %v249 = vunpack.c.h.b16 %v48
  %v250 = vunpack.c.l.b16 %v49
  %v251 = vunpack.c.h.b16 %v49
  %v252 = vunpack.c.l.b16 %v50
  %v253 = vunpack.c.h.b16 %v50
  %v254 = vunpack.c.l.b16 %v51
  %v255 = vunpack.c.h.b16 %v51
  %v256 = vunpack.c.l.b16 %v52
  %v257 = vunpack.c.h.b16 %v52
  %v258 = vunpack.c.l.b16 %v53
  %v259 = vunpack.c.h.b16 %v53
  %v260 = vunpack.c.l.b16 %v54
  %v261 = vunpack.c.h.b16 %v54
  %v262 = vunpack.c.l.b16 %v55
  %v263 = vunpack.c.h.b16 %v55
  %v264 = vunpack.c.l.b16 %v56
  %v265 = vunpack.c.h.b16 %v56
  %v266 = vunpack.c.l.b16 %v57
  %v267 = vunpack.c.h.b16 %v57
  %v268 = vunpack.c.l.b16 %v58
  %v269 = vunpack.c.h.b16 %v58
  %v270 = vunpack.c.l.b16 %v59
  %v271 = vunpack.c.h.b16 %v59
  %v272 = vunpack.c.l.b16 %v60
  %v273 = vunpack.c.h.b16 %v60
  %v274 = vunpack.c.l.b16 %v61
  %v275 = vunpack.c.h.b16 %v61
  %v276 = vunpack.c.l.b16 %v62
  %v277 = vunpack.c.h.b16 %v62
  %v278 = vunpack.c.l.b16 %v63
  %v279 = vunpack.c.h.b16 %v63
  %v280 = vunpack.c.l.b16 %v64
  %v281 = vunpack.c.h.b16 %v64
  %v282 = vunpack.c.l.b16 %v65
  %v283 = vunpack.c.h.b16 %v65
  %v284 = vunpack.c.l.b16 %v66
  %v285 = vunpack.c.h.b16 %v66
  %v286 = vunpack.c.l.b16 %v67
  %v287 = vunpack.c.h.b16 %v67
  %v288 = vunpack.c.l.b16 %v68
  %v289 = vunpack.c.h.b16 %v68
  %v290 = vunpack.c.l.b16 %v69
  %v291 = vunpack.c.h.b16 %v69
  %v292 = vunpack.c.l.b16 %v70
  %v293 = vunpack.c.h.b16 %v70
  %v294 = vunpack.c.l.b16 %v71
  %v295 = vunpack.c.h.b16 %v71
  %v296 = vunpack.c.l.b16 %v72
  %v297 = vunpack.c.h.b16 %v72
  %v298 = vunpack.c.l.b16 %v73
  %v299 = vunpack.c.h.b16 %v73
  %v300 = vunpack.c.l.b16 %v74
  %v301 = vunpack.c.h.b16 %v74
  %v302 = vunpack.c.l.b16 %v75
  %v303 = vunpack.c.h.b16 %v75
  %v304 = vunpack.c.l.b16 %v76
  %v305 = vunpack.c.h.b16 %v76
  %v306 = vunpack.c.l.b16 %v77
  %v307 = vunpack.c.h.b16 %v77
  %v308 = vunpack.c.l.b16 %v78
  %v309 = vunpack.c.h.b16 %v78
  %v310 = vunpack.c.l.b16 %v79
  %v311 = vunpack.c.h.b16 %v79
  %v312 = vunpack.c.l.b16 %v80
  %v313 = vunpack.c.h.b16 %v80
  %v314 = vunpack.c.l.b16 %v81
  %v315 = vunpack.c.h.b16 %v81
  %v316 = vunpack.c.l.b16 %v82
  %v317 = vunpack.c.h.b16 %v82
  %v318 = vunpack.c.l.b16 %v83
  %v319 = vunpack.c.h.b16 %v83
  %v320 = vunpack.c.l.b16 %v84
  %v321 = vunpack.c.h.b16 %v84
  %v322 = vunpack.c.l.b16 %v85
  %v323 = vunpack.c.h.b16 %v85
  %v324 = vunpack.c.l.b16 %v86
  %v325 = vunpack.c.h.b16 %v86
  %v326 = vunpack.c.l.b16 %v87
  %v327 = vunpack.c.h.b16 %v87
  %v328 = vunpack.c.l.b16 %v88
  %v329 = vunpack.c.h.b16 %v88
  %v330 = vunpack.c.l.b16 %v89
  %v331 = vunpack.c.h.b16 %v89
  %v332 = vunpack.c.l.b16 %v90
  %v333 = vunpack.c.h.b16 %v90
  %v334 = vpack.c.b16 %v194, %v190
  %v335 = vpack.c.b16 %v195, %v191
  %v336 = vpack.c.b16 %v196, %v192
  %v337 = vpack.c.b16 %v197, %v193
  %v338 = vpack.c.b16 %v202, %v198
  %v339 = vpack.c.b16 %v203, %v199
  %v340 = vpack.c.b16 %v204, %v200
  %v341 = vpack.c.b16 %v205, %v201
  %v342 = vpack.c.b16 %v210, %v206
  %v343 = vpack.c.b16 %v211, %v207
  %v344 = vpack.c.b16 %v212, %v208
  %v345 = vpack.c.b16 %v213, %v209
  %v346 = vpack.c.b16 %v218, %v214
  %v347 = vpack.c.b16 %v219, %v215
  %v348 = vpack.c.b16 %v220, %v216
  %v349 = vpack.c.b16 %v221, %v217
  %v350 = vpack.c.b16 %v226, %v222
  %v351 = vpack.c.b16 %v227, %v223
  %v352 = vpack.c.b16 %v228, %v224
  %v353 = vpack.c.b16 %v229, %v225
  %v354 = vpack.c.b16 %v234, %v230
  %v355 = vpack.c.b16 %v235, %v231
  %v356 = vpack.c.b16 %v236, %v232
  %v357 = vpack.c.b16 %v237, %v233
  %v358 = vpack.c.b16 %v242, %v238
  %v359 = vpack.c.b16 %v243, %v239
  %v360 = vpack.c.b16 %v244, %v240
  %v361 = vpack.c.b16 %v245, %v241
  %v362 = vpack.c.b16 %v250, %v246
  %v363 = vpack.c.b16 %v251, %v247
  %v364 = vpack.c.b16 %v252, %v248
  %v365 = vpack.c.b16 %v253, %v249
  %v366 = vpack.c.b16 %v258, %v254
  %v367 = vpack.c.b16 %v259, %v255
  %v368 = vpack.c.b16 %v260, %v256
  %v369 = vpack.c.b16 %v261, %v257
  %v370 = vpack.c.b16 %v266, %v262
  %v371 = vpack.c.b16 %v267, %v263
  %v372 = vpack.c.b16 %v268, %v264
  %v373 = vpack.c.b16 %v269, %v265
  %v374 = vpack.c.b16 %v274, %v270
  %v375 = vpack.c.b16 %v275, %v271
  %v376 = vpack.c.b16 %v276, %v272
  %v377 = vpack.c.b16 %v277, %v273
  %v378 = vpack.c.b16 %v282, %v278
  %v379 = vpack.c.b16 %v283, %v279
  %v380 = vpack.c.b16 %v284, %v280
  %v381 = vpack.c.b16 %v285, %v281
  %v382 = vpack.c.b16 %v290, %v286
  %v383 = vpack.c.b16 %v291, %v287
  %v384 = vpack.c.b16 %v292, %v288
  %v385 = vpack.c.b16 %v293, %v289
  %v386 = vpack.c.b16 %v298, %v294
  %v387 = vpack.c.b16 %v299, %v295
  %v388 = vpack.c.b16 %v300, %v296
  %v389 = vpack.c.b16 %v301, %v297
  %v390 = vpack.c.b16 %v306, %v302
  %v391 = vpack.c.b16 %v307, %v303
  %v392 = vpack.c.b16 %v308, %v304
  %v393 = vpack.c.b16 %v309, %v305
  %v394 = vpack.c.b16 %v314, %v310
  %v395 = vpack.c.b16 %v315, %v311
  %v396 = vpack.c.b16 %v316, %v312
  %v397 = vpack.c.b16 %v317, %v313
  %v398 = vpack.c.b16 %v322, %v318
  %v399 = vpack.c.b16 %v323, %v319
  %v400 = vpack.c.b16 %v324, %v320
  %v401 = vpack.c.b16 %v325, %v321
  %v402 = vpack.c.b16 %v330, %v326
  %v403 = vpack.c.b16 %v331, %v327
  %v404 = vpack.c.b16 %v332, %v328
  %v405 = vpack.c.b16 %v333, %v329
  %vm478 = vcmask 261120
  %v480 = vsel %vm478, %v115, 0
  %482 = vmatprep.subr.bf16.mxu0 %v335
  %483 = vmatpush1.bf16.msra.mxu0 %v334
  %484 = vmatprep.subr.bf16.mxu0 %v339
  %485 = vmatpush1.bf16.msra.mxu0 %v338
  %486 = vmatprep.subr.bf16.mxu0 %v343
  %487 = vmatpush1.bf16.msra.mxu0 %v342
  %488 = vmatprep.subr.bf16.mxu0 %v347
  %489 = vmatpush1.bf16.msra.mxu0 %v346
  %490 = vmatprep.subr.bf16.mxu0 %v351
  %491 = vmatpush1.bf16.msra.mxu0 %v350
  %492 = vmatprep.subr.bf16.mxu0 %v355
  %493 = vmatpush1.bf16.msra.mxu0 %v354
  %494 = vmatprep.subr.bf16.mxu0 %v359
  %495 = vmatpush1.bf16.msra.mxu0 %v358
  %496 = vmatprep.subr.bf16.mxu0 %v363
  %497 = vmatpush1.bf16.msra.mxu0 %v362
  %498 = vmatprep.subr.bf16.mxu0 %v367
  %499 = vmatpush1.bf16.msra.mxu0 %v366
  %500 = vmatprep.subr.bf16.mxu0 %v371
  %501 = vmatpush1.bf16.msra.mxu0 %v370
  %502 = vmatprep.subr.bf16.mxu0 %v375
  %503 = vmatpush1.bf16.msra.mxu0 %v374
  %504 = vmatprep.subr.bf16.mxu0 %v379
  %505 = vmatpush1.bf16.msra.mxu0 %v378
  %506 = vmatprep.subr.bf16.mxu0 %v383
  %507 = vmatpush1.bf16.msra.mxu0 %v382
  %508 = vmatprep.subr.bf16.mxu0 %v387
  %509 = vmatpush1.bf16.msra.mxu0 %v386
  %510 = vmatprep.subr.bf16.mxu0 %v391
  %511 = vmatpush1.bf16.msra.mxu0 %v390
  %512 = vmatprep.subr.bf16.mxu0 %v395
  %513 = vmatpush1.bf16.msra.mxu0 %v394
  %514 = vmatprep.mubr.bf16.mxu0 %v114
  %515 = vmatmul.mubr.bf16.gmra.mrb[0].mxu0 %v113
  %v516 = vpop.f32.mrb[0].mxu0
  %v517 = vadd.f32 %v96, %v516
  %v518 = vpop.f32.mrb[0].mxu0
  %v519 = vadd.f32 %v96, %v518
  %v520 = vpop.f32.mrb[0].mxu0
  %v521 = vadd.f32 %v101, %v520
  %v522 = vpop.f32.mrb[0].mxu0
  %v523 = vadd.f32 %v101, %v522
  %524 = vdwg.mxu0
  %525 = vmatprep.subr.bf16.mxu0 %v399
  %526 = vmatpush1.bf16.msra.mxu0 %v398
  %527 = vmatprep.subr.bf16.mxu0 %v403
  %528 = vmatpush1.bf16.msra.mxu0 %v402
  %529 = vmatprep.subr.bf16.mxu0 0
  %530 = vmatpush1.bf16.msra.mxu0 0
  %531 = vmatprep.subr.bf16.mxu0 0
  %532 = vmatpush1.bf16.msra.mxu0 0
  %533 = vmatprep.subr.bf16.mxu0 0
  %534 = vmatpush1.bf16.msra.mxu0 0
  %535 = vmatprep.subr.bf16.mxu0 0
  %536 = vmatpush1.bf16.msra.mxu0 0
  %537 = vmatprep.subr.bf16.mxu0 0
  %538 = vmatpush1.bf16.msra.mxu0 0
  %539 = vmatprep.subr.bf16.mxu0 0
  %540 = vmatpush1.bf16.msra.mxu0 0
  %541 = vmatprep.subr.bf16.mxu0 0
  %542 = vmatpush1.bf16.msra.mxu0 0
  %543 = vmatprep.subr.bf16.mxu0 0
  %544 = vmatpush1.bf16.msra.mxu0 0
  %545 = vmatprep.subr.bf16.mxu0 0
  %546 = vmatpush1.bf16.msra.mxu0 0
  %547 = vmatprep.subr.bf16.mxu0 0
  %548 = vmatpush1.bf16.msra.mxu0 0
  %549 = vmatprep.subr.bf16.mxu0 0
  %550 = vmatpush1.bf16.msra.mxu0 0
  %551 = vmatprep.subr.bf16.mxu0 0
  %552 = vmatpush1.bf16.msra.mxu0 0
  %553 = vmatprep.subr.bf16.mxu0 0
  %554 = vmatpush1.bf16.msra.mxu0 0
  %555 = vmatprep.subr.bf16.mxu0 0
  %556 = vmatpush1.bf16.msra.mxu0 0
  %557 = vmatprep.mubr.bf16.mxu0 0
  %558 = vmatmul.mubr.bf16.gmra.mrb[0].mxu0 %v480
  %v559 = vpop.f32.mrb[0].mxu0
  %v560 = vadd.f32 %v517, %v559
  %v561 = vpop.f32.mrb[0].mxu0
  %v562 = vadd.f32 %v519, %v561
  %v563 = vpop.f32.mrb[0].mxu0
  %v564 = vadd.f32 %v521, %v563
  %v565 = vpop.f32.mrb[0].mxu0
  %v566 = vadd.f32 %v523, %v565
  %567 = vdwg.mxu0
  %568 = vmatprep.subr.bf16.mxu0 %v337
  %569 = vmatpush1.bf16.msra.mxu0 %v336
  %570 = vmatprep.subr.bf16.mxu0 %v341
  %571 = vmatpush1.bf16.msra.mxu0 %v340
  %572 = vmatprep.subr.bf16.mxu0 %v345
  %573 = vmatpush1.bf16.msra.mxu0 %v344
  %574 = vmatprep.subr.bf16.mxu0 %v349
  %575 = vmatpush1.bf16.msra.mxu0 %v348
  %576 = vmatprep.subr.bf16.mxu0 %v353
  %577 = vmatpush1.bf16.msra.mxu0 %v352
  %578 = vmatprep.subr.bf16.mxu0 %v357
  %579 = vmatpush1.bf16.msra.mxu0 %v356
  %580 = vmatprep.subr.bf16.mxu0 %v361
  %581 = vmatpush1.bf16.msra.mxu0 %v360
  %582 = vmatprep.subr.bf16.mxu0 %v365
  %583 = vmatpush1.bf16.msra.mxu0 %v364
  %584 = vmatprep.subr.bf16.mxu0 %v369
  %585 = vmatpush1.bf16.msra.mxu0 %v368
  %586 = vmatprep.subr.bf16.mxu0 %v373
  %587 = vmatpush1.bf16.msra.mxu0 %v372
  %588 = vmatprep.subr.bf16.mxu0 %v377
  %589 = vmatpush1.bf16.msra.mxu0 %v376
  %590 = vmatprep.subr.bf16.mxu0 %v381
  %591 = vmatpush1.bf16.msra.mxu0 %v380
  %592 = vmatprep.subr.bf16.mxu0 %v385
  %593 = vmatpush1.bf16.msra.mxu0 %v384
  %594 = vmatprep.subr.bf16.mxu0 %v389
  %595 = vmatpush1.bf16.msra.mxu0 %v388
  %596 = vmatprep.subr.bf16.mxu0 %v393
  %597 = vmatpush1.bf16.msra.mxu0 %v392
  %598 = vmatprep.subr.bf16.mxu0 %v397
  %599 = vmatpush1.bf16.msra.mxu0 %v396
  %600 = vmatprep.mubr.bf16.mxu0 %v114
  %601 = vmatmul.mubr.bf16.gmra.mrb[0].mxu0 %v113
  %v602 = vpop.f32.mrb[0].mxu0
  %v603 = vadd.f32 %v96, %v602
  %v604 = vpop.f32.mrb[0].mxu0
  %v605 = vadd.f32 %v96, %v604
  %v606 = vpop.f32.mrb[0].mxu0
  %v607 = vadd.f32 %v101, %v606
  %v608 = vpop.f32.mrb[0].mxu0
  %v609 = vadd.f32 %v101, %v608
  %610 = vdwg.mxu0
  %611 = vmatprep.subr.bf16.mxu0 %v401
  %612 = vmatpush1.bf16.msra.mxu0 %v400
  %613 = vmatprep.subr.bf16.mxu0 %v405
  %614 = vmatpush1.bf16.msra.mxu0 %v404
  %615 = vmatprep.subr.bf16.mxu0 0
  %616 = vmatpush1.bf16.msra.mxu0 0
  %617 = vmatprep.subr.bf16.mxu0 0
  %618 = vmatpush1.bf16.msra.mxu0 0
  %619 = vmatprep.subr.bf16.mxu0 0
  %620 = vmatpush1.bf16.msra.mxu0 0
  %621 = vmatprep.subr.bf16.mxu0 0
  %622 = vmatpush1.bf16.msra.mxu0 0
  %623 = vmatprep.subr.bf16.mxu0 0
  %624 = vmatpush1.bf16.msra.mxu0 0
  %625 = vmatprep.subr.bf16.mxu0 0
  %626 = vmatpush1.bf16.msra.mxu0 0
  %627 = vmatprep.subr.bf16.mxu0 0
  %628 = vmatpush1.bf16.msra.mxu0 0
  %629 = vmatprep.subr.bf16.mxu0 0
  %630 = vmatpush1.bf16.msra.mxu0 0
  %631 = vmatprep.subr.bf16.mxu0 0
  %632 = vmatpush1.bf16.msra.mxu0 0
  %633 = vmatprep.subr.bf16.mxu0 0
  %634 = vmatpush1.bf16.msra.mxu0 0
  %635 = vmatprep.subr.bf16.mxu0 0
  %636 = vmatpush1.bf16.msra.mxu0 0
  %637 = vmatprep.subr.bf16.mxu0 0
  %638 = vmatpush1.bf16.msra.mxu0 0
  %639 = vmatprep.subr.bf16.mxu0 0
  %640 = vmatpush1.bf16.msra.mxu0 0
  %641 = vmatprep.subr.bf16.mxu0 0
  %642 = vmatpush1.bf16.msra.mxu0 0
  %643 = vmatprep.mubr.bf16.mxu0 0
  %644 = vmatmul.mubr.bf16.gmra.mrb[0].mxu0 %v480
  %v645 = vpop.f32.mrb[0].mxu0
  %v646 = vadd.f32 %v603, %v645
  %v647 = vpop.f32.mrb[0].mxu0
  %v648 = vadd.f32 %v605, %v647
  %v649 = vpop.f32.mrb[0].mxu0
  %v650 = vadd.f32 %v607, %v649
  %v651 = vpop.f32.mrb[0].mxu0
  %v652 = vadd.f32 %v609, %v651
  %653 = vdwg.mxu0
  %v654 = vmax.f32 %v560, 0.0
  %v655 = vmax.f32 %v562, 0.0
  %v656 = vmax.f32 %v646, 0.0
  %v657 = vmax.f32 %v648, 0.0
  %v658 = vmax.f32 %v564, 0.0
  %v659 = vmax.f32 %v566, 0.0
  %v660 = vmax.f32 %v650, 0.0
  %v661 = vmax.f32 %v652, 0.0
  %v662 = vpack.c.bf16 %v658, %v654
  %v663 = vpack.c.bf16 %v659, %v655
  %v664 = vpack.c.bf16 %v660, %v656
  %v665 = vpack.c.bf16 %v661, %v657
  %v670 = vunpack.c.l.b16 %v662
  %v671 = vunpack.c.l.b16 %v663
  %v672 = vunpack.c.l.b16 %v664
  %v673 = vunpack.c.l.b16 %v665
  %v674 = vunpack.c.h.b16 %v662
  %v675 = vunpack.c.h.b16 %v663
  %v676 = vunpack.c.h.b16 %v664
  %v677 = vunpack.c.h.b16 %v665
  %v678 = vpack.c.b16 %v671, %v670
  %v679 = vpack.c.b16 %v673, %v672
  %v680 = vpack.c.b16 %v675, %v674
  %v681 = vpack.c.b16 %v677, %v676
  %686 = vst [vmem:[%s3] sm:$0xff] %v678
  %vm687 = vcmask 1043456
  %vm688 = vcmask 64516
  %vm689 = vmor %vm688, %vm687
  %690 = vst.msk [vmem:[%s3 + $0x8] sm:$0xff] %vm689, %v679
  %691 = vst [vmem:[%s3 + $0x10] sm:$0xff] %v680
  %692 = vst.msk [vmem:[%s3 + $0x18] sm:$0xff] %vm689, %v681
  // Predicated region
  $region14: #{k_sparse_autoencoder_forward.14} parent=0 // pred_check
    _
  $region15: #{k_sparse_autoencoder_forward.14} parent=0 // pred_check_branch
    %694 = sbr.rel (0) target = $region17
  $region16: #{k_sparse_autoencoder_forward.14} parent=0 // pred_region
    _
  $region17: #{k_sparse_autoencoder_forward.14} parent=0 // pred_fallthru
    _
  // Predicated region
  $region18: #{k_sparse_autoencoder_forward.14} parent=0 // pred_check
    _
  $region19: #{k_sparse_autoencoder_forward.14} parent=0 // pred_check_branch
    %696 = sbr.rel (0) target = $region21
  $region20: #{k_sparse_autoencoder_forward.14} parent=0 // pred_region
    _
  $region21: #{k_sparse_autoencoder_forward.14} parent=0 // pred_fallthru
    _

// kernel: k_sparse_autoencoder_forward.15
$region0: #{k_sparse_autoencoder_forward.15}
  #allocation0 [shape = 'u32[]', space=smem, size = 0x4, offset = 0x4, fixed_abs, tag = 'smem constant byte address 0x4 - core index']
  #allocation1 [shape = 'u32[144,128]{1,0:T(1,128)}', space=vmem, size = 0x12000, scoped, tag = 'internal scratch']
  #allocation2 [shape = 'f32[1,1]{1,0:T(1,128)S(1)}', space=vmem, size = 0x200, scoped, tag = 'scoped memory for k_sparse_autoencoder_forward.15']
  %s0 = inlined_call_operand.vmem [shape: bf16[1,144], index: 0, kind: input, shape index: {}]
  %s1 = inlined_call_operand.vmem [shape: bf16[144,1568], index: 1, kind: input, shape index: {}]
  %s2 = inlined_call_operand.<no memory space> [shape: f32[1,1], index: 2, kind: input, shape index: {}]
  %s3 = inlined_call_operand.vmem [shape: bf16[1,1568], index: 3, kind: output, shape index: {}]
  %s4 = sld [smem:[#allocation0]]
  $region173: #{k_sparse_autoencoder_forward.15} parent=0
    _
  %s6 = ssub.s32 1, %s4
  %s7 = scalar_select 0, %s6, %s4
  %v8 = vstv %s2
  %9 = vst [vmem:[#allocation2] sm:$0x1] %v8
  $region1: #{k_sparse_autoencoder_forward.15} parent=0
    #allocation3 [shape = 'u8[516096]{0}', space=vmem, size = 0x7e000, scoped, tag = 'input window, operand 1']
    #allocation4 [shape = 'u8[7168]{0}', space=vmem, size = 0x1c00, scoped, tag = 'output window, operand 0']
    loop: start=0, step=1, limit=4
    $region2: #{k_sparse_autoencoder_forward.15} parent=1 // loop_pre_header
      _
    $region3: #{k_sparse_autoencoder_forward.15} parent=1 // loop_header
      %s11 = sphi 0, %s15
      %p12 = scmp.ge.s32.totalorder %s11, 4
      %s18 = sphi 0, %s30
      %s19 = sphi 0, %s26
      %s20 = sphi 0, %s18
      %s21 = sphi 0, %s19
      %s22 = sphi 0, %s20
      %s23 = sphi 0, %s21
      %s33 = sphi 0, %s35
      %s36 = sphi 0, %s33
      %s37 = sphi 0, %s36
      %s53 = sphi 0, %s37
      %s59 = sphi 0, %s61
      %s62 = sphi 0, %s59
      %s63 = sphi 0, %s62
      %s79 = sphi 0, %s63
      %s85 = sphi 0, %s87
      %s88 = sphi 0, %s85
      %s89 = sphi 0, %s88
      %s105 = sphi 0, %s89
      %s113 = sphi 0, %s115
      %s116 = sphi 0, %s113
      %s117 = sphi 0, %s116
      %s133 = sphi 0, %s117
    $region4: #{k_sparse_autoencoder_forward.15} parent=1 // loop_header_branch
      %14 = sbr.rel (%p12) target = $region8
    $region5: #{k_sparse_autoencoder_forward.15} parent=1 // loop_body
      %s16 = ssub.s32 %s11, 1
      %s17 = ssub.s32 %s11, 2
      %s24 = sadd.s32 1, %s19
      %p25 = scmp.ge.s32.totalorder %s24, 2
      %s26 = scalar_select %p25, 0, %s24
      %s27 = sadd.s32 1, %s18
      %s28 = scalar_select %p25, %s27, %s18
      %p29 = scmp.ge.s32.totalorder %s28, 1
      %s30 = scalar_select %p29, 0, %s28
      %s31 = ssub.s32 %s18, %s30
      %p32 = scmp.eq.s32.totalorder %s31, 0
      %s34 = sadd.s32 %s33, 1
      %s35 = scalar_select %p32, %s33, %s34
      %p38 = pneg %p32
      %p39 = scmp.eq.s32.totalorder %s11, 1
      %p40 = por %p38, %p39
      %p41 = scmp.ne.s32.totalorder %s33, %s36
      %p42 = scmp.eq.s32.totalorder %s11, 0
      %p43 = por %p41, %p42
      %p44 = scmp.ne.s32.totalorder %s33, %s36
      %p45 = scmp.eq.s32.totalorder %s16, 1
      %p46 = por %p44, %p45
      %p47 = scmp.ne.s32.totalorder %s36, %s37
      %p48 = scmp.eq.s32.totalorder %s16, 0
      %p49 = por %p47, %p48
      %p50 = scmp.ne.s32.totalorder %s36, %s37
      %p51 = scmp.eq.s32.totalorder %s17, 1
      %p52 = por %p50, %p51
      %p54 = scmp.ne.s32.totalorder %s37, %s53
      %p55 = scmp.eq.s32.totalorder %s17, 0
      %p56 = por %p54, %p55
      %s57 = ssub.s32 %s19, %s26
      %p58 = scmp.eq.s32.totalorder %s57, 0
      %s60 = sadd.s32 %s59, 1
      %s61 = scalar_select %p58, %s59, %s60
      %p64 = pneg %p58
      %p65 = scmp.eq.s32.totalorder %s11, 1
      %p66 = por %p64, %p65
      %p67 = scmp.ne.s32.totalorder %s59, %s62
      %p68 = scmp.eq.s32.totalorder %s11, 0
      %p69 = por %p67, %p68
      %p70 = scmp.ne.s32.totalorder %s59, %s62
      %p71 = scmp.eq.s32.totalorder %s16, 1
      %p72 = por %p70, %p71
      %p73 = scmp.ne.s32.totalorder %s62, %s63
      %p74 = scmp.eq.s32.totalorder %s16, 0
      %p75 = por %p73, %p74
      %p76 = scmp.ne.s32.totalorder %s62, %s63
      %p77 = scmp.eq.s32.totalorder %s17, 1
      %p78 = por %p76, %p77
      %p80 = scmp.ne.s32.totalorder %s63, %s79
      %p81 = scmp.eq.s32.totalorder %s17, 0
      %p82 = por %p80, %p81
      %s83 = ssub.s32 %s18, %s30
      %p84 = scmp.eq.s32.totalorder %s83, 0
      %s86 = sadd.s32 %s85, 1
      %s87 = scalar_select %p84, %s85, %s86
      %p90 = pneg %p84
      %p91 = scmp.eq.s32.totalorder %s11, 1
      %p92 = por %p90, %p91
      %p93 = scmp.ne.s32.totalorder %s85, %s88
      %p94 = scmp.eq.s32.totalorder %s11, 0
      %p95 = por %p93, %p94
      %p96 = scmp.ne.s32.totalorder %s85, %s88
      %p97 = scmp.eq.s32.totalorder %s16, 1
      %p98 = por %p96, %p97
      %p99 = scmp.ne.s32.totalorder %s88, %s89
      %p100 = scmp.eq.s32.totalorder %s16, 0
      %p101 = por %p99, %p100
      %p102 = scmp.ne.s32.totalorder %s88, %s89
      %p103 = scmp.eq.s32.totalorder %s17, 1
      %p104 = por %p102, %p103
      %p106 = scmp.ne.s32.totalorder %s89, %s105
      %p107 = scmp.eq.s32.totalorder %s17, 0
      %p108 = por %p106, %p107
      %s109 = ssub.s32 %s18, %s30
      %s110 = ssub.s32 %s19, %s26
      %s111 = sor.u32 %s109, %s110
      %p112 = scmp.eq.s32.totalorder %s111, 0
      %s114 = sadd.s32 %s113, 1
      %s115 = scalar_select %p112, %s113, %s114
      %p118 = pneg %p112
      %p119 = scmp.eq.s32.totalorder %s11, 1
      %p120 = por %p118, %p119
      %p121 = scmp.ne.s32.totalorder %s113, %s116
      %p122 = scmp.eq.s32.totalorder %s11, 0
      %p123 = por %p121, %p122
      %p124 = scmp.ne.s32.totalorder %s113, %s116
      %p125 = scmp.eq.s32.totalorder %s16, 1
      %p126 = por %p124, %p125
      %p127 = scmp.ne.s32.totalorder %s116, %s117
      %p128 = scmp.eq.s32.totalorder %s16, 0
      %p129 = por %p127, %p128
      %p130 = scmp.ne.s32.totalorder %s116, %s117
      %p131 = scmp.eq.s32.totalorder %s17, 1
      %p132 = por %p130, %p131
      %p134 = scmp.ne.s32.totalorder %s117, %s133
      %p135 = scmp.eq.s32.totalorder %s17, 0
      %p136 = por %p134, %p135
      %p137 = scmp.le.s32.totalorder 1, %s11
      %p138 = scmp.lt.s32.totalorder %s11, 3
      %p139 = pnand %p137, %p138
      %p140 = pneg %p139
      // Predicated region
      $region9: #{k_sparse_autoencoder_forward.15} parent=5 // pred_check
        _
      $region10: #{k_sparse_autoencoder_forward.15} parent=5 // pred_check_branch
        %142 = sbr.rel (%p139) target = $region12
      $region11: #{k_sparse_autoencoder_forward.15} parent=5 // pred_region
        %s143 = ssub.s32 %s11, 1
        // Predicated region
        $region13: #{k_sparse_autoencoder_forward.15} parent=11 // pred_check
          %p144 = pneg %p49
        $region14: #{k_sparse_autoencoder_forward.15} parent=11 // pred_check_branch
          %146 = sbr.rel (%p144) target = $region16
        $region15: #{k_sparse_autoencoder_forward.15} parent=11 // pred_region
          %p147 = scmp.lt.s32.totalorder %s20, 0
          %s148 = scalar_select %p147, %s20, 0
          %s149 = smul.addr %s148, 2
          %s150 = scalar_lea.vmem %s0, %s149
        $region16: #{k_sparse_autoencoder_forward.15} parent=11 // pred_fallthru
          _
        // Predicated region
        $region17: #{k_sparse_autoencoder_forward.15} parent=11 // pred_check
          %p151 = pneg %p101
        $region18: #{k_sparse_autoencoder_forward.15} parent=11 // pred_check_branch
          %153 = sbr.rel (%p151) target = $region20
        $region19: #{k_sparse_autoencoder_forward.15} parent=11 // pred_region
          %p154 = scmp.lt.s32.totalorder %s20, 0
          %s155 = scalar_select %p154, %s20, 0
          %s156 = scalar_lea.vmem [#allocation2], %s155
        $region20: #{k_sparse_autoencoder_forward.15} parent=11 // pred_fallthru
          _
      $region12: #{k_sparse_autoencoder_forward.15} parent=5 // pred_fallthru
        _
      %p157 = scmp.lt.s32.totalorder %s11, 2
      // Predicated region
      $region21: #{k_sparse_autoencoder_forward.15} parent=5 // pred_check
        %p158 = pneg %p157
      $region22: #{k_sparse_autoencoder_forward.15} parent=5 // pred_check_branch
        %160 = sbr.rel (%p158) target = $region24
      $region23: #{k_sparse_autoencoder_forward.15} parent=5 // pred_region
        // Predicated region
        $region25: #{k_sparse_autoencoder_forward.15} parent=23 // pred_check
          %p161 = pneg %p69
        $region26: #{k_sparse_autoencoder_forward.15} parent=23 // pred_check_branch
          %163 = sbr.rel (%p161) target = $region28
        $region27: #{k_sparse_autoencoder_forward.15} parent=23 // pred_region
          %s164 = sand.u32 %s59, 1
          %s165 = sand.u32 %s59, 1
          %s166 = smul.addr %s165, 504
          %s167 = scalar_lea.vmem [#allocation3], %s166
          %s168 = smul.u32 7, %s19
          %s169 = ssub.s32 13, %s168
          %p170 = scmp.lt.s32.totalorder %s169, 7
          %s171 = scalar_select %p170, %s169, 7
          %s172 = smul.u32 1152, %s171
          %p173 = scmp.ne.s32.totalorder 0, %s172
          %s174 = smul.addr %s168, 4
          %s175 = scalar_lea.vmem %s1, %s174
          %s176 = smul.u32 %s171, 4
          // Predicated region
          $region29: #{k_sparse_autoencoder_forward.15} parent=27 // pred_check
            %p177 = pneg %p173
          $region30: #{k_sparse_autoencoder_forward.15} parent=27 // pred_check_branch
            %179 = sbr.rel (%p177) target = $region32
          $region31: #{k_sparse_autoencoder_forward.15} parent=27 // pred_region
            %p180 = scmp.lt.u32.totalorder %s176, 8
            %p181 = pneg %p180
            // Predicated region
            $region33: #{k_sparse_autoencoder_forward.15} parent=31 // pred_check
              _
            $region34: #{k_sparse_autoencoder_forward.15} parent=31 // pred_check_branch
              %183 = sbr.rel (%p180) target = $region36
            $region35: #{k_sparse_autoencoder_forward.15} parent=31 // pred_region
              %s232 = sand.u32 %s176, 7
              %p233 = scmp.eq.s32.totalorder %s232, 0
              // Predicated region
              $region48: #{k_sparse_autoencoder_forward.15} parent=35 // pred_check
                %p234 = pneg %p233
              $region49: #{k_sparse_autoencoder_forward.15} parent=35 // pred_check_branch
                %236 = sbr.rel (%p234) target = $region51
              $region50: #{k_sparse_autoencoder_forward.15} parent=35 // pred_region
                %s237 = sshrl.u32 %s176, 3
                %s238 = sshrl.u32 %s237, 2
                // While loop
                $region52: #{k_sparse_autoencoder_forward.15} parent=50 // loop_pre_header
                  _
                $region53: #{k_sparse_autoencoder_forward.15} parent=50 // loop_header
                  %s242 = sphi 0, %s244
                  %p243 = scmp.ge.s32.totalorder %s242, %s238
                  %s247 = sphi 0, %s396
                  %s248 = sphi %s175, %s399
                  %s249 = sphi %s167, %s400
                $region54: #{k_sparse_autoencoder_forward.15} parent=50 // loop_header_branch
                  %246 = sbr.rel (%p243) target = $region58
                $region55: #{k_sparse_autoencoder_forward.15} parent=50 // loop_body
                  %v250 = vld [vmem:[%s248] sm:$0xff]
                  %251 = vst [vmem:[%s249] sm:$0xff] %v250
                  %v252 = vld [vmem:[%s248 + $0x8] sm:$0xff]
                  %253 = vst [vmem:[%s249 + $0x8] sm:$0xff] %v252
                  %v254 = vld [vmem:[%s248 + $0x10] sm:$0xff]
                  %255 = vst [vmem:[%s249 + $0x10] sm:$0xff] %v254
                  %v256 = vld [vmem:[%s248 + $0x18] sm:$0xff]
                  %257 = vst [vmem:[%s249 + $0x18] sm:$0xff] %v256
                  %v258 = vld [vmem:[%s248 + $0x34] sm:$0xff]
                  %259 = vst [vmem:[%s249 + $0x1c] sm:$0xff] %v258
                  %v260 = vld [vmem:[%s248 + $0x3c] sm:$0xff]
                  %261 = vst [vmem:[%s249 + $0x24] sm:$0xff] %v260
                  %v262 = vld [vmem:[%s248 + $0x44] sm:$0xff]
                  %263 = vst [vmem:[%s249 + $0x2c] sm:$0xff] %v262
                  %v264 = vld [vmem:[%s248 + $0x4c] sm:$0xff]
                  %265 = vst [vmem:[%s249 + $0x34] sm:$0xff] %v264
                  %v266 = vld [vmem:[%s248 + $0x68] sm:$0xff]
                  %267 = vst [vmem:[%s249 + $0x38] sm:$0xff] %v266
                  %v268 = vld [vmem:[%s248 + $0x70] sm:$0xff]
                  %269 = vst [vmem:[%s249 + $0x40] sm:$0xff] %v268
                  %v270 = vld [vmem:[%s248 + $0x78] sm:$0xff]
                  %271 = vst [vmem:[%s249 + $0x48] sm:$0xff] %v270
                  %v272 = vld [vmem:[%s248 + $0x80] sm:$0xff]
                  %273 = vst [vmem:[%s249 + $0x50] sm:$0xff] %v272
                  %v274 = vld [vmem:[%s248 + $0x9c] sm:$0xff]
                  %275 = vst [vmem:[%s249 + $0x54] sm:$0xff] %v274
                  %v276 = vld [vmem:[%s248 + $0xa4] sm:$0xff]
                  %277 = vst [vmem:[%s249 + $0x5c] sm:$0xff] %v276
                  %v278 = vld [vmem:[%s248 + $0xac] sm:$0xff]
                  %279 = vst [vmem:[%s249 + $0x64] sm:$0xff] %v278
                  %v280 = vld [vmem:[%s248 + $0xb4] sm:$0xff]
                  %281 = vst [vmem:[%s249 + $0x6c] sm:$0xff] %v280
                  %v282 = vld [vmem:[%s248 + $0xd0] sm:$0xff]
                  %283 = vst [vmem:[%s249 + $0x70] sm:$0xff] %v282
                  %v284 = vld [vmem:[%s248 + $0xd8] sm:$0xff]
                  %285 = vst [vmem:[%s249 + $0x78] sm:$0xff] %v284
                  %v286 = vld [vmem:[%s248 + $0xe0] sm:$0xff]
                  %287 = vst [vmem:[%s249 + $0x80] sm:$0xff] %v286
                  %v288 = vld [vmem:[%s248 + $0xe8] sm:$0xff]
                  %289 = vst [vmem:[%s249 + $0x88] sm:$0xff] %v288
                  %v290 = vld [vmem:[%s248 + $0x104] sm:$0xff]
                  %291 = vst [vmem:[%s249 + $0x8c] sm:$0xff] %v290
                  %v292 = vld [vmem:[%s248 + $0x10c] sm:$0xff]
                  %293 = vst [vmem:[%s249 + $0x94] sm:$0xff] %v292
                  %v294 = vld [vmem:[%s248 + $0x114] sm:$0xff]
                  %295 = vst [vmem:[%s249 + $0x9c] sm:$0xff] %v294
                  %v296 = vld [vmem:[%s248 + $0x11c] sm:$0xff]
                  %297 = vst [vmem:[%s249 + $0xa4] sm:$0xff] %v296
                  %v298 = vld [vmem:[%s248 + $0x138] sm:$0xff]
                  %299 = vst [vmem:[%s249 + $0xa8] sm:$0xff] %v298
                  %v300 = vld [vmem:[%s248 + $0x140] sm:$0xff]
                  %301 = vst [vmem:[%s249 + $0xb0] sm:$0xff] %v300
                  %v302 = vld [vmem:[%s248 + $0x148] sm:$0xff]
                  %303 = vst [vmem:[%s249 + $0xb8] sm:$0xff] %v302
                  %v304 = vld [vmem:[%s248 + $0x150] sm:$0xff]
                  %305 = vst [vmem:[%s249 + $0xc0] sm:$0xff] %v304
                  %v306 = vld [vmem:[%s248 + $0x16c] sm:$0xff]
                  %307 = vst [vmem:[%s249 + $0xc4] sm:$0xff] %v306
                  %v308 = vld [vmem:[%s248 + $0x174] sm:$0xff]
                  %309 = vst [vmem:[%s249 + $0xcc] sm:$0xff] %v308
                  %v310 = vld [vmem:[%s248 + $0x17c] sm:$0xff]
                  %311 = vst [vmem:[%s249 + $0xd4] sm:$0xff] %v310
                  %v312 = vld [vmem:[%s248 + $0x184] sm:$0xff]
                  %313 = vst [vmem:[%s249 + $0xdc] sm:$0xff] %v312
                  %v314 = vld [vmem:[%s248 + $0x1a0] sm:$0xff]
                  %315 = vst [vmem:[%s249 + $0xe0] sm:$0xff] %v314
                  %v316 = vld [vmem:[%s248 + $0x1a8] sm:$0xff]
                  %317 = vst [vmem:[%s249 + $0xe8] sm:$0xff] %v316
                  %v318 = vld [vmem:[%s248 + $0x1b0] sm:$0xff]
                  %319 = vst [vmem:[%s249 + $0xf0] sm:$0xff] %v318
                  %v320 = vld [vmem:[%s248 + $0x1b8] sm:$0xff]
                  %321 = vst [vmem:[%s249 + $0xf8] sm:$0xff] %v320
                  %v322 = vld [vmem:[%s248 + $0x1d4] sm:$0xff]
                  %323 = vst [vmem:[%s249 + $0xfc] sm:$0xff] %v322
                  %v324 = vld [vmem:[%s248 + $0x1dc] sm:$0xff]
                  %325 = vst [vmem:[%s249 + $0x104] sm:$0xff] %v324
                  %v326 = vld [vmem:[%s248 + $0x1e4] sm:$0xff]
                  %327 = vst [vmem:[%s249 + $0x10c] sm:$0xff] %v326
                  %v328 = vld [vmem:[%s248 + $0x1ec] sm:$0xff]
                  %329 = vst [vmem:[%s249 + $0x114] sm:$0xff] %v328
                  %v330 = vld [vmem:[%s248 + $0x208] sm:$0xff]
                  %331 = vst [vmem:[%s249 + $0x118] sm:$0xff] %v330
                  %v332 = vld [vmem:[%s248 + $0x210] sm:$0xff]
                  %333 = vst [vmem:[%s249 + $0x120] sm:$0xff] %v332
                  %v334 = vld [vmem:[%s248 + $0x218] sm:$0xff]
                  %335 = vst [vmem:[%s249 + $0x128] sm:$0xff] %v334
                  %v336 = vld [vmem:[%s248 + $0x220] sm:$0xff]
                  %337 = vst [vmem:[%s249 + $0x130] sm:$0xff] %v336
                  %v338 = vld [vmem:[%s248 + $0x23c] sm:$0xff]
                  %339 = vst [vmem:[%s249 + $0x134] sm:$0xff] %v338
                  %v340 = vld [vmem:[%s248 + $0x244] sm:$0xff]
                  %341 = vst [vmem:[%s249 + $0x13c] sm:$0xff] %v340
                  %v342 = vld [vmem:[%s248 + $0x24c] sm:$0xff]
                  %343 = vst [vmem:[%s249 + $0x144] sm:$0xff] %v342
                  %v344 = vld [vmem:[%s248 + $0x254] sm:$0xff]
                  %345 = vst [vmem:[%s249 + $0x14c] sm:$0xff] %v344
                  %v346 = vld [vmem:[%s248 + $0x270] sm:$0xff]
                  %347 = vst [vmem:[%s249 + $0x150] sm:$0xff] %v346
                  %v348 = vld [vmem:[%s248 + $0x278] sm:$0xff]
                  %349 = vst [vmem:[%s249 + $0x158] sm:$0xff] %v348
                  %v350 = vld [vmem:[%s248 + $0x280] sm:$0xff]
                  %351 = vst [vmem:[%s249 + $0x160] sm:$0xff] %v350
                  %v352 = vld [vmem:[%s248 + $0x288] sm:$0xff]
                  %353 = vst [vmem:[%s249 + $0x168] sm:$0xff] %v352
                  %v354 = vld [vmem:[%s248 + $0x2a4] sm:$0xff]
                  %355 = vst [vmem:[%s249 + $0x16c] sm:$0xff] %v354
                  %v356 = vld [vmem:[%s248 + $0x2ac] sm:$0xff]
                  %357 = vst [vmem:[%s249 + $0x174] sm:$0xff] %v356
                  %v358 = vld [vmem:[%s248 + $0x2b4] sm:$0xff]
                  %359 = vst [vmem:[%s249 + $0x17c] sm:$0xff] %v358
                  %v360 = vld [vmem:[%s248 + $0x2bc] sm:$0xff]
                  %361 = vst [vmem:[%s249 + $0x184] sm:$0xff] %v360
                  %v362 = vld [vmem:[%s248 + $0x2d8] sm:$0xff]
                  %363 = vst [vmem:[%s249 + $0x188] sm:$0xff] %v362
                  %v364 = vld [vmem:[%s248 + $0x2e0] sm:$0xff]
                  %365 = vst [vmem:[%s249 + $0x190] sm:$0xff] %v364
                  %v366 = vld [vmem:[%s248 + $0x2e8] sm:$0xff]
                  %367 = vst [vmem:[%s249 + $0x198] sm:$0xff] %v366
                  %v368 = vld [vmem:[%s248 + $0x2f0] sm:$0xff]
                  %369 = vst [vmem:[%s249 + $0x1a0] sm:$0xff] %v368
                  %v370 = vld [vmem:[%s248 + $0x30c] sm:$0xff]
                  %371 = vst [vmem:[%s249 + $0x1a4] sm:$0xff] %v370
                  %v372 = vld [vmem:[%s248 + $0x314] sm:$0xff]
                  %373 = vst [vmem:[%s249 + $0x1ac] sm:$0xff] %v372
                  %v374 = vld [vmem:[%s248 + $0x31c] sm:$0xff]
                  %375 = vst [vmem:[%s249 + $0x1b4] sm:$0xff] %v374
                  %v376 = vld [vmem:[%s248 + $0x324] sm:$0xff]
                  %377 = vst [vmem:[%s249 + $0x1bc] sm:$0xff] %v376
                  %v378 = vld [vmem:[%s248 + $0x340] sm:$0xff]
                  %379 = vst [vmem:[%s249 + $0x1c0] sm:$0xff] %v378
                  %v380 = vld [vmem:[%s248 + $0x348] sm:$0xff]
                  %381 = vst [vmem:[%s249 + $0x1c8] sm:$0xff] %v380
                  %v382 = vld [vmem:[%s248 + $0x350] sm:$0xff]
                  %383 = vst [vmem:[%s249 + $0x1d0] sm:$0xff] %v382
                  %v384 = vld [vmem:[%s248 + $0x358] sm:$0xff]
                  %385 = vst [vmem:[%s249 + $0x1d8] sm:$0xff] %v384
                  %v386 = vld [vmem:[%s248 + $0x374] sm:$0xff]
                  %387 = vst [vmem:[%s249 + $0x1dc] sm:$0xff] %v386
                  %v388 = vld [vmem:[%s248 + $0x37c] sm:$0xff]
                  %389 = vst [vmem:[%s249 + $0x1e4] sm:$0xff] %v388
                  %v390 = vld [vmem:[%s248 + $0x384] sm:$0xff]
                  %391 = vst [vmem:[%s249 + $0x1ec] sm:$0xff] %v390
                  %v392 = vld [vmem:[%s248 + $0x38c] sm:$0xff]
                  %393 = vst [vmem:[%s249 + $0x1f4] sm:$0xff] %v392
                  %s394 = sadd.s32 1, %s247
                  %p395 = scmp.ge.s32.totalorder %s394, %s238
                  %s396 = scalar_select %p395, 0, %s394
                  %s397 = smul.u32 %s396, 32
                  %s398 = smul.u32 %s396, 32
                  %s399 = scalar_lea.vmem %s175, %s397
                  %s400 = scalar_lea.vmem %s167, %s398 [#allocation3]
                $region56: #{k_sparse_autoencoder_forward.15} parent=50 // loop_footer
                  %s244 = sadd.s32 %s242, 1
                $region57: #{k_sparse_autoencoder_forward.15} parent=50 // loop_footer_branch
                  %241 = sbr.rel target = $region53
                $region58: #{k_sparse_autoencoder_forward.15} parent=50 // loop_exit
                  _
                %s401 = sshrl.u32 %s237, 2
                %s402 = sand.u32 %s237, 3
                %s403 = smul.u32 %s401, 4
                %s404 = smul.u32 128, %s403
                %s405 = sshra.s32 %s404, 4
                %s406 = scalar_lea.vmem %s175, %s405
                %s407 = smul.u32 128, %s403
                %s408 = sshra.s32 %s407, 4
                %s409 = scalar_lea.vmem %s167, %s408 [#allocation3]
                // While loop
                $region59: #{k_sparse_autoencoder_forward.15} parent=50 // loop_pre_header
                  _
                $region60: #{k_sparse_autoencoder_forward.15} parent=50 // loop_header
                  %s413 = sphi 0, %s415
                  %p414 = scmp.ge.s32.totalorder %s413, %s402
                  %s418 = sphi 0, %s459
                  %s419 = sphi %s406, %s462
                  %s420 = sphi %s409, %s463
                $region61: #{k_sparse_autoencoder_forward.15} parent=50 // loop_header_branch
                  %417 = sbr.rel (%p414) target = $region65
                $region62: #{k_sparse_autoencoder_forward.15} parent=50 // loop_body
                  %v421 = vld [vmem:[%s419] sm:$0xff]
                  %422 = vst [vmem:[%s420] sm:$0xff] %v421
                  %v423 = vld [vmem:[%s419 + $0x34] sm:$0xff]
                  %424 = vst [vmem:[%s420 + $0x1c] sm:$0xff] %v423
                  %v425 = vld [vmem:[%s419 + $0x68] sm:$0xff]
                  %426 = vst [vmem:[%s420 + $0x38] sm:$0xff] %v425
                  %v427 = vld [vmem:[%s419 + $0x9c] sm:$0xff]
                  %428 = vst [vmem:[%s420 + $0x54] sm:$0xff] %v427
                  %v429 = vld [vmem:[%s419 + $0xd0] sm:$0xff]
                  %430 = vst [vmem:[%s420 + $0x70] sm:$0xff] %v429
                  %v431 = vld [vmem:[%s419 + $0x104] sm:$0xff]
                  %432 = vst [vmem:[%s420 + $0x8c] sm:$0xff] %v431
                  %v433 = vld [vmem:[%s419 + $0x138] sm:$0xff]
                  %434 = vst [vmem:[%s420 + $0xa8] sm:$0xff] %v433
                  %v435 = vld [vmem:[%s419 + $0x16c] sm:$0xff]
                  %436 = vst [vmem:[%s420 + $0xc4] sm:$0xff] %v435
                  %v437 = vld [vmem:[%s419 + $0x1a0] sm:$0xff]
                  %438 = vst [vmem:[%s420 + $0xe0] sm:$0xff] %v437
                  %v439 = vld [vmem:[%s419 + $0x1d4] sm:$0xff]
                  %440 = vst [vmem:[%s420 + $0xfc] sm:$0xff] %v439
                  %v441 = vld [vmem:[%s419 + $0x208] sm:$0xff]
                  %442 = vst [vmem:[%s420 + $0x118] sm:$0xff] %v441
                  %v443 = vld [vmem:[%s419 + $0x23c] sm:$0xff]
                  %444 = vst [vmem:[%s420 + $0x134] sm:$0xff] %v443
                  %v445 = vld [vmem:[%s419 + $0x270] sm:$0xff]
                  %446 = vst [vmem:[%s420 + $0x150] sm:$0xff] %v445
                  %v447 = vld [vmem:[%s419 + $0x2a4] sm:$0xff]
                  %448 = vst [vmem:[%s420 + $0x16c] sm:$0xff] %v447
                  %v449 = vld [vmem:[%s419 + $0x2d8] sm:$0xff]
                  %450 = vst [vmem:[%s420 + $0x188] sm:$0xff] %v449
                  %v451 = vld [vmem:[%s419 + $0x30c] sm:$0xff]
                  %452 = vst [vmem:[%s420 + $0x1a4] sm:$0xff] %v451
                  %v453 = vld [vmem:[%s419 + $0x340] sm:$0xff]
                  %454 = vst [vmem:[%s420 + $0x1c0] sm:$0xff] %v453
                  %v455 = vld [vmem:[%s419 + $0x374] sm:$0xff]
                  %456 = vst [vmem:[%s420 + $0x1dc] sm:$0xff] %v455
                  %s457 = sadd.s32 1, %s418
                  %p458 = scmp.ge.s32.totalorder %s457, %s402
                  %s459 = scalar_select %p458, 0, %s457
                  %s460 = smul.u32 %s459, 8
                  %s461 = smul.u32 %s459, 8
                  %s462 = scalar_lea.vmem %s406, %s460
                  %s463 = scalar_lea.vmem %s409, %s461 [#allocation3]
                $region63: #{k_sparse_autoencoder_forward.15} parent=50 // loop_footer
                  %s415 = sadd.s32 %s413, 1
                $region64: #{k_sparse_autoencoder_forward.15} parent=50 // loop_footer_branch
                  %412 = sbr.rel target = $region60
                $region65: #{k_sparse_autoencoder_forward.15} parent=50 // loop_exit
                  _
              $region51: #{k_sparse_autoencoder_forward.15} parent=35 // pred_fallthru
                _
              %p464 = pneg %p233
              // Predicated region
              $region66: #{k_sparse_autoencoder_forward.15} parent=35 // pred_check
                _
              $region67: #{k_sparse_autoencoder_forward.15} parent=35 // pred_check_branch
                %466 = sbr.rel (%p233) target = $region69
              $region68: #{k_sparse_autoencoder_forward.15} parent=35 // pred_region
                %s467 = sand.u32 %s176, 7
                %s468 = ssub.s32 %s176, %s467
                %s469 = scalar_lea.vmem %s175, %s468
                %s470 = ssub.s32 %s176, %s467
                %s471 = scalar_lea.vmem %s167, %s470 [#allocation3]
                %s472 = sshrl.u32 %s176, 3
                %s473 = sshrl.u32 %s472, 2
                // While loop
                $region70: #{k_sparse_autoencoder_forward.15} parent=68 // loop_pre_header
                  _
                $region71: #{k_sparse_autoencoder_forward.15} parent=68 // loop_header
                  %s477 = sphi 0, %s479
                  %p478 = scmp.ge.s32.totalorder %s477, %s473
                  %s482 = sphi 0, %s631
                  %s483 = sphi %s175, %s634
                  %s484 = sphi %s167, %s635
                $region72: #{k_sparse_autoencoder_forward.15} parent=68 // loop_header_branch
                  %481 = sbr.rel (%p478) target = $region76
                $region73: #{k_sparse_autoencoder_forward.15} parent=68 // loop_body
                  %v485 = vld [vmem:[%s483] sm:$0xff]
                  %486 = vst [vmem:[%s484] sm:$0xff] %v485
                  %v487 = vld [vmem:[%s483 + $0x8] sm:$0xff]
                  %488 = vst [vmem:[%s484 + $0x8] sm:$0xff] %v487
                  %v489 = vld [vmem:[%s483 + $0x10] sm:$0xff]
                  %490 = vst [vmem:[%s484 + $0x10] sm:$0xff] %v489
                  %v491 = vld [vmem:[%s483 + $0x18] sm:$0xff]
                  %492 = vst [vmem:[%s484 + $0x18] sm:$0xff] %v491
                  %v493 = vld [vmem:[%s483 + $0x34] sm:$0xff]
                  %494 = vst [vmem:[%s484 + $0x1c] sm:$0xff] %v493
                  %v495 = vld [vmem:[%s483 + $0x3c] sm:$0xff]
                  %496 = vst [vmem:[%s484 + $0x24] sm:$0xff] %v495
                  %v497 = vld [vmem:[%s483 + $0x44] sm:$0xff]
                  %498 = vst [vmem:[%s484 + $0x2c] sm:$0xff] %v497
                  %v499 = vld [vmem:[%s483 + $0x4c] sm:$0xff]
                  %500 = vst [vmem:[%s484 + $0x34] sm:$0xff] %v499
                  %v501 = vld [vmem:[%s483 + $0x68] sm:$0xff]
                  %502 = vst [vmem:[%s484 + $0x38] sm:$0xff] %v501
                  %v503 = vld [vmem:[%s483 + $0x70] sm:$0xff]
                  %504 = vst [vmem:[%s484 + $0x40] sm:$0xff] %v503
                  %v505 = vld [vmem:[%s483 + $0x78] sm:$0xff]
                  %506 = vst [vmem:[%s484 + $0x48] sm:$0xff] %v505
                  %v507 = vld [vmem:[%s483 + $0x80] sm:$0xff]
                  %508 = vst [vmem:[%s484 + $0x50] sm:$0xff] %v507
                  %v509 = vld [vmem:[%s483 + $0x9c] sm:$0xff]
                  %510 = vst [vmem:[%s484 + $0x54] sm:$0xff] %v509
                  %v511 = vld [vmem:[%s483 + $0xa4] sm:$0xff]
                  %512 = vst [vmem:[%s484 + $0x5c] sm:$0xff] %v511
                  %v513 = vld [vmem:[%s483 + $0xac] sm:$0xff]
                  %514 = vst [vmem:[%s484 + $0x64] sm:$0xff] %v513
                  %v515 = vld [vmem:[%s483 + $0xb4] sm:$0xff]
                  %516 = vst [vmem:[%s484 + $0x6c] sm:$0xff] %v515
                  %v517 = vld [vmem:[%s483 + $0xd0] sm:$0xff]
                  %518 = vst [vmem:[%s484 + $0x70] sm:$0xff] %v517
                  %v519 = vld [vmem:[%s483 + $0xd8] sm:$0xff]
                  %520 = vst [vmem:[%s484 + $0x78] sm:$0xff] %v519
                  %v521 = vld [vmem:[%s483 + $0xe0] sm:$0xff]
                  %522 = vst [vmem:[%s484 + $0x80] sm:$0xff] %v521
                  %v523 = vld [vmem:[%s483 + $0xe8] sm:$0xff]
                  %524 = vst [vmem:[%s484 + $0x88] sm:$0xff] %v523
                  %v525 = vld [vmem:[%s483 + $0x104] sm:$0xff]
                  %526 = vst [vmem:[%s484 + $0x8c] sm:$0xff] %v525
                  %v527 = vld [vmem:[%s483 + $0x10c] sm:$0xff]
                  %528 = vst [vmem:[%s484 + $0x94] sm:$0xff] %v527
                  %v529 = vld [vmem:[%s483 + $0x114] sm:$0xff]
                  %530 = vst [vmem:[%s484 + $0x9c] sm:$0xff] %v529
                  %v531 = vld [vmem:[%s483 + $0x11c] sm:$0xff]
                  %532 = vst [vmem:[%s484 + $0xa4] sm:$0xff] %v531
                  %v533 = vld [vmem:[%s483 + $0x138] sm:$0xff]
                  %534 = vst [vmem:[%s484 + $0xa8] sm:$0xff] %v533
                  %v535 = vld [vmem:[%s483 + $0x140] sm:$0xff]
                  %536 = vst [vmem:[%s484 + $0xb0] sm:$0xff] %v535
                  %v537 = vld [vmem:[%s483 + $0x148] sm:$0xff]
                  %538 = vst [vmem:[%s484 + $0xb8] sm:$0xff] %v537
                  %v539 = vld [vmem:[%s483 + $0x150] sm:$0xff]
                  %540 = vst [vmem:[%s484 + $0xc0] sm:$0xff] %v539
                  %v541 = vld [vmem:[%s483 + $0x16c] sm:$0xff]
                  %542 = vst [vmem:[%s484 + $0xc4] sm:$0xff] %v541
                  %v543 = vld [vmem:[%s483 + $0x174] sm:$0xff]
                  %544 = vst [vmem:[%s484 + $0xcc] sm:$0xff] %v543
                  %v545 = vld [vmem:[%s483 + $0x17c] sm:$0xff]
                  %546 = vst [vmem:[%s484 + $0xd4] sm:$0xff] %v545
                  %v547 = vld [vmem:[%s483 + $0x184] sm:$0xff]
                  %548 = vst [vmem:[%s484 + $0xdc] sm:$0xff] %v547
                  %v549 = vld [vmem:[%s483 + $0x1a0] sm:$0xff]
                  %550 = vst [vmem:[%s484 + $0xe0] sm:$0xff] %v549
                  %v551 = vld [vmem:[%s483 + $0x1a8] sm:$0xff]
                  %552 = vst [vmem:[%s484 + $0xe8] sm:$0xff] %v551
                  %v553 = vld [vmem:[%s483 + $0x1b0] sm:$0xff]
                  %554 = vst [vmem:[%s484 + $0xf0] sm:$0xff] %v553
                  %v555 = vld [vmem:[%s483 + $0x1b8] sm:$0xff]
                  %556 = vst [vmem:[%s484 + $0xf8] sm:$0xff] %v555
                  %v557 = vld [vmem:[%s483 + $0x1d4] sm:$0xff]
                  %558 = vst [vmem:[%s484 + $0xfc] sm:$0xff] %v557
                  %v559 = vld [vmem:[%s483 + $0x1dc] sm:$0xff]
                  %560 = vst [vmem:[%s484 + $0x104] sm:$0xff] %v559
                  %v561 = vld [vmem:[%s483 + $0x1e4] sm:$0xff]
                  %562 = vst [vmem:[%s484 + $0x10c] sm:$0xff] %v561
                  %v563 = vld [vmem:[%s483 + $0x1ec] sm:$0xff]
                  %564 = vst [vmem:[%s484 + $0x114] sm:$0xff] %v563
                  %v565 = vld [vmem:[%s483 + $0x208] sm:$0xff]
                  %566 = vst [vmem:[%s484 + $0x118] sm:$0xff] %v565
                  %v567 = vld [vmem:[%s483 + $0x210] sm:$0xff]
                  %568 = vst [vmem:[%s484 + $0x120] sm:$0xff] %v567
                  %v569 = vld [vmem:[%s483 + $0x218] sm:$0xff]
                  %570 = vst [vmem:[%s484 + $0x128] sm:$0xff] %v569
                  %v571 = vld [vmem:[%s483 + $0x220] sm:$0xff]
                  %572 = vst [vmem:[%s484 + $0x130] sm:$0xff] %v571
                  %v573 = vld [vmem:[%s483 + $0x23c] sm:$0xff]
                  %574 = vst [vmem:[%s484 + $0x134] sm:$0xff] %v573
                  %v575 = vld [vmem:[%s483 + $0x244] sm:$0xff]
                  %576 = vst [vmem:[%s484 + $0x13c] sm:$0xff] %v575
                  %v577 = vld [vmem:[%s483 + $0x24c] sm:$0xff]
                  %578 = vst [vmem:[%s484 + $0x144] sm:$0xff] %v577
                  %v579 = vld [vmem:[%s483 + $0x254] sm:$0xff]
                  %580 = vst [vmem:[%s484 + $0x14c] sm:$0xff] %v579
                  %v581 = vld [vmem:[%s483 + $0x270] sm:$0xff]
                  %582 = vst [vmem:[%s484 + $0x150] sm:$0xff] %v581
                  %v583 = vld [vmem:[%s483 + $0x278] sm:$0xff]
                  %584 = vst [vmem:[%s484 + $0x158] sm:$0xff] %v583
                  %v585 = vld [vmem:[%s483 + $0x280] sm:$0xff]
                  %586 = vst [vmem:[%s484 + $0x160] sm:$0xff] %v585
                  %v587 = vld [vmem:[%s483 + $0x288] sm:$0xff]
                  %588 = vst [vmem:[%s484 + $0x168] sm:$0xff] %v587
                  %v589 = vld [vmem:[%s483 + $0x2a4] sm:$0xff]
                  %590 = vst [vmem:[%s484 + $0x16c] sm:$0xff] %v589
                  %v591 = vld [vmem:[%s483 + $0x2ac] sm:$0xff]
                  %592 = vst [vmem:[%s484 + $0x174] sm:$0xff] %v591
                  %v593 = vld [vmem:[%s483 + $0x2b4] sm:$0xff]
                  %594 = vst [vmem:[%s484 + $0x17c] sm:$0xff] %v593
                  %v595 = vld [vmem:[%s483 + $0x2bc] sm:$0xff]
                  %596 = vst [vmem:[%s484 + $0x184] sm:$0xff] %v595
                  %v597 = vld [vmem:[%s483 + $0x2d8] sm:$0xff]
                  %598 = vst [vmem:[%s484 + $0x188] sm:$0xff] %v597
                  %v599 = vld [vmem:[%s483 + $0x2e0] sm:$0xff]
                  %600 = vst [vmem:[%s484 + $0x190] sm:$0xff] %v599
                  %v601 = vld [vmem:[%s483 + $0x2e8] sm:$0xff]
                  %602 = vst [vmem:[%s484 + $0x198] sm:$0xff] %v601
                  %v603 = vld [vmem:[%s483 + $0x2f0] sm:$0xff]
                  %604 = vst [vmem:[%s484 + $0x1a0] sm:$0xff] %v603
                  %v605 = vld [vmem:[%s483 + $0x30c] sm:$0xff]
                  %606 = vst [vmem:[%s484 + $0x1a4] sm:$0xff] %v605
                  %v607 = vld [vmem:[%s483 + $0x314] sm:$0xff]
                  %608 = vst [vmem:[%s484 + $0x1ac] sm:$0xff] %v607
                  %v609 = vld [vmem:[%s483 + $0x31c] sm:$0xff]
                  %610 = vst [vmem:[%s484 + $0x1b4] sm:$0xff] %v609
                  %v611 = vld [vmem:[%s483 + $0x324] sm:$0xff]
                  %612 = vst [vmem:[%s484 + $0x1bc] sm:$0xff] %v611
                  %v613 = vld [vmem:[%s483 + $0x340] sm:$0xff]
                  %614 = vst [vmem:[%s484 + $0x1c0] sm:$0xff] %v613
                  %v615 = vld [vmem:[%s483 + $0x348] sm:$0xff]
                  %616 = vst [vmem:[%s484 + $0x1c8] sm:$0xff] %v615
                  %v617 = vld [vmem:[%s483 + $0x350] sm:$0xff]
                  %618 = vst [vmem:[%s484 + $0x1d0] sm:$0xff] %v617
                  %v619 = vld [vmem:[%s483 + $0x358] sm:$0xff]
                  %620 = vst [vmem:[%s484 + $0x1d8] sm:$0xff] %v619
                  %v621 = vld [vmem:[%s483 + $0x374] sm:$0xff]
                  %622 = vst [vmem:[%s484 + $0x1dc] sm:$0xff] %v621
                  %v623 = vld [vmem:[%s483 + $0x37c] sm:$0xff]
                  %624 = vst [vmem:[%s484 + $0x1e4] sm:$0xff] %v623
                  %v625 = vld [vmem:[%s483 + $0x384] sm:$0xff]
                  %626 = vst [vmem:[%s484 + $0x1ec] sm:$0xff] %v625
                  %v627 = vld [vmem:[%s483 + $0x38c] sm:$0xff]
                  %628 = vst [vmem:[%s484 + $0x1f4] sm:$0xff] %v627
                  %s629 = sadd.s32 1, %s482
                  %p630 = scmp.ge.s32.totalorder %s629, %s473
                  %s631 = scalar_select %p630, 0, %s629
                  %s632 = smul.u32 %s631, 32
                  %s633 = smul.u32 %s631, 32
                  %s634 = scalar_lea.vmem %s175, %s632
                  %s635 = scalar_lea.vmem %s167, %s633 [#allocation3]
                $region74: #{k_sparse_autoencoder_forward.15} parent=68 // loop_footer
                  %s479 = sadd.s32 %s477, 1
                $region75: #{k_sparse_autoencoder_forward.15} parent=68 // loop_footer_branch
                  %476 = sbr.rel target = $region71
                $region76: #{k_sparse_autoencoder_forward.15} parent=68 // loop_exit
                  _
                %s636 = sshrl.u32 %s472, 2
                %s637 = sand.u32 %s472, 3
                %s638 = smul.u32 %s636, 4
                %s639 = smul.u32 128, %s638
                %s640 = sshra.s32 %s639, 4
                %s641 = scalar_lea.vmem %s175, %s640
                %s642 = smul.u32 128, %s638
                %s643 = sshra.s32 %s642, 4
                %s644 = scalar_lea.vmem %s167, %s643 [#allocation3]
                // While loop
                $region77: #{k_sparse_autoencoder_forward.15} parent=68 // loop_pre_header
                  _
                $region78: #{k_sparse_autoencoder_forward.15} parent=68 // loop_header
                  %s648 = sphi 0, %s650
                  %p649 = scmp.ge.s32.totalorder %s648, %s637
                  %s653 = sphi 0, %s694
                  %s654 = sphi %s641, %s697
                  %s655 = sphi %s644, %s698
                $region79: #{k_sparse_autoencoder_forward.15} parent=68 // loop_header_branch
                  %652 = sbr.rel (%p649) target = $region83
                $region80: #{k_sparse_autoencoder_forward.15} parent=68 // loop_body
                  %v656 = vld [vmem:[%s654] sm:$0xff]
                  %657 = vst [vmem:[%s655] sm:$0xff] %v656
                  %v658 = vld [vmem:[%s654 + $0x34] sm:$0xff]
                  %659 = vst [vmem:[%s655 + $0x1c] sm:$0xff] %v658
                  %v660 = vld [vmem:[%s654 + $0x68] sm:$0xff]
                  %661 = vst [vmem:[%s655 + $0x38] sm:$0xff] %v660
                  %v662 = vld [vmem:[%s654 + $0x9c] sm:$0xff]
                  %663 = vst [vmem:[%s655 + $0x54] sm:$0xff] %v662
                  %v664 = vld [vmem:[%s654 + $0xd0] sm:$0xff]
                  %665 = vst [vmem:[%s655 + $0x70] sm:$0xff] %v664
                  %v666 = vld [vmem:[%s654 + $0x104] sm:$0xff]
                  %667 = vst [vmem:[%s655 + $0x8c] sm:$0xff] %v666
                  %v668 = vld [vmem:[%s654 + $0x138] sm:$0xff]
                  %669 = vst [vmem:[%s655 + $0xa8] sm:$0xff] %v668
                  %v670 = vld [vmem:[%s654 + $0x16c] sm:$0xff]
                  %671 = vst [vmem:[%s655 + $0xc4] sm:$0xff] %v670
                  %v672 = vld [vmem:[%s654 + $0x1a0] sm:$0xff]
                  %673 = vst [vmem:[%s655 + $0xe0] sm:$0xff] %v672
                  %v674 = vld [vmem:[%s654 + $0x1d4] sm:$0xff]
                  %675 = vst [vmem:[%s655 + $0xfc] sm:$0xff] %v674
                  %v676 = vld [vmem:[%s654 + $0x208] sm:$0xff]
                  %677 = vst [vmem:[%s655 + $0x118] sm:$0xff] %v676
                  %v678 = vld [vmem:[%s654 + $0x23c] sm:$0xff]
                  %679 = vst [vmem:[%s655 + $0x134] sm:$0xff] %v678
                  %v680 = vld [vmem:[%s654 + $0x270] sm:$0xff]
                  %681 = vst [vmem:[%s655 + $0x150] sm:$0xff] %v680
                  %v682 = vld [vmem:[%s654 + $0x2a4] sm:$0xff]
                  %683 = vst [vmem:[%s655 + $0x16c] sm:$0xff] %v682
                  %v684 = vld [vmem:[%s654 + $0x2d8] sm:$0xff]
                  %685 = vst [vmem:[%s655 + $0x188] sm:$0xff] %v684
                  %v686 = vld [vmem:[%s654 + $0x30c] sm:$0xff]
                  %687 = vst [vmem:[%s655 + $0x1a4] sm:$0xff] %v686
                  %v688 = vld [vmem:[%s654 + $0x340] sm:$0xff]
                  %689 = vst [vmem:[%s655 + $0x1c0] sm:$0xff] %v688
                  %v690 = vld [vmem:[%s654 + $0x374] sm:$0xff]
                  %691 = vst [vmem:[%s655 + $0x1dc] sm:$0xff] %v690
                  %s692 = sadd.s32 1, %s653
                  %p693 = scmp.ge.s32.totalorder %s692, %s637
                  %s694 = scalar_select %p693, 0, %s692
                  %s695 = smul.u32 %s694, 8
                  %s696 = smul.u32 %s694, 8
                  %s697 = scalar_lea.vmem %s641, %s695
                  %s698 = scalar_lea.vmem %s644, %s696 [#allocation3]
                $region81: #{k_sparse_autoencoder_forward.15} parent=68 // loop_footer
                  %s650 = sadd.s32 %s648, 1
                $region82: #{k_sparse_autoencoder_forward.15} parent=68 // loop_footer_branch
                  %647 = sbr.rel target = $region78
                $region83: #{k_sparse_autoencoder_forward.15} parent=68 // loop_exit
                  _
                %s699 = sshllo.u32 0, %s467
                loop: start=0, step=1, limit=1
                $region84: #{k_sparse_autoencoder_forward.15} parent=68 // loop_pre_header
                  _
                $region85: #{k_sparse_autoencoder_forward.15} parent=68 // loop_header
                  %s701 = sphi 0, %s705
                  %p702 = scmp.ge.s32.totalorder %s701, 1
                  %s706 = sphi %s469, %s469
                  %s707 = sphi %s471, %s471
                $region86: #{k_sparse_autoencoder_forward.15} parent=68 // loop_header_branch
                  %704 = sbr.rel (%p702) target = $region90
                $region87: #{k_sparse_autoencoder_forward.15} parent=68 // loop_body
                  %v708 = vld [vmem:[%s706] sm:%s699]
                  %709 = vst [vmem:[%s707] sm:%s699] %v708
                  %v710 = vld [vmem:[%s706 + $0x34] sm:%s699]
                  %711 = vst [vmem:[%s707 + $0x1c] sm:%s699] %v710
                  %v712 = vld [vmem:[%s706 + $0x68] sm:%s699]
                  %713 = vst [vmem:[%s707 + $0x38] sm:%s699] %v712
                  %v714 = vld [vmem:[%s706 + $0x9c] sm:%s699]
                  %715 = vst [vmem:[%s707 + $0x54] sm:%s699] %v714
                  %v716 = vld [vmem:[%s706 + $0xd0] sm:%s699]
                  %717 = vst [vmem:[%s707 + $0x70] sm:%s699] %v716
                  %v718 = vld [vmem:[%s706 + $0x104] sm:%s699]
                  %719 = vst [vmem:[%s707 + $0x8c] sm:%s699] %v718
                  %v720 = vld [vmem:[%s706 + $0x138] sm:%s699]
                  %721 = vst [vmem:[%s707 + $0xa8] sm:%s699] %v720
                  %v722 = vld [vmem:[%s706 + $0x16c] sm:%s699]
                  %723 = vst [vmem:[%s707 + $0xc4] sm:%s699] %v722
                  %v724 = vld [vmem:[%s706 + $0x1a0] sm:%s699]
                  %725 = vst [vmem:[%s707 + $0xe0] sm:%s699] %v724
                  %v726 = vld [vmem:[%s706 + $0x1d4] sm:%s699]
                  %727 = vst [vmem:[%s707 + $0xfc] sm:%s699] %v726
                  %v728 = vld [vmem:[%s706 + $0x208] sm:%s699]
                  %729 = vst [vmem:[%s707 + $0x118] sm:%s699] %v728
                  %v730 = vld [vmem:[%s706 + $0x23c] sm:%s699]
                  %731 = vst [vmem:[%s707 + $0x134] sm:%s699] %v730
                  %v732 = vld [vmem:[%s706 + $0x270] sm:%s699]
                  %733 = vst [vmem:[%s707 + $0x150] sm:%s699] %v732
                  %v734 = vld [vmem:[%s706 + $0x2a4] sm:%s699]
                  %735 = vst [vmem:[%s707 + $0x16c] sm:%s699] %v734
                  %v736 = vld [vmem:[%s706 + $0x2d8] sm:%s699]
                  %737 = vst [vmem:[%s707 + $0x188] sm:%s699] %v736
                  %v738 = vld [vmem:[%s706 + $0x30c] sm:%s699]
                  %739 = vst [vmem:[%s707 + $0x1a4] sm:%s699] %v738
                  %v740 = vld [vmem:[%s706 + $0x340] sm:%s699]
                  %741 = vst [vmem:[%s707 + $0x1c0] sm:%s699] %v740
                  %v742 = vld [vmem:[%s706 + $0x374] sm:%s699]
                  %743 = vst [vmem:[%s707 + $0x1dc] sm:%s699] %v742
                $region88: #{k_sparse_autoencoder_forward.15} parent=68 // loop_footer
                  %s705 = sadd.s32 1, %s701
                $region89: #{k_sparse_autoencoder_forward.15} parent=68 // loop_footer_branch
                  %700 = sbr.rel target = $region85
                $region90: #{k_sparse_autoencoder_forward.15} parent=68 // loop_exit
                  _
              $region69: #{k_sparse_autoencoder_forward.15} parent=35 // pred_fallthru
                _
            $region36: #{k_sparse_autoencoder_forward.15} parent=31 // pred_fallthru
              _
            // Predicated region
            $region37: #{k_sparse_autoencoder_forward.15} parent=31 // pred_check
              %p184 = pneg %p180
            $region38: #{k_sparse_autoencoder_forward.15} parent=31 // pred_check_branch
              %186 = sbr.rel (%p184) target = $region40
            $region39: #{k_sparse_autoencoder_forward.15} parent=31 // pred_region
              %s187 = sshllo.u32 0, %s176
              loop: start=0, step=1, limit=1
              $region41: #{k_sparse_autoencoder_forward.15} parent=39 // loop_pre_header
                _
              $region42: #{k_sparse_autoencoder_forward.15} parent=39 // loop_header
                %s189 = sphi 0, %s193
                %p190 = scmp.ge.s32.totalorder %s189, 1
                %s194 = sphi %s175, %s175
                %s195 = sphi %s167, %s167
              $region43: #{k_sparse_autoencoder_forward.15} parent=39 // loop_header_branch
                %192 = sbr.rel (%p190) target = $region47
              $region44: #{k_sparse_autoencoder_forward.15} parent=39 // loop_body
                %v196 = vld [vmem:[%s194] sm:%s187]
                %197 = vst [vmem:[%s195] sm:%s187] %v196
                %v198 = vld [vmem:[%s194 + $0x34] sm:%s187]
                %199 = vst [vmem:[%s195 + $0x1c] sm:%s187] %v198
                %v200 = vld [vmem:[%s194 + $0x68] sm:%s187]
                %201 = vst [vmem:[%s195 + $0x38] sm:%s187] %v200
                %v202 = vld [vmem:[%s194 + $0x9c] sm:%s187]
                %203 = vst [vmem:[%s195 + $0x54] sm:%s187] %v202
                %v204 = vld [vmem:[%s194 + $0xd0] sm:%s187]
                %205 = vst [vmem:[%s195 + $0x70] sm:%s187] %v204
                %v206 = vld [vmem:[%s194 + $0x104] sm:%s187]
                %207 = vst [vmem:[%s195 + $0x8c] sm:%s187] %v206
                %v208 = vld [vmem:[%s194 + $0x138] sm:%s187]
                %209 = vst [vmem:[%s195 + $0xa8] sm:%s187] %v208
                %v210 = vld [vmem:[%s194 + $0x16c] sm:%s187]
                %211 = vst [vmem:[%s195 + $0xc4] sm:%s187] %v210
                %v212 = vld [vmem:[%s194 + $0x1a0] sm:%s187]
                %213 = vst [vmem:[%s195 + $0xe0] sm:%s187] %v212
                %v214 = vld [vmem:[%s194 + $0x1d4] sm:%s187]
                %215 = vst [vmem:[%s195 + $0xfc] sm:%s187] %v214
                %v216 = vld [vmem:[%s194 + $0x208] sm:%s187]
                %217 = vst [vmem:[%s195 + $0x118] sm:%s187] %v216
                %v218 = vld [vmem:[%s194 + $0x23c] sm:%s187]
                %219 = vst [vmem:[%s195 + $0x134] sm:%s187] %v218
                %v220 = vld [vmem:[%s194 + $0x270] sm:%s187]
                %221 = vst [vmem:[%s195 + $0x150] sm:%s187] %v220
                %v222 = vld [vmem:[%s194 + $0x2a4] sm:%s187]
                %223 = vst [vmem:[%s195 + $0x16c] sm:%s187] %v222
                %v224 = vld [vmem:[%s194 + $0x2d8] sm:%s187]
                %225 = vst [vmem:[%s195 + $0x188] sm:%s187] %v224
                %v226 = vld [vmem:[%s194 + $0x30c] sm:%s187]
                %227 = vst [vmem:[%s195 + $0x1a4] sm:%s187] %v226
                %v228 = vld [vmem:[%s194 + $0x340] sm:%s187]
                %229 = vst [vmem:[%s195 + $0x1c0] sm:%s187] %v228
                %v230 = vld [vmem:[%s194 + $0x374] sm:%s187]
                %231 = vst [vmem:[%s195 + $0x1dc] sm:%s187] %v230
              $region45: #{k_sparse_autoencoder_forward.15} parent=39 // loop_footer
                %s193 = sadd.s32 1, %s189
              $region46: #{k_sparse_autoencoder_forward.15} parent=39 // loop_footer_branch
                %188 = sbr.rel target = $region42
              $region47: #{k_sparse_autoencoder_forward.15} parent=39 // loop_exit
                _
            $region40: #{k_sparse_autoencoder_forward.15} parent=31 // pred_fallthru
              _
          $region32: #{k_sparse_autoencoder_forward.15} parent=27 // pred_fallthru
            _
          %744 = vnop
        $region28: #{k_sparse_autoencoder_forward.15} parent=23 // pred_fallthru
          _
      $region24: #{k_sparse_autoencoder_forward.15} parent=5 // pred_fallthru
        _
      %p745 = scmp.le.s32.totalorder 1, %s11
      %p746 = scmp.lt.s32.totalorder %s11, 3
      %p747 = pnand %p745, %p746
      %p748 = pneg %p747
      // Predicated region
      $region91: #{k_sparse_autoencoder_forward.15} parent=5 // pred_check
        _
      $region92: #{k_sparse_autoencoder_forward.15} parent=5 // pred_check_branch
        %750 = sbr.rel (%p747) target = $region94
      $region93: #{k_sparse_autoencoder_forward.15} parent=5 // pred_region
        %s751 = ssub.s32 %s11, 1
        %s752 = sand.u32 %s62, 1
        %s753 = sand.u32 %s62, 1
        %s754 = smul.addr %s753, 504
        %s755 = scalar_lea.vmem [#allocation3], %s754
        // Predicated region
        $region95: #{k_sparse_autoencoder_forward.15} parent=93 // pred_check
          %p756 = pneg %p75
        $region96: #{k_sparse_autoencoder_forward.15} parent=93 // pred_check_branch
          %758 = sbr.rel (%p756) target = $region98
        $region97: #{k_sparse_autoencoder_forward.15} parent=93 // pred_region
          _
        $region98: #{k_sparse_autoencoder_forward.15} parent=93 // pred_fallthru
          _
        %p759 = scmp.lt.s32.totalorder %s20, 0
        %s760 = scalar_select %p759, %s20, 0
        %s761 = smul.addr %s760, 2
        %s762 = scalar_lea.vmem %s0, %s761
        %p763 = pneg %p49
        %p764 = pneg %p46
        %s765 = sand.u32 %s62, 1
        %s766 = sand.u32 %s62, 1
        %s767 = smul.addr %s766, 504
        %s768 = scalar_lea.vmem [#allocation3], %s767
        %p769 = pneg %p75
        %p770 = pneg %p72
        %p771 = scmp.lt.s32.totalorder %s20, 0
        %s772 = scalar_select %p771, %s20, 0
        %s773 = scalar_lea.vmem [#allocation2], %s772
        %p774 = pneg %p101
        %p775 = pneg %p98
        %p776 = pneg %p129
        %p777 = pneg %p126
        %s778 = sand.u32 %s116, 1
        %s779 = sand.u32 %s116, 1
        %s780 = smul.addr %s779, 7
        %s781 = scalar_lea.vmem [#allocation4], %s780
        %p782 = scmp.lt.s32.totalorder %s20, 0
        %s783 = scalar_select %p782, %s20, 0
        %s784 = smul.addr %s783, 2
        %s785 = scalar_lea.vmem %s0, %s784
        %s786 = smul.u32 7, %s21
        %s787 = ssub.s32 13, %s786
        %p788 = scmp.lt.s32.totalorder %s787, 7
        %s789 = scalar_select %p788, %s787, 7
        %s790 = smul.u32 1152, %s789
        %p791 = scmp.lt.s32.totalorder %s20, 0
        %s792 = scalar_select %p791, %s20, 0
        %s793 = scalar_lea.vmem [#allocation2], %s792
        %s794 = smul.u32 7, %s21
        %s795 = ssub.s32 13, %s794
        %p796 = scmp.lt.s32.totalorder %s795, 7
        %s797 = scalar_select %p796, %s795, 7
        %s798 = smul.u32 16, %s797
        %v800 = vld [vmem:[%s785] sm:$0x3]
        %v801 = vld [vmem:[%s755] sm:$0xff]
        %v802 = vld [vmem:[%s755 + $0x8] sm:$0xff]
        %v803 = vld [vmem:[%s755 + $0x10] sm:$0xff]
        %v804 = vld [vmem:[%s755 + $0x18] sm:$0xf]
        %v805 = vld [vmem:[%s755 + $0x1c] sm:$0xff]
        %v806 = vld [vmem:[%s755 + $0x24] sm:$0xff]
        %v807 = vld [vmem:[%s755 + $0x2c] sm:$0xff]
        %v808 = vld [vmem:[%s755 + $0x34] sm:$0xf]
        %v809 = vld [vmem:[%s755 + $0x38] sm:$0xff]
        %v810 = vld [vmem:[%s755 + $0x40] sm:$0xff]
        %v811 = vld [vmem:[%s755 + $0x48] sm:$0xff]
        %v812 = vld [vmem:[%s755 + $0x50] sm:$0xf]
        %v813 = vld [vmem:[%s755 + $0x54] sm:$0xff]
        %v814 = vld [vmem:[%s755 + $0x5c] sm:$0xff]
        %v815 = vld [vmem:[%s755 + $0x64] sm:$0xff]
        %v816 = vld [vmem:[%s755 + $0x6c] sm:$0xf]
        %v817 = vld [vmem:[%s755 + $0x70] sm:$0xff]
        %v818 = vld [vmem:[%s755 + $0x78] sm:$0xff]
        %v819 = vld [vmem:[%s755 + $0x80] sm:$0xff]
        %v820 = vld [vmem:[%s755 + $0x88] sm:$0xf]
        %v821 = vld [vmem:[%s755 + $0x8c] sm:$0xff]
        %v822 = vld [vmem:[%s755 + $0x94] sm:$0xff]
        %v823 = vld [vmem:[%s755 + $0x9c] sm:$0xff]
        %v824 = vld [vmem:[%s755 + $0xa4] sm:$0xf]
        %v825 = vld [vmem:[%s755 + $0xa8] sm:$0xff]
        %v826 = vld [vmem:[%s755 + $0xb0] sm:$0xff]
        %v827 = vld [vmem:[%s755 + $0xb8] sm:$0xff]
        %v828 = vld [vmem:[%s755 + $0xc0] sm:$0xf]
        %v829 = vld [vmem:[%s755 + $0xc4] sm:$0xff]
        %v830 = vld [vmem:[%s755 + $0xcc] sm:$0xff]
        %v831 = vld [vmem:[%s755 + $0xd4] sm:$0xff]
        %v832 = vld [vmem:[%s755 + $0xdc] sm:$0xf]
        %v833 = vld [vmem:[%s755 + $0xe0] sm:$0xff]
        %v834 = vld [vmem:[%s755 + $0xe8] sm:$0xff]
        %v835 = vld [vmem:[%s755 + $0xf0] sm:$0xff]
        %v836 = vld [vmem:[%s755 + $0xf8] sm:$0xf]
        %v837 = vld [vmem:[%s755 + $0xfc] sm:$0xff]
        %v838 = vld [vmem:[%s755 + $0x104] sm:$0xff]
        %v839 = vld [vmem:[%s755 + $0x10c] sm:$0xff]
        %v840 = vld [vmem:[%s755 + $0x114] sm:$0xf]
        %v841 = vld [vmem:[%s755 + $0x118] sm:$0xff]
        %v842 = vld [vmem:[%s755 + $0x120] sm:$0xff]
        %v843 = vld [vmem:[%s755 + $0x128] sm:$0xff]
        %v844 = vld [vmem:[%s755 + $0x130] sm:$0xf]
        %v845 = vld [vmem:[%s755 + $0x134] sm:$0xff]
        %v846 = vld [vmem:[%s755 + $0x13c] sm:$0xff]
        %v847 = vld [vmem:[%s755 + $0x144] sm:$0xff]
        %v848 = vld [vmem:[%s755 + $0x14c] sm:$0xf]
        %v849 = vld [vmem:[%s755 + $0x150] sm:$0xff]
        %v850 = vld [vmem:[%s755 + $0x158] sm:$0xff]
        %v851 = vld [vmem:[%s755 + $0x160] sm:$0xff]
        %v852 = vld [vmem:[%s755 + $0x168] sm:$0xf]
        %v853 = vld [vmem:[%s755 + $0x16c] sm:$0xff]
        %v854 = vld [vmem:[%s755 + $0x174] sm:$0xff]
        %v855 = vld [vmem:[%s755 + $0x17c] sm:$0xff]
        %v856 = vld [vmem:[%s755 + $0x184] sm:$0xf]
        %v857 = vld [vmem:[%s755 + $0x188] sm:$0xff]
        %v858 = vld [vmem:[%s755 + $0x190] sm:$0xff]
        %v859 = vld [vmem:[%s755 + $0x198] sm:$0xff]
        %v860 = vld [vmem:[%s755 + $0x1a0] sm:$0xf]
        %v861 = vld [vmem:[%s755 + $0x1a4] sm:$0xff]
        %v862 = vld [vmem:[%s755 + $0x1ac] sm:$0xff]
        %v863 = vld [vmem:[%s755 + $0x1b4] sm:$0xff]
        %v864 = vld [vmem:[%s755 + $0x1bc] sm:$0xf]
        %v865 = vld [vmem:[%s755 + $0x1c0] sm:$0xff]
        %v866 = vld [vmem:[%s755 + $0x1c8] sm:$0xff]
        %v867 = vld [vmem:[%s755 + $0x1d0] sm:$0xff]
        %v868 = vld [vmem:[%s755 + $0x1d8] sm:$0xf]
        %v869 = vld [vmem:[%s755 + $0x1dc] sm:$0xff]
        %v870 = vld [vmem:[%s755 + $0x1e4] sm:$0xff]
        %v871 = vld [vmem:[%s755 + $0x1ec] sm:$0xff]
        %v872 = vld [vmem:[%s755 + $0x1f4] sm:$0xf]
        %v873 = vld [vmem:[%s793] sm:$0x1]
        %875 = vset.pattern.permute.xlu0 0
        %876 = vperm.xlu0 %875, %v873
        %v877 = vpop.permute.xlu0 %876
        %v879 = vlaneseq
        %v880 = vshrl.u32 %v879, 7
        %v881 = vsub.s32 0, %v880
        %v882 = vrot.slane %v877, %v881
        %v885 = vunpack.c.l.s4 1966171168
        %v886 = vunpack.c.0.s8 %v885
        %v887 = vlaneseq
        %v888 = vshrl.u32 %v887, 7
        %v889 = vsub.s32 %v886, %v888
        %v890 = vrot.slane %v800, %v889
        %v891 = vcombine.high %v890, %v890
        %v893 = vunpack.c.l.s4 1966171168
        %v894 = vunpack.c.0.s8 %v893
        %v895 = vlaneseq
        %v896 = vshrl.u32 %v895, 7
        %v897 = vsub.s32 %v894, %v896
        %v898 = vrot.slane %v890, %v897
        %v900 = vunpack.c.l.s4 1966171168
        %v901 = vunpack.c.0.s8 %v900
        %v902 = vlaneseq
        %v903 = vshrl.u32 %v902, 7
        %v904 = vsub.s32 %v901, %v903
        %v905 = vrot.slane %v891, %v904
        %v979 = vunpack.c.l.b16 %v801
        %v980 = vunpack.c.h.b16 %v801
        %v981 = vunpack.c.l.b16 %v802
        %v982 = vunpack.c.h.b16 %v802
        %v983 = vunpack.c.l.b16 %v803
        %v984 = vunpack.c.h.b16 %v803
        %v985 = vunpack.c.l.b16 %v804
        %v986 = vunpack.c.l.b16 %v805
        %v987 = vunpack.c.h.b16 %v805
        %v988 = vunpack.c.l.b16 %v806
        %v989 = vunpack.c.h.b16 %v806
        %v990 = vunpack.c.l.b16 %v807
        %v991 = vunpack.c.h.b16 %v807
        %v992 = vunpack.c.l.b16 %v808
        %v993 = vunpack.c.l.b16 %v809
        %v994 = vunpack.c.h.b16 %v809
        %v995 = vunpack.c.l.b16 %v810
        %v996 = vunpack.c.h.b16 %v810
        %v997 = vunpack.c.l.b16 %v811
        %v998 = vunpack.c.h.b16 %v811
        %v999 = vunpack.c.l.b16 %v812
        %v1000 = vunpack.c.l.b16 %v813
        %v1001 = vunpack.c.h.b16 %v813
        %v1002 = vunpack.c.l.b16 %v814
        %v1003 = vunpack.c.h.b16 %v814
        %v1004 = vunpack.c.l.b16 %v815
        %v1005 = vunpack.c.h.b16 %v815
        %v1006 = vunpack.c.l.b16 %v816
        %v1007 = vunpack.c.l.b16 %v817
        %v1008 = vunpack.c.h.b16 %v817
        %v1009 = vunpack.c.l.b16 %v818
        %v1010 = vunpack.c.h.b16 %v818
        %v1011 = vunpack.c.l.b16 %v819
        %v1012 = vunpack.c.h.b16 %v819
        %v1013 = vunpack.c.l.b16 %v820
        %v1014 = vunpack.c.l.b16 %v821
        %v1015 = vunpack.c.h.b16 %v821
        %v1016 = vunpack.c.l.b16 %v822
        %v1017 = vunpack.c.h.b16 %v822
        %v1018 = vunpack.c.l.b16 %v823
        %v1019 = vunpack.c.h.b16 %v823
        %v1020 = vunpack.c.l.b16 %v824
        %v1021 = vunpack.c.l.b16 %v825
        %v1022 = vunpack.c.h.b16 %v825
        %v1023 = vunpack.c.l.b16 %v826
        %v1024 = vunpack.c.h.b16 %v826
        %v1025 = vunpack.c.l.b16 %v827
        %v1026 = vunpack.c.h.b16 %v827
        %v1027 = vunpack.c.l.b16 %v828
        %v1028 = vunpack.c.l.b16 %v829
        %v1029 = vunpack.c.h.b16 %v829
        %v1030 = vunpack.c.l.b16 %v830
        %v1031 = vunpack.c.h.b16 %v830
        %v1032 = vunpack.c.l.b16 %v831
        %v1033 = vunpack.c.h.b16 %v831
        %v1034 = vunpack.c.l.b16 %v832
        %v1035 = vunpack.c.l.b16 %v833
        %v1036 = vunpack.c.h.b16 %v833
        %v1037 = vunpack.c.l.b16 %v834
        %v1038 = vunpack.c.h.b16 %v834
        %v1039 = vunpack.c.l.b16 %v835
        %v1040 = vunpack.c.h.b16 %v835
        %v1041 = vunpack.c.l.b16 %v836
        %v1042 = vunpack.c.l.b16 %v837
        %v1043 = vunpack.c.h.b16 %v837
        %v1044 = vunpack.c.l.b16 %v838
        %v1045 = vunpack.c.h.b16 %v838
        %v1046 = vunpack.c.l.b16 %v839
        %v1047 = vunpack.c.h.b16 %v839
        %v1048 = vunpack.c.l.b16 %v840
        %v1049 = vunpack.c.l.b16 %v841
        %v1050 = vunpack.c.h.b16 %v841
        %v1051 = vunpack.c.l.b16 %v842
        %v1052 = vunpack.c.h.b16 %v842
        %v1053 = vunpack.c.l.b16 %v843
        %v1054 = vunpack.c.h.b16 %v843
        %v1055 = vunpack.c.l.b16 %v844
        %v1056 = vunpack.c.l.b16 %v845
        %v1057 = vunpack.c.h.b16 %v845
        %v1058 = vunpack.c.l.b16 %v846
        %v1059 = vunpack.c.h.b16 %v846
        %v1060 = vunpack.c.l.b16 %v847
        %v1061 = vunpack.c.h.b16 %v847
        %v1062 = vunpack.c.l.b16 %v848
        %v1063 = vunpack.c.l.b16 %v849
        %v1064 = vunpack.c.h.b16 %v849
        %v1065 = vunpack.c.l.b16 %v850
        %v1066 = vunpack.c.h.b16 %v850
        %v1067 = vunpack.c.l.b16 %v851
        %v1068 = vunpack.c.h.b16 %v851
        %v1069 = vunpack.c.l.b16 %v852
        %v1070 = vunpack.c.l.b16 %v853
        %v1071 = vunpack.c.h.b16 %v853
        %v1072 = vunpack.c.l.b16 %v854
        %v1073 = vunpack.c.h.b16 %v854
        %v1074 = vunpack.c.l.b16 %v855
        %v1075 = vunpack.c.h.b16 %v855
        %v1076 = vunpack.c.l.b16 %v856
        %v1077 = vunpack.c.l.b16 %v857
        %v1078 = vunpack.c.h.b16 %v857
        %v1079 = vunpack.c.l.b16 %v858
        %v1080 = vunpack.c.h.b16 %v858
        %v1081 = vunpack.c.l.b16 %v859
        %v1082 = vunpack.c.h.b16 %v859
        %v1083 = vunpack.c.l.b16 %v860
        %v1084 = vunpack.c.l.b16 %v861
        %v1085 = vunpack.c.h.b16 %v861
        %v1086 = vunpack.c.l.b16 %v862
        %v1087 = vunpack.c.h.b16 %v862
        %v1088 = vunpack.c.l.b16 %v863
        %v1089 = vunpack.c.h.b16 %v863
        %v1090 = vunpack.c.l.b16 %v864
        %v1091 = vunpack.c.l.b16 %v865
        %v1092 = vunpack.c.h.b16 %v865
        %v1093 = vunpack.c.l.b16 %v866
        %v1094 = vunpack.c.h.b16 %v866
        %v1095 = vunpack.c.l.b16 %v867
        %v1096 = vunpack.c.h.b16 %v867
        %v1097 = vunpack.c.l.b16 %v868
        %v1098 = vunpack.c.l.b16 %v869
        %v1099 = vunpack.c.h.b16 %v869
        %v1100 = vunpack.c.l.b16 %v870
        %v1101 = vunpack.c.h.b16 %v870
        %v1102 = vunpack.c.l.b16 %v871
        %v1103 = vunpack.c.h.b16 %v871
        %v1104 = vunpack.c.l.b16 %v872
        %v1105 = vpack.c.b16 %v986, %v979
        %v1106 = vpack.c.b16 %v987, %v980
        %v1107 = vpack.c.b16 %v988, %v981
        %v1108 = vpack.c.b16 %v989, %v982
        %v1109 = vpack.c.b16 %v990, %v983
        %v1110 = vpack.c.b16 %v991, %v984
        %v1111 = vpack.c.b16 %v992, %v985
        %v1112 = vpack.c.b16 %v1000, %v993
        %v1113 = vpack.c.b16 %v1001, %v994
        %v1114 = vpack.c.b16 %v1002, %v995
        %v1115 = vpack.c.b16 %v1003, %v996
        %v1116 = vpack.c.b16 %v1004, %v997
        %v1117 = vpack.c.b16 %v1005, %v998
        %v1118 = vpack.c.b16 %v1006, %v999
        %v1119 = vpack.c.b16 %v1014, %v1007
        %v1120 = vpack.c.b16 %v1015, %v1008
        %v1121 = vpack.c.b16 %v1016, %v1009
        %v1122 = vpack.c.b16 %v1017, %v1010
        %v1123 = vpack.c.b16 %v1018, %v1011
        %v1124 = vpack.c.b16 %v1019, %v1012
        %v1125 = vpack.c.b16 %v1020, %v1013
        %v1126 = vpack.c.b16 %v1028, %v1021
        %v1127 = vpack.c.b16 %v1029, %v1022
        %v1128 = vpack.c.b16 %v1030, %v1023
        %v1129 = vpack.c.b16 %v1031, %v1024
        %v1130 = vpack.c.b16 %v1032, %v1025
        %v1131 = vpack.c.b16 %v1033, %v1026
        %v1132 = vpack.c.b16 %v1034, %v1027
        %v1133 = vpack.c.b16 %v1042, %v1035
        %v1134 = vpack.c.b16 %v1043, %v1036
        %v1135 = vpack.c.b16 %v1044, %v1037
        %v1136 = vpack.c.b16 %v1045, %v1038
        %v1137 = vpack.c.b16 %v1046, %v1039
        %v1138 = vpack.c.b16 %v1047, %v1040
        %v1139 = vpack.c.b16 %v1048, %v1041
        %v1140 = vpack.c.b16 %v1056, %v1049
        %v1141 = vpack.c.b16 %v1057, %v1050
        %v1142 = vpack.c.b16 %v1058, %v1051
        %v1143 = vpack.c.b16 %v1059, %v1052
        %v1144 = vpack.c.b16 %v1060, %v1053
        %v1145 = vpack.c.b16 %v1061, %v1054
        %v1146 = vpack.c.b16 %v1062, %v1055
        %v1147 = vpack.c.b16 %v1070, %v1063
        %v1148 = vpack.c.b16 %v1071, %v1064
        %v1149 = vpack.c.b16 %v1072, %v1065
        %v1150 = vpack.c.b16 %v1073, %v1066
        %v1151 = vpack.c.b16 %v1074, %v1067
        %v1152 = vpack.c.b16 %v1075, %v1068
        %v1153 = vpack.c.b16 %v1076, %v1069
        %v1154 = vpack.c.b16 %v1084, %v1077
        %v1155 = vpack.c.b16 %v1085, %v1078
        %v1156 = vpack.c.b16 %v1086, %v1079
        %v1157 = vpack.c.b16 %v1087, %v1080
        %v1158 = vpack.c.b16 %v1088, %v1081
        %v1159 = vpack.c.b16 %v1089, %v1082
        %v1160 = vpack.c.b16 %v1090, %v1083
        %v1161 = vpack.c.b16 %v1098, %v1091
        %v1162 = vpack.c.b16 %v1099, %v1092
        %v1163 = vpack.c.b16 %v1100, %v1093
        %v1164 = vpack.c.b16 %v1101, %v1094
        %v1165 = vpack.c.b16 %v1102, %v1095
        %v1166 = vpack.c.b16 %v1103, %v1096
        %v1167 = vpack.c.b16 %v1104, %v1097
        %vm1231 = vcmask 130048
        %v1233 = vsel %vm1231, %v905, 0
        %1235 = vmatprep.subr.bf16.mxu0 %v1106
        %1236 = vmatpush1.bf16.msra.mxu0 %v1105
        %1237 = vmatprep.subr.bf16.mxu0 %v1113
        %1238 = vmatpush1.bf16.msra.mxu0 %v1112
        %1239 = vmatprep.subr.bf16.mxu0 %v1120
        %1240 = vmatpush1.bf16.msra.mxu0 %v1119
        %1241 = vmatprep.subr.bf16.mxu0 %v1127
        %1242 = vmatpush1.bf16.msra.mxu0 %v1126
        %1243 = vmatprep.subr.bf16.mxu0 %v1134
        %1244 = vmatpush1.bf16.msra.mxu0 %v1133
        %1245 = vmatprep.subr.bf16.mxu0 %v1141
        %1246 = vmatpush1.bf16.msra.mxu0 %v1140
        %1247 = vmatprep.subr.bf16.mxu0 %v1148
        %1248 = vmatpush1.bf16.msra.mxu0 %v1147
        %1249 = vmatprep.subr.bf16.mxu0 %v1155
        %1250 = vmatpush1.bf16.msra.mxu0 %v1154
        %1251 = vmatprep.subr.bf16.mxu0 %v1162
        %1252 = vmatpush1.bf16.msra.mxu0 %v1161
        %1253 = vmatprep.subr.bf16.mxu0 0
        %1254 = vmatpush1.bf16.msra.mxu0 0
        %1255 = vmatprep.subr.bf16.mxu0 0
        %1256 = vmatpush1.bf16.msra.mxu0 0
        %1257 = vmatprep.subr.bf16.mxu0 0
        %1258 = vmatpush1.bf16.msra.mxu0 0
        %1259 = vmatprep.subr.bf16.mxu0 0
        %1260 = vmatpush1.bf16.msra.mxu0 0
        %1261 = vmatprep.subr.bf16.mxu0 0
        %1262 = vmatpush1.bf16.msra.mxu0 0
        %1263 = vmatprep.subr.bf16.mxu0 0
        %1264 = vmatpush1.bf16.msra.mxu0 0
        %1265 = vmatprep.subr.bf16.mxu0 0
        %1266 = vmatpush1.bf16.msra.mxu0 0
        %1267 = vmatprep.mubr.bf16.mxu0 %v1233
        %1268 = vmatmul.mubr.bf16.gmra.mrb[0].mxu0 %v898
        %v1269 = vpop.f32.mrb[0].mxu0
        %v1270 = vadd.f32 %v882, %v1269
        %v1271 = vpop.f32.mrb[0].mxu0
        %v1272 = vadd.f32 %v882, %v1271
        %v1273 = vpop.f32.mrb[0].mxu0
        %v1274 = vpop.f32.mrb[0].mxu0
        %1275 = vdwg.mxu0
        %1276 = vmatprep.subr.bf16.mxu0 %v1108
        %1277 = vmatpush1.bf16.msra.mxu0 %v1107
        %1278 = vmatprep.subr.bf16.mxu0 %v1115
        %1279 = vmatpush1.bf16.msra.mxu0 %v1114
        %1280 = vmatprep.subr.bf16.mxu0 %v1122
        %1281 = vmatpush1.bf16.msra.mxu0 %v1121
        %1282 = vmatprep.subr.bf16.mxu0 %v1129
        %1283 = vmatpush1.bf16.msra.mxu0 %v1128
        %1284 = vmatprep.subr.bf16.mxu0 %v1136
        %1285 = vmatpush1.bf16.msra.mxu0 %v1135
        %1286 = vmatprep.subr.bf16.mxu0 %v1143
        %1287 = vmatpush1.bf16.msra.mxu0 %v1142
        %1288 = vmatprep.subr.bf16.mxu0 %v1150
        %1289 = vmatpush1.bf16.msra.mxu0 %v1149
        %1290 = vmatprep.subr.bf16.mxu0 %v1157
        %1291 = vmatpush1.bf16.msra.mxu0 %v1156
        %1292 = vmatprep.subr.bf16.mxu0 %v1164
        %1293 = vmatpush1.bf16.msra.mxu0 %v1163
        %1294 = vmatprep.subr.bf16.mxu0 0
        %1295 = vmatpush1.bf16.msra.mxu0 0
        %1296 = vmatprep.subr.bf16.mxu0 0
        %1297 = vmatpush1.bf16.msra.mxu0 0
        %1298 = vmatprep.subr.bf16.mxu0 0
        %1299 = vmatpush1.bf16.msra.mxu0 0
        %1300 = vmatprep.subr.bf16.mxu0 0
        %1301 = vmatpush1.bf16.msra.mxu0 0
        %1302 = vmatprep.subr.bf16.mxu0 0
        %1303 = vmatpush1.bf16.msra.mxu0 0
        %1304 = vmatprep.subr.bf16.mxu0 0
        %1305 = vmatpush1.bf16.msra.mxu0 0
        %1306 = vmatprep.subr.bf16.mxu0 0
        %1307 = vmatpush1.bf16.msra.mxu0 0
        %1308 = vmatprep.mubr.bf16.mxu0 %v1233
        %1309 = vmatmul.mubr.bf16.gmra.mrb[0].mxu0 %v898
        %v1310 = vpop.f32.mrb[0].mxu0
        %v1311 = vadd.f32 %v882, %v1310
        %v1312 = vpop.f32.mrb[0].mxu0
        %v1313 = vadd.f32 %v882, %v1312
        %v1314 = vpop.f32.mrb[0].mxu0
        %v1315 = vpop.f32.mrb[0].mxu0
        %1316 = vdwg.mxu0
        %1317 = vmatprep.subr.bf16.mxu0 %v1110
        %1318 = vmatpush1.bf16.msra.mxu0 %v1109
        %1319 = vmatprep.subr.bf16.mxu0 %v1117
        %1320 = vmatpush1.bf16.msra.mxu0 %v1116
        %1321 = vmatprep.subr.bf16.mxu0 %v1124
        %1322 = vmatpush1.bf16.msra.mxu0 %v1123
        %1323 = vmatprep.subr.bf16.mxu0 %v1131
        %1324 = vmatpush1.bf16.msra.mxu0 %v1130
        %1325 = vmatprep.subr.bf16.mxu0 %v1138
        %1326 = vmatpush1.bf16.msra.mxu0 %v1137
        %1327 = vmatprep.subr.bf16.mxu0 %v1145
        %1328 = vmatpush1.bf16.msra.mxu0 %v1144
        %1329 = vmatprep.subr.bf16.mxu0 %v1152
        %1330 = vmatpush1.bf16.msra.mxu0 %v1151
        %1331 = vmatprep.subr.bf16.mxu0 %v1159
        %1332 = vmatpush1.bf16.msra.mxu0 %v1158
        %1333 = vmatprep.subr.bf16.mxu0 %v1166
        %1334 = vmatpush1.bf16.msra.mxu0 %v1165
        %1335 = vmatprep.subr.bf16.mxu0 0
        %1336 = vmatpush1.bf16.msra.mxu0 0
        %1337 = vmatprep.subr.bf16.mxu0 0
        %1338 = vmatpush1.bf16.msra.mxu0 0
        %1339 = vmatprep.subr.bf16.mxu0 0
        %1340 = vmatpush1.bf16.msra.mxu0 0
        %1341 = vmatprep.subr.bf16.mxu0 0
        %1342 = vmatpush1.bf16.msra.mxu0 0
        %1343 = vmatprep.subr.bf16.mxu0 0
        %1344 = vmatpush1.bf16.msra.mxu0 0
        %1345 = vmatprep.subr.bf16.mxu0 0
        %1346 = vmatpush1.bf16.msra.mxu0 0
        %1347 = vmatprep.subr.bf16.mxu0 0
        %1348 = vmatpush1.bf16.msra.mxu0 0
        %1349 = vmatprep.mubr.bf16.mxu0 %v1233
        %1350 = vmatmul.mubr.bf16.gmra.mrb[0].mxu0 %v898
        %v1351 = vpop.f32.mrb[0].mxu0
        %v1352 = vadd.f32 %v882, %v1351
        %v1353 = vpop.f32.mrb[0].mxu0
        %v1354 = vadd.f32 %v882, %v1353
        %v1355 = vpop.f32.mrb[0].mxu0
        %v1356 = vpop.f32.mrb[0].mxu0
        %1357 = vdwg.mxu0
        %1358 = vmatprep.subr.bf16.mxu0 0
        %1359 = vmatpush1.bf16.msra.mxu0 %v1111
        %1360 = vmatprep.subr.bf16.mxu0 0
        %1361 = vmatpush1.bf16.msra.mxu0 %v1118
        %1362 = vmatprep.subr.bf16.mxu0 0
        %1363 = vmatpush1.bf16.msra.mxu0 %v1125
        %1364 = vmatprep.subr.bf16.mxu0 0
        %1365 = vmatpush1.bf16.msra.mxu0 %v1132
        %1366 = vmatprep.subr.bf16.mxu0 0
        %1367 = vmatpush1.bf16.msra.mxu0 %v1139
        %1368 = vmatprep.subr.bf16.mxu0 0
        %1369 = vmatpush1.bf16.msra.mxu0 %v1146
        %1370 = vmatprep.subr.bf16.mxu0 0
        %1371 = vmatpush1.bf16.msra.mxu0 %v1153
        %1372 = vmatprep.subr.bf16.mxu0 0
        %1373 = vmatpush1.bf16.msra.mxu0 %v1160
        %1374 = vmatprep.subr.bf16.mxu0 0
        %1375 = vmatpush1.bf16.msra.mxu0 %v1167
        %1376 = vmatprep.subr.bf16.mxu0 0
        %1377 = vmatpush1.bf16.msra.mxu0 0
        %1378 = vmatprep.subr.bf16.mxu0 0
        %1379 = vmatpush1.bf16.msra.mxu0 0
        %1380 = vmatprep.subr.bf16.mxu0 0
        %1381 = vmatpush1.bf16.msra.mxu0 0
        %1382 = vmatprep.subr.bf16.mxu0 0
        %1383 = vmatpush1.bf16.msra.mxu0 0
        %1384 = vmatprep.subr.bf16.mxu0 0
        %1385 = vmatpush1.bf16.msra.mxu0 0
        %1386 = vmatprep.subr.bf16.mxu0 0
        %1387 = vmatpush1.bf16.msra.mxu0 0
        %1388 = vmatprep.subr.bf16.mxu0 0
        %1389 = vmatpush1.bf16.msra.mxu0 0
        %1390 = vmatprep.mubr.bf16.mxu0 %v1233
        %1391 = vmatmul.mubr.bf16.gmra.mrb[0].mxu0 %v898
        %v1392 = vpop.f32.mrb[0].mxu0
        %v1393 = vadd.f32 %v882, %v1392
        %v1394 = vpop.f32.mrb[0].mxu0
        %v1395 = vpop.f32.mrb[0].mxu0
        %v1396 = vpop.f32.mrb[0].mxu0
        %1397 = vdwg.mxu0
        %v1398 = vmax.f32 %v1270, 0.0
        %v1399 = vmax.f32 %v1272, 0.0
        %v1400 = vmax.f32 %v1311, 0.0
        %v1401 = vmax.f32 %v1313, 0.0
        %v1402 = vmax.f32 %v1352, 0.0
        %v1403 = vmax.f32 %v1354, 0.0
        %v1404 = vmax.f32 %v1393, 0.0
        %v1405 = vpack.c.bf16 %v1398, %v1398
        %v1406 = vpack.c.bf16 %v1399, %v1399
        %v1407 = vpack.c.bf16 %v1400, %v1400
        %v1408 = vpack.c.bf16 %v1401, %v1401
        %v1409 = vpack.c.bf16 %v1402, %v1402
        %v1410 = vpack.c.bf16 %v1403, %v1403
        %v1411 = vpack.c.bf16 %v1404, %v1404
        %v1419 = vcombine.low %v1405, %v1406
        %v1420 = vcombine.low %v1407, %v1408
        %v1421 = vcombine.low %v1409, %v1410
        %v1423 = vunpack.c.l.s4 1966171168
        %v1424 = vunpack.c.0.s8 %v1423
        %v1425 = vlaneseq
        %v1426 = vshrl.u32 %v1425, 7
        %v1427 = vsub.s32 %v1424, %v1426
        %v1428 = vrot.slane %v1419, %v1427
        %v1430 = vunpack.c.l.s4 1966171168
        %v1431 = vunpack.c.0.s8 %v1430
        %v1432 = vlaneseq
        %v1433 = vshrl.u32 %v1432, 7
        %v1434 = vsub.s32 %v1431, %v1433
        %v1435 = vrot.slane %v1420, %v1434
        %v1437 = vunpack.c.l.s4 1966171168
        %v1438 = vunpack.c.0.s8 %v1437
        %v1439 = vlaneseq
        %v1440 = vshrl.u32 %v1439, 7
        %v1441 = vsub.s32 %v1438, %v1440
        %v1442 = vrot.slane %v1421, %v1441
        %v1444 = vunpack.c.l.s4 1966171168
        %v1445 = vunpack.c.0.s8 %v1444
        %v1446 = vlaneseq
        %v1447 = vshrl.u32 %v1446, 7
        %v1448 = vsub.s32 %v1445, %v1447
        %v1449 = vrot.slane %v1411, %v1448
        %v1450 = vcombine.low %v1428, %v1435
        %v1451 = vcombine.low %v1442, %v1449
        %v1453 = vunpack.c.l.s4 1966171168
        %v1454 = vunpack.c.0.s8 %v1453
        %v1455 = vlaneseq
        %v1456 = vshrl.u32 %v1455, 7
        %v1457 = vsub.s32 %v1454, %v1456
        %v1458 = vrot.slane %v1450, %v1457
        %v1460 = vunpack.c.l.s4 1966171168
        %v1461 = vunpack.c.0.s8 %v1460
        %v1462 = vlaneseq
        %v1463 = vshrl.u32 %v1462, 7
        %v1464 = vsub.s32 %v1461, %v1463
        %v1465 = vrot.slane %v1451, %v1464
        %v1466 = vcombine.low %v1458, %v1465
        %vm1468 = vcmask 1040384
        %vm1469 = vsmask.f32 256
        %vm1470 = vmand %vm1468, %vm1469
        %vm1471 = vcmask 1041409
        %vm1472 = vsmask.f32 1280
        %vm1473 = vmand %vm1471, %vm1472
        %vm1474 = vmor %vm1473, %vm1470
        %vm1475 = vcmask 1042434
        %vm1476 = vsmask.f32 2304
        %vm1477 = vmand %vm1475, %vm1476
        %vm1478 = vmor %vm1477, %vm1474
        %vm1479 = vcmask 1043459
        %vm1480 = vsmask.f32 3328
        %vm1481 = vmand %vm1479, %vm1480
        %vm1482 = vmor %vm1481, %vm1478
        %vm1483 = vcmask 1044484
        %vm1484 = vsmask.f32 4352
        %vm1485 = vmand %vm1483, %vm1484
        %vm1486 = vmor %vm1485, %vm1482
        %vm1487 = vcmask 1045509
        %vm1488 = vsmask.f32 5376
        %vm1489 = vmand %vm1487, %vm1488
        %vm1490 = vmor %vm1489, %vm1486
        %vm1491 = vcmask 1046534
        %vm1492 = vsmask.f32 6400
        %vm1493 = vmand %vm1491, %vm1492
        %vm1494 = vmor %vm1493, %vm1490
        %v1495 = vld [vmem:[%s781] sm:$0x7f]
        %v1496 = vsel %vm1494, %v1466, %v1495
        %1497 = vst [vmem:[%s781] sm:$0x7f] %v1496
        %s1498 = sand.u32 %s116, 1
        %s1499 = sand.u32 %s116, 1
        %s1500 = smul.addr %s1499, 7
        %s1501 = scalar_lea.vmem [#allocation4], %s1500
        // Predicated region
        $region99: #{k_sparse_autoencoder_forward.15} parent=93 // pred_check
          %p1502 = pneg %p126
        $region100: #{k_sparse_autoencoder_forward.15} parent=93 // pred_check_branch
          %1504 = sbr.rel (%p1502) target = $region102
        $region101: #{k_sparse_autoencoder_forward.15} parent=93 // pred_region
          %s1505 = smul.u32 7, %s21
          %s1506 = ssub.s32 13, %s1505
          %p1507 = scmp.lt.s32.totalorder %s1506, 7
          %s1508 = scalar_select %p1507, %s1506, 7
          %s1509 = smul.u32 16, %s1508
          %p1510 = scmp.ne.s32.totalorder 0, %s1509
          %s1511 = smul.addr %s20, 13
          %s1512 = sadd.s32 %s1505, %s1511
          %s1513 = scalar_lea.vmem %s3, %s1512
          // Predicated region
          $region103: #{k_sparse_autoencoder_forward.15} parent=101 // pred_check
            %p1514 = pneg %p1510
          $region104: #{k_sparse_autoencoder_forward.15} parent=101 // pred_check_branch
            %1516 = sbr.rel (%p1514) target = $region106
          $region105: #{k_sparse_autoencoder_forward.15} parent=101 // pred_region
            %p1517 = scmp.lt.u32.totalorder %s1508, 8
            %p1518 = pneg %p1517
            // Predicated region
            $region107: #{k_sparse_autoencoder_forward.15} parent=105 // pred_check
              _
            $region108: #{k_sparse_autoencoder_forward.15} parent=105 // pred_check_branch
              %1520 = sbr.rel (%p1517) target = $region110
            $region109: #{k_sparse_autoencoder_forward.15} parent=105 // pred_region
              %s1535 = sand.u32 %s1508, 7
              %p1536 = scmp.eq.s32.totalorder %s1535, 0
              // Predicated region
              $region122: #{k_sparse_autoencoder_forward.15} parent=109 // pred_check
                %p1537 = pneg %p1536
              $region123: #{k_sparse_autoencoder_forward.15} parent=109 // pred_check_branch
                %1539 = sbr.rel (%p1537) target = $region125
              $region124: #{k_sparse_autoencoder_forward.15} parent=109 // pred_region
                %s1540 = sshrl.u32 %s1508, 3
                %s1541 = sshrl.u32 %s1540, 6
                // While loop
                $region126: #{k_sparse_autoencoder_forward.15} parent=124 // loop_pre_header
                  _
                $region127: #{k_sparse_autoencoder_forward.15} parent=124 // loop_header
                  %s1545 = sphi 0, %s1547
                  %p1546 = scmp.ge.s32.totalorder %s1545, %s1541
                  %s1550 = sphi 0, %s1683
                  %s1551 = sphi %s1501, %s1686
                  %s1552 = sphi %s1513, %s1687
                $region128: #{k_sparse_autoencoder_forward.15} parent=124 // loop_header_branch
                  %1549 = sbr.rel (%p1546) target = $region132
                $region129: #{k_sparse_autoencoder_forward.15} parent=124 // loop_body
                  %v1553 = vld [vmem:[%s1551] sm:$0xff]
                  %1554 = vst [vmem:[%s1552] sm:$0xff] %v1553
                  %v1555 = vld [vmem:[%s1551 + $0x8] sm:$0xff]
                  %1556 = vst [vmem:[%s1552 + $0x8] sm:$0xff] %v1555
                  %v1557 = vld [vmem:[%s1551 + $0x10] sm:$0xff]
                  %1558 = vst [vmem:[%s1552 + $0x10] sm:$0xff] %v1557
                  %v1559 = vld [vmem:[%s1551 + $0x18] sm:$0xff]
                  %1560 = vst [vmem:[%s1552 + $0x18] sm:$0xff] %v1559
                  %v1561 = vld [vmem:[%s1551 + $0x20] sm:$0xff]
                  %1562 = vst [vmem:[%s1552 + $0x20] sm:$0xff] %v1561
                  %v1563 = vld [vmem:[%s1551 + $0x28] sm:$0xff]
                  %1564 = vst [vmem:[%s1552 + $0x28] sm:$0xff] %v1563
                  %v1565 = vld [vmem:[%s1551 + $0x30] sm:$0xff]
                  %1566 = vst [vmem:[%s1552 + $0x30] sm:$0xff] %v1565
                  %v1567 = vld [vmem:[%s1551 + $0x38] sm:$0xff]
                  %1568 = vst [vmem:[%s1552 + $0x38] sm:$0xff] %v1567
                  %v1569 = vld [vmem:[%s1551 + $0x40] sm:$0xff]
                  %1570 = vst [vmem:[%s1552 + $0x40] sm:$0xff] %v1569
                  %v1571 = vld [vmem:[%s1551 + $0x48] sm:$0xff]
                  %1572 = vst [vmem:[%s1552 + $0x48] sm:$0xff] %v1571
                  %v1573 = vld [vmem:[%s1551 + $0x50] sm:$0xff]
                  %1574 = vst [vmem:[%s1552 + $0x50] sm:$0xff] %v1573
                  %v1575 = vld [vmem:[%s1551 + $0x58] sm:$0xff]
                  %1576 = vst [vmem:[%s1552 + $0x58] sm:$0xff] %v1575
                  %v1577 = vld [vmem:[%s1551 + $0x60] sm:$0xff]
                  %1578 = vst [vmem:[%s1552 + $0x60] sm:$0xff] %v1577
                  %v1579 = vld [vmem:[%s1551 + $0x68] sm:$0xff]
                  %1580 = vst [vmem:[%s1552 + $0x68] sm:$0xff] %v1579
                  %v1581 = vld [vmem:[%s1551 + $0x70] sm:$0xff]
                  %1582 = vst [vmem:[%s1552 + $0x70] sm:$0xff] %v1581
                  %v1583 = vld [vmem:[%s1551 + $0x78] sm:$0xff]
                  %1584 = vst [vmem:[%s1552 + $0x78] sm:$0xff] %v1583
                  %v1585 = vld [vmem:[%s1551 + $0x80] sm:$0xff]
                  %1586 = vst [vmem:[%s1552 + $0x80] sm:$0xff] %v1585
                  %v1587 = vld [vmem:[%s1551 + $0x88] sm:$0xff]
                  %1588 = vst [vmem:[%s1552 + $0x88] sm:$0xff] %v1587
                  %v1589 = vld [vmem:[%s1551 + $0x90] sm:$0xff]
                  %1590 = vst [vmem:[%s1552 + $0x90] sm:$0xff] %v1589
                  %v1591 = vld [vmem:[%s1551 + $0x98] sm:$0xff]
                  %1592 = vst [vmem:[%s1552 + $0x98] sm:$0xff] %v1591
                  %v1593 = vld [vmem:[%s1551 + $0xa0] sm:$0xff]
                  %1594 = vst [vmem:[%s1552 + $0xa0] sm:$0xff] %v1593
                  %v1595 = vld [vmem:[%s1551 + $0xa8] sm:$0xff]
                  %1596 = vst [vmem:[%s1552 + $0xa8] sm:$0xff] %v1595
                  %v1597 = vld [vmem:[%s1551 + $0xb0] sm:$0xff]
                  %1598 = vst [vmem:[%s1552 + $0xb0] sm:$0xff] %v1597
                  %v1599 = vld [vmem:[%s1551 + $0xb8] sm:$0xff]
                  %1600 = vst [vmem:[%s1552 + $0xb8] sm:$0xff] %v1599
                  %v1601 = vld [vmem:[%s1551 + $0xc0] sm:$0xff]
                  %1602 = vst [vmem:[%s1552 + $0xc0] sm:$0xff] %v1601
                  %v1603 = vld [vmem:[%s1551 + $0xc8] sm:$0xff]
                  %1604 = vst [vmem:[%s1552 + $0xc8] sm:$0xff] %v1603
                  %v1605 = vld [vmem:[%s1551 + $0xd0] sm:$0xff]
                  %1606 = vst [vmem:[%s1552 + $0xd0] sm:$0xff] %v1605
                  %v1607 = vld [vmem:[%s1551 + $0xd8] sm:$0xff]
                  %1608 = vst [vmem:[%s1552 + $0xd8] sm:$0xff] %v1607
                  %v1609 = vld [vmem:[%s1551 + $0xe0] sm:$0xff]
                  %1610 = vst [vmem:[%s1552 + $0xe0] sm:$0xff] %v1609
                  %v1611 = vld [vmem:[%s1551 + $0xe8] sm:$0xff]
                  %1612 = vst [vmem:[%s1552 + $0xe8] sm:$0xff] %v1611
                  %v1613 = vld [vmem:[%s1551 + $0xf0] sm:$0xff]
                  %1614 = vst [vmem:[%s1552 + $0xf0] sm:$0xff] %v1613
                  %v1615 = vld [vmem:[%s1551 + $0xf8] sm:$0xff]
                  %1616 = vst [vmem:[%s1552 + $0xf8] sm:$0xff] %v1615
                  %v1617 = vld [vmem:[%s1551 + $0x100] sm:$0xff]
                  %1618 = vst [vmem:[%s1552 + $0x100] sm:$0xff] %v1617
                  %v1619 = vld [vmem:[%s1551 + $0x108] sm:$0xff]
                  %1620 = vst [vmem:[%s1552 + $0x108] sm:$0xff] %v1619
                  %v1621 = vld [vmem:[%s1551 + $0x110] sm:$0xff]
                  %1622 = vst [vmem:[%s1552 + $0x110] sm:$0xff] %v1621
                  %v1623 = vld [vmem:[%s1551 + $0x118] sm:$0xff]
                  %1624 = vst [vmem:[%s1552 + $0x118] sm:$0xff] %v1623
                  %v1625 = vld [vmem:[%s1551 + $0x120] sm:$0xff]
                  %1626 = vst [vmem:[%s1552 + $0x120] sm:$0xff] %v1625
                  %v1627 = vld [vmem:[%s1551 + $0x128] sm:$0xff]
                  %1628 = vst [vmem:[%s1552 + $0x128] sm:$0xff] %v1627
                  %v1629 = vld [vmem:[%s1551 + $0x130] sm:$0xff]
                  %1630 = vst [vmem:[%s1552 + $0x130] sm:$0xff] %v1629
                  %v1631 = vld [vmem:[%s1551 + $0x138] sm:$0xff]
                  %1632 = vst [vmem:[%s1552 + $0x138] sm:$0xff] %v1631
                  %v1633 = vld [vmem:[%s1551 + $0x140] sm:$0xff]
                  %1634 = vst [vmem:[%s1552 + $0x140] sm:$0xff] %v1633
                  %v1635 = vld [vmem:[%s1551 + $0x148] sm:$0xff]
                  %1636 = vst [vmem:[%s1552 + $0x148] sm:$0xff] %v1635
                  %v1637 = vld [vmem:[%s1551 + $0x150] sm:$0xff]
                  %1638 = vst [vmem:[%s1552 + $0x150] sm:$0xff] %v1637
                  %v1639 = vld [vmem:[%s1551 + $0x158] sm:$0xff]
                  %1640 = vst [vmem:[%s1552 + $0x158] sm:$0xff] %v1639
                  %v1641 = vld [vmem:[%s1551 + $0x160] sm:$0xff]
                  %1642 = vst [vmem:[%s1552 + $0x160] sm:$0xff] %v1641
                  %v1643 = vld [vmem:[%s1551 + $0x168] sm:$0xff]
                  %1644 = vst [vmem:[%s1552 + $0x168] sm:$0xff] %v1643
                  %v1645 = vld [vmem:[%s1551 + $0x170] sm:$0xff]
                  %1646 = vst [vmem:[%s1552 + $0x170] sm:$0xff] %v1645
                  %v1647 = vld [vmem:[%s1551 + $0x178] sm:$0xff]
                  %1648 = vst [vmem:[%s1552 + $0x178] sm:$0xff] %v1647
                  %v1649 = vld [vmem:[%s1551 + $0x180] sm:$0xff]
                  %1650 = vst [vmem:[%s1552 + $0x180] sm:$0xff] %v1649
                  %v1651 = vld [vmem:[%s1551 + $0x188] sm:$0xff]
                  %1652 = vst [vmem:[%s1552 + $0x188] sm:$0xff] %v1651
                  %v1653 = vld [vmem:[%s1551 + $0x190] sm:$0xff]
                  %1654 = vst [vmem:[%s1552 + $0x190] sm:$0xff] %v1653
                  %v1655 = vld [vmem:[%s1551 + $0x198] sm:$0xff]
                  %1656 = vst [vmem:[%s1552 + $0x198] sm:$0xff] %v1655
                  %v1657 = vld [vmem:[%s1551 + $0x1a0] sm:$0xff]
                  %1658 = vst [vmem:[%s1552 + $0x1a0] sm:$0xff] %v1657
                  %v1659 = vld [vmem:[%s1551 + $0x1a8] sm:$0xff]
                  %1660 = vst [vmem:[%s1552 + $0x1a8] sm:$0xff] %v1659
                  %v1661 = vld [vmem:[%s1551 + $0x1b0] sm:$0xff]
                  %1662 = vst [vmem:[%s1552 + $0x1b0] sm:$0xff] %v1661
                  %v1663 = vld [vmem:[%s1551 + $0x1b8] sm:$0xff]
                  %1664 = vst [vmem:[%s1552 + $0x1b8] sm:$0xff] %v1663
                  %v1665 = vld [vmem:[%s1551 + $0x1c0] sm:$0xff]
                  %1666 = vst [vmem:[%s1552 + $0x1c0] sm:$0xff] %v1665
                  %v1667 = vld [vmem:[%s1551 + $0x1c8] sm:$0xff]
                  %1668 = vst [vmem:[%s1552 + $0x1c8] sm:$0xff] %v1667
                  %v1669 = vld [vmem:[%s1551 + $0x1d0] sm:$0xff]
                  %1670 = vst [vmem:[%s1552 + $0x1d0] sm:$0xff] %v1669
                  %v1671 = vld [vmem:[%s1551 + $0x1d8] sm:$0xff]
                  %1672 = vst [vmem:[%s1552 + $0x1d8] sm:$0xff] %v1671
                  %v1673 = vld [vmem:[%s1551 + $0x1e0] sm:$0xff]
                  %1674 = vst [vmem:[%s1552 + $0x1e0] sm:$0xff] %v1673
                  %v1675 = vld [vmem:[%s1551 + $0x1e8] sm:$0xff]
                  %1676 = vst [vmem:[%s1552 + $0x1e8] sm:$0xff] %v1675
                  %v1677 = vld [vmem:[%s1551 + $0x1f0] sm:$0xff]
                  %1678 = vst [vmem:[%s1552 + $0x1f0] sm:$0xff] %v1677
                  %v1679 = vld [vmem:[%s1551 + $0x1f8] sm:$0xff]
                  %1680 = vst [vmem:[%s1552 + $0x1f8] sm:$0xff] %v1679
                  %s1681 = sadd.s32 1, %s1550
                  %p1682 = scmp.ge.s32.totalorder %s1681, %s1541
                  %s1683 = scalar_select %p1682, 0, %s1681
                  %s1684 = smul.u32 %s1683, 512
                  %s1685 = smul.u32 %s1683, 512
                  %s1686 = scalar_lea.vmem %s1501, %s1684 [#allocation4]
                  %s1687 = scalar_lea.vmem %s1513, %s1685
                $region130: #{k_sparse_autoencoder_forward.15} parent=124 // loop_footer
                  %s1547 = sadd.s32 %s1545, 1
                $region131: #{k_sparse_autoencoder_forward.15} parent=124 // loop_footer_branch
                  %1544 = sbr.rel target = $region127
                $region132: #{k_sparse_autoencoder_forward.15} parent=124 // loop_exit
                  _
                %s1688 = sshrl.u32 %s1540, 6
                %s1689 = sand.u32 %s1540, 63
                %s1690 = smul.u32 %s1688, 64
                %s1691 = smul.u32 128, %s1690
                %s1692 = sshra.s32 %s1691, 4
                %s1693 = scalar_lea.vmem %s1501, %s1692 [#allocation4]
                %s1694 = smul.u32 128, %s1690
                %s1695 = sshra.s32 %s1694, 4
                %s1696 = scalar_lea.vmem %s1513, %s1695
                // While loop
                $region133: #{k_sparse_autoencoder_forward.15} parent=124 // loop_pre_header
                  _
                $region134: #{k_sparse_autoencoder_forward.15} parent=124 // loop_header
                  %s1700 = sphi 0, %s1702
                  %p1701 = scmp.ge.s32.totalorder %s1700, %s1689
                  %s1705 = sphi 0, %s1712
                  %s1706 = sphi %s1693, %s1715
                  %s1707 = sphi %s1696, %s1716
                $region135: #{k_sparse_autoencoder_forward.15} parent=124 // loop_header_branch
                  %1704 = sbr.rel (%p1701) target = $region139
                $region136: #{k_sparse_autoencoder_forward.15} parent=124 // loop_body
                  %v1708 = vld [vmem:[%s1706] sm:$0xff]
                  %1709 = vst [vmem:[%s1707] sm:$0xff] %v1708
                  %s1710 = sadd.s32 1, %s1705
                  %p1711 = scmp.ge.s32.totalorder %s1710, %s1689
                  %s1712 = scalar_select %p1711, 0, %s1710
                  %s1713 = smul.u32 %s1712, 8
                  %s1714 = smul.u32 %s1712, 8
                  %s1715 = scalar_lea.vmem %s1693, %s1713 [#allocation4]
                  %s1716 = scalar_lea.vmem %s1696, %s1714
                $region137: #{k_sparse_autoencoder_forward.15} parent=124 // loop_footer
                  %s1702 = sadd.s32 %s1700, 1
                $region138: #{k_sparse_autoencoder_forward.15} parent=124 // loop_footer_branch
                  %1699 = sbr.rel target = $region134
                $region139: #{k_sparse_autoencoder_forward.15} parent=124 // loop_exit
                  _
              $region125: #{k_sparse_autoencoder_forward.15} parent=109 // pred_fallthru
                _
              %p1717 = pneg %p1536
              // Predicated region
              $region140: #{k_sparse_autoencoder_forward.15} parent=109 // pred_check
                _
              $region141: #{k_sparse_autoencoder_forward.15} parent=109 // pred_check_branch
                %1719 = sbr.rel (%p1536) target = $region143
              $region142: #{k_sparse_autoencoder_forward.15} parent=109 // pred_region
                %s1720 = sand.u32 %s1508, 7
                %s1721 = ssub.s32 %s1508, %s1720
                %s1722 = scalar_lea.vmem %s1501, %s1721 [#allocation4]
                %s1723 = ssub.s32 %s1508, %s1720
                %s1724 = scalar_lea.vmem %s1513, %s1723
                %s1725 = sshrl.u32 %s1508, 3
                %s1726 = sshrl.u32 %s1725, 6
                // While loop
                $region144: #{k_sparse_autoencoder_forward.15} parent=142 // loop_pre_header
                  _
                $region145: #{k_sparse_autoencoder_forward.15} parent=142 // loop_header
                  %s1730 = sphi 0, %s1732
                  %p1731 = scmp.ge.s32.totalorder %s1730, %s1726
                  %s1735 = sphi 0, %s1868
                  %s1736 = sphi %s1501, %s1871
                  %s1737 = sphi %s1513, %s1872
                $region146: #{k_sparse_autoencoder_forward.15} parent=142 // loop_header_branch
                  %1734 = sbr.rel (%p1731) target = $region150
                $region147: #{k_sparse_autoencoder_forward.15} parent=142 // loop_body
                  %v1738 = vld [vmem:[%s1736] sm:$0xff]
                  %1739 = vst [vmem:[%s1737] sm:$0xff] %v1738
                  %v1740 = vld [vmem:[%s1736 + $0x8] sm:$0xff]
                  %1741 = vst [vmem:[%s1737 + $0x8] sm:$0xff] %v1740
                  %v1742 = vld [vmem:[%s1736 + $0x10] sm:$0xff]
                  %1743 = vst [vmem:[%s1737 + $0x10] sm:$0xff] %v1742
                  %v1744 = vld [vmem:[%s1736 + $0x18] sm:$0xff]
                  %1745 = vst [vmem:[%s1737 + $0x18] sm:$0xff] %v1744
                  %v1746 = vld [vmem:[%s1736 + $0x20] sm:$0xff]
                  %1747 = vst [vmem:[%s1737 + $0x20] sm:$0xff] %v1746
                  %v1748 = vld [vmem:[%s1736 + $0x28] sm:$0xff]
                  %1749 = vst [vmem:[%s1737 + $0x28] sm:$0xff] %v1748
                  %v1750 = vld [vmem:[%s1736 + $0x30] sm:$0xff]
                  %1751 = vst [vmem:[%s1737 + $0x30] sm:$0xff] %v1750
                  %v1752 = vld [vmem:[%s1736 + $0x38] sm:$0xff]
                  %1753 = vst [vmem:[%s1737 + $0x38] sm:$0xff] %v1752
                  %v1754 = vld [vmem:[%s1736 + $0x40] sm:$0xff]
                  %1755 = vst [vmem:[%s1737 + $0x40] sm:$0xff] %v1754
                  %v1756 = vld [vmem:[%s1736 + $0x48] sm:$0xff]
                  %1757 = vst [vmem:[%s1737 + $0x48] sm:$0xff] %v1756
                  %v1758 = vld [vmem:[%s1736 + $0x50] sm:$0xff]
                  %1759 = vst [vmem:[%s1737 + $0x50] sm:$0xff] %v1758
                  %v1760 = vld [vmem:[%s1736 + $0x58] sm:$0xff]
                  %1761 = vst [vmem:[%s1737 + $0x58] sm:$0xff] %v1760
                  %v1762 = vld [vmem:[%s1736 + $0x60] sm:$0xff]
                  %1763 = vst [vmem:[%s1737 + $0x60] sm:$0xff] %v1762
                  %v1764 = vld [vmem:[%s1736 + $0x68] sm:$0xff]
                  %1765 = vst [vmem:[%s1737 + $0x68] sm:$0xff] %v1764
                  %v1766 = vld [vmem:[%s1736 + $0x70] sm:$0xff]
                  %1767 = vst [vmem:[%s1737 + $0x70] sm:$0xff] %v1766
                  %v1768 = vld [vmem:[%s1736 + $0x78] sm:$0xff]
                  %1769 = vst [vmem:[%s1737 + $0x78] sm:$0xff] %v1768
                  %v1770 = vld [vmem:[%s1736 + $0x80] sm:$0xff]
                  %1771 = vst [vmem:[%s1737 + $0x80] sm:$0xff] %v1770
                  %v1772 = vld [vmem:[%s1736 + $0x88] sm:$0xff]
                  %1773 = vst [vmem:[%s1737 + $0x88] sm:$0xff] %v1772
                  %v1774 = vld [vmem:[%s1736 + $0x90] sm:$0xff]
                  %1775 = vst [vmem:[%s1737 + $0x90] sm:$0xff] %v1774
                  %v1776 = vld [vmem:[%s1736 + $0x98] sm:$0xff]
                  %1777 = vst [vmem:[%s1737 + $0x98] sm:$0xff] %v1776
                  %v1778 = vld [vmem:[%s1736 + $0xa0] sm:$0xff]
                  %1779 = vst [vmem:[%s1737 + $0xa0] sm:$0xff] %v1778
                  %v1780 = vld [vmem:[%s1736 + $0xa8] sm:$0xff]
                  %1781 = vst [vmem:[%s1737 + $0xa8] sm:$0xff] %v1780
                  %v1782 = vld [vmem:[%s1736 + $0xb0] sm:$0xff]
                  %1783 = vst [vmem:[%s1737 + $0xb0] sm:$0xff] %v1782
                  %v1784 = vld [vmem:[%s1736 + $0xb8] sm:$0xff]
                  %1785 = vst [vmem:[%s1737 + $0xb8] sm:$0xff] %v1784
                  %v1786 = vld [vmem:[%s1736 + $0xc0] sm:$0xff]
                  %1787 = vst [vmem:[%s1737 + $0xc0] sm:$0xff] %v1786
                  %v1788 = vld [vmem:[%s1736 + $0xc8] sm:$0xff]
                  %1789 = vst [vmem:[%s1737 + $0xc8] sm:$0xff] %v1788
                  %v1790 = vld [vmem:[%s1736 + $0xd0] sm:$0xff]
                  %1791 = vst [vmem:[%s1737 + $0xd0] sm:$0xff] %v1790
                  %v1792 = vld [vmem:[%s1736 + $0xd8] sm:$0xff]
                  %1793 = vst [vmem:[%s1737 + $0xd8] sm:$0xff] %v1792
                  %v1794 = vld [vmem:[%s1736 + $0xe0] sm:$0xff]
                  %1795 = vst [vmem:[%s1737 + $0xe0] sm:$0xff] %v1794
                  %v1796 = vld [vmem:[%s1736 + $0xe8] sm:$0xff]
                  %1797 = vst [vmem:[%s1737 + $0xe8] sm:$0xff] %v1796
                  %v1798 = vld [vmem:[%s1736 + $0xf0] sm:$0xff]
                  %1799 = vst [vmem:[%s1737 + $0xf0] sm:$0xff] %v1798
                  %v1800 = vld [vmem:[%s1736 + $0xf8] sm:$0xff]
                  %1801 = vst [vmem:[%s1737 + $0xf8] sm:$0xff] %v1800
                  %v1802 = vld [vmem:[%s1736 + $0x100] sm:$0xff]
                  %1803 = vst [vmem:[%s1737 + $0x100] sm:$0xff] %v1802
                  %v1804 = vld [vmem:[%s1736 + $0x108] sm:$0xff]
                  %1805 = vst [vmem:[%s1737 + $0x108] sm:$0xff] %v1804
                  %v1806 = vld [vmem:[%s1736 + $0x110] sm:$0xff]
                  %1807 = vst [vmem:[%s1737 + $0x110] sm:$0xff] %v1806
                  %v1808 = vld [vmem:[%s1736 + $0x118] sm:$0xff]
                  %1809 = vst [vmem:[%s1737 + $0x118] sm:$0xff] %v1808
                  %v1810 = vld [vmem:[%s1736 + $0x120] sm:$0xff]
                  %1811 = vst [vmem:[%s1737 + $0x120] sm:$0xff] %v1810
                  %v1812 = vld [vmem:[%s1736 + $0x128] sm:$0xff]
                  %1813 = vst [vmem:[%s1737 + $0x128] sm:$0xff] %v1812
                  %v1814 = vld [vmem:[%s1736 + $0x130] sm:$0xff]
                  %1815 = vst [vmem:[%s1737 + $0x130] sm:$0xff] %v1814
                  %v1816 = vld [vmem:[%s1736 + $0x138] sm:$0xff]
                  %1817 = vst [vmem:[%s1737 + $0x138] sm:$0xff] %v1816
                  %v1818 = vld [vmem:[%s1736 + $0x140] sm:$0xff]
                  %1819 = vst [vmem:[%s1737 + $0x140] sm:$0xff] %v1818
                  %v1820 = vld [vmem:[%s1736 + $0x148] sm:$0xff]
                  %1821 = vst [vmem:[%s1737 + $0x148] sm:$0xff] %v1820
                  %v1822 = vld [vmem:[%s1736 + $0x150] sm:$0xff]
                  %1823 = vst [vmem:[%s1737 + $0x150] sm:$0xff] %v1822
                  %v1824 = vld [vmem:[%s1736 + $0x158] sm:$0xff]
                  %1825 = vst [vmem:[%s1737 + $0x158] sm:$0xff] %v1824
                  %v1826 = vld [vmem:[%s1736 + $0x160] sm:$0xff]
                  %1827 = vst [vmem:[%s1737 + $0x160] sm:$0xff] %v1826
                  %v1828 = vld [vmem:[%s1736 + $0x168] sm:$0xff]
                  %1829 = vst [vmem:[%s1737 + $0x168] sm:$0xff] %v1828
                  %v1830 = vld [vmem:[%s1736 + $0x170] sm:$0xff]
                  %1831 = vst [vmem:[%s1737 + $0x170] sm:$0xff] %v1830
                  %v1832 = vld [vmem:[%s1736 + $0x178] sm:$0xff]
                  %1833 = vst [vmem:[%s1737 + $0x178] sm:$0xff] %v1832
                  %v1834 = vld [vmem:[%s1736 + $0x180] sm:$0xff]
                  %1835 = vst [vmem:[%s1737 + $0x180] sm:$0xff] %v1834
                  %v1836 = vld [vmem:[%s1736 + $0x188] sm:$0xff]
                  %1837 = vst [vmem:[%s1737 + $0x188] sm:$0xff] %v1836
                  %v1838 = vld [vmem:[%s1736 + $0x190] sm:$0xff]
                  %1839 = vst [vmem:[%s1737 + $0x190] sm:$0xff] %v1838
                  %v1840 = vld [vmem:[%s1736 + $0x198] sm:$0xff]
                  %1841 = vst [vmem:[%s1737 + $0x198] sm:$0xff] %v1840
                  %v1842 = vld [vmem:[%s1736 + $0x1a0] sm:$0xff]
                  %1843 = vst [vmem:[%s1737 + $0x1a0] sm:$0xff] %v1842
                  %v1844 = vld [vmem:[%s1736 + $0x1a8] sm:$0xff]
                  %1845 = vst [vmem:[%s1737 + $0x1a8] sm:$0xff] %v1844
                  %v1846 = vld [vmem:[%s1736 + $0x1b0] sm:$0xff]
                  %1847 = vst [vmem:[%s1737 + $0x1b0] sm:$0xff] %v1846
                  %v1848 = vld [vmem:[%s1736 + $0x1b8] sm:$0xff]
                  %1849 = vst [vmem:[%s1737 + $0x1b8] sm:$0xff] %v1848
                  %v1850 = vld [vmem:[%s1736 + $0x1c0] sm:$0xff]
                  %1851 = vst [vmem:[%s1737 + $0x1c0] sm:$0xff] %v1850
                  %v1852 = vld [vmem:[%s1736 + $0x1c8] sm:$0xff]
                  %1853 = vst [vmem:[%s1737 + $0x1c8] sm:$0xff] %v1852
                  %v1854 = vld [vmem:[%s1736 + $0x1d0] sm:$0xff]
                  %1855 = vst [vmem:[%s1737 + $0x1d0] sm:$0xff] %v1854
                  %v1856 = vld [vmem:[%s1736 + $0x1d8] sm:$0xff]
                  %1857 = vst [vmem:[%s1737 + $0x1d8] sm:$0xff] %v1856
                  %v1858 = vld [vmem:[%s1736 + $0x1e0] sm:$0xff]
                  %1859 = vst [vmem:[%s1737 + $0x1e0] sm:$0xff] %v1858
                  %v1860 = vld [vmem:[%s1736 + $0x1e8] sm:$0xff]
                  %1861 = vst [vmem:[%s1737 + $0x1e8] sm:$0xff] %v1860
                  %v1862 = vld [vmem:[%s1736 + $0x1f0] sm:$0xff]
                  %1863 = vst [vmem:[%s1737 + $0x1f0] sm:$0xff] %v1862
                  %v1864 = vld [vmem:[%s1736 + $0x1f8] sm:$0xff]
                  %1865 = vst [vmem:[%s1737 + $0x1f8] sm:$0xff] %v1864
                  %s1866 = sadd.s32 1, %s1735
                  %p1867 = scmp.ge.s32.totalorder %s1866, %s1726
                  %s1868 = scalar_select %p1867, 0, %s1866
                  %s1869 = smul.u32 %s1868, 512
                  %s1870 = smul.u32 %s1868, 512
                  %s1871 = scalar_lea.vmem %s1501, %s1869 [#allocation4]
                  %s1872 = scalar_lea.vmem %s1513, %s1870
                $region148: #{k_sparse_autoencoder_forward.15} parent=142 // loop_footer
                  %s1732 = sadd.s32 %s1730, 1
                $region149: #{k_sparse_autoencoder_forward.15} parent=142 // loop_footer_branch
                  %1729 = sbr.rel target = $region145
                $region150: #{k_sparse_autoencoder_forward.15} parent=142 // loop_exit
                  _
                %s1873 = sshrl.u32 %s1725, 6
                %s1874 = sand.u32 %s1725, 63
                %s1875 = smul.u32 %s1873, 64
                %s1876 = smul.u32 128, %s1875
                %s1877 = sshra.s32 %s1876, 4
                %s1878 = scalar_lea.vmem %s1501, %s1877 [#allocation4]
                %s1879 = smul.u32 128, %s1875
                %s1880 = sshra.s32 %s1879, 4
                %s1881 = scalar_lea.vmem %s1513, %s1880
                // While loop
                $region151: #{k_sparse_autoencoder_forward.15} parent=142 // loop_pre_header
                  _
                $region152: #{k_sparse_autoencoder_forward.15} parent=142 // loop_header
                  %s1885 = sphi 0, %s1887
                  %p1886 = scmp.ge.s32.totalorder %s1885, %s1874
                  %s1890 = sphi 0, %s1897
                  %s1891 = sphi %s1878, %s1900
                  %s1892 = sphi %s1881, %s1901
                $region153: #{k_sparse_autoencoder_forward.15} parent=142 // loop_header_branch
                  %1889 = sbr.rel (%p1886) target = $region157
                $region154: #{k_sparse_autoencoder_forward.15} parent=142 // loop_body
                  %v1893 = vld [vmem:[%s1891] sm:$0xff]
                  %1894 = vst [vmem:[%s1892] sm:$0xff] %v1893
                  %s1895 = sadd.s32 1, %s1890
                  %p1896 = scmp.ge.s32.totalorder %s1895, %s1874
                  %s1897 = scalar_select %p1896, 0, %s1895
                  %s1898 = smul.u32 %s1897, 8
                  %s1899 = smul.u32 %s1897, 8
                  %s1900 = scalar_lea.vmem %s1878, %s1898 [#allocation4]
                  %s1901 = scalar_lea.vmem %s1881, %s1899
                $region155: #{k_sparse_autoencoder_forward.15} parent=142 // loop_footer
                  %s1887 = sadd.s32 %s1885, 1
                $region156: #{k_sparse_autoencoder_forward.15} parent=142 // loop_footer_branch
                  %1884 = sbr.rel target = $region152
                $region157: #{k_sparse_autoencoder_forward.15} parent=142 // loop_exit
                  _
                %s1902 = sshllo.u32 0, %s1720
                loop: start=0, step=1, limit=1
                $region158: #{k_sparse_autoencoder_forward.15} parent=142 // loop_pre_header
                  _
                $region159: #{k_sparse_autoencoder_forward.15} parent=142 // loop_header
                  %s1904 = sphi 0, %s1908
                  %p1905 = scmp.ge.s32.totalorder %s1904, 1
                  %s1909 = sphi %s1722, %s1722
                  %s1910 = sphi %s1724, %s1724
                $region160: #{k_sparse_autoencoder_forward.15} parent=142 // loop_header_branch
                  %1907 = sbr.rel (%p1905) target = $region164
                $region161: #{k_sparse_autoencoder_forward.15} parent=142 // loop_body
                  %v1911 = vld [vmem:[%s1909] sm:%s1902]
                  %1912 = vst [vmem:[%s1910] sm:%s1902] %v1911
                $region162: #{k_sparse_autoencoder_forward.15} parent=142 // loop_footer
                  %s1908 = sadd.s32 1, %s1904
                $region163: #{k_sparse_autoencoder_forward.15} parent=142 // loop_footer_branch
                  %1903 = sbr.rel target = $region159
                $region164: #{k_sparse_autoencoder_forward.15} parent=142 // loop_exit
                  _
              $region143: #{k_sparse_autoencoder_forward.15} parent=109 // pred_fallthru
                _
            $region110: #{k_sparse_autoencoder_forward.15} parent=105 // pred_fallthru
              _
            // Predicated region
            $region111: #{k_sparse_autoencoder_forward.15} parent=105 // pred_check
              %p1521 = pneg %p1517
            $region112: #{k_sparse_autoencoder_forward.15} parent=105 // pred_check_branch
              %1523 = sbr.rel (%p1521) target = $region114
            $region113: #{k_sparse_autoencoder_forward.15} parent=105 // pred_region
              %s1524 = sshllo.u32 0, %s1508
              loop: start=0, step=1, limit=1
              $region115: #{k_sparse_autoencoder_forward.15} parent=113 // loop_pre_header
                _
              $region116: #{k_sparse_autoencoder_forward.15} parent=113 // loop_header
                %s1526 = sphi 0, %s1530
                %p1527 = scmp.ge.s32.totalorder %s1526, 1
                %s1531 = sphi %s1501, %s1501
                %s1532 = sphi %s1513, %s1513
              $region117: #{k_sparse_autoencoder_forward.15} parent=113 // loop_header_branch
                %1529 = sbr.rel (%p1527) target = $region121
              $region118: #{k_sparse_autoencoder_forward.15} parent=113 // loop_body
                %v1533 = vld [vmem:[%s1531] sm:%s1524]
                %1534 = vst [vmem:[%s1532] sm:%s1524] %v1533
              $region119: #{k_sparse_autoencoder_forward.15} parent=113 // loop_footer
                %s1530 = sadd.s32 1, %s1526
              $region120: #{k_sparse_autoencoder_forward.15} parent=113 // loop_footer_branch
                %1525 = sbr.rel target = $region116
              $region121: #{k_sparse_autoencoder_forward.15} parent=113 // loop_exit
                _
            $region114: #{k_sparse_autoencoder_forward.15} parent=105 // pred_fallthru
              _
          $region106: #{k_sparse_autoencoder_forward.15} parent=101 // pred_fallthru
            _
          %1913 = vnop
        $region102: #{k_sparse_autoencoder_forward.15} parent=93 // pred_fallthru
          _
      $region94: #{k_sparse_autoencoder_forward.15} parent=5 // pred_fallthru
        _
      %p1914 = scmp.le.s32.totalorder 2, %s11
      // Predicated region
      $region165: #{k_sparse_autoencoder_forward.15} parent=5 // pred_check
        %p1915 = pneg %p1914
      $region166: #{k_sparse_autoencoder_forward.15} parent=5 // pred_check_branch
        %1917 = sbr.rel (%p1915) target = $region168
      $region167: #{k_sparse_autoencoder_forward.15} parent=5 // pred_region
        %s1918 = ssub.s32 %s11, 2
        // Predicated region
        $region169: #{k_sparse_autoencoder_forward.15} parent=167 // pred_check
          %p1919 = pneg %p132
        $region170: #{k_sparse_autoencoder_forward.15} parent=167 // pred_check_branch
          %1921 = sbr.rel (%p1919) target = $region172
        $region171: #{k_sparse_autoencoder_forward.15} parent=167 // pred_region
          %s1922 = sand.u32 %s117, 1
          %s1923 = sand.u32 %s117, 1
          %s1924 = smul.addr %s1923, 7
          %s1925 = scalar_lea.vmem [#allocation4], %s1924
        $region172: #{k_sparse_autoencoder_forward.15} parent=167 // pred_fallthru
          _
      $region168: #{k_sparse_autoencoder_forward.15} parent=5 // pred_fallthru
        _
    $region6: #{k_sparse_autoencoder_forward.15} parent=1 // loop_footer
      %s15 = sadd.s32 1, %s11
    $region7: #{k_sparse_autoencoder_forward.15} parent=1 // loop_footer_branch
      %10 = sbr.rel target = $region3
    $region8: #{k_sparse_autoencoder_forward.15} parent=1 // loop_exit
      _

</llo_original>
